<compile_context>
chip_gen: v7x
topology: tpu7x:2x2x1
jax: 0.10.0
libtpu: 0.0.40
codegen_flags: <defaults>
</compile_context>

<pallas_src>
import math
import functools

import jax
import jax.numpy as jnp
from jax.experimental import pallas as pl
from jax.experimental.pallas import tpu as pltpu

LANE = 128      # K and Cout are padded to a multiple of this (lane-dense MXU feed)
TM_MAX = 256    # max row tile (rows = N*H_out*W_out); small enough for 2+ grid steps
VMEM_LIMIT = 32 * 1024 * 1024


def _round_up(x, m):
    return ((x + m - 1) // m) * m


def _row_tiling(m):
    """Row-tile size / padded rows.  >=2 grid steps whenever M > 16 (v7x 2 TCs)."""
    if m >= 2 * TM_MAX:
        tm = TM_MAX
        mp = _round_up(m, tm)
    elif m > 16:
        tm = _round_up((m + 1) // 2, 16)
        mp = 2 * tm
    else:
        tm = 16
        mp = 16
    return tm, mp


# ----------------------------- Pallas kernels ------------------------------

def _gemm_kernel(x_ref, w_ref, b_ref, o_ref, *, relu):
    """o = relu?(x @ w + b); bf16 inputs, f32 accumulate/epilogue, bf16 store."""
    y = jnp.dot(x_ref[...], w_ref[...], preferred_element_type=jnp.float32)
    y = y + b_ref[...]
    if relu:
        y = jnp.maximum(y, 0.0)
    o_ref[...] = y.astype(o_ref.dtype)


def _gemm_res_kernel(x_ref, w_ref, b_ref, r_ref, o_ref, *, relu):
    """o = relu?(x @ w + b + residual)."""
    y = jnp.dot(x_ref[...], w_ref[...], preferred_element_type=jnp.float32)
    y = y + b_ref[...] + r_ref[...].astype(jnp.float32)
    if relu:
        y = jnp.maximum(y, 0.0)
    o_ref[...] = y.astype(o_ref.dtype)


def _pool_kernel(*refs, op, inv_win):
    """Window reduction over `win` shifted (tm, C) views (sum*1/win or max)."""
    o_ref = refs[-1]
    win = len(refs) - 1
    if op == "avg":
        acc = refs[0][...].astype(jnp.float32)
        for t in range(1, win):
            acc = acc + refs[t][...].astype(jnp.float32)
        acc = acc * inv_win
    else:
        acc = refs[0][...]
        for t in range(1, win):
            acc = jnp.maximum(acc, refs[t][...])
    o_ref[...] = acc.astype(o_ref.dtype)


# ------------------------------ kernel wrappers ------------------------------

def gemm_parts(parts, weights, shift, residual=None, relu=True):
    """y[:, :Cout] = relu?(concat_K(parts) @ concat_K(weights) + shift (+ residual)).

    parts:    list of (M, K_t) bf16 activation views (concatenated along K here)
    weights:  list of (K_t, Cout) f32 arrays (BN scale already folded in); these
              are concrete constants under the jitted closure -> packed at trace time
    shift:    (Cout,) f32
    residual: optional (M, Cout), added in f32 before the ReLU
    """
    assert len(parts) == len(weights) and len(parts) >= 1
    M = parts[0].shape[0]
    cout = weights[0].shape[1]
    cp = _round_up(cout, LANE)                 # lane-dense output / full MXU width
    ksum = sum(int(w.shape[0]) for w in weights)
    kp = _round_up(ksum, LANE)                 # lane-dense activation slab / aligned W
    tm, mp = _row_tiling(M)

    x = parts[0] if len(parts) == 1 else jnp.concatenate(parts, axis=-1)
    x = jnp.pad(x.astype(jnp.bfloat16), ((0, mp - M), (0, kp - ksum)))
    w = weights[0] if len(weights) == 1 else jnp.concatenate(weights, axis=0)
    w = jnp.pad(w, ((0, kp - ksum), (0, cp - cout))).astype(jnp.bfloat16)
    b = jnp.pad(shift.reshape(1, cout).astype(jnp.float32), ((0, 0), (0, cp - cout)))

    args = [x, w, b]
    in_specs = [pl.BlockSpec((tm, kp), lambda i: (i, 0)),
                pl.BlockSpec((kp, cp), lambda i: (0, 0)),
                pl.BlockSpec((1, cp), lambda i: (0, 0))]
    if residual is not None:
        r = jnp.pad(residual.astype(jnp.bfloat16), ((0, mp - M), (0, cp - cout)))
        args.append(r)
        in_specs.append(pl.BlockSpec((tm, cp), lambda i: (i, 0)))
        kernel = functools.partial(_gemm_res_kernel, relu=relu)
    else:
        kernel = functools.partial(_gemm_kernel, relu=relu)

    out = pl.pallas_call(
        kernel,
        out_shape=jax.ShapeDtypeStruct((mp, cp), jnp.bfloat16),
        grid=(mp // tm,),
        in_specs=in_specs,
        out_specs=pl.BlockSpec((tm, cp), lambda i: (i, 0)),
        compiler_params=pltpu.CompilerParams(
            dimension_semantics=("parallel",),
            vmem_limit_bytes=VMEM_LIMIT),
    )(*args)
    return out[:M, :cout]


def conv2d_fused(x, w, scale, shift, stride=1, padding=0, dilation=1,
                 relu=True, residual=None):
    """x: (N,H,W,Cin) NHWC bf16.  w: (Cout,Cin,kh,kw) f32 (PyTorch weight layout).

    Lowered to one fused Pallas GEMM whose K axis is the (kh*kw*Cin) im2col
    concat (built from shifted views, concatenated + padded in the wrapper), BN
    scale folded into the weights, shift/residual/ReLU in the epilogue.
    """
    n, h, wd, cin = x.shape
    cout, _, kh, kw = w.shape
    hout = (h + 2 * padding - dilation * (kh - 1) - 1) // stride + 1
    wout = (wd + 2 * padding - dilation * (kw - 1) - 1) // stride + 1
    xp = jnp.pad(x, ((0, 0), (padding, padding), (padding, padding), (0, 0))) \
        if padding else x
    M = n * hout * wout
    # (kh, kw, Cin, Cout) with BN scale folded along Cout (trace-time constant).
    wt = jnp.transpose(w, (2, 3, 1, 0)) * scale[None, None, None, :]
    parts, weights = [], []
    for i in range(kh):
        for j in range(kw):
            hs, ws = i * dilation, j * dilation
            v = xp[:, hs:hs + stride * (hout - 1) + 1:stride,
                     ws:ws + stride * (wout - 1) + 1:stride, :]
            parts.append(v.reshape(M, cin))
            weights.append(wt[i, j])
    res = None if residual is None else residual.reshape(M, cout)
    out = gemm_parts(parts, weights, shift, residual=res, relu=relu)
    return out.reshape(n, hout, wout, cout)


def pool2d(x, kernel, stride, padding, op):
    """AvgPool2d (count_include_pad=True) / MaxPool2d on NHWC via a row-tiled
    Pallas reduction over kernel^2 shifted 2-D views (lane-dense, double-buffered).
    Note: the 'max' path relies on padding == 0 (always true for the DLA maxpools)."""
    assert op != "max" or padding == 0
    n, h, w, c = x.shape
    hout = (h + 2 * padding - kernel) // stride + 1
    wout = (w + 2 * padding - kernel) // stride + 1
    xp = jnp.pad(x, ((0, 0), (padding, padding), (padding, padding), (0, 0))) \
        if padding else x
    cp = _round_up(c, LANE)
    xp = jnp.pad(xp, ((0, 0), (0, 0), (0, 0), (0, cp - c)))   # lane-dense channels
    M = n * hout * wout
    tm, mp = _row_tiling(M)
    parts = []
    for i in range(kernel):
        for j in range(kernel):
            v = xp[:, i:i + stride * (hout - 1) + 1:stride,
                     j:j + stride * (wout - 1) + 1:stride, :]
            parts.append(jnp.pad(v.reshape(M, cp), ((0, mp - M), (0, 0))))
    out = pl.pallas_call(
        functools.partial(_pool_kernel, op=op, inv_win=1.0 / (kernel * kernel)),
        out_shape=jax.ShapeDtypeStruct((mp, cp), x.dtype),
        grid=(mp // tm,),
        in_specs=[pl.BlockSpec((tm, cp), lambda i: (i, 0)) for _ in parts],
        out_specs=pl.BlockSpec((tm, cp), lambda i: (i, 0)),
        compiler_params=pltpu.CompilerParams(
            dimension_semantics=("parallel",),
            vmem_limit_bytes=VMEM_LIMIT),
    )(*parts)
    return out[:M, :c].reshape(n, hout, wout, c)


# ---------------------------- parameter builders ----------------------------

class KeyGen:
    def __init__(self, seed=0):
        self._key = jax.random.PRNGKey(seed)

    def __call__(self):
        self._key, sub = jax.random.split(self._key)
        return sub


def conv_p(kg, cin, cout, k):
    # PyTorch DLA init: normal(0, sqrt(2 / (k*k*cout)))
    n = k * k * cout
    return jax.random.normal(kg(), (cout, cin, k, k), jnp.float32) * math.sqrt(2.0 / n)


def bn_p(c, eps=1e-5):
    # inference-mode BN folded to per-channel (scale, shift):
    #   weight=1, bias=0, running_mean=0, running_var=1
    scale = jnp.full((c,), 1.0 / math.sqrt(1.0 + eps), jnp.float32)
    shift = jnp.zeros((c,), jnp.float32)
    return scale, shift


def make_bottle2neck(kg, inplanes, planes, stride=1, dilation=1, baseWidth=28, scale=4):
    width = int(math.floor(planes * (baseWidth / 128.0)))
    nums = 1 if scale == 1 else scale - 1
    return {
        "stride": stride, "dilation": dilation, "scale": scale,
        "width": width, "nums": nums,
        "stype": "stage" if stride != 1 else "normal",
        "conv1": conv_p(kg, inplanes, width * scale, 1), "bn1": bn_p(width * scale),
        "convs": [conv_p(kg, width, width, 3) for _ in range(nums)],
        "bns": [bn_p(width) for _ in range(nums)],
        "conv3": conv_p(kg, width * scale, planes, 1), "bn3": bn_p(planes),
    }


def make_root(kg, in_channels, out_channels, kernel_size, residual):
    return {"conv": conv_p(kg, in_channels, out_channels, 1),
            "bn": bn_p(out_channels),
            "pad": (kernel_size - 1) // 2,
            "residual": residual}


def make_tree(kg, levels, in_channels, out_channels, stride=1, level_root=False,
              root_dim=0, root_kernel_size=1, dilation=1, root_residual=False):
    if root_dim == 0:
        root_dim = 2 * out_channels
    if level_root:
        root_dim += in_channels
    p = {"levels": levels, "level_root": level_root, "stride": stride}
    if levels == 1:
        p["tree1"] = make_bottle2neck(kg, in_channels, out_channels, stride, dilation)
        p["tree2"] = make_bottle2neck(kg, out_channels, out_channels, 1, dilation)
        p["root"] = make_root(kg, root_dim, out_channels, root_kernel_size, root_residual)
    else:
        p["tree1"] = make_tree(kg, levels - 1, in_channels, out_channels, stride,
                               root_dim=0, root_kernel_size=root_kernel_size,
                               dilation=dilation, root_residual=root_residual)
        p["tree2"] = make_tree(kg, levels - 1, out_channels, out_channels,
                               root_dim=root_dim + out_channels,
                               root_kernel_size=root_kernel_size,
                               dilation=dilation, root_residual=root_residual)
    p["downsample"] = stride > 1
    if in_channels != out_channels:
        p["project"] = {"conv": conv_p(kg, in_channels, out_channels, 1),
                        "bn": bn_p(out_channels)}
    else:
        p["project"] = None
    return p


def make_conv_level(kg, inplanes, planes, convs, stride=1, dilation=1):
    mods = []
    for i in range(convs):
        mods.append({"conv": conv_p(kg, inplanes, planes, 3), "bn": bn_p(planes),
                     "stride": stride if i == 0 else 1, "dilation": dilation})
        inplanes = planes
    return mods


def make_dla(kg, levels, channels, num_classes):
    p = {}
    p["base"] = {"conv": conv_p(kg, 3, channels[0], 7), "bn": bn_p(channels[0])}
    p["level0"] = make_conv_level(kg, channels[0], channels[0], levels[0])
    p["level1"] = make_conv_level(kg, channels[0], channels[1], levels[1], stride=2)
    p["level2"] = make_tree(kg, levels[2], channels[1], channels[2], 1, level_root=False)
    p["level3"] = make_tree(kg, levels[3], channels[2], channels[3], 2, level_root=True)
    p["level4"] = make_tree(kg, levels[4], channels[3], channels[4], 2, level_root=True)
    p["level5"] = make_tree(kg, levels[5], channels[4], channels[5], 2, level_root=True)
    fc_w = conv_p(kg, channels[-1], num_classes, 1)
    bound = 1.0 / math.sqrt(channels[-1])
    fc_b = jax.random.uniform(kg(), (num_classes,), jnp.float32, -bound, bound)
    p["fc"] = (fc_w, fc_b)
    return p


# ------------------------------- forward pass -------------------------------

def bottle2neck_fwd(p, x, residual=None):
    if residual is None:
        residual = x
    width, scale_ = p["width"], p["scale"]
    stride, dil, nums = p["stride"], p["dilation"], p["nums"]

    s1, b1 = p["bn1"]
    out = conv2d_fused(x, p["conv1"], s1, b1, 1, 0, 1, relu=True)

    # conv3 (1x1) consumes the channel-concat of the branch outputs (+ last chunk)
    # plus bn3 + residual + relu -- all fused into a single multi-part GEMM below.
    s3, b3 = p["bn3"]
    wt3 = jnp.transpose(p["conv3"][:, :, 0, 0], (1, 0)) * s3[None, :]  # (w*scale, planes)

    parts, weights = [], []
    if p["stype"] == "stage":
        # Batch the `nums` independent branch 3x3 convs into one block-diagonal conv.
        xin = out[..., :nums * width]
        wbd = jnp.zeros((nums * width, nums * width, 3, 3), jnp.float32)
        for i in range(nums):
            wbd = wbd.at[i * width:(i + 1) * width,
                         i * width:(i + 1) * width].set(p["convs"][i])
        sbd = jnp.concatenate([p["bns"][i][0] for i in range(nums)])
        bbd = jnp.concatenate([p["bns"][i][1] for i in range(nums)])
        branch = conv2d_fused(xin, wbd, sbd, bbd, stride, dil, dil, relu=True)
        n2, h2, w2 = branch.shape[:3]
        M2 = n2 * h2 * w2
        parts.append(branch.reshape(M2, nums * width))
        weights.append(wt3[:nums * width, :])
        if scale_ != 1:
            # AvgPool2d(3, stride, pad=1, count_include_pad) of the last chunk,
            # folded into the conv3 GEMM by linearity: 9 shifted views @ (W/9).
            last = out[..., nums * width:scale_ * width]
            lp = jnp.pad(last, ((0, 0), (1, 1), (1, 1), (0, 0)))
            w_last = wt3[nums * width:scale_ * width, :] * (1.0 / 9.0)
            for i in range(3):
                for j in range(3):
                    v = lp[:, i:i + stride * (h2 - 1) + 1:stride,
                             j:j + stride * (w2 - 1) + 1:stride, :]
                    parts.append(v.reshape(M2, width))
                    weights.append(w_last)
    else:
        # 'normal' stype: the branch convs are sequentially dependent
        # (sp = conv(sp_prev + spx[i])), so they cannot be batched.
        spx = [out[..., i * width:(i + 1) * width] for i in range(scale_)]
        sp = None
        n2 = h2 = w2 = None
        for i in range(nums):
            inp = spx[i] if i == 0 else sp + spx[i]
            si, bi = p["bns"][i]
            sp = conv2d_fused(inp, p["convs"][i], si, bi, stride, dil, dil, relu=True)
            n2, h2, w2 = sp.shape[:3]
            parts.append(sp.reshape(n2 * h2 * w2, width))
            weights.append(wt3[i * width:(i + 1) * width, :])
        if scale_ != 1:
            parts.append(spx[nums].reshape(n2 * h2 * w2, width))
            weights.append(wt3[nums * width:scale_ * width, :])

    M2 = n2 * h2 * w2
    res2 = residual.reshape(M2, residual.shape[-1])
    y = gemm_parts(parts, weights, b3, residual=res2, relu=True)
    return y.reshape(n2, h2, w2, -1)


def root_fwd(p, *xs):
    # channel concat + 1x1 conv + BN (+ residual) + ReLU, fused into one GEMM.
    # TODO(synk): root padding>0 (root_kernel_size>1) is not supported by the fused
    #             concat GEMM; it is always 0 in this architecture.
    s, b = p["bn"]
    n, h, w = xs[0].shape[:3]
    M = n * h * w
    wt = jnp.transpose(p["conv"][:, :, 0, 0], (1, 0)) * s[None, :]
    parts, weights = [], []
    off = 0
    for xi in xs:
        c = xi.shape[-1]
        parts.append(xi.reshape(M, c))
        weights.append(wt[off:off + c, :])
        off += c
    res = xs[0].reshape(M, -1) if p["residual"] else None
    y = gemm_parts(parts, weights, b, residual=res, relu=True)
    return y.reshape(n, h, w, -1)


def tree_fwd(p, x, residual=None, children=None):
    children = [] if children is None else children
    bottom = pool2d(x, p["stride"], p["stride"], 0, "max") if p["downsample"] else x
    if p["project"] is not None:
        s, b = p["project"]["bn"]
        residual = conv2d_fused(bottom, p["project"]["conv"], s, b, 1, 0, 1, relu=False)
    else:
        residual = bottom
    if p["level_root"]:
        children.append(bottom)
    if p["levels"] == 1:
        x1 = bottle2neck_fwd(p["tree1"], x, residual)
        x2 = bottle2neck_fwd(p["tree2"], x1)
        out = root_fwd(p["root"], x2, x1, *children)
    else:
        x1 = tree_fwd(p["tree1"], x, residual)
        children.append(x1)
        out = tree_fwd(p["tree2"], x1, children=children)
    return out


def conv_level_fwd(mods, x):
    for m in mods:
        s, b = m["bn"]
        x = conv2d_fused(x, m["conv"], s, b, m["stride"], m["dilation"], m["dilation"],
                         relu=True)
    return x


def avgpool_fc_fused(x, fc_w, fc_b, pool_size):
    """AvgPool2d(pool_size) folded into the fc 1x1 conv by linearity:
    pool_size^2 shifted views with weight W/pool_size^2, plus the fc bias."""
    n, h, w, c = x.shape
    hout = (h - pool_size) // pool_size + 1
    wout = (w - pool_size) // pool_size + 1
    M = n * hout * wout
    wt = jnp.transpose(fc_w[:, :, 0, 0], (1, 0)).astype(jnp.float32)  # (c, classes)
    inv = 1.0 / (pool_size * pool_size)
    parts, weights = [], []
    for i in range(pool_size):
        for j in range(pool_size):
            v = x[:, i:i + pool_size * (hout - 1) + 1:pool_size,
                    j:j + pool_size * (wout - 1) + 1:pool_size, :]
            parts.append(v.reshape(M, c))
            weights.append(wt * inv)
    y = gemm_parts(parts, weights, fc_b, relu=False)
    return y.reshape(n, hout, wout, -1)


def dla_fwd(params, x_nchw, pool_size):
    x = jnp.transpose(x_nchw, (0, 2, 3, 1)).astype(jnp.bfloat16)  # NCHW -> NHWC, bf16
    sb, bb = params["base"]["bn"]
    x = conv2d_fused(x, params["base"]["conv"], sb, bb, 1, 3, 1, relu=True)
    x = conv_level_fwd(params["level0"], x)
    x = conv_level_fwd(params["level1"], x)
    x = tree_fwd(params["level2"], x)
    x = tree_fwd(params["level3"], x)
    x = tree_fwd(params["level4"], x)
    x = tree_fwd(params["level5"], x)
    fc_w, fc_b = params["fc"]
    x = avgpool_fc_fused(x, fc_w, fc_b, pool_size)   # avgpool + fc, one GEMM
    x = jnp.transpose(x, (0, 3, 1, 2)).astype(jnp.float32)  # back to NCHW, f32 out
    return x.reshape(x.shape[0], -1)


# ----------------------------------- main -----------------------------------

if __name__ == "__main__":
    # Small DLA config (Bottle2neck blocks, baseWidth=28, scale=4)
    levels = [1, 1, 1, 1, 1, 1]
    channels = [8, 16, 32, 32, 64, 64]
    num_classes = 10
    pool_size = 2  # input 32x32 is downsampled 16x -> 2x2 before the avg pool

    kg = KeyGen(0)
    params = make_dla(kg, levels, channels, num_classes)

    x = jax.random.normal(jax.random.PRNGKey(0), (2, 3, 32, 32), jnp.float32)

    # Params are closed over (not jit arguments): the pytree contains Python
    # metadata (strings/ints), and closing over the concrete weight arrays makes
    # all weight packing (BN fold / transpose / pad / bf16 cast) trace-time work.
    fwd = jax.jit(lambda inp: dla_fwd(params, inp, pool_size))
    out = jax.block_until_ready(fwd(x))

    assert out.shape == (2, num_classes), out.shape
    assert jnp.all(jnp.isfinite(out))
    print("KERNEL_OK")
</pallas_src>

<mosaic_0001>
module attributes {stable_mosaic.version = 11 : i64} {
  func.func @_gemm_kernel(%arg0: i32, %arg1: memref<256x256xbf16, #tpu.memory_space<vmem>>, %arg2: memref<256x128xbf16, #tpu.memory_space<vmem>>, %arg3: memref<1x128xf32, #tpu.memory_space<vmem>>, %arg4: memref<256x128xbf16, #tpu.memory_space<vmem>>) attributes {dimension_semantics = [#tpu.dimension_semantics<parallel>], iteration_bounds = array<i64: 8>, scalar_prefetch = 0 : i64, scratch_operands = 0 : i64, tpu.core_type = #tpu.core_type<tc>, window_params = [{transform_indices = @transform_0, window_bounds = array<i64: 256, 256>}, {pipeline_mode = #tpu.pipeline_mode<synchronous>, transform_indices = @transform_1, window_bounds = array<i64: 256, 128>}, {pipeline_mode = #tpu.pipeline_mode<synchronous>, transform_indices = @transform_2, window_bounds = array<i64: 1, 128>}, {transform_indices = @transform_3, window_bounds = array<i64: 256, 128>}]} {
    %c0 = arith.constant 0 : index
    %c0_0 = arith.constant 0 : index
    %0 = vector.load %arg1[%c0, %c0_0] : memref<256x256xbf16, #tpu.memory_space<vmem>>, vector<256x256xbf16>
    %c0_1 = arith.constant 0 : index
    %c0_2 = arith.constant 0 : index
    %1 = vector.load %arg2[%c0_1, %c0_2] : memref<256x128xbf16, #tpu.memory_space<vmem>>, vector<256x128xbf16>
    %cst = arith.constant dense<0.000000e+00> : vector<256x128xf32>
    %2 = tpu.matmul %0, %1, %cst {dimension_numbers = #tpu.dot_dimension_numbers<[1], [0], [0], [1], [0, 0, 1, 1], [], []>} : vector<256x256xbf16>, vector<256x128xbf16>, vector<256x128xf32> -> vector<256x128xf32>
    %c0_3 = arith.constant 0 : index
    %c0_4 = arith.constant 0 : index
    %3 = vector.load %arg3[%c0_3, %c0_4] : memref<1x128xf32, #tpu.memory_space<vmem>>, vector<1x128xf32>
    %4 = vector.broadcast %3 : vector<1x128xf32> to vector<256x128xf32>
    %5 = arith.addf %2, %4 : vector<256x128xf32>
    %cst_5 = arith.constant 0.000000e+00 : f32
    %6 = vector.broadcast %cst_5 : f32 to vector<256x128xf32>
    %7 = arith.maximumf %5, %6 : vector<256x128xf32>
    %8 = arith.truncf %7 : vector<256x128xf32> to vector<256x128xbf16>
    %c0_6 = arith.constant 0 : index
    %c0_7 = arith.constant 0 : index
    %9 = vector.load %arg4[%c0_6, %c0_7] : memref<256x128xbf16, #tpu.memory_space<vmem>>, vector<256x128xbf16>
    tpu.vector_store %arg4[%c0_6, %c0_7], %8 {strides = array<i32>} : memref<256x128xbf16, #tpu.memory_space<vmem>>, vector<256x128xbf16>,
    return
  }
  func.func @transform_0(%arg0: i32) -> (i32, i32) {
    %c0_i32 = arith.constant 0 : i32
    %c0_i32_0 = arith.constant 0 : i32
    return %arg0, %c0_i32 : i32, i32
  }
  func.func @transform_1(%arg0: i32) -> (i32, i32) {
    %c0_i32 = arith.constant 0 : i32
    %c0_i32_0 = arith.constant 0 : i32
    %c0_i32_1 = arith.constant 0 : i32
    return %c0_i32, %c0_i32_0 : i32, i32
  }
  func.func @transform_2(%arg0: i32) -> (i32, i32) {
    %c0_i32 = arith.constant 0 : i32
    %c0_i32_0 = arith.constant 0 : i32
    %c0_i32_1 = arith.constant 0 : i32
    return %c0_i32, %c0_i32_0 : i32, i32
  }
  func.func @transform_3(%arg0: i32) -> (i32, i32) {
    %c0_i32 = arith.constant 0 : i32
    %c0_i32_0 = arith.constant 0 : i32
    return %arg0, %c0_i32 : i32, i32
  }
}

module attributes {stable_mosaic.version = 11 : i64} {
  func.func @_gemm_kernel(%arg0: i32, %arg1: memref<256x128xbf16, #tpu.memory_space<vmem>>, %arg2: memref<128x128xbf16, #tpu.memory_space<vmem>>, %arg3: memref<1x128xf32, #tpu.memory_space<vmem>>, %arg4: memref<256x128xbf16, #tpu.memory_space<vmem>>) attributes {dimension_semantics = [#tpu.dimension_semantics<parallel>], iteration_bounds = array<i64: 8>, scalar_prefetch = 0 : i64, scratch_operands = 0 : i64, tpu.core_type = #tpu.core_type<tc>, window_params = [{transform_indices = @transform_0, window_bounds = array<i64: 256, 128>}, {pipeline_mode = #tpu.pipeline_mode<synchronous>, transform_indices = @transform_1, window_bounds = array<i64: 128, 128>}, {pipeline_mode = #tpu.pipeline_mode<synchronous>, transform_indices = @transform_2, window_bounds = array<i64: 1, 128>}, {transform_indices = @transform_3, window_bounds = array<i64: 256, 128>}]} {
    %c0 = arith.constant 0 : index
    %c0_0 = arith.constant 0 : index
    %0 = vector.load %arg1[%c0, %c0_0] : memref<256x128xbf16, #tpu.memory_space<vmem>>, vector<256x128xbf16>
    %c0_1 = arith.constant 0 : index
    %c0_2 = arith.constant 0 : index
    %1 = vector.load %arg2[%c0_1, %c0_2] : memref<128x128xbf16, #tpu.memory_space<vmem>>, vector<128x128xbf16>
    %cst = arith.constant dense<0.000000e+00> : vector<256x128xf32>
    %2 = tpu.matmul %0, %1, %cst {dimension_numbers = #tpu.dot_dimension_numbers<[1], [0], [0], [1], [0, 0, 1, 1], [], []>} : vector<256x128xbf16>, vector<128x128xbf16>, vector<256x128xf32> -> vector<256x128xf32>
    %c0_3 = arith.constant 0 : index
    %c0_4 = arith.constant 0 : index
    %3 = vector.load %arg3[%c0_3, %c0_4] : memref<1x128xf32, #tpu.memory_space<vmem>>, vector<1x128xf32>
    %4 = vector.broadcast %3 : vector<1x128xf32> to vector<256x128xf32>
    %5 = arith.addf %2, %4 : vector<256x128xf32>
    %cst_5 = arith.constant 0.000000e+00 : f32
    %6 = vector.broadcast %cst_5 : f32 to vector<256x128xf32>
    %7 = arith.maximumf %5, %6 : vector<256x128xf32>
    %8 = arith.truncf %7 : vector<256x128xf32> to vector<256x128xbf16>
    %c0_6 = arith.constant 0 : index
    %c0_7 = arith.constant 0 : index
    %9 = vector.load %arg4[%c0_6, %c0_7] : memref<256x128xbf16, #tpu.memory_space<vmem>>, vector<256x128xbf16>
    tpu.vector_store %arg4[%c0_6, %c0_7], %8 {strides = array<i32>} : memref<256x128xbf16, #tpu.memory_space<vmem>>, vector<256x128xbf16>,
    return
  }
  func.func @transform_0(%arg0: i32) -> (i32, i32) {
    %c0_i32 = arith.constant 0 : i32
    %c0_i32_0 = arith.constant 0 : i32
    return %arg0, %c0_i32 : i32, i32
  }
  func.func @transform_1(%arg0: i32) -> (i32, i32) {
    %c0_i32 = arith.constant 0 : i32
    %c0_i32_0 = arith.constant 0 : i32
    %c0_i32_1 = arith.constant 0 : i32
    return %c0_i32, %c0_i32_0 : i32, i32
  }
  func.func @transform_2(%arg0: i32) -> (i32, i32) {
    %c0_i32 = arith.constant 0 : i32
    %c0_i32_0 = arith.constant 0 : i32
    %c0_i32_1 = arith.constant 0 : i32
    return %c0_i32, %c0_i32_0 : i32, i32
  }
  func.func @transform_3(%arg0: i32) -> (i32, i32) {
    %c0_i32 = arith.constant 0 : i32
    %c0_i32_0 = arith.constant 0 : i32
    return %arg0, %c0_i32 : i32, i32
  }
}

module attributes {stable_mosaic.version = 11 : i64} {
  func.func @_gemm_kernel(%arg0: i32, %arg1: memref<256x128xbf16, #tpu.memory_space<vmem>>, %arg2: memref<128x128xbf16, #tpu.memory_space<vmem>>, %arg3: memref<1x128xf32, #tpu.memory_space<vmem>>, %arg4: memref<256x128xbf16, #tpu.memory_space<vmem>>) attributes {dimension_semantics = [#tpu.dimension_semantics<parallel>], iteration_bounds = array<i64: 2>, scalar_prefetch = 0 : i64, scratch_operands = 0 : i64, tpu.core_type = #tpu.core_type<tc>, window_params = [{transform_indices = @transform_0, window_bounds = array<i64: 256, 128>}, {pipeline_mode = #tpu.pipeline_mode<synchronous>, transform_indices = @transform_1, window_bounds = array<i64: 128, 128>}, {pipeline_mode = #tpu.pipeline_mode<synchronous>, transform_indices = @transform_2, window_bounds = array<i64: 1, 128>}, {transform_indices = @transform_3, window_bounds = array<i64: 256, 128>}]} {
    %c0 = arith.constant 0 : index
    %c0_0 = arith.constant 0 : index
    %0 = vector.load %arg1[%c0, %c0_0] : memref<256x128xbf16, #tpu.memory_space<vmem>>, vector<256x128xbf16>
    %c0_1 = arith.constant 0 : index
    %c0_2 = arith.constant 0 : index
    %1 = vector.load %arg2[%c0_1, %c0_2] : memref<128x128xbf16, #tpu.memory_space<vmem>>, vector<128x128xbf16>
    %cst = arith.constant dense<0.000000e+00> : vector<256x128xf32>
    %2 = tpu.matmul %0, %1, %cst {dimension_numbers = #tpu.dot_dimension_numbers<[1], [0], [0], [1], [0, 0, 1, 1], [], []>} : vector<256x128xbf16>, vector<128x128xbf16>, vector<256x128xf32> -> vector<256x128xf32>
    %c0_3 = arith.constant 0 : index
    %c0_4 = arith.constant 0 : index
    %3 = vector.load %arg3[%c0_3, %c0_4] : memref<1x128xf32, #tpu.memory_space<vmem>>, vector<1x128xf32>
    %4 = vector.broadcast %3 : vector<1x128xf32> to vector<256x128xf32>
    %5 = arith.addf %2, %4 : vector<256x128xf32>
    %cst_5 = arith.constant 0.000000e+00 : f32
    %6 = vector.broadcast %cst_5 : f32 to vector<256x128xf32>
    %7 = arith.maximumf %5, %6 : vector<256x128xf32>
    %8 = arith.truncf %7 : vector<256x128xf32> to vector<256x128xbf16>
    %c0_6 = arith.constant 0 : index
    %c0_7 = arith.constant 0 : index
    %9 = vector.load %arg4[%c0_6, %c0_7] : memref<256x128xbf16, #tpu.memory_space<vmem>>, vector<256x128xbf16>
    tpu.vector_store %arg4[%c0_6, %c0_7], %8 {strides = array<i32>} : memref<256x128xbf16, #tpu.memory_space<vmem>>, vector<256x128xbf16>,
    return
  }
  func.func @transform_0(%arg0: i32) -> (i32, i32) {
    %c0_i32 = arith.constant 0 : i32
    %c0_i32_0 = arith.constant 0 : i32
    return %arg0, %c0_i32 : i32, i32
  }
  func.func @transform_1(%arg0: i32) -> (i32, i32) {
    %c0_i32 = arith.constant 0 : i32
    %c0_i32_0 = arith.constant 0 : i32
    %c0_i32_1 = arith.constant 0 : i32
    return %c0_i32, %c0_i32_0 : i32, i32
  }
  func.func @transform_2(%arg0: i32) -> (i32, i32) {
    %c0_i32 = arith.constant 0 : i32
    %c0_i32_0 = arith.constant 0 : i32
    %c0_i32_1 = arith.constant 0 : i32
    return %c0_i32, %c0_i32_0 : i32, i32
  }
  func.func @transform_3(%arg0: i32) -> (i32, i32) {
    %c0_i32 = arith.constant 0 : i32
    %c0_i32_0 = arith.constant 0 : i32
    return %arg0, %c0_i32 : i32, i32
  }
}

module attributes {stable_mosaic.version = 11 : i64} {
  func.func @_gemm_kernel(%arg0: i32, %arg1: memref<256x128xbf16, #tpu.memory_space<vmem>>, %arg2: memref<128x128xbf16, #tpu.memory_space<vmem>>, %arg3: memref<1x128xf32, #tpu.memory_space<vmem>>, %arg4: memref<256x128xbf16, #tpu.memory_space<vmem>>) attributes {dimension_semantics = [#tpu.dimension_semantics<parallel>], iteration_bounds = array<i64: 2>, scalar_prefetch = 0 : i64, scratch_operands = 0 : i64, tpu.core_type = #tpu.core_type<tc>, window_params = [{transform_indices = @transform_0, window_bounds = array<i64: 256, 128>}, {pipeline_mode = #tpu.pipeline_mode<synchronous>, transform_indices = @transform_1, window_bounds = array<i64: 128, 128>}, {pipeline_mode = #tpu.pipeline_mode<synchronous>, transform_indices = @transform_2, window_bounds = array<i64: 1, 128>}, {transform_indices = @transform_3, window_bounds = array<i64: 256, 128>}]} {
    %c0 = arith.constant 0 : index
    %c0_0 = arith.constant 0 : index
    %0 = vector.load %arg1[%c0, %c0_0] : memref<256x128xbf16, #tpu.memory_space<vmem>>, vector<256x128xbf16>
    %c0_1 = arith.constant 0 : index
    %c0_2 = arith.constant 0 : index
    %1 = vector.load %arg2[%c0_1, %c0_2] : memref<128x128xbf16, #tpu.memory_space<vmem>>, vector<128x128xbf16>
    %cst = arith.constant dense<0.000000e+00> : vector<256x128xf32>
    %2 = tpu.matmul %0, %1, %cst {dimension_numbers = #tpu.dot_dimension_numbers<[1], [0], [0], [1], [0, 0, 1, 1], [], []>} : vector<256x128xbf16>, vector<128x128xbf16>, vector<256x128xf32> -> vector<256x128xf32>
    %c0_3 = arith.constant 0 : index
    %c0_4 = arith.constant 0 : index
    %3 = vector.load %arg3[%c0_3, %c0_4] : memref<1x128xf32, #tpu.memory_space<vmem>>, vector<1x128xf32>
    %4 = vector.broadcast %3 : vector<1x128xf32> to vector<256x128xf32>
    %5 = arith.addf %2, %4 : vector<256x128xf32>
    %6 = arith.truncf %5 : vector<256x128xf32> to vector<256x128xbf16>
    %c0_5 = arith.constant 0 : index
    %c0_6 = arith.constant 0 : index
    %7 = vector.load %arg4[%c0_5, %c0_6] : memref<256x128xbf16, #tpu.memory_space<vmem>>, vector<256x128xbf16>
    tpu.vector_store %arg4[%c0_5, %c0_6], %6 {strides = array<i32>} : memref<256x128xbf16, #tpu.memory_space<vmem>>, vector<256x128xbf16>,
    return
  }
  func.func @transform_0(%arg0: i32) -> (i32, i32) {
    %c0_i32 = arith.constant 0 : i32
    %c0_i32_0 = arith.constant 0 : i32
    return %arg0, %c0_i32 : i32, i32
  }
  func.func @transform_1(%arg0: i32) -> (i32, i32) {
    %c0_i32 = arith.constant 0 : i32
    %c0_i32_0 = arith.constant 0 : i32
    %c0_i32_1 = arith.constant 0 : i32
    return %c0_i32, %c0_i32_0 : i32, i32
  }
  func.func @transform_2(%arg0: i32) -> (i32, i32) {
    %c0_i32 = arith.constant 0 : i32
    %c0_i32_0 = arith.constant 0 : i32
    %c0_i32_1 = arith.constant 0 : i32
    return %c0_i32, %c0_i32_0 : i32, i32
  }
  func.func @transform_3(%arg0: i32) -> (i32, i32) {
    %c0_i32 = arith.constant 0 : i32
    %c0_i32_0 = arith.constant 0 : i32
    return %arg0, %c0_i32 : i32, i32
  }
}

module attributes {stable_mosaic.version = 11 : i64} {
  func.func @_gemm_res_kernel(%arg0: i32, %arg1: memref<256x128xbf16, #tpu.memory_space<vmem>>, %arg2: memref<128x128xbf16, #tpu.memory_space<vmem>>, %arg3: memref<1x128xf32, #tpu.memory_space<vmem>>, %arg4: memref<256x128xbf16, #tpu.memory_space<vmem>>, %arg5: memref<256x128xbf16, #tpu.memory_space<vmem>>) attributes {dimension_semantics = [#tpu.dimension_semantics<parallel>], iteration_bounds = array<i64: 2>, scalar_prefetch = 0 : i64, scratch_operands = 0 : i64, tpu.core_type = #tpu.core_type<tc>, window_params = [{transform_indices = @transform_0, window_bounds = array<i64: 256, 128>}, {pipeline_mode = #tpu.pipeline_mode<synchronous>, transform_indices = @transform_1, window_bounds = array<i64: 128, 128>}, {pipeline_mode = #tpu.pipeline_mode<synchronous>, transform_indices = @transform_2, window_bounds = array<i64: 1, 128>}, {transform_indices = @transform_3, window_bounds = array<i64: 256, 128>}, {transform_indices = @transform_4, window_bounds = array<i64: 256, 128>}]} {
    %c0 = arith.constant 0 : index
    %c0_0 = arith.constant 0 : index
    %0 = vector.load %arg1[%c0, %c0_0] : memref<256x128xbf16, #tpu.memory_space<vmem>>, vector<256x128xbf16>
    %c0_1 = arith.constant 0 : index
    %c0_2 = arith.constant 0 : index
    %1 = vector.load %arg2[%c0_1, %c0_2] : memref<128x128xbf16, #tpu.memory_space<vmem>>, vector<128x128xbf16>
    %cst = arith.constant dense<0.000000e+00> : vector<256x128xf32>
    %2 = tpu.matmul %0, %1, %cst {dimension_numbers = #tpu.dot_dimension_numbers<[1], [0], [0], [1], [0, 0, 1, 1], [], []>} : vector<256x128xbf16>, vector<128x128xbf16>, vector<256x128xf32> -> vector<256x128xf32>
    %c0_3 = arith.constant 0 : index
    %c0_4 = arith.constant 0 : index
    %3 = vector.load %arg3[%c0_3, %c0_4] : memref<1x128xf32, #tpu.memory_space<vmem>>, vector<1x128xf32>
    %4 = vector.broadcast %3 : vector<1x128xf32> to vector<256x128xf32>
    %5 = arith.addf %2, %4 : vector<256x128xf32>
    %c0_5 = arith.constant 0 : index
    %c0_6 = arith.constant 0 : index
    %6 = vector.load %arg4[%c0_5, %c0_6] : memref<256x128xbf16, #tpu.memory_space<vmem>>, vector<256x128xbf16>
    %7 = arith.extf %6 : vector<256x128xbf16> to vector<256x128xf32>
    %8 = arith.addf %5, %7 : vector<256x128xf32>
    %cst_7 = arith.constant 0.000000e+00 : f32
    %9 = vector.broadcast %cst_7 : f32 to vector<256x128xf32>
    %10 = arith.maximumf %8, %9 : vector<256x128xf32>
    %11 = arith.truncf %10 : vector<256x128xf32> to vector<256x128xbf16>
    %c0_8 = arith.constant 0 : index
    %c0_9 = arith.constant 0 : index
    %12 = vector.load %arg5[%c0_8, %c0_9] : memref<256x128xbf16, #tpu.memory_space<vmem>>, vector<256x128xbf16>
    tpu.vector_store %arg5[%c0_8, %c0_9], %11 {strides = array<i32>} : memref<256x128xbf16, #tpu.memory_space<vmem>>, vector<256x128xbf16>,
    return
  }
  func.func @transform_0(%arg0: i32) -> (i32, i32) {
    %c0_i32 = arith.constant 0 : i32
    %c0_i32_0 = arith.constant 0 : i32
    return %arg0, %c0_i32 : i32, i32
  }
  func.func @transform_1(%arg0: i32) -> (i32, i32) {
    %c0_i32 = arith.constant 0 : i32
    %c0_i32_0 = arith.constant 0 : i32
    %c0_i32_1 = arith.constant 0 : i32
    return %c0_i32, %c0_i32_0 : i32, i32
  }
  func.func @transform_2(%arg0: i32) -> (i32, i32) {
    %c0_i32 = arith.constant 0 : i32
    %c0_i32_0 = arith.constant 0 : i32
    %c0_i32_1 = arith.constant 0 : i32
    return %c0_i32, %c0_i32_0 : i32, i32
  }
  func.func @transform_3(%arg0: i32) -> (i32, i32) {
    %c0_i32 = arith.constant 0 : i32
    %c0_i32_0 = arith.constant 0 : i32
    return %arg0, %c0_i32 : i32, i32
  }
  func.func @transform_4(%arg0: i32) -> (i32, i32) {
    %c0_i32 = arith.constant 0 : i32
    %c0_i32_0 = arith.constant 0 : i32
    return %arg0, %c0_i32 : i32, i32
  }
}

module attributes {stable_mosaic.version = 11 : i64} {
  func.func @_gemm_kernel(%arg0: i32, %arg1: memref<64x256xbf16, #tpu.memory_space<vmem>>, %arg2: memref<256x128xbf16, #tpu.memory_space<vmem>>, %arg3: memref<1x128xf32, #tpu.memory_space<vmem>>, %arg4: memref<64x128xbf16, #tpu.memory_space<vmem>>) attributes {dimension_semantics = [#tpu.dimension_semantics<parallel>], iteration_bounds = array<i64: 2>, scalar_prefetch = 0 : i64, scratch_operands = 0 : i64, tpu.core_type = #tpu.core_type<tc>, window_params = [{transform_indices = @transform_0, window_bounds = array<i64: 64, 256>}, {pipeline_mode = #tpu.pipeline_mode<synchronous>, transform_indices = @transform_1, window_bounds = array<i64: 256, 128>}, {pipeline_mode = #tpu.pipeline_mode<synchronous>, transform_indices = @transform_2, window_bounds = array<i64: 1, 128>}, {transform_indices = @transform_3, window_bounds = array<i64: 64, 128>}]} {
    %c0 = arith.constant 0 : index
    %c0_0 = arith.constant 0 : index
    %0 = vector.load %arg1[%c0, %c0_0] : memref<64x256xbf16, #tpu.memory_space<vmem>>, vector<64x256xbf16>
    %c0_1 = arith.constant 0 : index
    %c0_2 = arith.constant 0 : index
    %1 = vector.load %arg2[%c0_1, %c0_2] : memref<256x128xbf16, #tpu.memory_space<vmem>>, vector<256x128xbf16>
    %cst = arith.constant dense<0.000000e+00> : vector<64x128xf32>
    %2 = tpu.matmul %0, %1, %cst {dimension_numbers = #tpu.dot_dimension_numbers<[1], [0], [0], [1], [0, 0, 1, 1], [], []>} : vector<64x256xbf16>, vector<256x128xbf16>, vector<64x128xf32> -> vector<64x128xf32>
    %c0_3 = arith.constant 0 : index
    %c0_4 = arith.constant 0 : index
    %3 = vector.load %arg3[%c0_3, %c0_4] : memref<1x128xf32, #tpu.memory_space<vmem>>, vector<1x128xf32>
    %4 = vector.broadcast %3 : vector<1x128xf32> to vector<64x128xf32>
    %5 = arith.addf %2, %4 : vector<64x128xf32>
    %cst_5 = arith.constant 0.000000e+00 : f32
    %6 = vector.broadcast %cst_5 : f32 to vector<64x128xf32>
    %7 = arith.maximumf %5, %6 : vector<64x128xf32>
    %8 = arith.truncf %7 : vector<64x128xf32> to vector<64x128xbf16>
    %c0_6 = arith.constant 0 : index
    %c0_7 = arith.constant 0 : index
    %9 = vector.load %arg4[%c0_6, %c0_7] : memref<64x128xbf16, #tpu.memory_space<vmem>>, vector<64x128xbf16>
    tpu.vector_store %arg4[%c0_6, %c0_7], %8 {strides = array<i32>} : memref<64x128xbf16, #tpu.memory_space<vmem>>, vector<64x128xbf16>,
    return
  }
  func.func @transform_0(%arg0: i32) -> (i32, i32) {
    %c0_i32 = arith.constant 0 : i32
    %c0_i32_0 = arith.constant 0 : i32
    return %arg0, %c0_i32 : i32, i32
  }
  func.func @transform_1(%arg0: i32) -> (i32, i32) {
    %c0_i32 = arith.constant 0 : i32
    %c0_i32_0 = arith.constant 0 : i32
    %c0_i32_1 = arith.constant 0 : i32
    return %c0_i32, %c0_i32_0 : i32, i32
  }
  func.func @transform_2(%arg0: i32) -> (i32, i32) {
    %c0_i32 = arith.constant 0 : i32
    %c0_i32_0 = arith.constant 0 : i32
    %c0_i32_1 = arith.constant 0 : i32
    return %c0_i32, %c0_i32_0 : i32, i32
  }
  func.func @transform_3(%arg0: i32) -> (i32, i32) {
    %c0_i32 = arith.constant 0 : i32
    %c0_i32_0 = arith.constant 0 : i32
    return %arg0, %c0_i32 : i32, i32
  }
}

module attributes {stable_mosaic.version = 11 : i64} {
  func.func @_pool_kernel(%arg0: i32, %arg1: memref<64x128xbf16, #tpu.memory_space<vmem>>, %arg2: memref<64x128xbf16, #tpu.memory_space<vmem>>, %arg3: memref<64x128xbf16, #tpu.memory_space<vmem>>, %arg4: memref<64x128xbf16, #tpu.memory_space<vmem>>, %arg5: memref<64x128xbf16, #tpu.memory_space<vmem>>) attributes {dimension_semantics = [#tpu.dimension_semantics<parallel>], iteration_bounds = array<i64: 2>, scalar_prefetch = 0 : i64, scratch_operands = 0 : i64, tpu.core_type = #tpu.core_type<tc>, window_params = [{transform_indices = @transform_0, window_bounds = array<i64: 64, 128>}, {transform_indices = @transform_1, window_bounds = array<i64: 64, 128>}, {transform_indices = @transform_2, window_bounds = array<i64: 64, 128>}, {transform_indices = @transform_3, window_bounds = array<i64: 64, 128>}, {transform_indices = @transform_4, window_bounds = array<i64: 64, 128>}]} {
    %c0 = arith.constant 0 : index
    %c0_0 = arith.constant 0 : index
    %0 = vector.load %arg1[%c0, %c0_0] : memref<64x128xbf16, #tpu.memory_space<vmem>>, vector<64x128xbf16>
    %c0_1 = arith.constant 0 : index
    %c0_2 = arith.constant 0 : index
    %1 = vector.load %arg2[%c0_1, %c0_2] : memref<64x128xbf16, #tpu.memory_space<vmem>>, vector<64x128xbf16>
    %2 = arith.maximumf %0, %1 : vector<64x128xbf16>
    %c0_3 = arith.constant 0 : index
    %c0_4 = arith.constant 0 : index
    %3 = vector.load %arg3[%c0_3, %c0_4] : memref<64x128xbf16, #tpu.memory_space<vmem>>, vector<64x128xbf16>
    %4 = arith.maximumf %2, %3 : vector<64x128xbf16>
    %c0_5 = arith.constant 0 : index
    %c0_6 = arith.constant 0 : index
    %5 = vector.load %arg4[%c0_5, %c0_6] : memref<64x128xbf16, #tpu.memory_space<vmem>>, vector<64x128xbf16>
    %6 = arith.maximumf %4, %5 : vector<64x128xbf16>
    %c0_7 = arith.constant 0 : index
    %c0_8 = arith.constant 0 : index
    %7 = vector.load %arg5[%c0_7, %c0_8] : memref<64x128xbf16, #tpu.memory_space<vmem>>, vector<64x128xbf16>
    tpu.vector_store %arg5[%c0_7, %c0_8], %6 {strides = array<i32>} : memref<64x128xbf16, #tpu.memory_space<vmem>>, vector<64x128xbf16>,
    return
  }
  func.func @transform_0(%arg0: i32) -> (i32, i32) {
    %c0_i32 = arith.constant 0 : i32
    %c0_i32_0 = arith.constant 0 : i32
    return %arg0, %c0_i32 : i32, i32
  }
  func.func @transform_1(%arg0: i32) -> (i32, i32) {
    %c0_i32 = arith.constant 0 : i32
    %c0_i32_0 = arith.constant 0 : i32
    return %arg0, %c0_i32 : i32, i32
  }
  func.func @transform_2(%arg0: i32) -> (i32, i32) {
    %c0_i32 = arith.constant 0 : i32
    %c0_i32_0 = arith.constant 0 : i32
    return %arg0, %c0_i32 : i32, i32
  }
  func.func @transform_3(%arg0: i32) -> (i32, i32) {
    %c0_i32 = arith.constant 0 : i32
    %c0_i32_0 = arith.constant 0 : i32
    return %arg0, %c0_i32 : i32, i32
  }
  func.func @transform_4(%arg0: i32) -> (i32, i32) {
    %c0_i32 = arith.constant 0 : i32
    %c0_i32_0 = arith.constant 0 : i32
    return %arg0, %c0_i32 : i32, i32
  }
}

module attributes {stable_mosaic.version = 11 : i64} {
  func.func @_gemm_res_kernel(%arg0: i32, %arg1: memref<64x128xbf16, #tpu.memory_space<vmem>>, %arg2: memref<128x128xbf16, #tpu.memory_space<vmem>>, %arg3: memref<1x128xf32, #tpu.memory_space<vmem>>, %arg4: memref<64x128xbf16, #tpu.memory_space<vmem>>, %arg5: memref<64x128xbf16, #tpu.memory_space<vmem>>) attributes {dimension_semantics = [#tpu.dimension_semantics<parallel>], iteration_bounds = array<i64: 2>, scalar_prefetch = 0 : i64, scratch_operands = 0 : i64, tpu.core_type = #tpu.core_type<tc>, window_params = [{transform_indices = @transform_0, window_bounds = array<i64: 64, 128>}, {pipeline_mode = #tpu.pipeline_mode<synchronous>, transform_indices = @transform_1, window_bounds = array<i64: 128, 128>}, {pipeline_mode = #tpu.pipeline_mode<synchronous>, transform_indices = @transform_2, window_bounds = array<i64: 1, 128>}, {transform_indices = @transform_3, window_bounds = array<i64: 64, 128>}, {transform_indices = @transform_4, window_bounds = array<i64: 64, 128>}]} {
    %c0 = arith.constant 0 : index
    %c0_0 = arith.constant 0 : index
    %0 = vector.load %arg1[%c0, %c0_0] : memref<64x128xbf16, #tpu.memory_space<vmem>>, vector<64x128xbf16>
    %c0_1 = arith.constant 0 : index
    %c0_2 = arith.constant 0 : index
    %1 = vector.load %arg2[%c0_1, %c0_2] : memref<128x128xbf16, #tpu.memory_space<vmem>>, vector<128x128xbf16>
    %cst = arith.constant dense<0.000000e+00> : vector<64x128xf32>
    %2 = tpu.matmul %0, %1, %cst {dimension_numbers = #tpu.dot_dimension_numbers<[1], [0], [0], [1], [0, 0, 1, 1], [], []>} : vector<64x128xbf16>, vector<128x128xbf16>, vector<64x128xf32> -> vector<64x128xf32>
    %c0_3 = arith.constant 0 : index
    %c0_4 = arith.constant 0 : index
    %3 = vector.load %arg3[%c0_3, %c0_4] : memref<1x128xf32, #tpu.memory_space<vmem>>, vector<1x128xf32>
    %4 = vector.broadcast %3 : vector<1x128xf32> to vector<64x128xf32>
    %5 = arith.addf %2, %4 : vector<64x128xf32>
    %c0_5 = arith.constant 0 : index
    %c0_6 = arith.constant 0 : index
    %6 = vector.load %arg4[%c0_5, %c0_6] : memref<64x128xbf16, #tpu.memory_space<vmem>>, vector<64x128xbf16>
    %7 = arith.extf %6 : vector<64x128xbf16> to vector<64x128xf32>
    %8 = arith.addf %5, %7 : vector<64x128xf32>
    %cst_7 = arith.constant 0.000000e+00 : f32
    %9 = vector.broadcast %cst_7 : f32 to vector<64x128xf32>
    %10 = arith.maximumf %8, %9 : vector<64x128xf32>
    %11 = arith.truncf %10 : vector<64x128xf32> to vector<64x128xbf16>
    %c0_8 = arith.constant 0 : index
    %c0_9 = arith.constant 0 : index
    %12 = vector.load %arg5[%c0_8, %c0_9] : memref<64x128xbf16, #tpu.memory_space<vmem>>, vector<64x128xbf16>
    tpu.vector_store %arg5[%c0_8, %c0_9], %11 {strides = array<i32>} : memref<64x128xbf16, #tpu.memory_space<vmem>>, vector<64x128xbf16>,
    return
  }
  func.func @transform_0(%arg0: i32) -> (i32, i32) {
    %c0_i32 = arith.constant 0 : i32
    %c0_i32_0 = arith.constant 0 : i32
    return %arg0, %c0_i32 : i32, i32
  }
  func.func @transform_1(%arg0: i32) -> (i32, i32) {
    %c0_i32 = arith.constant 0 : i32
    %c0_i32_0 = arith.constant 0 : i32
    %c0_i32_1 = arith.constant 0 : i32
    return %c0_i32, %c0_i32_0 : i32, i32
  }
  func.func @transform_2(%arg0: i32) -> (i32, i32) {
    %c0_i32 = arith.constant 0 : i32
    %c0_i32_0 = arith.constant 0 : i32
    %c0_i32_1 = arith.constant 0 : i32
    return %c0_i32, %c0_i32_0 : i32, i32
  }
  func.func @transform_3(%arg0: i32) -> (i32, i32) {
    %c0_i32 = arith.constant 0 : i32
    %c0_i32_0 = arith.constant 0 : i32
    return %arg0, %c0_i32 : i32, i32
  }
  func.func @transform_4(%arg0: i32) -> (i32, i32) {
    %c0_i32 = arith.constant 0 : i32
    %c0_i32_0 = arith.constant 0 : i32
    return %arg0, %c0_i32 : i32, i32
  }
}

module attributes {stable_mosaic.version = 11 : i64} {
  func.func @_gemm_kernel(%arg0: i32, %arg1: memref<64x128xbf16, #tpu.memory_space<vmem>>, %arg2: memref<128x128xbf16, #tpu.memory_space<vmem>>, %arg3: memref<1x128xf32, #tpu.memory_space<vmem>>, %arg4: memref<64x128xbf16, #tpu.memory_space<vmem>>) attributes {dimension_semantics = [#tpu.dimension_semantics<parallel>], iteration_bounds = array<i64: 2>, scalar_prefetch = 0 : i64, scratch_operands = 0 : i64, tpu.core_type = #tpu.core_type<tc>, window_params = [{transform_indices = @transform_0, window_bounds = array<i64: 64, 128>}, {pipeline_mode = #tpu.pipeline_mode<synchronous>, transform_indices = @transform_1, window_bounds = array<i64: 128, 128>}, {pipeline_mode = #tpu.pipeline_mode<synchronous>, transform_indices = @transform_2, window_bounds = array<i64: 1, 128>}, {transform_indices = @transform_3, window_bounds = array<i64: 64, 128>}]} {
    %c0 = arith.constant 0 : index
    %c0_0 = arith.constant 0 : index
    %0 = vector.load %arg1[%c0, %c0_0] : memref<64x128xbf16, #tpu.memory_space<vmem>>, vector<64x128xbf16>
    %c0_1 = arith.constant 0 : index
    %c0_2 = arith.constant 0 : index
    %1 = vector.load %arg2[%c0_1, %c0_2] : memref<128x128xbf16, #tpu.memory_space<vmem>>, vector<128x128xbf16>
    %cst = arith.constant dense<0.000000e+00> : vector<64x128xf32>
    %2 = tpu.matmul %0, %1, %cst {dimension_numbers = #tpu.dot_dimension_numbers<[1], [0], [0], [1], [0, 0, 1, 1], [], []>} : vector<64x128xbf16>, vector<128x128xbf16>, vector<64x128xf32> -> vector<64x128xf32>
    %c0_3 = arith.constant 0 : index
    %c0_4 = arith.constant 0 : index
    %3 = vector.load %arg3[%c0_3, %c0_4] : memref<1x128xf32, #tpu.memory_space<vmem>>, vector<1x128xf32>
    %4 = vector.broadcast %3 : vector<1x128xf32> to vector<64x128xf32>
    %5 = arith.addf %2, %4 : vector<64x128xf32>
    %cst_5 = arith.constant 0.000000e+00 : f32
    %6 = vector.broadcast %cst_5 : f32 to vector<64x128xf32>
    %7 = arith.maximumf %5, %6 : vector<64x128xf32>
    %8 = arith.truncf %7 : vector<64x128xf32> to vector<64x128xbf16>
    %c0_6 = arith.constant 0 : index
    %c0_7 = arith.constant 0 : index
    %9 = vector.load %arg4[%c0_6, %c0_7] : memref<64x128xbf16, #tpu.memory_space<vmem>>, vector<64x128xbf16>
    tpu.vector_store %arg4[%c0_6, %c0_7], %8 {strides = array<i32>} : memref<64x128xbf16, #tpu.memory_space<vmem>>, vector<64x128xbf16>,
    return
  }
  func.func @transform_0(%arg0: i32) -> (i32, i32) {
    %c0_i32 = arith.constant 0 : i32
    %c0_i32_0 = arith.constant 0 : i32
    return %arg0, %c0_i32 : i32, i32
  }
  func.func @transform_1(%arg0: i32) -> (i32, i32) {
    %c0_i32 = arith.constant 0 : i32
    %c0_i32_0 = arith.constant 0 : i32
    %c0_i32_1 = arith.constant 0 : i32
    return %c0_i32, %c0_i32_0 : i32, i32
  }
  func.func @transform_2(%arg0: i32) -> (i32, i32) {
    %c0_i32 = arith.constant 0 : i32
    %c0_i32_0 = arith.constant 0 : i32
    %c0_i32_1 = arith.constant 0 : i32
    return %c0_i32, %c0_i32_0 : i32, i32
  }
  func.func @transform_3(%arg0: i32) -> (i32, i32) {
    %c0_i32 = arith.constant 0 : i32
    %c0_i32_0 = arith.constant 0 : i32
    return %arg0, %c0_i32 : i32, i32
  }
}

module attributes {stable_mosaic.version = 11 : i64} {
  func.func @_gemm_kernel(%arg0: i32, %arg1: memref<16x384xbf16, #tpu.memory_space<vmem>>, %arg2: memref<384x128xbf16, #tpu.memory_space<vmem>>, %arg3: memref<1x128xf32, #tpu.memory_space<vmem>>, %arg4: memref<16x128xbf16, #tpu.memory_space<vmem>>) attributes {dimension_semantics = [#tpu.dimension_semantics<parallel>], iteration_bounds = array<i64: 2>, scalar_prefetch = 0 : i64, scratch_operands = 0 : i64, tpu.core_type = #tpu.core_type<tc>, window_params = [{transform_indices = @transform_0, window_bounds = array<i64: 16, 384>}, {pipeline_mode = #tpu.pipeline_mode<synchronous>, transform_indices = @transform_1, window_bounds = array<i64: 384, 128>}, {pipeline_mode = #tpu.pipeline_mode<synchronous>, transform_indices = @transform_2, window_bounds = array<i64: 1, 128>}, {transform_indices = @transform_3, window_bounds = array<i64: 16, 128>}]} {
    %c0 = arith.constant 0 : index
    %c0_0 = arith.constant 0 : index
    %0 = vector.load %arg1[%c0, %c0_0] : memref<16x384xbf16, #tpu.memory_space<vmem>>, vector<16x384xbf16>
    %c0_1 = arith.constant 0 : index
    %c0_2 = arith.constant 0 : index
    %1 = vector.load %arg2[%c0_1, %c0_2] : memref<384x128xbf16, #tpu.memory_space<vmem>>, vector<384x128xbf16>
    %cst = arith.constant dense<0.000000e+00> : vector<16x128xf32>
    %2 = tpu.matmul %0, %1, %cst {dimension_numbers = #tpu.dot_dimension_numbers<[1], [0], [0], [1], [0, 0, 1, 1], [], []>} : vector<16x384xbf16>, vector<384x128xbf16>, vector<16x128xf32> -> vector<16x128xf32>
    %c0_3 = arith.constant 0 : index
    %c0_4 = arith.constant 0 : index
    %3 = vector.load %arg3[%c0_3, %c0_4] : memref<1x128xf32, #tpu.memory_space<vmem>>, vector<1x128xf32>
    %4 = vector.broadcast %3 : vector<1x128xf32> to vector<16x128xf32>
    %5 = arith.addf %2, %4 : vector<16x128xf32>
    %cst_5 = arith.constant 0.000000e+00 : f32
    %6 = vector.broadcast %cst_5 : f32 to vector<16x128xf32>
    %7 = arith.maximumf %5, %6 : vector<16x128xf32>
    %8 = arith.truncf %7 : vector<16x128xf32> to vector<16x128xbf16>
    %c0_6 = arith.constant 0 : index
    %c0_7 = arith.constant 0 : index
    %9 = vector.load %arg4[%c0_6, %c0_7] : memref<16x128xbf16, #tpu.memory_space<vmem>>, vector<16x128xbf16>
    tpu.vector_store %arg4[%c0_6, %c0_7], %8 {strides = array<i32>} : memref<16x128xbf16, #tpu.memory_space<vmem>>, vector<16x128xbf16>,
    return
  }
  func.func @transform_0(%arg0: i32) -> (i32, i32) {
    %c0_i32 = arith.constant 0 : i32
    %c0_i32_0 = arith.constant 0 : i32
    return %arg0, %c0_i32 : i32, i32
  }
  func.func @transform_1(%arg0: i32) -> (i32, i32) {
    %c0_i32 = arith.constant 0 : i32
    %c0_i32_0 = arith.constant 0 : i32
    %c0_i32_1 = arith.constant 0 : i32
    return %c0_i32, %c0_i32_0 : i32, i32
  }
  func.func @transform_2(%arg0: i32) -> (i32, i32) {
    %c0_i32 = arith.constant 0 : i32
    %c0_i32_0 = arith.constant 0 : i32
    %c0_i32_1 = arith.constant 0 : i32
    return %c0_i32, %c0_i32_0 : i32, i32
  }
  func.func @transform_3(%arg0: i32) -> (i32, i32) {
    %c0_i32 = arith.constant 0 : i32
    %c0_i32_0 = arith.constant 0 : i32
    return %arg0, %c0_i32 : i32, i32
  }
}

module attributes {stable_mosaic.version = 11 : i64} {
  func.func @_gemm_res_kernel(%arg0: i32, %arg1: memref<16x256xbf16, #tpu.memory_space<vmem>>, %arg2: memref<256x128xbf16, #tpu.memory_space<vmem>>, %arg3: memref<1x128xf32, #tpu.memory_space<vmem>>, %arg4: memref<16x128xbf16, #tpu.memory_space<vmem>>, %arg5: memref<16x128xbf16, #tpu.memory_space<vmem>>) attributes {dimension_semantics = [#tpu.dimension_semantics<parallel>], iteration_bounds = array<i64: 2>, scalar_prefetch = 0 : i64, scratch_operands = 0 : i64, tpu.core_type = #tpu.core_type<tc>, window_params = [{transform_indices = @transform_0, window_bounds = array<i64: 16, 256>}, {pipeline_mode = #tpu.pipeline_mode<synchronous>, transform_indices = @transform_1, window_bounds = array<i64: 256, 128>}, {pipeline_mode = #tpu.pipeline_mode<synchronous>, transform_indices = @transform_2, window_bounds = array<i64: 1, 128>}, {transform_indices = @transform_3, window_bounds = array<i64: 16, 128>}, {transform_indices = @transform_4, window_bounds = array<i64: 16, 128>}]} {
    %c0 = arith.constant 0 : index
    %c0_0 = arith.constant 0 : index
    %0 = vector.load %arg1[%c0, %c0_0] : memref<16x256xbf16, #tpu.memory_space<vmem>>, vector<16x256xbf16>
    %c0_1 = arith.constant 0 : index
    %c0_2 = arith.constant 0 : index
    %1 = vector.load %arg2[%c0_1, %c0_2] : memref<256x128xbf16, #tpu.memory_space<vmem>>, vector<256x128xbf16>
    %cst = arith.constant dense<0.000000e+00> : vector<16x128xf32>
    %2 = tpu.matmul %0, %1, %cst {dimension_numbers = #tpu.dot_dimension_numbers<[1], [0], [0], [1], [0, 0, 1, 1], [], []>} : vector<16x256xbf16>, vector<256x128xbf16>, vector<16x128xf32> -> vector<16x128xf32>
    %c0_3 = arith.constant 0 : index
    %c0_4 = arith.constant 0 : index
    %3 = vector.load %arg3[%c0_3, %c0_4] : memref<1x128xf32, #tpu.memory_space<vmem>>, vector<1x128xf32>
    %4 = vector.broadcast %3 : vector<1x128xf32> to vector<16x128xf32>
    %5 = arith.addf %2, %4 : vector<16x128xf32>
    %c0_5 = arith.constant 0 : index
    %c0_6 = arith.constant 0 : index
    %6 = vector.load %arg4[%c0_5, %c0_6] : memref<16x128xbf16, #tpu.memory_space<vmem>>, vector<16x128xbf16>
    %7 = arith.extf %6 : vector<16x128xbf16> to vector<16x128xf32>
    %8 = arith.addf %5, %7 : vector<16x128xf32>
    %cst_7 = arith.constant 0.000000e+00 : f32
    %9 = vector.broadcast %cst_7 : f32 to vector<16x128xf32>
    %10 = arith.maximumf %8, %9 : vector<16x128xf32>
    %11 = arith.truncf %10 : vector<16x128xf32> to vector<16x128xbf16>
    %c0_8 = arith.constant 0 : index
    %c0_9 = arith.constant 0 : index
    %12 = vector.load %arg5[%c0_8, %c0_9] : memref<16x128xbf16, #tpu.memory_space<vmem>>, vector<16x128xbf16>
    tpu.vector_store %arg5[%c0_8, %c0_9], %11 {strides = array<i32>} : memref<16x128xbf16, #tpu.memory_space<vmem>>, vector<16x128xbf16>,
    return
  }
  func.func @transform_0(%arg0: i32) -> (i32, i32) {
    %c0_i32 = arith.constant 0 : i32
    %c0_i32_0 = arith.constant 0 : i32
    return %arg0, %c0_i32 : i32, i32
  }
  func.func @transform_1(%arg0: i32) -> (i32, i32) {
    %c0_i32 = arith.constant 0 : i32
    %c0_i32_0 = arith.constant 0 : i32
    %c0_i32_1 = arith.constant 0 : i32
    return %c0_i32, %c0_i32_0 : i32, i32
  }
  func.func @transform_2(%arg0: i32) -> (i32, i32) {
    %c0_i32 = arith.constant 0 : i32
    %c0_i32_0 = arith.constant 0 : i32
    %c0_i32_1 = arith.constant 0 : i32
    return %c0_i32, %c0_i32_0 : i32, i32
  }
  func.func @transform_3(%arg0: i32) -> (i32, i32) {
    %c0_i32 = arith.constant 0 : i32
    %c0_i32_0 = arith.constant 0 : i32
    return %arg0, %c0_i32 : i32, i32
  }
  func.func @transform_4(%arg0: i32) -> (i32, i32) {
    %c0_i32 = arith.constant 0 : i32
    %c0_i32_0 = arith.constant 0 : i32
    return %arg0, %c0_i32 : i32, i32
  }
}

module attributes {stable_mosaic.version = 11 : i64} {
  func.func @_pool_kernel(%arg0: i32, %arg1: memref<16x128xbf16, #tpu.memory_space<vmem>>, %arg2: memref<16x128xbf16, #tpu.memory_space<vmem>>, %arg3: memref<16x128xbf16, #tpu.memory_space<vmem>>, %arg4: memref<16x128xbf16, #tpu.memory_space<vmem>>, %arg5: memref<16x128xbf16, #tpu.memory_space<vmem>>) attributes {dimension_semantics = [#tpu.dimension_semantics<parallel>], iteration_bounds = array<i64: 2>, scalar_prefetch = 0 : i64, scratch_operands = 0 : i64, tpu.core_type = #tpu.core_type<tc>, window_params = [{transform_indices = @transform_0, window_bounds = array<i64: 16, 128>}, {transform_indices = @transform_1, window_bounds = array<i64: 16, 128>}, {transform_indices = @transform_2, window_bounds = array<i64: 16, 128>}, {transform_indices = @transform_3, window_bounds = array<i64: 16, 128>}, {transform_indices = @transform_4, window_bounds = array<i64: 16, 128>}]} {
    %c0 = arith.constant 0 : index
    %c0_0 = arith.constant 0 : index
    %0 = vector.load %arg1[%c0, %c0_0] : memref<16x128xbf16, #tpu.memory_space<vmem>>, vector<16x128xbf16>
    %c0_1 = arith.constant 0 : index
    %c0_2 = arith.constant 0 : index
    %1 = vector.load %arg2[%c0_1, %c0_2] : memref<16x128xbf16, #tpu.memory_space<vmem>>, vector<16x128xbf16>
    %2 = arith.maximumf %0, %1 : vector<16x128xbf16>
    %c0_3 = arith.constant 0 : index
    %c0_4 = arith.constant 0 : index
    %3 = vector.load %arg3[%c0_3, %c0_4] : memref<16x128xbf16, #tpu.memory_space<vmem>>, vector<16x128xbf16>
    %4 = arith.maximumf %2, %3 : vector<16x128xbf16>
    %c0_5 = arith.constant 0 : index
    %c0_6 = arith.constant 0 : index
    %5 = vector.load %arg4[%c0_5, %c0_6] : memref<16x128xbf16, #tpu.memory_space<vmem>>, vector<16x128xbf16>
    %6 = arith.maximumf %4, %5 : vector<16x128xbf16>
    %c0_7 = arith.constant 0 : index
    %c0_8 = arith.constant 0 : index
    %7 = vector.load %arg5[%c0_7, %c0_8] : memref<16x128xbf16, #tpu.memory_space<vmem>>, vector<16x128xbf16>
    tpu.vector_store %arg5[%c0_7, %c0_8], %6 {strides = array<i32>} : memref<16x128xbf16, #tpu.memory_space<vmem>>, vector<16x128xbf16>,
    return
  }
  func.func @transform_0(%arg0: i32) -> (i32, i32) {
    %c0_i32 = arith.constant 0 : i32
    %c0_i32_0 = arith.constant 0 : i32
    return %arg0, %c0_i32 : i32, i32
  }
  func.func @transform_1(%arg0: i32) -> (i32, i32) {
    %c0_i32 = arith.constant 0 : i32
    %c0_i32_0 = arith.constant 0 : i32
    return %arg0, %c0_i32 : i32, i32
  }
  func.func @transform_2(%arg0: i32) -> (i32, i32) {
    %c0_i32 = arith.constant 0 : i32
    %c0_i32_0 = arith.constant 0 : i32
    return %arg0, %c0_i32 : i32, i32
  }
  func.func @transform_3(%arg0: i32) -> (i32, i32) {
    %c0_i32 = arith.constant 0 : i32
    %c0_i32_0 = arith.constant 0 : i32
    return %arg0, %c0_i32 : i32, i32
  }
  func.func @transform_4(%arg0: i32) -> (i32, i32) {
    %c0_i32 = arith.constant 0 : i32
    %c0_i32_0 = arith.constant 0 : i32
    return %arg0, %c0_i32 : i32, i32
  }
}

module attributes {stable_mosaic.version = 11 : i64} {
  func.func @_gemm_kernel(%arg0: i32, %arg1: memref<16x128xbf16, #tpu.memory_space<vmem>>, %arg2: memref<128x128xbf16, #tpu.memory_space<vmem>>, %arg3: memref<1x128xf32, #tpu.memory_space<vmem>>, %arg4: memref<16x128xbf16, #tpu.memory_space<vmem>>) attributes {dimension_semantics = [#tpu.dimension_semantics<parallel>], iteration_bounds = array<i64: 2>, scalar_prefetch = 0 : i64, scratch_operands = 0 : i64, tpu.core_type = #tpu.core_type<tc>, window_params = [{transform_indices = @transform_0, window_bounds = array<i64: 16, 128>}, {pipeline_mode = #tpu.pipeline_mode<synchronous>, transform_indices = @transform_1, window_bounds = array<i64: 128, 128>}, {pipeline_mode = #tpu.pipeline_mode<synchronous>, transform_indices = @transform_2, window_bounds = array<i64: 1, 128>}, {transform_indices = @transform_3, window_bounds = array<i64: 16, 128>}]} {
    %c0 = arith.constant 0 : index
    %c0_0 = arith.constant 0 : index
    %0 = vector.load %arg1[%c0, %c0_0] : memref<16x128xbf16, #tpu.memory_space<vmem>>, vector<16x128xbf16>
    %c0_1 = arith.constant 0 : index
    %c0_2 = arith.constant 0 : index
    %1 = vector.load %arg2[%c0_1, %c0_2] : memref<128x128xbf16, #tpu.memory_space<vmem>>, vector<128x128xbf16>
    %cst = arith.constant dense<0.000000e+00> : vector<16x128xf32>
    %2 = tpu.matmul %0, %1, %cst {dimension_numbers = #tpu.dot_dimension_numbers<[1], [0], [0], [1], [0, 0, 1, 1], [], []>} : vector<16x128xbf16>, vector<128x128xbf16>, vector<16x128xf32> -> vector<16x128xf32>
    %c0_3 = arith.constant 0 : index
    %c0_4 = arith.constant 0 : index
    %3 = vector.load %arg3[%c0_3, %c0_4] : memref<1x128xf32, #tpu.memory_space<vmem>>, vector<1x128xf32>
    %4 = vector.broadcast %3 : vector<1x128xf32> to vector<16x128xf32>
    %5 = arith.addf %2, %4 : vector<16x128xf32>
    %6 = arith.truncf %5 : vector<16x128xf32> to vector<16x128xbf16>
    %c0_5 = arith.constant 0 : index
    %c0_6 = arith.constant 0 : index
    %7 = vector.load %arg4[%c0_5, %c0_6] : memref<16x128xbf16, #tpu.memory_space<vmem>>, vector<16x128xbf16>
    tpu.vector_store %arg4[%c0_5, %c0_6], %6 {strides = array<i32>} : memref<16x128xbf16, #tpu.memory_space<vmem>>, vector<16x128xbf16>,
    return
  }
  func.func @transform_0(%arg0: i32) -> (i32, i32) {
    %c0_i32 = arith.constant 0 : i32
    %c0_i32_0 = arith.constant 0 : i32
    return %arg0, %c0_i32 : i32, i32
  }
  func.func @transform_1(%arg0: i32) -> (i32, i32) {
    %c0_i32 = arith.constant 0 : i32
    %c0_i32_0 = arith.constant 0 : i32
    %c0_i32_1 = arith.constant 0 : i32
    return %c0_i32, %c0_i32_0 : i32, i32
  }
  func.func @transform_2(%arg0: i32) -> (i32, i32) {
    %c0_i32 = arith.constant 0 : i32
    %c0_i32_0 = arith.constant 0 : i32
    %c0_i32_1 = arith.constant 0 : i32
    return %c0_i32, %c0_i32_0 : i32, i32
  }
  func.func @transform_3(%arg0: i32) -> (i32, i32) {
    %c0_i32 = arith.constant 0 : i32
    %c0_i32_0 = arith.constant 0 : i32
    return %arg0, %c0_i32 : i32, i32
  }
}

module attributes {stable_mosaic.version = 11 : i64} {
  func.func @_gemm_kernel(%arg0: i32, %arg1: memref<16x128xbf16, #tpu.memory_space<vmem>>, %arg2: memref<128x128xbf16, #tpu.memory_space<vmem>>, %arg3: memref<1x128xf32, #tpu.memory_space<vmem>>, %arg4: memref<16x128xbf16, #tpu.memory_space<vmem>>) attributes {dimension_semantics = [#tpu.dimension_semantics<parallel>], iteration_bounds = array<i64: 2>, scalar_prefetch = 0 : i64, scratch_operands = 0 : i64, tpu.core_type = #tpu.core_type<tc>, window_params = [{transform_indices = @transform_0, window_bounds = array<i64: 16, 128>}, {pipeline_mode = #tpu.pipeline_mode<synchronous>, transform_indices = @transform_1, window_bounds = array<i64: 128, 128>}, {pipeline_mode = #tpu.pipeline_mode<synchronous>, transform_indices = @transform_2, window_bounds = array<i64: 1, 128>}, {transform_indices = @transform_3, window_bounds = array<i64: 16, 128>}]} {
    %c0 = arith.constant 0 : index
    %c0_0 = arith.constant 0 : index
    %0 = vector.load %arg1[%c0, %c0_0] : memref<16x128xbf16, #tpu.memory_space<vmem>>, vector<16x128xbf16>
    %c0_1 = arith.constant 0 : index
    %c0_2 = arith.constant 0 : index
    %1 = vector.load %arg2[%c0_1, %c0_2] : memref<128x128xbf16, #tpu.memory_space<vmem>>, vector<128x128xbf16>
    %cst = arith.constant dense<0.000000e+00> : vector<16x128xf32>
    %2 = tpu.matmul %0, %1, %cst {dimension_numbers = #tpu.dot_dimension_numbers<[1], [0], [0], [1], [0, 0, 1, 1], [], []>} : vector<16x128xbf16>, vector<128x128xbf16>, vector<16x128xf32> -> vector<16x128xf32>
    %c0_3 = arith.constant 0 : index
    %c0_4 = arith.constant 0 : index
    %3 = vector.load %arg3[%c0_3, %c0_4] : memref<1x128xf32, #tpu.memory_space<vmem>>, vector<1x128xf32>
    %4 = vector.broadcast %3 : vector<1x128xf32> to vector<16x128xf32>
    %5 = arith.addf %2, %4 : vector<16x128xf32>
    %cst_5 = arith.constant 0.000000e+00 : f32
    %6 = vector.broadcast %cst_5 : f32 to vector<16x128xf32>
    %7 = arith.maximumf %5, %6 : vector<16x128xf32>
    %8 = arith.truncf %7 : vector<16x128xf32> to vector<16x128xbf16>
    %c0_6 = arith.constant 0 : index
    %c0_7 = arith.constant 0 : index
    %9 = vector.load %arg4[%c0_6, %c0_7] : memref<16x128xbf16, #tpu.memory_space<vmem>>, vector<16x128xbf16>
    tpu.vector_store %arg4[%c0_6, %c0_7], %8 {strides = array<i32>} : memref<16x128xbf16, #tpu.memory_space<vmem>>, vector<16x128xbf16>,
    return
  }
  func.func @transform_0(%arg0: i32) -> (i32, i32) {
    %c0_i32 = arith.constant 0 : i32
    %c0_i32_0 = arith.constant 0 : i32
    return %arg0, %c0_i32 : i32, i32
  }
  func.func @transform_1(%arg0: i32) -> (i32, i32) {
    %c0_i32 = arith.constant 0 : i32
    %c0_i32_0 = arith.constant 0 : i32
    %c0_i32_1 = arith.constant 0 : i32
    return %c0_i32, %c0_i32_0 : i32, i32
  }
  func.func @transform_2(%arg0: i32) -> (i32, i32) {
    %c0_i32 = arith.constant 0 : i32
    %c0_i32_0 = arith.constant 0 : i32
    %c0_i32_1 = arith.constant 0 : i32
    return %c0_i32, %c0_i32_0 : i32, i32
  }
  func.func @transform_3(%arg0: i32) -> (i32, i32) {
    %c0_i32 = arith.constant 0 : i32
    %c0_i32_0 = arith.constant 0 : i32
    return %arg0, %c0_i32 : i32, i32
  }
}

module attributes {stable_mosaic.version = 11 : i64} {
  func.func @_gemm_kernel(%arg0: i32, %arg1: memref<16x256xbf16, #tpu.memory_space<vmem>>, %arg2: memref<256x128xbf16, #tpu.memory_space<vmem>>, %arg3: memref<1x128xf32, #tpu.memory_space<vmem>>, %arg4: memref<16x128xbf16, #tpu.memory_space<vmem>>) attributes {dimension_semantics = [#tpu.dimension_semantics<parallel>], iteration_bounds = array<i64: 2>, scalar_prefetch = 0 : i64, scratch_operands = 0 : i64, tpu.core_type = #tpu.core_type<tc>, window_params = [{transform_indices = @transform_0, window_bounds = array<i64: 16, 256>}, {pipeline_mode = #tpu.pipeline_mode<synchronous>, transform_indices = @transform_1, window_bounds = array<i64: 256, 128>}, {pipeline_mode = #tpu.pipeline_mode<synchronous>, transform_indices = @transform_2, window_bounds = array<i64: 1, 128>}, {transform_indices = @transform_3, window_bounds = array<i64: 16, 128>}]} {
    %c0 = arith.constant 0 : index
    %c0_0 = arith.constant 0 : index
    %0 = vector.load %arg1[%c0, %c0_0] : memref<16x256xbf16, #tpu.memory_space<vmem>>, vector<16x256xbf16>
    %c0_1 = arith.constant 0 : index
    %c0_2 = arith.constant 0 : index
    %1 = vector.load %arg2[%c0_1, %c0_2] : memref<256x128xbf16, #tpu.memory_space<vmem>>, vector<256x128xbf16>
    %cst = arith.constant dense<0.000000e+00> : vector<16x128xf32>
    %2 = tpu.matmul %0, %1, %cst {dimension_numbers = #tpu.dot_dimension_numbers<[1], [0], [0], [1], [0, 0, 1, 1], [], []>} : vector<16x256xbf16>, vector<256x128xbf16>, vector<16x128xf32> -> vector<16x128xf32>
    %c0_3 = arith.constant 0 : index
    %c0_4 = arith.constant 0 : index
    %3 = vector.load %arg3[%c0_3, %c0_4] : memref<1x128xf32, #tpu.memory_space<vmem>>, vector<1x128xf32>
    %4 = vector.broadcast %3 : vector<1x128xf32> to vector<16x128xf32>
    %5 = arith.addf %2, %4 : vector<16x128xf32>
    %cst_5 = arith.constant 0.000000e+00 : f32
    %6 = vector.broadcast %cst_5 : f32 to vector<16x128xf32>
    %7 = arith.maximumf %5, %6 : vector<16x128xf32>
    %8 = arith.truncf %7 : vector<16x128xf32> to vector<16x128xbf16>
    %c0_6 = arith.constant 0 : index
    %c0_7 = arith.constant 0 : index
    %9 = vector.load %arg4[%c0_6, %c0_7] : memref<16x128xbf16, #tpu.memory_space<vmem>>, vector<16x128xbf16>
    tpu.vector_store %arg4[%c0_6, %c0_7], %8 {strides = array<i32>} : memref<16x128xbf16, #tpu.memory_space<vmem>>, vector<16x128xbf16>,
    return
  }
  func.func @transform_0(%arg0: i32) -> (i32, i32) {
    %c0_i32 = arith.constant 0 : i32
    %c0_i32_0 = arith.constant 0 : i32
    return %arg0, %c0_i32 : i32, i32
  }
  func.func @transform_1(%arg0: i32) -> (i32, i32) {
    %c0_i32 = arith.constant 0 : i32
    %c0_i32_0 = arith.constant 0 : i32
    %c0_i32_1 = arith.constant 0 : i32
    return %c0_i32, %c0_i32_0 : i32, i32
  }
  func.func @transform_2(%arg0: i32) -> (i32, i32) {
    %c0_i32 = arith.constant 0 : i32
    %c0_i32_0 = arith.constant 0 : i32
    %c0_i32_1 = arith.constant 0 : i32
    return %c0_i32, %c0_i32_0 : i32, i32
  }
  func.func @transform_3(%arg0: i32) -> (i32, i32) {
    %c0_i32 = arith.constant 0 : i32
    %c0_i32_0 = arith.constant 0 : i32
    return %arg0, %c0_i32 : i32, i32
  }
}

module attributes {stable_mosaic.version = 11 : i64} {
  func.func @_gemm_res_kernel(%arg0: i32, %arg1: memref<16x128xbf16, #tpu.memory_space<vmem>>, %arg2: memref<128x128xbf16, #tpu.memory_space<vmem>>, %arg3: memref<1x128xf32, #tpu.memory_space<vmem>>, %arg4: memref<16x128xbf16, #tpu.memory_space<vmem>>, %arg5: memref<16x128xbf16, #tpu.memory_space<vmem>>) attributes {dimension_semantics = [#tpu.dimension_semantics<parallel>], iteration_bounds = array<i64: 2>, scalar_prefetch = 0 : i64, scratch_operands = 0 : i64, tpu.core_type = #tpu.core_type<tc>, window_params = [{transform_indices = @transform_0, window_bounds = array<i64: 16, 128>}, {pipeline_mode = #tpu.pipeline_mode<synchronous>, transform_indices = @transform_1, window_bounds = array<i64: 128, 128>}, {pipeline_mode = #tpu.pipeline_mode<synchronous>, transform_indices = @transform_2, window_bounds = array<i64: 1, 128>}, {transform_indices = @transform_3, window_bounds = array<i64: 16, 128>}, {transform_indices = @transform_4, window_bounds = array<i64: 16, 128>}]} {
    %c0 = arith.constant 0 : index
    %c0_0 = arith.constant 0 : index
    %0 = vector.load %arg1[%c0, %c0_0] : memref<16x128xbf16, #tpu.memory_space<vmem>>, vector<16x128xbf16>
    %c0_1 = arith.constant 0 : index
    %c0_2 = arith.constant 0 : index
    %1 = vector.load %arg2[%c0_1, %c0_2] : memref<128x128xbf16, #tpu.memory_space<vmem>>, vector<128x128xbf16>
    %cst = arith.constant dense<0.000000e+00> : vector<16x128xf32>
    %2 = tpu.matmul %0, %1, %cst {dimension_numbers = #tpu.dot_dimension_numbers<[1], [0], [0], [1], [0, 0, 1, 1], [], []>} : vector<16x128xbf16>, vector<128x128xbf16>, vector<16x128xf32> -> vector<16x128xf32>
    %c0_3 = arith.constant 0 : index
    %c0_4 = arith.constant 0 : index
    %3 = vector.load %arg3[%c0_3, %c0_4] : memref<1x128xf32, #tpu.memory_space<vmem>>, vector<1x128xf32>
    %4 = vector.broadcast %3 : vector<1x128xf32> to vector<16x128xf32>
    %5 = arith.addf %2, %4 : vector<16x128xf32>
    %c0_5 = arith.constant 0 : index
    %c0_6 = arith.constant 0 : index
    %6 = vector.load %arg4[%c0_5, %c0_6] : memref<16x128xbf16, #tpu.memory_space<vmem>>, vector<16x128xbf16>
    %7 = arith.extf %6 : vector<16x128xbf16> to vector<16x128xf32>
    %8 = arith.addf %5, %7 : vector<16x128xf32>
    %cst_7 = arith.constant 0.000000e+00 : f32
    %9 = vector.broadcast %cst_7 : f32 to vector<16x128xf32>
    %10 = arith.maximumf %8, %9 : vector<16x128xf32>
    %11 = arith.truncf %10 : vector<16x128xf32> to vector<16x128xbf16>
    %c0_8 = arith.constant 0 : index
    %c0_9 = arith.constant 0 : index
    %12 = vector.load %arg5[%c0_8, %c0_9] : memref<16x128xbf16, #tpu.memory_space<vmem>>, vector<16x128xbf16>
    tpu.vector_store %arg5[%c0_8, %c0_9], %11 {strides = array<i32>} : memref<16x128xbf16, #tpu.memory_space<vmem>>, vector<16x128xbf16>,
    return
  }
  func.func @transform_0(%arg0: i32) -> (i32, i32) {
    %c0_i32 = arith.constant 0 : i32
    %c0_i32_0 = arith.constant 0 : i32
    return %arg0, %c0_i32 : i32, i32
  }
  func.func @transform_1(%arg0: i32) -> (i32, i32) {
    %c0_i32 = arith.constant 0 : i32
    %c0_i32_0 = arith.constant 0 : i32
    %c0_i32_1 = arith.constant 0 : i32
    return %c0_i32, %c0_i32_0 : i32, i32
  }
  func.func @transform_2(%arg0: i32) -> (i32, i32) {
    %c0_i32 = arith.constant 0 : i32
    %c0_i32_0 = arith.constant 0 : i32
    %c0_i32_1 = arith.constant 0 : i32
    return %c0_i32, %c0_i32_0 : i32, i32
  }
  func.func @transform_3(%arg0: i32) -> (i32, i32) {
    %c0_i32 = arith.constant 0 : i32
    %c0_i32_0 = arith.constant 0 : i32
    return %arg0, %c0_i32 : i32, i32
  }
  func.func @transform_4(%arg0: i32) -> (i32, i32) {
    %c0_i32 = arith.constant 0 : i32
    %c0_i32_0 = arith.constant 0 : i32
    return %arg0, %c0_i32 : i32, i32
  }
}

module attributes {stable_mosaic.version = 11 : i64} {
  func.func @_gemm_kernel(%arg0: i32, %arg1: memref<16x384xbf16, #tpu.memory_space<vmem>>, %arg2: memref<384x128xbf16, #tpu.memory_space<vmem>>, %arg3: memref<1x128xf32, #tpu.memory_space<vmem>>, %arg4: memref<16x128xbf16, #tpu.memory_space<vmem>>) attributes {dimension_semantics = [#tpu.dimension_semantics<parallel>], iteration_bounds = array<i64: 1>, scalar_prefetch = 0 : i64, scratch_operands = 0 : i64, tpu.core_type = #tpu.core_type<tc>, window_params = [{transform_indices = @transform_0, window_bounds = array<i64: 16, 384>}, {pipeline_mode = #tpu.pipeline_mode<synchronous>, transform_indices = @transform_1, window_bounds = array<i64: 384, 128>}, {pipeline_mode = #tpu.pipeline_mode<synchronous>, transform_indices = @transform_2, window_bounds = array<i64: 1, 128>}, {transform_indices = @transform_3, window_bounds = array<i64: 16, 128>}]} {
    %c0 = arith.constant 0 : index
    %c0_0 = arith.constant 0 : index
    %0 = vector.load %arg1[%c0, %c0_0] : memref<16x384xbf16, #tpu.memory_space<vmem>>, vector<16x384xbf16>
    %c0_1 = arith.constant 0 : index
    %c0_2 = arith.constant 0 : index
    %1 = vector.load %arg2[%c0_1, %c0_2] : memref<384x128xbf16, #tpu.memory_space<vmem>>, vector<384x128xbf16>
    %cst = arith.constant dense<0.000000e+00> : vector<16x128xf32>
    %2 = tpu.matmul %0, %1, %cst {dimension_numbers = #tpu.dot_dimension_numbers<[1], [0], [0], [1], [0, 0, 1, 1], [], []>} : vector<16x384xbf16>, vector<384x128xbf16>, vector<16x128xf32> -> vector<16x128xf32>
    %c0_3 = arith.constant 0 : index
    %c0_4 = arith.constant 0 : index
    %3 = vector.load %arg3[%c0_3, %c0_4] : memref<1x128xf32, #tpu.memory_space<vmem>>, vector<1x128xf32>
    %4 = vector.broadcast %3 : vector<1x128xf32> to vector<16x128xf32>
    %5 = arith.addf %2, %4 : vector<16x128xf32>
    %cst_5 = arith.constant 0.000000e+00 : f32
    %6 = vector.broadcast %cst_5 : f32 to vector<16x128xf32>
    %7 = arith.maximumf %5, %6 : vector<16x128xf32>
    %8 = arith.truncf %7 : vector<16x128xf32> to vector<16x128xbf16>
    %c0_6 = arith.constant 0 : index
    %c0_7 = arith.constant 0 : index
    %9 = vector.load %arg4[%c0_6, %c0_7] : memref<16x128xbf16, #tpu.memory_space<vmem>>, vector<16x128xbf16>
    tpu.vector_store %arg4[%c0_6, %c0_7], %8 {strides = array<i32>} : memref<16x128xbf16, #tpu.memory_space<vmem>>, vector<16x128xbf16>,
    return
  }
  func.func @transform_0(%arg0: i32) -> (i32, i32) {
    %c0_i32 = arith.constant 0 : i32
    %c0_i32_0 = arith.constant 0 : i32
    return %arg0, %c0_i32 : i32, i32
  }
  func.func @transform_1(%arg0: i32) -> (i32, i32) {
    %c0_i32 = arith.constant 0 : i32
    %c0_i32_0 = arith.constant 0 : i32
    %c0_i32_1 = arith.constant 0 : i32
    return %c0_i32, %c0_i32_0 : i32, i32
  }
  func.func @transform_2(%arg0: i32) -> (i32, i32) {
    %c0_i32 = arith.constant 0 : i32
    %c0_i32_0 = arith.constant 0 : i32
    %c0_i32_1 = arith.constant 0 : i32
    return %c0_i32, %c0_i32_0 : i32, i32
  }
  func.func @transform_3(%arg0: i32) -> (i32, i32) {
    %c0_i32 = arith.constant 0 : i32
    %c0_i32_0 = arith.constant 0 : i32
    return %arg0, %c0_i32 : i32, i32
  }
}

module attributes {stable_mosaic.version = 11 : i64} {
  func.func @_gemm_res_kernel(%arg0: i32, %arg1: memref<16x256xbf16, #tpu.memory_space<vmem>>, %arg2: memref<256x128xbf16, #tpu.memory_space<vmem>>, %arg3: memref<1x128xf32, #tpu.memory_space<vmem>>, %arg4: memref<16x128xbf16, #tpu.memory_space<vmem>>, %arg5: memref<16x128xbf16, #tpu.memory_space<vmem>>) attributes {dimension_semantics = [#tpu.dimension_semantics<parallel>], iteration_bounds = array<i64: 1>, scalar_prefetch = 0 : i64, scratch_operands = 0 : i64, tpu.core_type = #tpu.core_type<tc>, window_params = [{transform_indices = @transform_0, window_bounds = array<i64: 16, 256>}, {pipeline_mode = #tpu.pipeline_mode<synchronous>, transform_indices = @transform_1, window_bounds = array<i64: 256, 128>}, {pipeline_mode = #tpu.pipeline_mode<synchronous>, transform_indices = @transform_2, window_bounds = array<i64: 1, 128>}, {transform_indices = @transform_3, window_bounds = array<i64: 16, 128>}, {transform_indices = @transform_4, window_bounds = array<i64: 16, 128>}]} {
    %c0 = arith.constant 0 : index
    %c0_0 = arith.constant 0 : index
    %0 = vector.load %arg1[%c0, %c0_0] : memref<16x256xbf16, #tpu.memory_space<vmem>>, vector<16x256xbf16>
    %c0_1 = arith.constant 0 : index
    %c0_2 = arith.constant 0 : index
    %1 = vector.load %arg2[%c0_1, %c0_2] : memref<256x128xbf16, #tpu.memory_space<vmem>>, vector<256x128xbf16>
    %cst = arith.constant dense<0.000000e+00> : vector<16x128xf32>
    %2 = tpu.matmul %0, %1, %cst {dimension_numbers = #tpu.dot_dimension_numbers<[1], [0], [0], [1], [0, 0, 1, 1], [], []>} : vector<16x256xbf16>, vector<256x128xbf16>, vector<16x128xf32> -> vector<16x128xf32>
    %c0_3 = arith.constant 0 : index
    %c0_4 = arith.constant 0 : index
    %3 = vector.load %arg3[%c0_3, %c0_4] : memref<1x128xf32, #tpu.memory_space<vmem>>, vector<1x128xf32>
    %4 = vector.broadcast %3 : vector<1x128xf32> to vector<16x128xf32>
    %5 = arith.addf %2, %4 : vector<16x128xf32>
    %c0_5 = arith.constant 0 : index
    %c0_6 = arith.constant 0 : index
    %6 = vector.load %arg4[%c0_5, %c0_6] : memref<16x128xbf16, #tpu.memory_space<vmem>>, vector<16x128xbf16>
    %7 = arith.extf %6 : vector<16x128xbf16> to vector<16x128xf32>
    %8 = arith.addf %5, %7 : vector<16x128xf32>
    %cst_7 = arith.constant 0.000000e+00 : f32
    %9 = vector.broadcast %cst_7 : f32 to vector<16x128xf32>
    %10 = arith.maximumf %8, %9 : vector<16x128xf32>
    %11 = arith.truncf %10 : vector<16x128xf32> to vector<16x128xbf16>
    %c0_8 = arith.constant 0 : index
    %c0_9 = arith.constant 0 : index
    %12 = vector.load %arg5[%c0_8, %c0_9] : memref<16x128xbf16, #tpu.memory_space<vmem>>, vector<16x128xbf16>
    tpu.vector_store %arg5[%c0_8, %c0_9], %11 {strides = array<i32>} : memref<16x128xbf16, #tpu.memory_space<vmem>>, vector<16x128xbf16>,
    return
  }
  func.func @transform_0(%arg0: i32) -> (i32, i32) {
    %c0_i32 = arith.constant 0 : i32
    %c0_i32_0 = arith.constant 0 : i32
    return %arg0, %c0_i32 : i32, i32
  }
  func.func @transform_1(%arg0: i32) -> (i32, i32) {
    %c0_i32 = arith.constant 0 : i32
    %c0_i32_0 = arith.constant 0 : i32
    %c0_i32_1 = arith.constant 0 : i32
    return %c0_i32, %c0_i32_0 : i32, i32
  }
  func.func @transform_2(%arg0: i32) -> (i32, i32) {
    %c0_i32 = arith.constant 0 : i32
    %c0_i32_0 = arith.constant 0 : i32
    %c0_i32_1 = arith.constant 0 : i32
    return %c0_i32, %c0_i32_0 : i32, i32
  }
  func.func @transform_3(%arg0: i32) -> (i32, i32) {
    %c0_i32 = arith.constant 0 : i32
    %c0_i32_0 = arith.constant 0 : i32
    return %arg0, %c0_i32 : i32, i32
  }
  func.func @transform_4(%arg0: i32) -> (i32, i32) {
    %c0_i32 = arith.constant 0 : i32
    %c0_i32_0 = arith.constant 0 : i32
    return %arg0, %c0_i32 : i32, i32
  }
}

module attributes {stable_mosaic.version = 11 : i64} {
  func.func @_pool_kernel(%arg0: i32, %arg1: memref<16x128xbf16, #tpu.memory_space<vmem>>, %arg2: memref<16x128xbf16, #tpu.memory_space<vmem>>, %arg3: memref<16x128xbf16, #tpu.memory_space<vmem>>, %arg4: memref<16x128xbf16, #tpu.memory_space<vmem>>, %arg5: memref<16x128xbf16, #tpu.memory_space<vmem>>) attributes {dimension_semantics = [#tpu.dimension_semantics<parallel>], iteration_bounds = array<i64: 1>, scalar_prefetch = 0 : i64, scratch_operands = 0 : i64, tpu.core_type = #tpu.core_type<tc>, window_params = [{transform_indices = @transform_0, window_bounds = array<i64: 16, 128>}, {transform_indices = @transform_1, window_bounds = array<i64: 16, 128>}, {transform_indices = @transform_2, window_bounds = array<i64: 16, 128>}, {transform_indices = @transform_3, window_bounds = array<i64: 16, 128>}, {transform_indices = @transform_4, window_bounds = array<i64: 16, 128>}]} {
    %c0 = arith.constant 0 : index
    %c0_0 = arith.constant 0 : index
    %0 = vector.load %arg1[%c0, %c0_0] : memref<16x128xbf16, #tpu.memory_space<vmem>>, vector<16x128xbf16>
    %c0_1 = arith.constant 0 : index
    %c0_2 = arith.constant 0 : index
    %1 = vector.load %arg2[%c0_1, %c0_2] : memref<16x128xbf16, #tpu.memory_space<vmem>>, vector<16x128xbf16>
    %2 = arith.maximumf %0, %1 : vector<16x128xbf16>
    %c0_3 = arith.constant 0 : index
    %c0_4 = arith.constant 0 : index
    %3 = vector.load %arg3[%c0_3, %c0_4] : memref<16x128xbf16, #tpu.memory_space<vmem>>, vector<16x128xbf16>
    %4 = arith.maximumf %2, %3 : vector<16x128xbf16>
    %c0_5 = arith.constant 0 : index
    %c0_6 = arith.constant 0 : index
    %5 = vector.load %arg4[%c0_5, %c0_6] : memref<16x128xbf16, #tpu.memory_space<vmem>>, vector<16x128xbf16>
    %6 = arith.maximumf %4, %5 : vector<16x128xbf16>
    %c0_7 = arith.constant 0 : index
    %c0_8 = arith.constant 0 : index
    %7 = vector.load %arg5[%c0_7, %c0_8] : memref<16x128xbf16, #tpu.memory_space<vmem>>, vector<16x128xbf16>
    tpu.vector_store %arg5[%c0_7, %c0_8], %6 {strides = array<i32>} : memref<16x128xbf16, #tpu.memory_space<vmem>>, vector<16x128xbf16>,
    return
  }
  func.func @transform_0(%arg0: i32) -> (i32, i32) {
    %c0_i32 = arith.constant 0 : i32
    %c0_i32_0 = arith.constant 0 : i32
    return %arg0, %c0_i32 : i32, i32
  }
  func.func @transform_1(%arg0: i32) -> (i32, i32) {
    %c0_i32 = arith.constant 0 : i32
    %c0_i32_0 = arith.constant 0 : i32
    return %arg0, %c0_i32 : i32, i32
  }
  func.func @transform_2(%arg0: i32) -> (i32, i32) {
    %c0_i32 = arith.constant 0 : i32
    %c0_i32_0 = arith.constant 0 : i32
    return %arg0, %c0_i32 : i32, i32
  }
  func.func @transform_3(%arg0: i32) -> (i32, i32) {
    %c0_i32 = arith.constant 0 : i32
    %c0_i32_0 = arith.constant 0 : i32
    return %arg0, %c0_i32 : i32, i32
  }
  func.func @transform_4(%arg0: i32) -> (i32, i32) {
    %c0_i32 = arith.constant 0 : i32
    %c0_i32_0 = arith.constant 0 : i32
    return %arg0, %c0_i32 : i32, i32
  }
}

module attributes {stable_mosaic.version = 11 : i64} {
  func.func @_gemm_kernel(%arg0: i32, %arg1: memref<16x128xbf16, #tpu.memory_space<vmem>>, %arg2: memref<128x128xbf16, #tpu.memory_space<vmem>>, %arg3: memref<1x128xf32, #tpu.memory_space<vmem>>, %arg4: memref<16x128xbf16, #tpu.memory_space<vmem>>) attributes {dimension_semantics = [#tpu.dimension_semantics<parallel>], iteration_bounds = array<i64: 1>, scalar_prefetch = 0 : i64, scratch_operands = 0 : i64, tpu.core_type = #tpu.core_type<tc>, window_params = [{transform_indices = @transform_0, window_bounds = array<i64: 16, 128>}, {pipeline_mode = #tpu.pipeline_mode<synchronous>, transform_indices = @transform_1, window_bounds = array<i64: 128, 128>}, {pipeline_mode = #tpu.pipeline_mode<synchronous>, transform_indices = @transform_2, window_bounds = array<i64: 1, 128>}, {transform_indices = @transform_3, window_bounds = array<i64: 16, 128>}]} {
    %c0 = arith.constant 0 : index
    %c0_0 = arith.constant 0 : index
    %0 = vector.load %arg1[%c0, %c0_0] : memref<16x128xbf16, #tpu.memory_space<vmem>>, vector<16x128xbf16>
    %c0_1 = arith.constant 0 : index
    %c0_2 = arith.constant 0 : index
    %1 = vector.load %arg2[%c0_1, %c0_2] : memref<128x128xbf16, #tpu.memory_space<vmem>>, vector<128x128xbf16>
    %cst = arith.constant dense<0.000000e+00> : vector<16x128xf32>
    %2 = tpu.matmul %0, %1, %cst {dimension_numbers = #tpu.dot_dimension_numbers<[1], [0], [0], [1], [0, 0, 1, 1], [], []>} : vector<16x128xbf16>, vector<128x128xbf16>, vector<16x128xf32> -> vector<16x128xf32>
    %c0_3 = arith.constant 0 : index
    %c0_4 = arith.constant 0 : index
    %3 = vector.load %arg3[%c0_3, %c0_4] : memref<1x128xf32, #tpu.memory_space<vmem>>, vector<1x128xf32>
    %4 = vector.broadcast %3 : vector<1x128xf32> to vector<16x128xf32>
    %5 = arith.addf %2, %4 : vector<16x128xf32>
    %cst_5 = arith.constant 0.000000e+00 : f32
    %6 = vector.broadcast %cst_5 : f32 to vector<16x128xf32>
    %7 = arith.maximumf %5, %6 : vector<16x128xf32>
    %8 = arith.truncf %7 : vector<16x128xf32> to vector<16x128xbf16>
    %c0_6 = arith.constant 0 : index
    %c0_7 = arith.constant 0 : index
    %9 = vector.load %arg4[%c0_6, %c0_7] : memref<16x128xbf16, #tpu.memory_space<vmem>>, vector<16x128xbf16>
    tpu.vector_store %arg4[%c0_6, %c0_7], %8 {strides = array<i32>} : memref<16x128xbf16, #tpu.memory_space<vmem>>, vector<16x128xbf16>,
    return
  }
  func.func @transform_0(%arg0: i32) -> (i32, i32) {
    %c0_i32 = arith.constant 0 : i32
    %c0_i32_0 = arith.constant 0 : i32
    return %arg0, %c0_i32 : i32, i32
  }
  func.func @transform_1(%arg0: i32) -> (i32, i32) {
    %c0_i32 = arith.constant 0 : i32
    %c0_i32_0 = arith.constant 0 : i32
    %c0_i32_1 = arith.constant 0 : i32
    return %c0_i32, %c0_i32_0 : i32, i32
  }
  func.func @transform_2(%arg0: i32) -> (i32, i32) {
    %c0_i32 = arith.constant 0 : i32
    %c0_i32_0 = arith.constant 0 : i32
    %c0_i32_1 = arith.constant 0 : i32
    return %c0_i32, %c0_i32_0 : i32, i32
  }
  func.func @transform_3(%arg0: i32) -> (i32, i32) {
    %c0_i32 = arith.constant 0 : i32
    %c0_i32_0 = arith.constant 0 : i32
    return %arg0, %c0_i32 : i32, i32
  }
}

module attributes {stable_mosaic.version = 11 : i64} {
  func.func @_gemm_res_kernel(%arg0: i32, %arg1: memref<16x128xbf16, #tpu.memory_space<vmem>>, %arg2: memref<128x128xbf16, #tpu.memory_space<vmem>>, %arg3: memref<1x128xf32, #tpu.memory_space<vmem>>, %arg4: memref<16x128xbf16, #tpu.memory_space<vmem>>, %arg5: memref<16x128xbf16, #tpu.memory_space<vmem>>) attributes {dimension_semantics = [#tpu.dimension_semantics<parallel>], iteration_bounds = array<i64: 1>, scalar_prefetch = 0 : i64, scratch_operands = 0 : i64, tpu.core_type = #tpu.core_type<tc>, window_params = [{transform_indices = @transform_0, window_bounds = array<i64: 16, 128>}, {pipeline_mode = #tpu.pipeline_mode<synchronous>, transform_indices = @transform_1, window_bounds = array<i64: 128, 128>}, {pipeline_mode = #tpu.pipeline_mode<synchronous>, transform_indices = @transform_2, window_bounds = array<i64: 1, 128>}, {transform_indices = @transform_3, window_bounds = array<i64: 16, 128>}, {transform_indices = @transform_4, window_bounds = array<i64: 16, 128>}]} {
    %c0 = arith.constant 0 : index
    %c0_0 = arith.constant 0 : index
    %0 = vector.load %arg1[%c0, %c0_0] : memref<16x128xbf16, #tpu.memory_space<vmem>>, vector<16x128xbf16>
    %c0_1 = arith.constant 0 : index
    %c0_2 = arith.constant 0 : index
    %1 = vector.load %arg2[%c0_1, %c0_2] : memref<128x128xbf16, #tpu.memory_space<vmem>>, vector<128x128xbf16>
    %cst = arith.constant dense<0.000000e+00> : vector<16x128xf32>
    %2 = tpu.matmul %0, %1, %cst {dimension_numbers = #tpu.dot_dimension_numbers<[1], [0], [0], [1], [0, 0, 1, 1], [], []>} : vector<16x128xbf16>, vector<128x128xbf16>, vector<16x128xf32> -> vector<16x128xf32>
    %c0_3 = arith.constant 0 : index
    %c0_4 = arith.constant 0 : index
    %3 = vector.load %arg3[%c0_3, %c0_4] : memref<1x128xf32, #tpu.memory_space<vmem>>, vector<1x128xf32>
    %4 = vector.broadcast %3 : vector<1x128xf32> to vector<16x128xf32>
    %5 = arith.addf %2, %4 : vector<16x128xf32>
    %c0_5 = arith.constant 0 : index
    %c0_6 = arith.constant 0 : index
    %6 = vector.load %arg4[%c0_5, %c0_6] : memref<16x128xbf16, #tpu.memory_space<vmem>>, vector<16x128xbf16>
    %7 = arith.extf %6 : vector<16x128xbf16> to vector<16x128xf32>
    %8 = arith.addf %5, %7 : vector<16x128xf32>
    %cst_7 = arith.constant 0.000000e+00 : f32
    %9 = vector.broadcast %cst_7 : f32 to vector<16x128xf32>
    %10 = arith.maximumf %8, %9 : vector<16x128xf32>
    %11 = arith.truncf %10 : vector<16x128xf32> to vector<16x128xbf16>
    %c0_8 = arith.constant 0 : index
    %c0_9 = arith.constant 0 : index
    %12 = vector.load %arg5[%c0_8, %c0_9] : memref<16x128xbf16, #tpu.memory_space<vmem>>, vector<16x128xbf16>
    tpu.vector_store %arg5[%c0_8, %c0_9], %11 {strides = array<i32>} : memref<16x128xbf16, #tpu.memory_space<vmem>>, vector<16x128xbf16>,
    return
  }
  func.func @transform_0(%arg0: i32) -> (i32, i32) {
    %c0_i32 = arith.constant 0 : i32
    %c0_i32_0 = arith.constant 0 : i32
    return %arg0, %c0_i32 : i32, i32
  }
  func.func @transform_1(%arg0: i32) -> (i32, i32) {
    %c0_i32 = arith.constant 0 : i32
    %c0_i32_0 = arith.constant 0 : i32
    %c0_i32_1 = arith.constant 0 : i32
    return %c0_i32, %c0_i32_0 : i32, i32
  }
  func.func @transform_2(%arg0: i32) -> (i32, i32) {
    %c0_i32 = arith.constant 0 : i32
    %c0_i32_0 = arith.constant 0 : i32
    %c0_i32_1 = arith.constant 0 : i32
    return %c0_i32, %c0_i32_0 : i32, i32
  }
  func.func @transform_3(%arg0: i32) -> (i32, i32) {
    %c0_i32 = arith.constant 0 : i32
    %c0_i32_0 = arith.constant 0 : i32
    return %arg0, %c0_i32 : i32, i32
  }
  func.func @transform_4(%arg0: i32) -> (i32, i32) {
    %c0_i32 = arith.constant 0 : i32
    %c0_i32_0 = arith.constant 0 : i32
    return %arg0, %c0_i32 : i32, i32
  }
}

module attributes {stable_mosaic.version = 11 : i64} {
  func.func @_gemm_kernel(%arg0: i32, %arg1: memref<16x256xbf16, #tpu.memory_space<vmem>>, %arg2: memref<256x128xbf16, #tpu.memory_space<vmem>>, %arg3: memref<1x128xf32, #tpu.memory_space<vmem>>, %arg4: memref<16x128xbf16, #tpu.memory_space<vmem>>) attributes {dimension_semantics = [#tpu.dimension_semantics<parallel>], iteration_bounds = array<i64: 1>, scalar_prefetch = 0 : i64, scratch_operands = 0 : i64, tpu.core_type = #tpu.core_type<tc>, window_params = [{transform_indices = @transform_0, window_bounds = array<i64: 16, 256>}, {pipeline_mode = #tpu.pipeline_mode<synchronous>, transform_indices = @transform_1, window_bounds = array<i64: 256, 128>}, {pipeline_mode = #tpu.pipeline_mode<synchronous>, transform_indices = @transform_2, window_bounds = array<i64: 1, 128>}, {transform_indices = @transform_3, window_bounds = array<i64: 16, 128>}]} {
    %c0 = arith.constant 0 : index
    %c0_0 = arith.constant 0 : index
    %0 = vector.load %arg1[%c0, %c0_0] : memref<16x256xbf16, #tpu.memory_space<vmem>>, vector<16x256xbf16>
    %c0_1 = arith.constant 0 : index
    %c0_2 = arith.constant 0 : index
    %1 = vector.load %arg2[%c0_1, %c0_2] : memref<256x128xbf16, #tpu.memory_space<vmem>>, vector<256x128xbf16>
    %cst = arith.constant dense<0.000000e+00> : vector<16x128xf32>
    %2 = tpu.matmul %0, %1, %cst {dimension_numbers = #tpu.dot_dimension_numbers<[1], [0], [0], [1], [0, 0, 1, 1], [], []>} : vector<16x256xbf16>, vector<256x128xbf16>, vector<16x128xf32> -> vector<16x128xf32>
    %c0_3 = arith.constant 0 : index
    %c0_4 = arith.constant 0 : index
    %3 = vector.load %arg3[%c0_3, %c0_4] : memref<1x128xf32, #tpu.memory_space<vmem>>, vector<1x128xf32>
    %4 = vector.broadcast %3 : vector<1x128xf32> to vector<16x128xf32>
    %5 = arith.addf %2, %4 : vector<16x128xf32>
    %cst_5 = arith.constant 0.000000e+00 : f32
    %6 = vector.broadcast %cst_5 : f32 to vector<16x128xf32>
    %7 = arith.maximumf %5, %6 : vector<16x128xf32>
    %8 = arith.truncf %7 : vector<16x128xf32> to vector<16x128xbf16>
    %c0_6 = arith.constant 0 : index
    %c0_7 = arith.constant 0 : index
    %9 = vector.load %arg4[%c0_6, %c0_7] : memref<16x128xbf16, #tpu.memory_space<vmem>>, vector<16x128xbf16>
    tpu.vector_store %arg4[%c0_6, %c0_7], %8 {strides = array<i32>} : memref<16x128xbf16, #tpu.memory_space<vmem>>, vector<16x128xbf16>,
    return
  }
  func.func @transform_0(%arg0: i32) -> (i32, i32) {
    %c0_i32 = arith.constant 0 : i32
    %c0_i32_0 = arith.constant 0 : i32
    return %arg0, %c0_i32 : i32, i32
  }
  func.func @transform_1(%arg0: i32) -> (i32, i32) {
    %c0_i32 = arith.constant 0 : i32
    %c0_i32_0 = arith.constant 0 : i32
    %c0_i32_1 = arith.constant 0 : i32
    return %c0_i32, %c0_i32_0 : i32, i32
  }
  func.func @transform_2(%arg0: i32) -> (i32, i32) {
    %c0_i32 = arith.constant 0 : i32
    %c0_i32_0 = arith.constant 0 : i32
    %c0_i32_1 = arith.constant 0 : i32
    return %c0_i32, %c0_i32_0 : i32, i32
  }
  func.func @transform_3(%arg0: i32) -> (i32, i32) {
    %c0_i32 = arith.constant 0 : i32
    %c0_i32_0 = arith.constant 0 : i32
    return %arg0, %c0_i32 : i32, i32
  }
}

module attributes {stable_mosaic.version = 11 : i64} {
  func.func @_gemm_kernel(%arg0: i32, %arg1: memref<16x256xbf16, #tpu.memory_space<vmem>>, %arg2: memref<256x128xbf16, #tpu.memory_space<vmem>>, %arg3: memref<1x128xf32, #tpu.memory_space<vmem>>, %arg4: memref<16x128xbf16, #tpu.memory_space<vmem>>) attributes {dimension_semantics = [#tpu.dimension_semantics<parallel>], iteration_bounds = array<i64: 1>, scalar_prefetch = 0 : i64, scratch_operands = 0 : i64, tpu.core_type = #tpu.core_type<tc>, window_params = [{transform_indices = @transform_0, window_bounds = array<i64: 16, 256>}, {pipeline_mode = #tpu.pipeline_mode<synchronous>, transform_indices = @transform_1, window_bounds = array<i64: 256, 128>}, {pipeline_mode = #tpu.pipeline_mode<synchronous>, transform_indices = @transform_2, window_bounds = array<i64: 1, 128>}, {transform_indices = @transform_3, window_bounds = array<i64: 16, 128>}]} {
    %c0 = arith.constant 0 : index
    %c0_0 = arith.constant 0 : index
    %0 = vector.load %arg1[%c0, %c0_0] : memref<16x256xbf16, #tpu.memory_space<vmem>>, vector<16x256xbf16>
    %c0_1 = arith.constant 0 : index
    %c0_2 = arith.constant 0 : index
    %1 = vector.load %arg2[%c0_1, %c0_2] : memref<256x128xbf16, #tpu.memory_space<vmem>>, vector<256x128xbf16>
    %cst = arith.constant dense<0.000000e+00> : vector<16x128xf32>
    %2 = tpu.matmul %0, %1, %cst {dimension_numbers = #tpu.dot_dimension_numbers<[1], [0], [0], [1], [0, 0, 1, 1], [], []>} : vector<16x256xbf16>, vector<256x128xbf16>, vector<16x128xf32> -> vector<16x128xf32>
    %c0_3 = arith.constant 0 : index
    %c0_4 = arith.constant 0 : index
    %3 = vector.load %arg3[%c0_3, %c0_4] : memref<1x128xf32, #tpu.memory_space<vmem>>, vector<1x128xf32>
    %4 = vector.broadcast %3 : vector<1x128xf32> to vector<16x128xf32>
    %5 = arith.addf %2, %4 : vector<16x128xf32>
    %6 = arith.truncf %5 : vector<16x128xf32> to vector<16x128xbf16>
    %c0_5 = arith.constant 0 : index
    %c0_6 = arith.constant 0 : index
    %7 = vector.load %arg4[%c0_5, %c0_6] : memref<16x128xbf16, #tpu.memory_space<vmem>>, vector<16x128xbf16>
    tpu.vector_store %arg4[%c0_5, %c0_6], %6 {strides = array<i32>} : memref<16x128xbf16, #tpu.memory_space<vmem>>, vector<16x128xbf16>,
    return
  }
  func.func @transform_0(%arg0: i32) -> (i32, i32) {
    %c0_i32 = arith.constant 0 : i32
    %c0_i32_0 = arith.constant 0 : i32
    return %arg0, %c0_i32 : i32, i32
  }
  func.func @transform_1(%arg0: i32) -> (i32, i32) {
    %c0_i32 = arith.constant 0 : i32
    %c0_i32_0 = arith.constant 0 : i32
    %c0_i32_1 = arith.constant 0 : i32
    return %c0_i32, %c0_i32_0 : i32, i32
  }
  func.func @transform_2(%arg0: i32) -> (i32, i32) {
    %c0_i32 = arith.constant 0 : i32
    %c0_i32_0 = arith.constant 0 : i32
    %c0_i32_1 = arith.constant 0 : i32
    return %c0_i32, %c0_i32_0 : i32, i32
  }
  func.func @transform_3(%arg0: i32) -> (i32, i32) {
    %c0_i32 = arith.constant 0 : i32
    %c0_i32_0 = arith.constant 0 : i32
    return %arg0, %c0_i32 : i32, i32
  }
}

</mosaic_0001>

<llo_original>
// kernel: _lambda_.47
$region0: #{_lambda_.47}
  #allocation0 [shape = 'u32[]', space=smem, size = 0x4, offset = 0x4, fixed_abs, tag = 'smem constant byte address 0x4 - core index']
  #allocation1 [shape = 'u32[144,128]{1,0:T(1,128)}', space=vmem, size = 0x12000, scoped, tag = 'internal scratch']
  %s0 = inlined_call_operand.vmem [shape: bf16[2048,256], index: 0, kind: input, shape index: {}]
  %s1 = inlined_call_operand.vmem [shape: bf16[256,128], index: 1, kind: input, shape index: {}]
  %s2 = inlined_call_operand.vmem [shape: f32[1,128], index: 2, kind: input, shape index: {}]
  %s3 = inlined_call_operand.vmem [shape: bf16[2048,128], index: 3, kind: output, shape index: {}]
  %s4 = sld [smem:[#allocation0]]
  $region45: #{_lambda_.47} parent=0
    _
  %s6 = ssub.s32 1, %s4
  %s7 = scalar_select 0, %s6, %s4
  loop: start=0, step=1, limit=10
  $region2: #{_lambda_.47} parent=0 // loop_pre_header
    _
  $region3: #{_lambda_.47} parent=0 // loop_header
    %s9 = sphi 0, %s13
    %p10 = scmp.ge.s32.totalorder %s9, 10
    %s19 = sphi 0, %s21
    %s22 = sphi 0, %s19
    %s23 = sphi 0, %s22
    %s39 = sphi 0, %s23
    %s43 = sphi 0, %s43
    %s45 = sphi 0, %s43
    %s46 = sphi 0, %s45
    %s60 = sphi 0, %s46
    %s64 = sphi 0, %s64
    %s66 = sphi 0, %s64
    %s67 = sphi 0, %s66
    %s81 = sphi 0, %s67
    %s87 = sphi 0, %s89
    %s90 = sphi 0, %s87
    %s91 = sphi 0, %s90
    %s107 = sphi 0, %s91
  $region4: #{_lambda_.47} parent=0 // loop_header_branch
    %12 = sbr.rel (%p10) target = $region8
  $region5: #{_lambda_.47} parent=0 // loop_body
    %s14 = ssub.s32 %s9, 1
    %s15 = ssub.s32 %s9, 2
    %s16 = sadd.s32 %s9, 1
    %s17 = ssub.s32 %s9, %s16
    %p18 = scmp.eq.s32.totalorder %s17, 0
    %s20 = sadd.s32 %s19, 1
    %s21 = scalar_select %p18, %s19, %s20
    %p24 = pneg %p18
    %p25 = scmp.eq.s32.totalorder %s9, 7
    %p26 = por %p24, %p25
    %p27 = scmp.ne.s32.totalorder %s19, %s22
    %p28 = scmp.eq.s32.totalorder %s9, 0
    %p29 = por %p27, %p28
    %p30 = scmp.ne.s32.totalorder %s19, %s22
    %p31 = scmp.eq.s32.totalorder %s14, 7
    %p32 = por %p30, %p31
    %p33 = scmp.ne.s32.totalorder %s22, %s23
    %p34 = scmp.eq.s32.totalorder %s14, 0
    %p35 = por %p33, %p34
    %p36 = scmp.ne.s32.totalorder %s22, %s23
    %p37 = scmp.eq.s32.totalorder %s15, 7
    %p38 = por %p36, %p37
    %p40 = scmp.ne.s32.totalorder %s23, %s39
    %p41 = scmp.eq.s32.totalorder %s15, 0
    %p42 = por %p40, %p41
    %s44 = sadd.s32 %s43, 1
    %p47 = scmp.eq.s32.totalorder %s9, 7
    %p48 = scmp.ne.s32.totalorder %s43, %s45
    %p49 = scmp.eq.s32.totalorder %s9, 0
    %p50 = por %p48, %p49
    %p51 = scmp.ne.s32.totalorder %s43, %s45
    %p52 = scmp.eq.s32.totalorder %s14, 7
    %p53 = por %p51, %p52
    %p54 = scmp.ne.s32.totalorder %s45, %s46
    %p55 = scmp.eq.s32.totalorder %s14, 0
    %p56 = por %p54, %p55
    %p57 = scmp.ne.s32.totalorder %s45, %s46
    %p58 = scmp.eq.s32.totalorder %s15, 7
    %p59 = por %p57, %p58
    %p61 = scmp.ne.s32.totalorder %s46, %s60
    %p62 = scmp.eq.s32.totalorder %s15, 0
    %p63 = por %p61, %p62
    %s65 = sadd.s32 %s64, 1
    %p68 = scmp.eq.s32.totalorder %s9, 7
    %p69 = scmp.ne.s32.totalorder %s64, %s66
    %p70 = scmp.eq.s32.totalorder %s9, 0
    %p71 = por %p69, %p70
    %p72 = scmp.ne.s32.totalorder %s64, %s66
    %p73 = scmp.eq.s32.totalorder %s14, 7
    %p74 = por %p72, %p73
    %p75 = scmp.ne.s32.totalorder %s66, %s67
    %p76 = scmp.eq.s32.totalorder %s14, 0
    %p77 = por %p75, %p76
    %p78 = scmp.ne.s32.totalorder %s66, %s67
    %p79 = scmp.eq.s32.totalorder %s15, 7
    %p80 = por %p78, %p79
    %p82 = scmp.ne.s32.totalorder %s67, %s81
    %p83 = scmp.eq.s32.totalorder %s15, 0
    %p84 = por %p82, %p83
    %s85 = ssub.s32 %s9, %s16
    %p86 = scmp.eq.s32.totalorder %s85, 0
    %s88 = sadd.s32 %s87, 1
    %s89 = scalar_select %p86, %s87, %s88
    %p92 = pneg %p86
    %p93 = scmp.eq.s32.totalorder %s9, 7
    %p94 = por %p92, %p93
    %p95 = scmp.ne.s32.totalorder %s87, %s90
    %p96 = scmp.eq.s32.totalorder %s9, 0
    %p97 = por %p95, %p96
    %p98 = scmp.ne.s32.totalorder %s87, %s90
    %p99 = scmp.eq.s32.totalorder %s14, 7
    %p100 = por %p98, %p99
    %p101 = scmp.ne.s32.totalorder %s90, %s91
    %p102 = scmp.eq.s32.totalorder %s14, 0
    %p103 = por %p101, %p102
    %p104 = scmp.ne.s32.totalorder %s90, %s91
    %p105 = scmp.eq.s32.totalorder %s15, 7
    %p106 = por %p104, %p105
    %p108 = scmp.ne.s32.totalorder %s91, %s107
    %p109 = scmp.eq.s32.totalorder %s15, 0
    %p110 = por %p108, %p109
    %p111 = scmp.le.s32.totalorder 1, %s9
    %p112 = scmp.lt.s32.totalorder %s9, 9
    %p113 = pnand %p111, %p112
    %p114 = pneg %p113
    // Predicated region
    $region9: #{_lambda_.47} parent=5 // pred_check
      _
    $region10: #{_lambda_.47} parent=5 // pred_check_branch
      %116 = sbr.rel (%p113) target = $region12
    $region11: #{_lambda_.47} parent=5 // pred_region
      %s117 = ssub.s32 %s9, 1
      // Predicated region
      $region13: #{_lambda_.47} parent=11 // pred_check
        %p118 = pneg %p56
      $region14: #{_lambda_.47} parent=11 // pred_check_branch
        %120 = sbr.rel (%p118) target = $region16
      $region15: #{_lambda_.47} parent=11 // pred_region
        _
      $region16: #{_lambda_.47} parent=11 // pred_fallthru
        _
      // Predicated region
      $region17: #{_lambda_.47} parent=11 // pred_check
        %p121 = pneg %p77
      $region18: #{_lambda_.47} parent=11 // pred_check_branch
        %123 = sbr.rel (%p121) target = $region20
      $region19: #{_lambda_.47} parent=11 // pred_region
        _
      $region20: #{_lambda_.47} parent=11 // pred_fallthru
        _
    $region12: #{_lambda_.47} parent=5 // pred_fallthru
      _
    %p124 = scmp.lt.s32.totalorder %s9, 8
    // Predicated region
    $region21: #{_lambda_.47} parent=5 // pred_check
      %p125 = pneg %p124
    $region22: #{_lambda_.47} parent=5 // pred_check_branch
      %127 = sbr.rel (%p125) target = $region24
    $region23: #{_lambda_.47} parent=5 // pred_region
      // Predicated region
      $region25: #{_lambda_.47} parent=23 // pred_check
        %p128 = pneg %p29
      $region26: #{_lambda_.47} parent=23 // pred_check_branch
        %130 = sbr.rel (%p128) target = $region28
      $region27: #{_lambda_.47} parent=23 // pred_region
        %s131 = smul.u32 32, %s9
        %p132 = scmp.lt.s32.totalorder %s131, 255
        %s133 = scalar_select %p132, %s131, 255
        %s134 = smul.addr %s133, 2
        %s135 = smul.addr %s134, 4
        %s136 = scalar_lea.vmem %s0, %s135
        %s137 = smul.u32 32, %s9
      $region28: #{_lambda_.47} parent=23 // pred_fallthru
        _
    $region24: #{_lambda_.47} parent=5 // pred_fallthru
      _
    %p138 = scmp.le.s32.totalorder 1, %s9
    %p139 = scmp.lt.s32.totalorder %s9, 9
    %p140 = pnand %p138, %p139
    %p141 = pneg %p140
    // Predicated region
    $region29: #{_lambda_.47} parent=5 // pred_check
      _
    $region30: #{_lambda_.47} parent=5 // pred_check_branch
      %143 = sbr.rel (%p140) target = $region32
    $region31: #{_lambda_.47} parent=5 // pred_region
      %s144 = ssub.s32 %s9, 1
      %s145 = smul.u32 32, %s14
      %p146 = scmp.lt.s32.totalorder %s145, 255
      %s147 = scalar_select %p146, %s145, 255
      %s148 = smul.addr %s147, 2
      %s149 = smul.addr %s148, 4
      %s150 = scalar_lea.vmem %s0, %s149
      %p151 = pneg %p35
      %p152 = pneg %p32
      %p153 = pneg %p56
      %p154 = pneg %p53
      %p155 = pneg %p77
      %p156 = pneg %p74
      %p157 = pneg %p103
      %p158 = pneg %p100
      %s159 = smul.u32 32, %s14
      %p160 = scmp.lt.s32.totalorder %s159, 255
      %s161 = scalar_select %p160, %s159, 255
      %s162 = smul.addr %s161, 4
      %s163 = scalar_lea.vmem %s3, %s162
      %s164 = smul.u32 32, %s14
      %p165 = scmp.lt.s32.totalorder %s164, 255
      %s166 = scalar_select %p165, %s164, 255
      %s167 = smul.addr %s166, 2
      %s168 = smul.addr %s167, 4
      %s169 = scalar_lea.vmem %s0, %s168
      %s170 = smul.u32 32, %s14
      %s171 = smul.u32 32, %s14
      %p172 = scmp.lt.s32.totalorder %s171, 255
      %s173 = scalar_select %p172, %s171, 255
      %s174 = smul.addr %s173, 4
      %s175 = scalar_lea.vmem %s3, %s174
      %s176 = smul.u32 32, %s14
      %v178 = vld [vmem:[%s169] sm:$0xff]
      %v179 = vld [vmem:[%s169 + $0x8] sm:$0xff]
      %v180 = vld [vmem:[%s169 + $0x10] sm:$0xff]
      %v181 = vld [vmem:[%s169 + $0x18] sm:$0xff]
      %v182 = vld [vmem:[%s169 + $0x20] sm:$0xff]
      %v183 = vld [vmem:[%s169 + $0x28] sm:$0xff]
      %v184 = vld [vmem:[%s169 + $0x30] sm:$0xff]
      %v185 = vld [vmem:[%s169 + $0x38] sm:$0xff]
      %v186 = vld [vmem:[%s169 + $0x40] sm:$0xff]
      %v187 = vld [vmem:[%s169 + $0x48] sm:$0xff]
      %v188 = vld [vmem:[%s169 + $0x50] sm:$0xff]
      %v189 = vld [vmem:[%s169 + $0x58] sm:$0xff]
      %v190 = vld [vmem:[%s169 + $0x60] sm:$0xff]
      %v191 = vld [vmem:[%s169 + $0x68] sm:$0xff]
      %v192 = vld [vmem:[%s169 + $0x70] sm:$0xff]
      %v193 = vld [vmem:[%s169 + $0x78] sm:$0xff]
      %v194 = vld [vmem:[%s169 + $0x80] sm:$0xff]
      %v195 = vld [vmem:[%s169 + $0x88] sm:$0xff]
      %v196 = vld [vmem:[%s169 + $0x90] sm:$0xff]
      %v197 = vld [vmem:[%s169 + $0x98] sm:$0xff]
      %v198 = vld [vmem:[%s169 + $0xa0] sm:$0xff]
      %v199 = vld [vmem:[%s169 + $0xa8] sm:$0xff]
      %v200 = vld [vmem:[%s169 + $0xb0] sm:$0xff]
      %v201 = vld [vmem:[%s169 + $0xb8] sm:$0xff]
      %v202 = vld [vmem:[%s169 + $0xc0] sm:$0xff]
      %v203 = vld [vmem:[%s169 + $0xc8] sm:$0xff]
      %v204 = vld [vmem:[%s169 + $0xd0] sm:$0xff]
      %v205 = vld [vmem:[%s169 + $0xd8] sm:$0xff]
      %v206 = vld [vmem:[%s169 + $0xe0] sm:$0xff]
      %v207 = vld [vmem:[%s169 + $0xe8] sm:$0xff]
      %v208 = vld [vmem:[%s169 + $0xf0] sm:$0xff]
      %v209 = vld [vmem:[%s169 + $0xf8] sm:$0xff]
      %v210 = vld [vmem:[%s1] sm:$0xf]
      %v211 = vld [vmem:[%s1 + $0x4] sm:$0xf]
      %v212 = vld [vmem:[%s1 + $0x8] sm:$0xf]
      %v213 = vld [vmem:[%s1 + $0xc] sm:$0xf]
      %v214 = vld [vmem:[%s1 + $0x10] sm:$0xf]
      %v215 = vld [vmem:[%s1 + $0x14] sm:$0xf]
      %v216 = vld [vmem:[%s1 + $0x18] sm:$0xf]
      %v217 = vld [vmem:[%s1 + $0x1c] sm:$0xf]
      %v218 = vld [vmem:[%s1 + $0x20] sm:$0xf]
      %v219 = vld [vmem:[%s1 + $0x24] sm:$0xf]
      %v220 = vld [vmem:[%s1 + $0x28] sm:$0xf]
      %v221 = vld [vmem:[%s1 + $0x2c] sm:$0xf]
      %v222 = vld [vmem:[%s1 + $0x30] sm:$0xf]
      %v223 = vld [vmem:[%s1 + $0x34] sm:$0xf]
      %v224 = vld [vmem:[%s1 + $0x38] sm:$0xf]
      %v225 = vld [vmem:[%s1 + $0x3c] sm:$0xf]
      %v226 = vld [vmem:[%s1 + $0x40] sm:$0xf]
      %v227 = vld [vmem:[%s1 + $0x44] sm:$0xf]
      %v228 = vld [vmem:[%s1 + $0x48] sm:$0xf]
      %v229 = vld [vmem:[%s1 + $0x4c] sm:$0xf]
      %v230 = vld [vmem:[%s1 + $0x50] sm:$0xf]
      %v231 = vld [vmem:[%s1 + $0x54] sm:$0xf]
      %v232 = vld [vmem:[%s1 + $0x58] sm:$0xf]
      %v233 = vld [vmem:[%s1 + $0x5c] sm:$0xf]
      %v234 = vld [vmem:[%s1 + $0x60] sm:$0xf]
      %v235 = vld [vmem:[%s1 + $0x64] sm:$0xf]
      %v236 = vld [vmem:[%s1 + $0x68] sm:$0xf]
      %v237 = vld [vmem:[%s1 + $0x6c] sm:$0xf]
      %v238 = vld [vmem:[%s1 + $0x70] sm:$0xf]
      %v239 = vld [vmem:[%s1 + $0x74] sm:$0xf]
      %v240 = vld [vmem:[%s1 + $0x78] sm:$0xf]
      %v241 = vld [vmem:[%s1 + $0x7c] sm:$0xf]
      %v242 = vld [vmem:[%s2] sm:$0x1]
      %v244 = vlaneseq
      %v245 = vshrl.u32 %v244, 7
      %v246 = vsub.s32 0, %v245
      %v247 = vrot.slane %v242, %v246
      %v281 = vunpack.c.l.b16 %v178
      %v282 = vunpack.c.h.b16 %v178
      %v283 = vunpack.c.l.b16 %v179
      %v284 = vunpack.c.h.b16 %v179
      %v285 = vunpack.c.l.b16 %v180
      %v286 = vunpack.c.h.b16 %v180
      %v287 = vunpack.c.l.b16 %v181
      %v288 = vunpack.c.h.b16 %v181
      %v289 = vunpack.c.l.b16 %v182
      %v290 = vunpack.c.h.b16 %v182
      %v291 = vunpack.c.l.b16 %v183
      %v292 = vunpack.c.h.b16 %v183
      %v293 = vunpack.c.l.b16 %v184
      %v294 = vunpack.c.h.b16 %v184
      %v295 = vunpack.c.l.b16 %v185
      %v296 = vunpack.c.h.b16 %v185
      %v297 = vunpack.c.l.b16 %v186
      %v298 = vunpack.c.h.b16 %v186
      %v299 = vunpack.c.l.b16 %v187
      %v300 = vunpack.c.h.b16 %v187
      %v301 = vunpack.c.l.b16 %v188
      %v302 = vunpack.c.h.b16 %v188
      %v303 = vunpack.c.l.b16 %v189
      %v304 = vunpack.c.h.b16 %v189
      %v305 = vunpack.c.l.b16 %v190
      %v306 = vunpack.c.h.b16 %v190
      %v307 = vunpack.c.l.b16 %v191
      %v308 = vunpack.c.h.b16 %v191
      %v309 = vunpack.c.l.b16 %v192
      %v310 = vunpack.c.h.b16 %v192
      %v311 = vunpack.c.l.b16 %v193
      %v312 = vunpack.c.h.b16 %v193
      %v313 = vunpack.c.l.b16 %v194
      %v314 = vunpack.c.h.b16 %v194
      %v315 = vunpack.c.l.b16 %v195
      %v316 = vunpack.c.h.b16 %v195
      %v317 = vunpack.c.l.b16 %v196
      %v318 = vunpack.c.h.b16 %v196
      %v319 = vunpack.c.l.b16 %v197
      %v320 = vunpack.c.h.b16 %v197
      %v321 = vunpack.c.l.b16 %v198
      %v322 = vunpack.c.h.b16 %v198
      %v323 = vunpack.c.l.b16 %v199
      %v324 = vunpack.c.h.b16 %v199
      %v325 = vunpack.c.l.b16 %v200
      %v326 = vunpack.c.h.b16 %v200
      %v327 = vunpack.c.l.b16 %v201
      %v328 = vunpack.c.h.b16 %v201
      %v329 = vunpack.c.l.b16 %v202
      %v330 = vunpack.c.h.b16 %v202
      %v331 = vunpack.c.l.b16 %v203
      %v332 = vunpack.c.h.b16 %v203
      %v333 = vunpack.c.l.b16 %v204
      %v334 = vunpack.c.h.b16 %v204
      %v335 = vunpack.c.l.b16 %v205
      %v336 = vunpack.c.h.b16 %v205
      %v337 = vunpack.c.l.b16 %v206
      %v338 = vunpack.c.h.b16 %v206
      %v339 = vunpack.c.l.b16 %v207
      %v340 = vunpack.c.h.b16 %v207
      %v341 = vunpack.c.l.b16 %v208
      %v342 = vunpack.c.h.b16 %v208
      %v343 = vunpack.c.l.b16 %v209
      %v344 = vunpack.c.h.b16 %v209
      %v345 = vpack.c.b16 %v283, %v281
      %v346 = vpack.c.b16 %v284, %v282
      %v347 = vpack.c.b16 %v287, %v285
      %v348 = vpack.c.b16 %v288, %v286
      %v349 = vpack.c.b16 %v291, %v289
      %v350 = vpack.c.b16 %v292, %v290
      %v351 = vpack.c.b16 %v295, %v293
      %v352 = vpack.c.b16 %v296, %v294
      %v353 = vpack.c.b16 %v299, %v297
      %v354 = vpack.c.b16 %v300, %v298
      %v355 = vpack.c.b16 %v303, %v301
      %v356 = vpack.c.b16 %v304, %v302
      %v357 = vpack.c.b16 %v307, %v305
      %v358 = vpack.c.b16 %v308, %v306
      %v359 = vpack.c.b16 %v311, %v309
      %v360 = vpack.c.b16 %v312, %v310
      %v361 = vpack.c.b16 %v315, %v313
      %v362 = vpack.c.b16 %v316, %v314
      %v363 = vpack.c.b16 %v319, %v317
      %v364 = vpack.c.b16 %v320, %v318
      %v365 = vpack.c.b16 %v323, %v321
      %v366 = vpack.c.b16 %v324, %v322
      %v367 = vpack.c.b16 %v327, %v325
      %v368 = vpack.c.b16 %v328, %v326
      %v369 = vpack.c.b16 %v331, %v329
      %v370 = vpack.c.b16 %v332, %v330
      %v371 = vpack.c.b16 %v335, %v333
      %v372 = vpack.c.b16 %v336, %v334
      %v373 = vpack.c.b16 %v339, %v337
      %v374 = vpack.c.b16 %v340, %v338
      %v375 = vpack.c.b16 %v343, %v341
      %v376 = vpack.c.b16 %v344, %v342
      %v441 = vunpack.c.l.b16 %v210
      %v442 = vunpack.c.l.b16 %v211
      %v443 = vunpack.c.l.b16 %v212
      %v444 = vunpack.c.l.b16 %v213
      %v445 = vunpack.c.l.b16 %v214
      %v446 = vunpack.c.l.b16 %v215
      %v447 = vunpack.c.l.b16 %v216
      %v448 = vunpack.c.l.b16 %v217
      %v449 = vunpack.c.l.b16 %v218
      %v450 = vunpack.c.l.b16 %v219
      %v451 = vunpack.c.l.b16 %v220
      %v452 = vunpack.c.l.b16 %v221
      %v453 = vunpack.c.l.b16 %v222
      %v454 = vunpack.c.l.b16 %v223
      %v455 = vunpack.c.l.b16 %v224
      %v456 = vunpack.c.l.b16 %v225
      %v457 = vunpack.c.l.b16 %v226
      %v458 = vunpack.c.l.b16 %v227
      %v459 = vunpack.c.l.b16 %v228
      %v460 = vunpack.c.l.b16 %v229
      %v461 = vunpack.c.l.b16 %v230
      %v462 = vunpack.c.l.b16 %v231
      %v463 = vunpack.c.l.b16 %v232
      %v464 = vunpack.c.l.b16 %v233
      %v465 = vunpack.c.l.b16 %v234
      %v466 = vunpack.c.l.b16 %v235
      %v467 = vunpack.c.l.b16 %v236
      %v468 = vunpack.c.l.b16 %v237
      %v469 = vunpack.c.l.b16 %v238
      %v470 = vunpack.c.l.b16 %v239
      %v471 = vunpack.c.l.b16 %v240
      %v472 = vunpack.c.l.b16 %v241
      %v473 = vpack.c.b16 %v442, %v441
      %v474 = vpack.c.b16 %v444, %v443
      %v475 = vpack.c.b16 %v446, %v445
      %v476 = vpack.c.b16 %v448, %v447
      %v477 = vpack.c.b16 %v450, %v449
      %v478 = vpack.c.b16 %v452, %v451
      %v479 = vpack.c.b16 %v454, %v453
      %v480 = vpack.c.b16 %v456, %v455
      %v481 = vpack.c.b16 %v458, %v457
      %v482 = vpack.c.b16 %v460, %v459
      %v483 = vpack.c.b16 %v462, %v461
      %v484 = vpack.c.b16 %v464, %v463
      %v485 = vpack.c.b16 %v466, %v465
      %v486 = vpack.c.b16 %v468, %v467
      %v487 = vpack.c.b16 %v470, %v469
      %v488 = vpack.c.b16 %v472, %v471
      %505 = vmatprep.subr.bf16.mxu0 0
      %506 = vmatpush1.bf16.msra.mxu0 %v473
      %507 = vmatprep.subr.bf16.mxu0 0
      %508 = vmatpush1.bf16.msra.mxu0 %v474
      %509 = vmatprep.subr.bf16.mxu0 0
      %510 = vmatpush1.bf16.msra.mxu0 %v475
      %511 = vmatprep.subr.bf16.mxu0 0
      %512 = vmatpush1.bf16.msra.mxu0 %v476
      %513 = vmatprep.subr.bf16.mxu0 0
      %514 = vmatpush1.bf16.msra.mxu0 %v477
      %515 = vmatprep.subr.bf16.mxu0 0
      %516 = vmatpush1.bf16.msra.mxu0 %v478
      %517 = vmatprep.subr.bf16.mxu0 0
      %518 = vmatpush1.bf16.msra.mxu0 %v479
      %519 = vmatprep.subr.bf16.mxu0 0
      %520 = vmatpush1.bf16.msra.mxu0 %v480
      %521 = vmatprep.subr.bf16.mxu0 0
      %522 = vmatpush1.bf16.msra.mxu0 %v481
      %523 = vmatprep.subr.bf16.mxu0 0
      %524 = vmatpush1.bf16.msra.mxu0 %v482
      %525 = vmatprep.subr.bf16.mxu0 0
      %526 = vmatpush1.bf16.msra.mxu0 %v483
      %527 = vmatprep.subr.bf16.mxu0 0
      %528 = vmatpush1.bf16.msra.mxu0 %v484
      %529 = vmatprep.subr.bf16.mxu0 0
      %530 = vmatpush1.bf16.msra.mxu0 %v485
      %531 = vmatprep.subr.bf16.mxu0 0
      %532 = vmatpush1.bf16.msra.mxu0 %v486
      %533 = vmatprep.subr.bf16.mxu0 0
      %534 = vmatpush1.bf16.msra.mxu0 %v487
      %535 = vmatprep.subr.bf16.mxu0 0
      %536 = vmatpush1.bf16.msra.mxu0 %v488
      %537 = vmatprep.mubr.bf16.mxu0 %v346
      %538 = vmatmul.mubr.bf16.gmra.mrb[0].mxu0 %v345
      %v539 = vpop.f32.mrb[0].mxu0
      %v540 = vadd.f32 %v247, %v539
      %v541 = vpop.f32.mrb[0].mxu0
      %v542 = vpop.f32.mrb[0].mxu0
      %v543 = vadd.f32 %v247, %v542
      %v544 = vpop.f32.mrb[0].mxu0
      %545 = vmatprep.mubr.bf16.mxu0 %v348
      %546 = vmatmul.mubr.bf16.gmra.mrb[0].mxu0 %v347
      %v547 = vpop.f32.mrb[0].mxu0
      %v548 = vadd.f32 %v247, %v547
      %v549 = vpop.f32.mrb[0].mxu0
      %v550 = vpop.f32.mrb[0].mxu0
      %v551 = vadd.f32 %v247, %v550
      %v552 = vpop.f32.mrb[0].mxu0
      %553 = vmatprep.mubr.bf16.mxu0 %v350
      %554 = vmatmul.mubr.bf16.gmra.mrb[0].mxu0 %v349
      %v555 = vpop.f32.mrb[0].mxu0
      %v556 = vadd.f32 %v247, %v555
      %v557 = vpop.f32.mrb[0].mxu0
      %v558 = vpop.f32.mrb[0].mxu0
      %v559 = vadd.f32 %v247, %v558
      %v560 = vpop.f32.mrb[0].mxu0
      %561 = vmatprep.mubr.bf16.mxu0 %v352
      %562 = vmatmul.mubr.bf16.gmra.mrb[0].mxu0 %v351
      %v563 = vpop.f32.mrb[0].mxu0
      %v564 = vadd.f32 %v247, %v563
      %v565 = vpop.f32.mrb[0].mxu0
      %v566 = vpop.f32.mrb[0].mxu0
      %v567 = vadd.f32 %v247, %v566
      %v568 = vpop.f32.mrb[0].mxu0
      %569 = vmatprep.mubr.bf16.mxu0 %v354
      %570 = vmatmul.mubr.bf16.gmra.mrb[0].mxu0 %v353
      %v571 = vpop.f32.mrb[0].mxu0
      %v572 = vadd.f32 %v247, %v571
      %v573 = vpop.f32.mrb[0].mxu0
      %v574 = vpop.f32.mrb[0].mxu0
      %v575 = vadd.f32 %v247, %v574
      %v576 = vpop.f32.mrb[0].mxu0
      %577 = vmatprep.mubr.bf16.mxu0 %v356
      %578 = vmatmul.mubr.bf16.gmra.mrb[0].mxu0 %v355
      %v579 = vpop.f32.mrb[0].mxu0
      %v580 = vadd.f32 %v247, %v579
      %v581 = vpop.f32.mrb[0].mxu0
      %v582 = vpop.f32.mrb[0].mxu0
      %v583 = vadd.f32 %v247, %v582
      %v584 = vpop.f32.mrb[0].mxu0
      %585 = vmatprep.mubr.bf16.mxu0 %v358
      %586 = vmatmul.mubr.bf16.gmra.mrb[0].mxu0 %v357
      %v587 = vpop.f32.mrb[0].mxu0
      %v588 = vadd.f32 %v247, %v587
      %v589 = vpop.f32.mrb[0].mxu0
      %v590 = vpop.f32.mrb[0].mxu0
      %v591 = vadd.f32 %v247, %v590
      %v592 = vpop.f32.mrb[0].mxu0
      %593 = vmatprep.mubr.bf16.mxu0 %v360
      %594 = vmatmul.mubr.bf16.gmra.mrb[0].mxu0 %v359
      %v595 = vpop.f32.mrb[0].mxu0
      %v596 = vadd.f32 %v247, %v595
      %v597 = vpop.f32.mrb[0].mxu0
      %v598 = vpop.f32.mrb[0].mxu0
      %v599 = vadd.f32 %v247, %v598
      %v600 = vpop.f32.mrb[0].mxu0
      %601 = vmatprep.mubr.bf16.mxu0 %v362
      %602 = vmatmul.mubr.bf16.gmra.mrb[0].mxu0 %v361
      %v603 = vpop.f32.mrb[0].mxu0
      %v604 = vadd.f32 %v247, %v603
      %v605 = vpop.f32.mrb[0].mxu0
      %v606 = vpop.f32.mrb[0].mxu0
      %v607 = vadd.f32 %v247, %v606
      %v608 = vpop.f32.mrb[0].mxu0
      %609 = vmatprep.mubr.bf16.mxu0 %v364
      %610 = vmatmul.mubr.bf16.gmra.mrb[0].mxu0 %v363
      %v611 = vpop.f32.mrb[0].mxu0
      %v612 = vadd.f32 %v247, %v611
      %v613 = vpop.f32.mrb[0].mxu0
      %v614 = vpop.f32.mrb[0].mxu0
      %v615 = vadd.f32 %v247, %v614
      %v616 = vpop.f32.mrb[0].mxu0
      %617 = vmatprep.mubr.bf16.mxu0 %v366
      %618 = vmatmul.mubr.bf16.gmra.mrb[0].mxu0 %v365
      %v619 = vpop.f32.mrb[0].mxu0
      %v620 = vadd.f32 %v247, %v619
      %v621 = vpop.f32.mrb[0].mxu0
      %v622 = vpop.f32.mrb[0].mxu0
      %v623 = vadd.f32 %v247, %v622
      %v624 = vpop.f32.mrb[0].mxu0
      %625 = vmatprep.mubr.bf16.mxu0 %v368
      %626 = vmatmul.mubr.bf16.gmra.mrb[0].mxu0 %v367
      %v627 = vpop.f32.mrb[0].mxu0
      %v628 = vadd.f32 %v247, %v627
      %v629 = vpop.f32.mrb[0].mxu0
      %v630 = vpop.f32.mrb[0].mxu0
      %v631 = vadd.f32 %v247, %v630
      %v632 = vpop.f32.mrb[0].mxu0
      %633 = vmatprep.mubr.bf16.mxu0 %v370
      %634 = vmatmul.mubr.bf16.gmra.mrb[0].mxu0 %v369
      %v635 = vpop.f32.mrb[0].mxu0
      %v636 = vadd.f32 %v247, %v635
      %v637 = vpop.f32.mrb[0].mxu0
      %v638 = vpop.f32.mrb[0].mxu0
      %v639 = vadd.f32 %v247, %v638
      %v640 = vpop.f32.mrb[0].mxu0
      %641 = vmatprep.mubr.bf16.mxu0 %v372
      %642 = vmatmul.mubr.bf16.gmra.mrb[0].mxu0 %v371
      %v643 = vpop.f32.mrb[0].mxu0
      %v644 = vadd.f32 %v247, %v643
      %v645 = vpop.f32.mrb[0].mxu0
      %v646 = vpop.f32.mrb[0].mxu0
      %v647 = vadd.f32 %v247, %v646
      %v648 = vpop.f32.mrb[0].mxu0
      %649 = vmatprep.mubr.bf16.mxu0 %v374
      %650 = vmatmul.mubr.bf16.gmra.mrb[0].mxu0 %v373
      %v651 = vpop.f32.mrb[0].mxu0
      %v652 = vadd.f32 %v247, %v651
      %v653 = vpop.f32.mrb[0].mxu0
      %v654 = vpop.f32.mrb[0].mxu0
      %v655 = vadd.f32 %v247, %v654
      %v656 = vpop.f32.mrb[0].mxu0
      %657 = vmatprep.mubr.bf16.mxu0 %v376
      %658 = vmatmul.mubr.bf16.gmra.mrb[0].mxu0 %v375
      %v659 = vpop.f32.mrb[0].mxu0
      %v660 = vadd.f32 %v247, %v659
      %v661 = vpop.f32.mrb[0].mxu0
      %v662 = vpop.f32.mrb[0].mxu0
      %v663 = vadd.f32 %v247, %v662
      %v664 = vpop.f32.mrb[0].mxu0
      %665 = vdwg.mxu0
      %v666 = vmax.f32 %v540, 0.0
      %v667 = vmax.f32 %v543, 0.0
      %v668 = vmax.f32 %v548, 0.0
      %v669 = vmax.f32 %v551, 0.0
      %v670 = vmax.f32 %v556, 0.0
      %v671 = vmax.f32 %v559, 0.0
      %v672 = vmax.f32 %v564, 0.0
      %v673 = vmax.f32 %v567, 0.0
      %v674 = vmax.f32 %v572, 0.0
      %v675 = vmax.f32 %v575, 0.0
      %v676 = vmax.f32 %v580, 0.0
      %v677 = vmax.f32 %v583, 0.0
      %v678 = vmax.f32 %v588, 0.0
      %v679 = vmax.f32 %v591, 0.0
      %v680 = vmax.f32 %v596, 0.0
      %v681 = vmax.f32 %v599, 0.0
      %v682 = vmax.f32 %v604, 0.0
      %v683 = vmax.f32 %v607, 0.0
      %v684 = vmax.f32 %v612, 0.0
      %v685 = vmax.f32 %v615, 0.0
      %v686 = vmax.f32 %v620, 0.0
      %v687 = vmax.f32 %v623, 0.0
      %v688 = vmax.f32 %v628, 0.0
      %v689 = vmax.f32 %v631, 0.0
      %v690 = vmax.f32 %v636, 0.0
      %v691 = vmax.f32 %v639, 0.0
      %v692 = vmax.f32 %v644, 0.0
      %v693 = vmax.f32 %v647, 0.0
      %v694 = vmax.f32 %v652, 0.0
      %v695 = vmax.f32 %v655, 0.0
      %v696 = vmax.f32 %v660, 0.0
      %v697 = vmax.f32 %v663, 0.0
      %v698 = vpack.c.bf16 %v667, %v666
      %v699 = vpack.c.bf16 %v669, %v668
      %v700 = vpack.c.bf16 %v671, %v670
      %v701 = vpack.c.bf16 %v673, %v672
      %v702 = vpack.c.bf16 %v675, %v674
      %v703 = vpack.c.bf16 %v677, %v676
      %v704 = vpack.c.bf16 %v679, %v678
      %v705 = vpack.c.bf16 %v681, %v680
      %v706 = vpack.c.bf16 %v683, %v682
      %v707 = vpack.c.bf16 %v685, %v684
      %v708 = vpack.c.bf16 %v687, %v686
      %v709 = vpack.c.bf16 %v689, %v688
      %v710 = vpack.c.bf16 %v691, %v690
      %v711 = vpack.c.bf16 %v693, %v692
      %v712 = vpack.c.bf16 %v695, %v694
      %v713 = vpack.c.bf16 %v697, %v696
      %v730 = vunpack.c.l.b16 %v698
      %v731 = vunpack.c.h.b16 %v698
      %v732 = vunpack.c.l.b16 %v699
      %v733 = vunpack.c.h.b16 %v699
      %v734 = vunpack.c.l.b16 %v700
      %v735 = vunpack.c.h.b16 %v700
      %v736 = vunpack.c.l.b16 %v701
      %v737 = vunpack.c.h.b16 %v701
      %v738 = vunpack.c.l.b16 %v702
      %v739 = vunpack.c.h.b16 %v702
      %v740 = vunpack.c.l.b16 %v703
      %v741 = vunpack.c.h.b16 %v703
      %v742 = vunpack.c.l.b16 %v704
      %v743 = vunpack.c.h.b16 %v704
      %v744 = vunpack.c.l.b16 %v705
      %v745 = vunpack.c.h.b16 %v705
      %v746 = vunpack.c.l.b16 %v706
      %v747 = vunpack.c.h.b16 %v706
      %v748 = vunpack.c.l.b16 %v707
      %v749 = vunpack.c.h.b16 %v707
      %v750 = vunpack.c.l.b16 %v708
      %v751 = vunpack.c.h.b16 %v708
      %v752 = vunpack.c.l.b16 %v709
      %v753 = vunpack.c.h.b16 %v709
      %v754 = vunpack.c.l.b16 %v710
      %v755 = vunpack.c.h.b16 %v710
      %v756 = vunpack.c.l.b16 %v711
      %v757 = vunpack.c.h.b16 %v711
      %v758 = vunpack.c.l.b16 %v712
      %v759 = vunpack.c.h.b16 %v712
      %v760 = vunpack.c.l.b16 %v713
      %v761 = vunpack.c.h.b16 %v713
      %v762 = vpack.c.b16 %v730, %v730
      %v763 = vpack.c.b16 %v731, %v731
      %v764 = vpack.c.b16 %v732, %v732
      %v765 = vpack.c.b16 %v733, %v733
      %v766 = vpack.c.b16 %v734, %v734
      %v767 = vpack.c.b16 %v735, %v735
      %v768 = vpack.c.b16 %v736, %v736
      %v769 = vpack.c.b16 %v737, %v737
      %v770 = vpack.c.b16 %v738, %v738
      %v771 = vpack.c.b16 %v739, %v739
      %v772 = vpack.c.b16 %v740, %v740
      %v773 = vpack.c.b16 %v741, %v741
      %v774 = vpack.c.b16 %v742, %v742
      %v775 = vpack.c.b16 %v743, %v743
      %v776 = vpack.c.b16 %v744, %v744
      %v777 = vpack.c.b16 %v745, %v745
      %v778 = vpack.c.b16 %v746, %v746
      %v779 = vpack.c.b16 %v747, %v747
      %v780 = vpack.c.b16 %v748, %v748
      %v781 = vpack.c.b16 %v749, %v749
      %v782 = vpack.c.b16 %v750, %v750
      %v783 = vpack.c.b16 %v751, %v751
      %v784 = vpack.c.b16 %v752, %v752
      %v785 = vpack.c.b16 %v753, %v753
      %v786 = vpack.c.b16 %v754, %v754
      %v787 = vpack.c.b16 %v755, %v755
      %v788 = vpack.c.b16 %v756, %v756
      %v789 = vpack.c.b16 %v757, %v757
      %v790 = vpack.c.b16 %v758, %v758
      %v791 = vpack.c.b16 %v759, %v759
      %v792 = vpack.c.b16 %v760, %v760
      %v793 = vpack.c.b16 %v761, %v761
      %826 = vst [vmem:[%s175] sm:$0xf] %v762
      %827 = vst [vmem:[%s175 + $0x4] sm:$0xf] %v763
      %828 = vst [vmem:[%s175 + $0x8] sm:$0xf] %v764
      %829 = vst [vmem:[%s175 + $0xc] sm:$0xf] %v765
      %830 = vst [vmem:[%s175 + $0x10] sm:$0xf] %v766
      %831 = vst [vmem:[%s175 + $0x14] sm:$0xf] %v767
      %832 = vst [vmem:[%s175 + $0x18] sm:$0xf] %v768
      %833 = vst [vmem:[%s175 + $0x1c] sm:$0xf] %v769
      %834 = vst [vmem:[%s175 + $0x20] sm:$0xf] %v770
      %835 = vst [vmem:[%s175 + $0x24] sm:$0xf] %v771
      %836 = vst [vmem:[%s175 + $0x28] sm:$0xf] %v772
      %837 = vst [vmem:[%s175 + $0x2c] sm:$0xf] %v773
      %838 = vst [vmem:[%s175 + $0x30] sm:$0xf] %v774
      %839 = vst [vmem:[%s175 + $0x34] sm:$0xf] %v775
      %840 = vst [vmem:[%s175 + $0x38] sm:$0xf] %v776
      %841 = vst [vmem:[%s175 + $0x3c] sm:$0xf] %v777
      %842 = vst [vmem:[%s175 + $0x40] sm:$0xf] %v778
      %843 = vst [vmem:[%s175 + $0x44] sm:$0xf] %v779
      %844 = vst [vmem:[%s175 + $0x48] sm:$0xf] %v780
      %845 = vst [vmem:[%s175 + $0x4c] sm:$0xf] %v781
      %846 = vst [vmem:[%s175 + $0x50] sm:$0xf] %v782
      %847 = vst [vmem:[%s175 + $0x54] sm:$0xf] %v783
      %848 = vst [vmem:[%s175 + $0x58] sm:$0xf] %v784
      %849 = vst [vmem:[%s175 + $0x5c] sm:$0xf] %v785
      %850 = vst [vmem:[%s175 + $0x60] sm:$0xf] %v786
      %851 = vst [vmem:[%s175 + $0x64] sm:$0xf] %v787
      %852 = vst [vmem:[%s175 + $0x68] sm:$0xf] %v788
      %853 = vst [vmem:[%s175 + $0x6c] sm:$0xf] %v789
      %854 = vst [vmem:[%s175 + $0x70] sm:$0xf] %v790
      %855 = vst [vmem:[%s175 + $0x74] sm:$0xf] %v791
      %856 = vst [vmem:[%s175 + $0x78] sm:$0xf] %v792
      %857 = vst [vmem:[%s175 + $0x7c] sm:$0xf] %v793
      %s858 = smul.u32 32, %s14
      %p859 = scmp.lt.s32.totalorder %s858, 255
      %s860 = scalar_select %p859, %s858, 255
      %s861 = smul.addr %s860, 4
      %s862 = scalar_lea.vmem %s3, %s861
      // Predicated region
      $region33: #{_lambda_.47} parent=31 // pred_check
        %p863 = pneg %p100
      $region34: #{_lambda_.47} parent=31 // pred_check_branch
        %865 = sbr.rel (%p863) target = $region36
      $region35: #{_lambda_.47} parent=31 // pred_region
        %s866 = smul.u32 32, %s14
      $region36: #{_lambda_.47} parent=31 // pred_fallthru
        _
    $region32: #{_lambda_.47} parent=5 // pred_fallthru
      _
    %p867 = scmp.le.s32.totalorder 2, %s9
    // Predicated region
    $region37: #{_lambda_.47} parent=5 // pred_check
      %p868 = pneg %p867
    $region38: #{_lambda_.47} parent=5 // pred_check_branch
      %870 = sbr.rel (%p868) target = $region40
    $region39: #{_lambda_.47} parent=5 // pred_region
      %s871 = ssub.s32 %s9, 2
      // Predicated region
      $region41: #{_lambda_.47} parent=39 // pred_check
        %p872 = pneg %p106
      $region42: #{_lambda_.47} parent=39 // pred_check_branch
        %874 = sbr.rel (%p872) target = $region44
      $region43: #{_lambda_.47} parent=39 // pred_region
        %s875 = smul.u32 32, %s15
        %p876 = scmp.lt.s32.totalorder %s875, 255
        %s877 = scalar_select %p876, %s875, 255
        %s878 = smul.addr %s877, 4
        %s879 = scalar_lea.vmem %s3, %s878
      $region44: #{_lambda_.47} parent=39 // pred_fallthru
        _
    $region40: #{_lambda_.47} parent=5 // pred_fallthru
      _
  $region6: #{_lambda_.47} parent=0 // loop_footer
    %s13 = sadd.s32 1, %s9
  $region7: #{_lambda_.47} parent=0 // loop_footer_branch
    %8 = sbr.rel target = $region3
  $region8: #{_lambda_.47} parent=0 // loop_exit
    _

// kernel: _lambda_.48
$region0: #{_lambda_.48}
  #allocation0 [shape = 'u32[]', space=smem, size = 0x4, offset = 0x4, fixed_abs, tag = 'smem constant byte address 0x4 - core index']
  #allocation1 [shape = 'u32[144,128]{1,0:T(1,128)}', space=vmem, size = 0x12000, scoped, tag = 'internal scratch']
  %s0 = inlined_call_operand.vmem [shape: bf16[2048,128], index: 0, kind: input, shape index: {}]
  %s1 = inlined_call_operand.vmem [shape: bf16[128,128], index: 1, kind: input, shape index: {}]
  %s2 = inlined_call_operand.vmem [shape: f32[1,128], index: 2, kind: input, shape index: {}]
  %s3 = inlined_call_operand.vmem [shape: bf16[2048,128], index: 3, kind: output, shape index: {}]
  %s4 = sld [smem:[#allocation0]]
  $region45: #{_lambda_.48} parent=0
    _
  %s6 = ssub.s32 1, %s4
  %s7 = scalar_select 0, %s6, %s4
  loop: start=0, step=1, limit=10
  $region2: #{_lambda_.48} parent=0 // loop_pre_header
    _
  $region3: #{_lambda_.48} parent=0 // loop_header
    %s9 = sphi 0, %s13
    %p10 = scmp.ge.s32.totalorder %s9, 10
    %s19 = sphi 0, %s21
    %s22 = sphi 0, %s19
    %s23 = sphi 0, %s22
    %s39 = sphi 0, %s23
    %s43 = sphi 0, %s43
    %s45 = sphi 0, %s43
    %s46 = sphi 0, %s45
    %s60 = sphi 0, %s46
    %s64 = sphi 0, %s64
    %s66 = sphi 0, %s64
    %s67 = sphi 0, %s66
    %s81 = sphi 0, %s67
    %s87 = sphi 0, %s89
    %s90 = sphi 0, %s87
    %s91 = sphi 0, %s90
    %s107 = sphi 0, %s91
  $region4: #{_lambda_.48} parent=0 // loop_header_branch
    %12 = sbr.rel (%p10) target = $region8
  $region5: #{_lambda_.48} parent=0 // loop_body
    %s14 = ssub.s32 %s9, 1
    %s15 = ssub.s32 %s9, 2
    %s16 = sadd.s32 %s9, 1
    %s17 = ssub.s32 %s9, %s16
    %p18 = scmp.eq.s32.totalorder %s17, 0
    %s20 = sadd.s32 %s19, 1
    %s21 = scalar_select %p18, %s19, %s20
    %p24 = pneg %p18
    %p25 = scmp.eq.s32.totalorder %s9, 7
    %p26 = por %p24, %p25
    %p27 = scmp.ne.s32.totalorder %s19, %s22
    %p28 = scmp.eq.s32.totalorder %s9, 0
    %p29 = por %p27, %p28
    %p30 = scmp.ne.s32.totalorder %s19, %s22
    %p31 = scmp.eq.s32.totalorder %s14, 7
    %p32 = por %p30, %p31
    %p33 = scmp.ne.s32.totalorder %s22, %s23
    %p34 = scmp.eq.s32.totalorder %s14, 0
    %p35 = por %p33, %p34
    %p36 = scmp.ne.s32.totalorder %s22, %s23
    %p37 = scmp.eq.s32.totalorder %s15, 7
    %p38 = por %p36, %p37
    %p40 = scmp.ne.s32.totalorder %s23, %s39
    %p41 = scmp.eq.s32.totalorder %s15, 0
    %p42 = por %p40, %p41
    %s44 = sadd.s32 %s43, 1
    %p47 = scmp.eq.s32.totalorder %s9, 7
    %p48 = scmp.ne.s32.totalorder %s43, %s45
    %p49 = scmp.eq.s32.totalorder %s9, 0
    %p50 = por %p48, %p49
    %p51 = scmp.ne.s32.totalorder %s43, %s45
    %p52 = scmp.eq.s32.totalorder %s14, 7
    %p53 = por %p51, %p52
    %p54 = scmp.ne.s32.totalorder %s45, %s46
    %p55 = scmp.eq.s32.totalorder %s14, 0
    %p56 = por %p54, %p55
    %p57 = scmp.ne.s32.totalorder %s45, %s46
    %p58 = scmp.eq.s32.totalorder %s15, 7
    %p59 = por %p57, %p58
    %p61 = scmp.ne.s32.totalorder %s46, %s60
    %p62 = scmp.eq.s32.totalorder %s15, 0
    %p63 = por %p61, %p62
    %s65 = sadd.s32 %s64, 1
    %p68 = scmp.eq.s32.totalorder %s9, 7
    %p69 = scmp.ne.s32.totalorder %s64, %s66
    %p70 = scmp.eq.s32.totalorder %s9, 0
    %p71 = por %p69, %p70
    %p72 = scmp.ne.s32.totalorder %s64, %s66
    %p73 = scmp.eq.s32.totalorder %s14, 7
    %p74 = por %p72, %p73
    %p75 = scmp.ne.s32.totalorder %s66, %s67
    %p76 = scmp.eq.s32.totalorder %s14, 0
    %p77 = por %p75, %p76
    %p78 = scmp.ne.s32.totalorder %s66, %s67
    %p79 = scmp.eq.s32.totalorder %s15, 7
    %p80 = por %p78, %p79
    %p82 = scmp.ne.s32.totalorder %s67, %s81
    %p83 = scmp.eq.s32.totalorder %s15, 0
    %p84 = por %p82, %p83
    %s85 = ssub.s32 %s9, %s16
    %p86 = scmp.eq.s32.totalorder %s85, 0
    %s88 = sadd.s32 %s87, 1
    %s89 = scalar_select %p86, %s87, %s88
    %p92 = pneg %p86
    %p93 = scmp.eq.s32.totalorder %s9, 7
    %p94 = por %p92, %p93
    %p95 = scmp.ne.s32.totalorder %s87, %s90
    %p96 = scmp.eq.s32.totalorder %s9, 0
    %p97 = por %p95, %p96
    %p98 = scmp.ne.s32.totalorder %s87, %s90
    %p99 = scmp.eq.s32.totalorder %s14, 7
    %p100 = por %p98, %p99
    %p101 = scmp.ne.s32.totalorder %s90, %s91
    %p102 = scmp.eq.s32.totalorder %s14, 0
    %p103 = por %p101, %p102
    %p104 = scmp.ne.s32.totalorder %s90, %s91
    %p105 = scmp.eq.s32.totalorder %s15, 7
    %p106 = por %p104, %p105
    %p108 = scmp.ne.s32.totalorder %s91, %s107
    %p109 = scmp.eq.s32.totalorder %s15, 0
    %p110 = por %p108, %p109
    %p111 = scmp.le.s32.totalorder 1, %s9
    %p112 = scmp.lt.s32.totalorder %s9, 9
    %p113 = pnand %p111, %p112
    %p114 = pneg %p113
    // Predicated region
    $region9: #{_lambda_.48} parent=5 // pred_check
      _
    $region10: #{_lambda_.48} parent=5 // pred_check_branch
      %116 = sbr.rel (%p113) target = $region12
    $region11: #{_lambda_.48} parent=5 // pred_region
      %s117 = ssub.s32 %s9, 1
      // Predicated region
      $region13: #{_lambda_.48} parent=11 // pred_check
        %p118 = pneg %p56
      $region14: #{_lambda_.48} parent=11 // pred_check_branch
        %120 = sbr.rel (%p118) target = $region16
      $region15: #{_lambda_.48} parent=11 // pred_region
        _
      $region16: #{_lambda_.48} parent=11 // pred_fallthru
        _
      // Predicated region
      $region17: #{_lambda_.48} parent=11 // pred_check
        %p121 = pneg %p77
      $region18: #{_lambda_.48} parent=11 // pred_check_branch
        %123 = sbr.rel (%p121) target = $region20
      $region19: #{_lambda_.48} parent=11 // pred_region
        _
      $region20: #{_lambda_.48} parent=11 // pred_fallthru
        _
    $region12: #{_lambda_.48} parent=5 // pred_fallthru
      _
    %p124 = scmp.lt.s32.totalorder %s9, 8
    // Predicated region
    $region21: #{_lambda_.48} parent=5 // pred_check
      %p125 = pneg %p124
    $region22: #{_lambda_.48} parent=5 // pred_check_branch
      %127 = sbr.rel (%p125) target = $region24
    $region23: #{_lambda_.48} parent=5 // pred_region
      // Predicated region
      $region25: #{_lambda_.48} parent=23 // pred_check
        %p128 = pneg %p29
      $region26: #{_lambda_.48} parent=23 // pred_check_branch
        %130 = sbr.rel (%p128) target = $region28
      $region27: #{_lambda_.48} parent=23 // pred_region
        %s131 = smul.u32 32, %s9
        %p132 = scmp.lt.s32.totalorder %s131, 255
        %s133 = scalar_select %p132, %s131, 255
        %s134 = smul.addr %s133, 4
        %s135 = scalar_lea.vmem %s0, %s134
        %s136 = smul.u32 32, %s9
      $region28: #{_lambda_.48} parent=23 // pred_fallthru
        _
    $region24: #{_lambda_.48} parent=5 // pred_fallthru
      _
    %p137 = scmp.le.s32.totalorder 1, %s9
    %p138 = scmp.lt.s32.totalorder %s9, 9
    %p139 = pnand %p137, %p138
    %p140 = pneg %p139
    // Predicated region
    $region29: #{_lambda_.48} parent=5 // pred_check
      _
    $region30: #{_lambda_.48} parent=5 // pred_check_branch
      %142 = sbr.rel (%p139) target = $region32
    $region31: #{_lambda_.48} parent=5 // pred_region
      %s143 = ssub.s32 %s9, 1
      %s144 = smul.u32 32, %s14
      %p145 = scmp.lt.s32.totalorder %s144, 255
      %s146 = scalar_select %p145, %s144, 255
      %s147 = smul.addr %s146, 4
      %s148 = scalar_lea.vmem %s0, %s147
      %p149 = pneg %p35
      %p150 = pneg %p32
      %p151 = pneg %p56
      %p152 = pneg %p53
      %p153 = pneg %p77
      %p154 = pneg %p74
      %p155 = pneg %p103
      %p156 = pneg %p100
      %s157 = smul.u32 32, %s14
      %p158 = scmp.lt.s32.totalorder %s157, 255
      %s159 = scalar_select %p158, %s157, 255
      %s160 = smul.addr %s159, 4
      %s161 = scalar_lea.vmem %s3, %s160
      %s162 = smul.u32 32, %s14
      %p163 = scmp.lt.s32.totalorder %s162, 255
      %s164 = scalar_select %p163, %s162, 255
      %s165 = smul.addr %s164, 4
      %s166 = scalar_lea.vmem %s0, %s165
      %s167 = smul.u32 32, %s14
      %s168 = smul.u32 32, %s14
      %p169 = scmp.lt.s32.totalorder %s168, 255
      %s170 = scalar_select %p169, %s168, 255
      %s171 = smul.addr %s170, 4
      %s172 = scalar_lea.vmem %s3, %s171
      %s173 = smul.u32 32, %s14
      %v175 = vld [vmem:[%s166] sm:$0xf]
      %v176 = vld [vmem:[%s166 + $0x4] sm:$0xf]
      %v177 = vld [vmem:[%s166 + $0x8] sm:$0xf]
      %v178 = vld [vmem:[%s166 + $0xc] sm:$0xf]
      %v179 = vld [vmem:[%s166 + $0x10] sm:$0xf]
      %v180 = vld [vmem:[%s166 + $0x14] sm:$0xf]
      %v181 = vld [vmem:[%s166 + $0x18] sm:$0xf]
      %v182 = vld [vmem:[%s166 + $0x1c] sm:$0xf]
      %v183 = vld [vmem:[%s166 + $0x20] sm:$0xf]
      %v184 = vld [vmem:[%s166 + $0x24] sm:$0xf]
      %v185 = vld [vmem:[%s166 + $0x28] sm:$0xf]
      %v186 = vld [vmem:[%s166 + $0x2c] sm:$0xf]
      %v187 = vld [vmem:[%s166 + $0x30] sm:$0xf]
      %v188 = vld [vmem:[%s166 + $0x34] sm:$0xf]
      %v189 = vld [vmem:[%s166 + $0x38] sm:$0xf]
      %v190 = vld [vmem:[%s166 + $0x3c] sm:$0xf]
      %v191 = vld [vmem:[%s166 + $0x40] sm:$0xf]
      %v192 = vld [vmem:[%s166 + $0x44] sm:$0xf]
      %v193 = vld [vmem:[%s166 + $0x48] sm:$0xf]
      %v194 = vld [vmem:[%s166 + $0x4c] sm:$0xf]
      %v195 = vld [vmem:[%s166 + $0x50] sm:$0xf]
      %v196 = vld [vmem:[%s166 + $0x54] sm:$0xf]
      %v197 = vld [vmem:[%s166 + $0x58] sm:$0xf]
      %v198 = vld [vmem:[%s166 + $0x5c] sm:$0xf]
      %v199 = vld [vmem:[%s166 + $0x60] sm:$0xf]
      %v200 = vld [vmem:[%s166 + $0x64] sm:$0xf]
      %v201 = vld [vmem:[%s166 + $0x68] sm:$0xf]
      %v202 = vld [vmem:[%s166 + $0x6c] sm:$0xf]
      %v203 = vld [vmem:[%s166 + $0x70] sm:$0xf]
      %v204 = vld [vmem:[%s166 + $0x74] sm:$0xf]
      %v205 = vld [vmem:[%s166 + $0x78] sm:$0xf]
      %v206 = vld [vmem:[%s166 + $0x7c] sm:$0xf]
      %v207 = vld [vmem:[%s1] sm:$0xf]
      %v208 = vld [vmem:[%s1 + $0x4] sm:$0xf]
      %v209 = vld [vmem:[%s1 + $0x8] sm:$0xf]
      %v210 = vld [vmem:[%s1 + $0xc] sm:$0xf]
      %v211 = vld [vmem:[%s1 + $0x10] sm:$0xf]
      %v212 = vld [vmem:[%s1 + $0x14] sm:$0xf]
      %v213 = vld [vmem:[%s1 + $0x18] sm:$0xf]
      %v214 = vld [vmem:[%s1 + $0x1c] sm:$0xf]
      %v215 = vld [vmem:[%s1 + $0x20] sm:$0xf]
      %v216 = vld [vmem:[%s1 + $0x24] sm:$0xf]
      %v217 = vld [vmem:[%s1 + $0x28] sm:$0xf]
      %v218 = vld [vmem:[%s1 + $0x2c] sm:$0xf]
      %v219 = vld [vmem:[%s1 + $0x30] sm:$0xf]
      %v220 = vld [vmem:[%s1 + $0x34] sm:$0xf]
      %v221 = vld [vmem:[%s1 + $0x38] sm:$0xf]
      %v222 = vld [vmem:[%s1 + $0x3c] sm:$0xf]
      %v223 = vld [vmem:[%s2] sm:$0x1]
      %v225 = vlaneseq
      %v226 = vshrl.u32 %v225, 7
      %v227 = vsub.s32 0, %v226
      %v228 = vrot.slane %v223, %v227
      %v262 = vunpack.c.l.b16 %v175
      %v263 = vunpack.c.l.b16 %v176
      %v264 = vunpack.c.l.b16 %v177
      %v265 = vunpack.c.l.b16 %v178
      %v266 = vunpack.c.l.b16 %v179
      %v267 = vunpack.c.l.b16 %v180
      %v268 = vunpack.c.l.b16 %v181
      %v269 = vunpack.c.l.b16 %v182
      %v270 = vunpack.c.l.b16 %v183
      %v271 = vunpack.c.l.b16 %v184
      %v272 = vunpack.c.l.b16 %v185
      %v273 = vunpack.c.l.b16 %v186
      %v274 = vunpack.c.l.b16 %v187
      %v275 = vunpack.c.l.b16 %v188
      %v276 = vunpack.c.l.b16 %v189
      %v277 = vunpack.c.l.b16 %v190
      %v278 = vunpack.c.l.b16 %v191
      %v279 = vunpack.c.l.b16 %v192
      %v280 = vunpack.c.l.b16 %v193
      %v281 = vunpack.c.l.b16 %v194
      %v282 = vunpack.c.l.b16 %v195
      %v283 = vunpack.c.l.b16 %v196
      %v284 = vunpack.c.l.b16 %v197
      %v285 = vunpack.c.l.b16 %v198
      %v286 = vunpack.c.l.b16 %v199
      %v287 = vunpack.c.l.b16 %v200
      %v288 = vunpack.c.l.b16 %v201
      %v289 = vunpack.c.l.b16 %v202
      %v290 = vunpack.c.l.b16 %v203
      %v291 = vunpack.c.l.b16 %v204
      %v292 = vunpack.c.l.b16 %v205
      %v293 = vunpack.c.l.b16 %v206
      %v294 = vpack.c.b16 %v263, %v262
      %v295 = vpack.c.b16 %v265, %v264
      %v296 = vpack.c.b16 %v267, %v266
      %v297 = vpack.c.b16 %v269, %v268
      %v298 = vpack.c.b16 %v271, %v270
      %v299 = vpack.c.b16 %v273, %v272
      %v300 = vpack.c.b16 %v275, %v274
      %v301 = vpack.c.b16 %v277, %v276
      %v302 = vpack.c.b16 %v279, %v278
      %v303 = vpack.c.b16 %v281, %v280
      %v304 = vpack.c.b16 %v283, %v282
      %v305 = vpack.c.b16 %v285, %v284
      %v306 = vpack.c.b16 %v287, %v286
      %v307 = vpack.c.b16 %v289, %v288
      %v308 = vpack.c.b16 %v291, %v290
      %v309 = vpack.c.b16 %v293, %v292
      %v342 = vunpack.c.l.b16 %v207
      %v343 = vunpack.c.l.b16 %v208
      %v344 = vunpack.c.l.b16 %v209
      %v345 = vunpack.c.l.b16 %v210
      %v346 = vunpack.c.l.b16 %v211
      %v347 = vunpack.c.l.b16 %v212
      %v348 = vunpack.c.l.b16 %v213
      %v349 = vunpack.c.l.b16 %v214
      %v350 = vunpack.c.l.b16 %v215
      %v351 = vunpack.c.l.b16 %v216
      %v352 = vunpack.c.l.b16 %v217
      %v353 = vunpack.c.l.b16 %v218
      %v354 = vunpack.c.l.b16 %v219
      %v355 = vunpack.c.l.b16 %v220
      %v356 = vunpack.c.l.b16 %v221
      %v357 = vunpack.c.l.b16 %v222
      %v358 = vpack.c.b16 %v343, %v342
      %v359 = vpack.c.b16 %v345, %v344
      %v360 = vpack.c.b16 %v347, %v346
      %v361 = vpack.c.b16 %v349, %v348
      %v362 = vpack.c.b16 %v351, %v350
      %v363 = vpack.c.b16 %v353, %v352
      %v364 = vpack.c.b16 %v355, %v354
      %v365 = vpack.c.b16 %v357, %v356
      %374 = vmatprep.subr.bf16.mxu0 0
      %375 = vmatpush1.bf16.msra.mxu0 %v358
      %376 = vmatprep.subr.bf16.mxu0 0
      %377 = vmatpush1.bf16.msra.mxu0 %v359
      %378 = vmatprep.subr.bf16.mxu0 0
      %379 = vmatpush1.bf16.msra.mxu0 %v360
      %380 = vmatprep.subr.bf16.mxu0 0
      %381 = vmatpush1.bf16.msra.mxu0 %v361
      %382 = vmatprep.subr.bf16.mxu0 0
      %383 = vmatpush1.bf16.msra.mxu0 %v362
      %384 = vmatprep.subr.bf16.mxu0 0
      %385 = vmatpush1.bf16.msra.mxu0 %v363
      %386 = vmatprep.subr.bf16.mxu0 0
      %387 = vmatpush1.bf16.msra.mxu0 %v364
      %388 = vmatprep.subr.bf16.mxu0 0
      %389 = vmatpush1.bf16.msra.mxu0 %v365
      %390 = vmatprep.subr.bf16.mxu0 0
      %391 = vmatpush1.bf16.msra.mxu0 0
      %392 = vmatprep.subr.bf16.mxu0 0
      %393 = vmatpush1.bf16.msra.mxu0 0
      %394 = vmatprep.subr.bf16.mxu0 0
      %395 = vmatpush1.bf16.msra.mxu0 0
      %396 = vmatprep.subr.bf16.mxu0 0
      %397 = vmatpush1.bf16.msra.mxu0 0
      %398 = vmatprep.subr.bf16.mxu0 0
      %399 = vmatpush1.bf16.msra.mxu0 0
      %400 = vmatprep.subr.bf16.mxu0 0
      %401 = vmatpush1.bf16.msra.mxu0 0
      %402 = vmatprep.subr.bf16.mxu0 0
      %403 = vmatpush1.bf16.msra.mxu0 0
      %404 = vmatprep.subr.bf16.mxu0 0
      %405 = vmatpush1.bf16.msra.mxu0 0
      %406 = vmatprep.mubr.bf16.mxu0 0
      %407 = vmatmul.mubr.bf16.gmra.mrb[0].mxu0 %v294
      %v408 = vpop.f32.mrb[0].mxu0
      %v409 = vadd.f32 %v228, %v408
      %v410 = vpop.f32.mrb[0].mxu0
      %v411 = vpop.f32.mrb[0].mxu0
      %v412 = vadd.f32 %v228, %v411
      %v413 = vpop.f32.mrb[0].mxu0
      %414 = vmatprep.mubr.bf16.mxu0 0
      %415 = vmatmul.mubr.bf16.gmra.mrb[0].mxu0 %v295
      %v416 = vpop.f32.mrb[0].mxu0
      %v417 = vadd.f32 %v228, %v416
      %v418 = vpop.f32.mrb[0].mxu0
      %v419 = vpop.f32.mrb[0].mxu0
      %v420 = vadd.f32 %v228, %v419
      %v421 = vpop.f32.mrb[0].mxu0
      %422 = vmatprep.mubr.bf16.mxu0 0
      %423 = vmatmul.mubr.bf16.gmra.mrb[0].mxu0 %v296
      %v424 = vpop.f32.mrb[0].mxu0
      %v425 = vadd.f32 %v228, %v424
      %v426 = vpop.f32.mrb[0].mxu0
      %v427 = vpop.f32.mrb[0].mxu0
      %v428 = vadd.f32 %v228, %v427
      %v429 = vpop.f32.mrb[0].mxu0
      %430 = vmatprep.mubr.bf16.mxu0 0
      %431 = vmatmul.mubr.bf16.gmra.mrb[0].mxu0 %v297
      %v432 = vpop.f32.mrb[0].mxu0
      %v433 = vadd.f32 %v228, %v432
      %v434 = vpop.f32.mrb[0].mxu0
      %v435 = vpop.f32.mrb[0].mxu0
      %v436 = vadd.f32 %v228, %v435
      %v437 = vpop.f32.mrb[0].mxu0
      %438 = vmatprep.mubr.bf16.mxu0 0
      %439 = vmatmul.mubr.bf16.gmra.mrb[0].mxu0 %v298
      %v440 = vpop.f32.mrb[0].mxu0
      %v441 = vadd.f32 %v228, %v440
      %v442 = vpop.f32.mrb[0].mxu0
      %v443 = vpop.f32.mrb[0].mxu0
      %v444 = vadd.f32 %v228, %v443
      %v445 = vpop.f32.mrb[0].mxu0
      %446 = vmatprep.mubr.bf16.mxu0 0
      %447 = vmatmul.mubr.bf16.gmra.mrb[0].mxu0 %v299
      %v448 = vpop.f32.mrb[0].mxu0
      %v449 = vadd.f32 %v228, %v448
      %v450 = vpop.f32.mrb[0].mxu0
      %v451 = vpop.f32.mrb[0].mxu0
      %v452 = vadd.f32 %v228, %v451
      %v453 = vpop.f32.mrb[0].mxu0
      %454 = vmatprep.mubr.bf16.mxu0 0
      %455 = vmatmul.mubr.bf16.gmra.mrb[0].mxu0 %v300
      %v456 = vpop.f32.mrb[0].mxu0
      %v457 = vadd.f32 %v228, %v456
      %v458 = vpop.f32.mrb[0].mxu0
      %v459 = vpop.f32.mrb[0].mxu0
      %v460 = vadd.f32 %v228, %v459
      %v461 = vpop.f32.mrb[0].mxu0
      %462 = vmatprep.mubr.bf16.mxu0 0
      %463 = vmatmul.mubr.bf16.gmra.mrb[0].mxu0 %v301
      %v464 = vpop.f32.mrb[0].mxu0
      %v465 = vadd.f32 %v228, %v464
      %v466 = vpop.f32.mrb[0].mxu0
      %v467 = vpop.f32.mrb[0].mxu0
      %v468 = vadd.f32 %v228, %v467
      %v469 = vpop.f32.mrb[0].mxu0
      %470 = vmatprep.mubr.bf16.mxu0 0
      %471 = vmatmul.mubr.bf16.gmra.mrb[0].mxu0 %v302
      %v472 = vpop.f32.mrb[0].mxu0
      %v473 = vadd.f32 %v228, %v472
      %v474 = vpop.f32.mrb[0].mxu0
      %v475 = vpop.f32.mrb[0].mxu0
      %v476 = vadd.f32 %v228, %v475
      %v477 = vpop.f32.mrb[0].mxu0
      %478 = vmatprep.mubr.bf16.mxu0 0
      %479 = vmatmul.mubr.bf16.gmra.mrb[0].mxu0 %v303
      %v480 = vpop.f32.mrb[0].mxu0
      %v481 = vadd.f32 %v228, %v480
      %v482 = vpop.f32.mrb[0].mxu0
      %v483 = vpop.f32.mrb[0].mxu0
      %v484 = vadd.f32 %v228, %v483
      %v485 = vpop.f32.mrb[0].mxu0
      %486 = vmatprep.mubr.bf16.mxu0 0
      %487 = vmatmul.mubr.bf16.gmra.mrb[0].mxu0 %v304
      %v488 = vpop.f32.mrb[0].mxu0
      %v489 = vadd.f32 %v228, %v488
      %v490 = vpop.f32.mrb[0].mxu0
      %v491 = vpop.f32.mrb[0].mxu0
      %v492 = vadd.f32 %v228, %v491
      %v493 = vpop.f32.mrb[0].mxu0
      %494 = vmatprep.mubr.bf16.mxu0 0
      %495 = vmatmul.mubr.bf16.gmra.mrb[0].mxu0 %v305
      %v496 = vpop.f32.mrb[0].mxu0
      %v497 = vadd.f32 %v228, %v496
      %v498 = vpop.f32.mrb[0].mxu0
      %v499 = vpop.f32.mrb[0].mxu0
      %v500 = vadd.f32 %v228, %v499
      %v501 = vpop.f32.mrb[0].mxu0
      %502 = vmatprep.mubr.bf16.mxu0 0
      %503 = vmatmul.mubr.bf16.gmra.mrb[0].mxu0 %v306
      %v504 = vpop.f32.mrb[0].mxu0
      %v505 = vadd.f32 %v228, %v504
      %v506 = vpop.f32.mrb[0].mxu0
      %v507 = vpop.f32.mrb[0].mxu0
      %v508 = vadd.f32 %v228, %v507
      %v509 = vpop.f32.mrb[0].mxu0
      %510 = vmatprep.mubr.bf16.mxu0 0
      %511 = vmatmul.mubr.bf16.gmra.mrb[0].mxu0 %v307
      %v512 = vpop.f32.mrb[0].mxu0
      %v513 = vadd.f32 %v228, %v512
      %v514 = vpop.f32.mrb[0].mxu0
      %v515 = vpop.f32.mrb[0].mxu0
      %v516 = vadd.f32 %v228, %v515
      %v517 = vpop.f32.mrb[0].mxu0
      %518 = vmatprep.mubr.bf16.mxu0 0
      %519 = vmatmul.mubr.bf16.gmra.mrb[0].mxu0 %v308
      %v520 = vpop.f32.mrb[0].mxu0
      %v521 = vadd.f32 %v228, %v520
      %v522 = vpop.f32.mrb[0].mxu0
      %v523 = vpop.f32.mrb[0].mxu0
      %v524 = vadd.f32 %v228, %v523
      %v525 = vpop.f32.mrb[0].mxu0
      %526 = vmatprep.mubr.bf16.mxu0 0
      %527 = vmatmul.mubr.bf16.gmra.mrb[0].mxu0 %v309
      %v528 = vpop.f32.mrb[0].mxu0
      %v529 = vadd.f32 %v228, %v528
      %v530 = vpop.f32.mrb[0].mxu0
      %v531 = vpop.f32.mrb[0].mxu0
      %v532 = vadd.f32 %v228, %v531
      %v533 = vpop.f32.mrb[0].mxu0
      %534 = vdwg.mxu0
      %v535 = vmax.f32 %v409, 0.0
      %v536 = vmax.f32 %v412, 0.0
      %v537 = vmax.f32 %v417, 0.0
      %v538 = vmax.f32 %v420, 0.0
      %v539 = vmax.f32 %v425, 0.0
      %v540 = vmax.f32 %v428, 0.0
      %v541 = vmax.f32 %v433, 0.0
      %v542 = vmax.f32 %v436, 0.0
      %v543 = vmax.f32 %v441, 0.0
      %v544 = vmax.f32 %v444, 0.0
      %v545 = vmax.f32 %v449, 0.0
      %v546 = vmax.f32 %v452, 0.0
      %v547 = vmax.f32 %v457, 0.0
      %v548 = vmax.f32 %v460, 0.0
      %v549 = vmax.f32 %v465, 0.0
      %v550 = vmax.f32 %v468, 0.0
      %v551 = vmax.f32 %v473, 0.0
      %v552 = vmax.f32 %v476, 0.0
      %v553 = vmax.f32 %v481, 0.0
      %v554 = vmax.f32 %v484, 0.0
      %v555 = vmax.f32 %v489, 0.0
      %v556 = vmax.f32 %v492, 0.0
      %v557 = vmax.f32 %v497, 0.0
      %v558 = vmax.f32 %v500, 0.0
      %v559 = vmax.f32 %v505, 0.0
      %v560 = vmax.f32 %v508, 0.0
      %v561 = vmax.f32 %v513, 0.0
      %v562 = vmax.f32 %v516, 0.0
      %v563 = vmax.f32 %v521, 0.0
      %v564 = vmax.f32 %v524, 0.0
      %v565 = vmax.f32 %v529, 0.0
      %v566 = vmax.f32 %v532, 0.0
      %v567 = vpack.c.bf16 %v536, %v535
      %v568 = vpack.c.bf16 %v538, %v537
      %v569 = vpack.c.bf16 %v540, %v539
      %v570 = vpack.c.bf16 %v542, %v541
      %v571 = vpack.c.bf16 %v544, %v543
      %v572 = vpack.c.bf16 %v546, %v545
      %v573 = vpack.c.bf16 %v548, %v547
      %v574 = vpack.c.bf16 %v550, %v549
      %v575 = vpack.c.bf16 %v552, %v551
      %v576 = vpack.c.bf16 %v554, %v553
      %v577 = vpack.c.bf16 %v556, %v555
      %v578 = vpack.c.bf16 %v558, %v557
      %v579 = vpack.c.bf16 %v560, %v559
      %v580 = vpack.c.bf16 %v562, %v561
      %v581 = vpack.c.bf16 %v564, %v563
      %v582 = vpack.c.bf16 %v566, %v565
      %v599 = vunpack.c.l.b16 %v567
      %v600 = vunpack.c.h.b16 %v567
      %v601 = vunpack.c.l.b16 %v568
      %v602 = vunpack.c.h.b16 %v568
      %v603 = vunpack.c.l.b16 %v569
      %v604 = vunpack.c.h.b16 %v569
      %v605 = vunpack.c.l.b16 %v570
      %v606 = vunpack.c.h.b16 %v570
      %v607 = vunpack.c.l.b16 %v571
      %v608 = vunpack.c.h.b16 %v571
      %v609 = vunpack.c.l.b16 %v572
      %v610 = vunpack.c.h.b16 %v572
      %v611 = vunpack.c.l.b16 %v573
      %v612 = vunpack.c.h.b16 %v573
      %v613 = vunpack.c.l.b16 %v574
      %v614 = vunpack.c.h.b16 %v574
      %v615 = vunpack.c.l.b16 %v575
      %v616 = vunpack.c.h.b16 %v575
      %v617 = vunpack.c.l.b16 %v576
      %v618 = vunpack.c.h.b16 %v576
      %v619 = vunpack.c.l.b16 %v577
      %v620 = vunpack.c.h.b16 %v577
      %v621 = vunpack.c.l.b16 %v578
      %v622 = vunpack.c.h.b16 %v578
      %v623 = vunpack.c.l.b16 %v579
      %v624 = vunpack.c.h.b16 %v579
      %v625 = vunpack.c.l.b16 %v580
      %v626 = vunpack.c.h.b16 %v580
      %v627 = vunpack.c.l.b16 %v581
      %v628 = vunpack.c.h.b16 %v581
      %v629 = vunpack.c.l.b16 %v582
      %v630 = vunpack.c.h.b16 %v582
      %v631 = vpack.c.b16 %v599, %v599
      %v632 = vpack.c.b16 %v600, %v600
      %v633 = vpack.c.b16 %v601, %v601
      %v634 = vpack.c.b16 %v602, %v602
      %v635 = vpack.c.b16 %v603, %v603
      %v636 = vpack.c.b16 %v604, %v604
      %v637 = vpack.c.b16 %v605, %v605
      %v638 = vpack.c.b16 %v606, %v606
      %v639 = vpack.c.b16 %v607, %v607
      %v640 = vpack.c.b16 %v608, %v608
      %v641 = vpack.c.b16 %v609, %v609
      %v642 = vpack.c.b16 %v610, %v610
      %v643 = vpack.c.b16 %v611, %v611
      %v644 = vpack.c.b16 %v612, %v612
      %v645 = vpack.c.b16 %v613, %v613
      %v646 = vpack.c.b16 %v614, %v614
      %v647 = vpack.c.b16 %v615, %v615
      %v648 = vpack.c.b16 %v616, %v616
      %v649 = vpack.c.b16 %v617, %v617
      %v650 = vpack.c.b16 %v618, %v618
      %v651 = vpack.c.b16 %v619, %v619
      %v652 = vpack.c.b16 %v620, %v620
      %v653 = vpack.c.b16 %v621, %v621
      %v654 = vpack.c.b16 %v622, %v622
      %v655 = vpack.c.b16 %v623, %v623
      %v656 = vpack.c.b16 %v624, %v624
      %v657 = vpack.c.b16 %v625, %v625
      %v658 = vpack.c.b16 %v626, %v626
      %v659 = vpack.c.b16 %v627, %v627
      %v660 = vpack.c.b16 %v628, %v628
      %v661 = vpack.c.b16 %v629, %v629
      %v662 = vpack.c.b16 %v630, %v630
      %695 = vst [vmem:[%s172] sm:$0xf] %v631
      %696 = vst [vmem:[%s172 + $0x4] sm:$0xf] %v632
      %697 = vst [vmem:[%s172 + $0x8] sm:$0xf] %v633
      %698 = vst [vmem:[%s172 + $0xc] sm:$0xf] %v634
      %699 = vst [vmem:[%s172 + $0x10] sm:$0xf] %v635
      %700 = vst [vmem:[%s172 + $0x14] sm:$0xf] %v636
      %701 = vst [vmem:[%s172 + $0x18] sm:$0xf] %v637
      %702 = vst [vmem:[%s172 + $0x1c] sm:$0xf] %v638
      %703 = vst [vmem:[%s172 + $0x20] sm:$0xf] %v639
      %704 = vst [vmem:[%s172 + $0x24] sm:$0xf] %v640
      %705 = vst [vmem:[%s172 + $0x28] sm:$0xf] %v641
      %706 = vst [vmem:[%s172 + $0x2c] sm:$0xf] %v642
      %707 = vst [vmem:[%s172 + $0x30] sm:$0xf] %v643
      %708 = vst [vmem:[%s172 + $0x34] sm:$0xf] %v644
      %709 = vst [vmem:[%s172 + $0x38] sm:$0xf] %v645
      %710 = vst [vmem:[%s172 + $0x3c] sm:$0xf] %v646
      %711 = vst [vmem:[%s172 + $0x40] sm:$0xf] %v647
      %712 = vst [vmem:[%s172 + $0x44] sm:$0xf] %v648
      %713 = vst [vmem:[%s172 + $0x48] sm:$0xf] %v649
      %714 = vst [vmem:[%s172 + $0x4c] sm:$0xf] %v650
      %715 = vst [vmem:[%s172 + $0x50] sm:$0xf] %v651
      %716 = vst [vmem:[%s172 + $0x54] sm:$0xf] %v652
      %717 = vst [vmem:[%s172 + $0x58] sm:$0xf] %v653
      %718 = vst [vmem:[%s172 + $0x5c] sm:$0xf] %v654
      %719 = vst [vmem:[%s172 + $0x60] sm:$0xf] %v655
      %720 = vst [vmem:[%s172 + $0x64] sm:$0xf] %v656
      %721 = vst [vmem:[%s172 + $0x68] sm:$0xf] %v657
      %722 = vst [vmem:[%s172 + $0x6c] sm:$0xf] %v658
      %723 = vst [vmem:[%s172 + $0x70] sm:$0xf] %v659
      %724 = vst [vmem:[%s172 + $0x74] sm:$0xf] %v660
      %725 = vst [vmem:[%s172 + $0x78] sm:$0xf] %v661
      %726 = vst [vmem:[%s172 + $0x7c] sm:$0xf] %v662
      %s727 = smul.u32 32, %s14
      %p728 = scmp.lt.s32.totalorder %s727, 255
      %s729 = scalar_select %p728, %s727, 255
      %s730 = smul.addr %s729, 4
      %s731 = scalar_lea.vmem %s3, %s730
      // Predicated region
      $region33: #{_lambda_.48} parent=31 // pred_check
        %p732 = pneg %p100
      $region34: #{_lambda_.48} parent=31 // pred_check_branch
        %734 = sbr.rel (%p732) target = $region36
      $region35: #{_lambda_.48} parent=31 // pred_region
        %s735 = smul.u32 32, %s14
      $region36: #{_lambda_.48} parent=31 // pred_fallthru
        _
    $region32: #{_lambda_.48} parent=5 // pred_fallthru
      _
    %p736 = scmp.le.s32.totalorder 2, %s9
    // Predicated region
    $region37: #{_lambda_.48} parent=5 // pred_check
      %p737 = pneg %p736
    $region38: #{_lambda_.48} parent=5 // pred_check_branch
      %739 = sbr.rel (%p737) target = $region40
    $region39: #{_lambda_.48} parent=5 // pred_region
      %s740 = ssub.s32 %s9, 2
      // Predicated region
      $region41: #{_lambda_.48} parent=39 // pred_check
        %p741 = pneg %p106
      $region42: #{_lambda_.48} parent=39 // pred_check_branch
        %743 = sbr.rel (%p741) target = $region44
      $region43: #{_lambda_.48} parent=39 // pred_region
        %s744 = smul.u32 32, %s15
        %p745 = scmp.lt.s32.totalorder %s744, 255
        %s746 = scalar_select %p745, %s744, 255
        %s747 = smul.addr %s746, 4
        %s748 = scalar_lea.vmem %s3, %s747
      $region44: #{_lambda_.48} parent=39 // pred_fallthru
        _
    $region40: #{_lambda_.48} parent=5 // pred_fallthru
      _
  $region6: #{_lambda_.48} parent=0 // loop_footer
    %s13 = sadd.s32 1, %s9
  $region7: #{_lambda_.48} parent=0 // loop_footer_branch
    %8 = sbr.rel target = $region3
  $region8: #{_lambda_.48} parent=0 // loop_exit
    _

// kernel: _lambda_.49
$region0: #{_lambda_.49}
  #allocation0 [shape = 'u32[]', space=smem, size = 0x4, offset = 0x4, fixed_abs, tag = 'smem constant byte address 0x4 - core index']
  #allocation1 [shape = 'u32[144,128]{1,0:T(1,128)}', space=vmem, size = 0x12000, scoped, tag = 'internal scratch']
  %s0 = inlined_call_operand.vmem [shape: bf16[512,128], index: 0, kind: input, shape index: {}]
  %s1 = inlined_call_operand.vmem [shape: bf16[128,128], index: 1, kind: input, shape index: {}]
  %s2 = inlined_call_operand.vmem [shape: f32[1,128], index: 2, kind: input, shape index: {}]
  %s3 = inlined_call_operand.vmem [shape: bf16[512,128], index: 3, kind: output, shape index: {}]
  %s4 = sld [smem:[#allocation0]]
  $region45: #{_lambda_.49} parent=0
    _
  %s6 = ssub.s32 1, %s4
  %s7 = scalar_select 0, %s6, %s4
  loop: start=0, step=1, limit=4
  $region2: #{_lambda_.49} parent=0 // loop_pre_header
    _
  $region3: #{_lambda_.49} parent=0 // loop_header
    %s9 = sphi 0, %s13
    %p10 = scmp.ge.s32.totalorder %s9, 4
    %s19 = sphi 0, %s21
    %s22 = sphi 0, %s19
    %s23 = sphi 0, %s22
    %s39 = sphi 0, %s23
    %s43 = sphi 0, %s43
    %s45 = sphi 0, %s43
    %s46 = sphi 0, %s45
    %s60 = sphi 0, %s46
    %s64 = sphi 0, %s64
    %s66 = sphi 0, %s64
    %s67 = sphi 0, %s66
    %s81 = sphi 0, %s67
    %s87 = sphi 0, %s89
    %s90 = sphi 0, %s87
    %s91 = sphi 0, %s90
    %s107 = sphi 0, %s91
  $region4: #{_lambda_.49} parent=0 // loop_header_branch
    %12 = sbr.rel (%p10) target = $region8
  $region5: #{_lambda_.49} parent=0 // loop_body
    %s14 = ssub.s32 %s9, 1
    %s15 = ssub.s32 %s9, 2
    %s16 = sadd.s32 %s9, 1
    %s17 = ssub.s32 %s9, %s16
    %p18 = scmp.eq.s32.totalorder %s17, 0
    %s20 = sadd.s32 %s19, 1
    %s21 = scalar_select %p18, %s19, %s20
    %p24 = pneg %p18
    %p25 = scmp.eq.s32.totalorder %s9, 1
    %p26 = por %p24, %p25
    %p27 = scmp.ne.s32.totalorder %s19, %s22
    %p28 = scmp.eq.s32.totalorder %s9, 0
    %p29 = por %p27, %p28
    %p30 = scmp.ne.s32.totalorder %s19, %s22
    %p31 = scmp.eq.s32.totalorder %s14, 1
    %p32 = por %p30, %p31
    %p33 = scmp.ne.s32.totalorder %s22, %s23
    %p34 = scmp.eq.s32.totalorder %s14, 0
    %p35 = por %p33, %p34
    %p36 = scmp.ne.s32.totalorder %s22, %s23
    %p37 = scmp.eq.s32.totalorder %s15, 1
    %p38 = por %p36, %p37
    %p40 = scmp.ne.s32.totalorder %s23, %s39
    %p41 = scmp.eq.s32.totalorder %s15, 0
    %p42 = por %p40, %p41
    %s44 = sadd.s32 %s43, 1
    %p47 = scmp.eq.s32.totalorder %s9, 1
    %p48 = scmp.ne.s32.totalorder %s43, %s45
    %p49 = scmp.eq.s32.totalorder %s9, 0
    %p50 = por %p48, %p49
    %p51 = scmp.ne.s32.totalorder %s43, %s45
    %p52 = scmp.eq.s32.totalorder %s14, 1
    %p53 = por %p51, %p52
    %p54 = scmp.ne.s32.totalorder %s45, %s46
    %p55 = scmp.eq.s32.totalorder %s14, 0
    %p56 = por %p54, %p55
    %p57 = scmp.ne.s32.totalorder %s45, %s46
    %p58 = scmp.eq.s32.totalorder %s15, 1
    %p59 = por %p57, %p58
    %p61 = scmp.ne.s32.totalorder %s46, %s60
    %p62 = scmp.eq.s32.totalorder %s15, 0
    %p63 = por %p61, %p62
    %s65 = sadd.s32 %s64, 1
    %p68 = scmp.eq.s32.totalorder %s9, 1
    %p69 = scmp.ne.s32.totalorder %s64, %s66
    %p70 = scmp.eq.s32.totalorder %s9, 0
    %p71 = por %p69, %p70
    %p72 = scmp.ne.s32.totalorder %s64, %s66
    %p73 = scmp.eq.s32.totalorder %s14, 1
    %p74 = por %p72, %p73
    %p75 = scmp.ne.s32.totalorder %s66, %s67
    %p76 = scmp.eq.s32.totalorder %s14, 0
    %p77 = por %p75, %p76
    %p78 = scmp.ne.s32.totalorder %s66, %s67
    %p79 = scmp.eq.s32.totalorder %s15, 1
    %p80 = por %p78, %p79
    %p82 = scmp.ne.s32.totalorder %s67, %s81
    %p83 = scmp.eq.s32.totalorder %s15, 0
    %p84 = por %p82, %p83
    %s85 = ssub.s32 %s9, %s16
    %p86 = scmp.eq.s32.totalorder %s85, 0
    %s88 = sadd.s32 %s87, 1
    %s89 = scalar_select %p86, %s87, %s88
    %p92 = pneg %p86
    %p93 = scmp.eq.s32.totalorder %s9, 1
    %p94 = por %p92, %p93
    %p95 = scmp.ne.s32.totalorder %s87, %s90
    %p96 = scmp.eq.s32.totalorder %s9, 0
    %p97 = por %p95, %p96
    %p98 = scmp.ne.s32.totalorder %s87, %s90
    %p99 = scmp.eq.s32.totalorder %s14, 1
    %p100 = por %p98, %p99
    %p101 = scmp.ne.s32.totalorder %s90, %s91
    %p102 = scmp.eq.s32.totalorder %s14, 0
    %p103 = por %p101, %p102
    %p104 = scmp.ne.s32.totalorder %s90, %s91
    %p105 = scmp.eq.s32.totalorder %s15, 1
    %p106 = por %p104, %p105
    %p108 = scmp.ne.s32.totalorder %s91, %s107
    %p109 = scmp.eq.s32.totalorder %s15, 0
    %p110 = por %p108, %p109
    %p111 = scmp.le.s32.totalorder 1, %s9
    %p112 = scmp.lt.s32.totalorder %s9, 3
    %p113 = pnand %p111, %p112
    %p114 = pneg %p113
    // Predicated region
    $region9: #{_lambda_.49} parent=5 // pred_check
      _
    $region10: #{_lambda_.49} parent=5 // pred_check_branch
      %116 = sbr.rel (%p113) target = $region12
    $region11: #{_lambda_.49} parent=5 // pred_region
      %s117 = ssub.s32 %s9, 1
      // Predicated region
      $region13: #{_lambda_.49} parent=11 // pred_check
        %p118 = pneg %p56
      $region14: #{_lambda_.49} parent=11 // pred_check_branch
        %120 = sbr.rel (%p118) target = $region16
      $region15: #{_lambda_.49} parent=11 // pred_region
        _
      $region16: #{_lambda_.49} parent=11 // pred_fallthru
        _
      // Predicated region
      $region17: #{_lambda_.49} parent=11 // pred_check
        %p121 = pneg %p77
      $region18: #{_lambda_.49} parent=11 // pred_check_branch
        %123 = sbr.rel (%p121) target = $region20
      $region19: #{_lambda_.49} parent=11 // pred_region
        _
      $region20: #{_lambda_.49} parent=11 // pred_fallthru
        _
    $region12: #{_lambda_.49} parent=5 // pred_fallthru
      _
    %p124 = scmp.lt.s32.totalorder %s9, 2
    // Predicated region
    $region21: #{_lambda_.49} parent=5 // pred_check
      %p125 = pneg %p124
    $region22: #{_lambda_.49} parent=5 // pred_check_branch
      %127 = sbr.rel (%p125) target = $region24
    $region23: #{_lambda_.49} parent=5 // pred_region
      // Predicated region
      $region25: #{_lambda_.49} parent=23 // pred_check
        %p128 = pneg %p29
      $region26: #{_lambda_.49} parent=23 // pred_check_branch
        %130 = sbr.rel (%p128) target = $region28
      $region27: #{_lambda_.49} parent=23 // pred_region
        %s131 = smul.u32 32, %s9
        %p132 = scmp.lt.s32.totalorder %s131, 63
        %s133 = scalar_select %p132, %s131, 63
        %s134 = smul.addr %s133, 4
        %s135 = scalar_lea.vmem %s0, %s134
        %s136 = smul.u32 32, %s9
      $region28: #{_lambda_.49} parent=23 // pred_fallthru
        _
    $region24: #{_lambda_.49} parent=5 // pred_fallthru
      _
    %p137 = scmp.le.s32.totalorder 1, %s9
    %p138 = scmp.lt.s32.totalorder %s9, 3
    %p139 = pnand %p137, %p138
    %p140 = pneg %p139
    // Predicated region
    $region29: #{_lambda_.49} parent=5 // pred_check
      _
    $region30: #{_lambda_.49} parent=5 // pred_check_branch
      %142 = sbr.rel (%p139) target = $region32
    $region31: #{_lambda_.49} parent=5 // pred_region
      %s143 = ssub.s32 %s9, 1
      %s144 = smul.u32 32, %s14
      %p145 = scmp.lt.s32.totalorder %s144, 63
      %s146 = scalar_select %p145, %s144, 63
      %s147 = smul.addr %s146, 4
      %s148 = scalar_lea.vmem %s0, %s147
      %p149 = pneg %p35
      %p150 = pneg %p32
      %p151 = pneg %p56
      %p152 = pneg %p53
      %p153 = pneg %p77
      %p154 = pneg %p74
      %p155 = pneg %p103
      %p156 = pneg %p100
      %s157 = smul.u32 32, %s14
      %p158 = scmp.lt.s32.totalorder %s157, 63
      %s159 = scalar_select %p158, %s157, 63
      %s160 = smul.addr %s159, 4
      %s161 = scalar_lea.vmem %s3, %s160
      %s162 = smul.u32 32, %s14
      %p163 = scmp.lt.s32.totalorder %s162, 63
      %s164 = scalar_select %p163, %s162, 63
      %s165 = smul.addr %s164, 4
      %s166 = scalar_lea.vmem %s0, %s165
      %s167 = smul.u32 32, %s14
      %s168 = smul.u32 32, %s14
      %p169 = scmp.lt.s32.totalorder %s168, 63
      %s170 = scalar_select %p169, %s168, 63
      %s171 = smul.addr %s170, 4
      %s172 = scalar_lea.vmem %s3, %s171
      %s173 = smul.u32 32, %s14
      %v175 = vld [vmem:[%s166] sm:$0xf]
      %v176 = vld [vmem:[%s166 + $0x4] sm:$0xf]
      %v177 = vld [vmem:[%s166 + $0x8] sm:$0xf]
      %v178 = vld [vmem:[%s166 + $0xc] sm:$0xf]
      %v179 = vld [vmem:[%s166 + $0x10] sm:$0xf]
      %v180 = vld [vmem:[%s166 + $0x14] sm:$0xf]
      %v181 = vld [vmem:[%s166 + $0x18] sm:$0xf]
      %v182 = vld [vmem:[%s166 + $0x1c] sm:$0xf]
      %v183 = vld [vmem:[%s166 + $0x20] sm:$0xf]
      %v184 = vld [vmem:[%s166 + $0x24] sm:$0xf]
      %v185 = vld [vmem:[%s166 + $0x28] sm:$0xf]
      %v186 = vld [vmem:[%s166 + $0x2c] sm:$0xf]
      %v187 = vld [vmem:[%s166 + $0x30] sm:$0xf]
      %v188 = vld [vmem:[%s166 + $0x34] sm:$0xf]
      %v189 = vld [vmem:[%s166 + $0x38] sm:$0xf]
      %v190 = vld [vmem:[%s166 + $0x3c] sm:$0xf]
      %v191 = vld [vmem:[%s166 + $0x40] sm:$0xf]
      %v192 = vld [vmem:[%s166 + $0x44] sm:$0xf]
      %v193 = vld [vmem:[%s166 + $0x48] sm:$0xf]
      %v194 = vld [vmem:[%s166 + $0x4c] sm:$0xf]
      %v195 = vld [vmem:[%s166 + $0x50] sm:$0xf]
      %v196 = vld [vmem:[%s166 + $0x54] sm:$0xf]
      %v197 = vld [vmem:[%s166 + $0x58] sm:$0xf]
      %v198 = vld [vmem:[%s166 + $0x5c] sm:$0xf]
      %v199 = vld [vmem:[%s166 + $0x60] sm:$0xf]
      %v200 = vld [vmem:[%s166 + $0x64] sm:$0xf]
      %v201 = vld [vmem:[%s166 + $0x68] sm:$0xf]
      %v202 = vld [vmem:[%s166 + $0x6c] sm:$0xf]
      %v203 = vld [vmem:[%s166 + $0x70] sm:$0xf]
      %v204 = vld [vmem:[%s166 + $0x74] sm:$0xf]
      %v205 = vld [vmem:[%s166 + $0x78] sm:$0xf]
      %v206 = vld [vmem:[%s166 + $0x7c] sm:$0xf]
      %v207 = vld [vmem:[%s1] sm:$0xf]
      %v208 = vld [vmem:[%s1 + $0x4] sm:$0xf]
      %v209 = vld [vmem:[%s1 + $0x8] sm:$0xf]
      %v210 = vld [vmem:[%s1 + $0xc] sm:$0xf]
      %v211 = vld [vmem:[%s1 + $0x10] sm:$0xf]
      %v212 = vld [vmem:[%s1 + $0x14] sm:$0xf]
      %v213 = vld [vmem:[%s1 + $0x18] sm:$0xf]
      %v214 = vld [vmem:[%s1 + $0x1c] sm:$0xf]
      %v215 = vld [vmem:[%s1 + $0x20] sm:$0xf]
      %v216 = vld [vmem:[%s1 + $0x24] sm:$0xf]
      %v217 = vld [vmem:[%s1 + $0x28] sm:$0xf]
      %v218 = vld [vmem:[%s1 + $0x2c] sm:$0xf]
      %v219 = vld [vmem:[%s1 + $0x30] sm:$0xf]
      %v220 = vld [vmem:[%s1 + $0x34] sm:$0xf]
      %v221 = vld [vmem:[%s1 + $0x38] sm:$0xf]
      %v222 = vld [vmem:[%s1 + $0x3c] sm:$0xf]
      %v223 = vld [vmem:[%s2] sm:$0x1]
      %v225 = vlaneseq
      %v226 = vshrl.u32 %v225, 7
      %v227 = vsub.s32 0, %v226
      %v228 = vrot.slane %v223, %v227
      %v262 = vunpack.c.l.b16 %v175
      %v263 = vunpack.c.l.b16 %v176
      %v264 = vunpack.c.l.b16 %v177
      %v265 = vunpack.c.l.b16 %v178
      %v266 = vunpack.c.l.b16 %v179
      %v267 = vunpack.c.l.b16 %v180
      %v268 = vunpack.c.l.b16 %v181
      %v269 = vunpack.c.l.b16 %v182
      %v270 = vunpack.c.l.b16 %v183
      %v271 = vunpack.c.l.b16 %v184
      %v272 = vunpack.c.l.b16 %v185
      %v273 = vunpack.c.l.b16 %v186
      %v274 = vunpack.c.l.b16 %v187
      %v275 = vunpack.c.l.b16 %v188
      %v276 = vunpack.c.l.b16 %v189
      %v277 = vunpack.c.l.b16 %v190
      %v278 = vunpack.c.l.b16 %v191
      %v279 = vunpack.c.l.b16 %v192
      %v280 = vunpack.c.l.b16 %v193
      %v281 = vunpack.c.l.b16 %v194
      %v282 = vunpack.c.l.b16 %v195
      %v283 = vunpack.c.l.b16 %v196
      %v284 = vunpack.c.l.b16 %v197
      %v285 = vunpack.c.l.b16 %v198
      %v286 = vunpack.c.l.b16 %v199
      %v287 = vunpack.c.l.b16 %v200
      %v288 = vunpack.c.l.b16 %v201
      %v289 = vunpack.c.l.b16 %v202
      %v290 = vunpack.c.l.b16 %v203
      %v291 = vunpack.c.l.b16 %v204
      %v292 = vunpack.c.l.b16 %v205
      %v293 = vunpack.c.l.b16 %v206
      %v294 = vpack.c.b16 %v263, %v262
      %v295 = vpack.c.b16 %v265, %v264
      %v296 = vpack.c.b16 %v267, %v266
      %v297 = vpack.c.b16 %v269, %v268
      %v298 = vpack.c.b16 %v271, %v270
      %v299 = vpack.c.b16 %v273, %v272
      %v300 = vpack.c.b16 %v275, %v274
      %v301 = vpack.c.b16 %v277, %v276
      %v302 = vpack.c.b16 %v279, %v278
      %v303 = vpack.c.b16 %v281, %v280
      %v304 = vpack.c.b16 %v283, %v282
      %v305 = vpack.c.b16 %v285, %v284
      %v306 = vpack.c.b16 %v287, %v286
      %v307 = vpack.c.b16 %v289, %v288
      %v308 = vpack.c.b16 %v291, %v290
      %v309 = vpack.c.b16 %v293, %v292
      %v342 = vunpack.c.l.b16 %v207
      %v343 = vunpack.c.l.b16 %v208
      %v344 = vunpack.c.l.b16 %v209
      %v345 = vunpack.c.l.b16 %v210
      %v346 = vunpack.c.l.b16 %v211
      %v347 = vunpack.c.l.b16 %v212
      %v348 = vunpack.c.l.b16 %v213
      %v349 = vunpack.c.l.b16 %v214
      %v350 = vunpack.c.l.b16 %v215
      %v351 = vunpack.c.l.b16 %v216
      %v352 = vunpack.c.l.b16 %v217
      %v353 = vunpack.c.l.b16 %v218
      %v354 = vunpack.c.l.b16 %v219
      %v355 = vunpack.c.l.b16 %v220
      %v356 = vunpack.c.l.b16 %v221
      %v357 = vunpack.c.l.b16 %v222
      %v358 = vpack.c.b16 %v343, %v342
      %v359 = vpack.c.b16 %v345, %v344
      %v360 = vpack.c.b16 %v347, %v346
      %v361 = vpack.c.b16 %v349, %v348
      %v362 = vpack.c.b16 %v351, %v350
      %v363 = vpack.c.b16 %v353, %v352
      %v364 = vpack.c.b16 %v355, %v354
      %v365 = vpack.c.b16 %v357, %v356
      %374 = vmatprep.subr.bf16.mxu0 0
      %375 = vmatpush1.bf16.msra.mxu0 %v358
      %376 = vmatprep.subr.bf16.mxu0 0
      %377 = vmatpush1.bf16.msra.mxu0 %v359
      %378 = vmatprep.subr.bf16.mxu0 0
      %379 = vmatpush1.bf16.msra.mxu0 %v360
      %380 = vmatprep.subr.bf16.mxu0 0
      %381 = vmatpush1.bf16.msra.mxu0 %v361
      %382 = vmatprep.subr.bf16.mxu0 0
      %383 = vmatpush1.bf16.msra.mxu0 %v362
      %384 = vmatprep.subr.bf16.mxu0 0
      %385 = vmatpush1.bf16.msra.mxu0 %v363
      %386 = vmatprep.subr.bf16.mxu0 0
      %387 = vmatpush1.bf16.msra.mxu0 %v364
      %388 = vmatprep.subr.bf16.mxu0 0
      %389 = vmatpush1.bf16.msra.mxu0 %v365
      %390 = vmatprep.subr.bf16.mxu0 0
      %391 = vmatpush1.bf16.msra.mxu0 0
      %392 = vmatprep.subr.bf16.mxu0 0
      %393 = vmatpush1.bf16.msra.mxu0 0
      %394 = vmatprep.subr.bf16.mxu0 0
      %395 = vmatpush1.bf16.msra.mxu0 0
      %396 = vmatprep.subr.bf16.mxu0 0
      %397 = vmatpush1.bf16.msra.mxu0 0
      %398 = vmatprep.subr.bf16.mxu0 0
      %399 = vmatpush1.bf16.msra.mxu0 0
      %400 = vmatprep.subr.bf16.mxu0 0
      %401 = vmatpush1.bf16.msra.mxu0 0
      %402 = vmatprep.subr.bf16.mxu0 0
      %403 = vmatpush1.bf16.msra.mxu0 0
      %404 = vmatprep.subr.bf16.mxu0 0
      %405 = vmatpush1.bf16.msra.mxu0 0
      %406 = vmatprep.mubr.bf16.mxu0 0
      %407 = vmatmul.mubr.bf16.gmra.mrb[0].mxu0 %v294
      %v408 = vpop.f32.mrb[0].mxu0
      %v409 = vadd.f32 %v228, %v408
      %v410 = vpop.f32.mrb[0].mxu0
      %v411 = vpop.f32.mrb[0].mxu0
      %v412 = vadd.f32 %v228, %v411
      %v413 = vpop.f32.mrb[0].mxu0
      %414 = vmatprep.mubr.bf16.mxu0 0
      %415 = vmatmul.mubr.bf16.gmra.mrb[0].mxu0 %v295
      %v416 = vpop.f32.mrb[0].mxu0
      %v417 = vadd.f32 %v228, %v416
      %v418 = vpop.f32.mrb[0].mxu0
      %v419 = vpop.f32.mrb[0].mxu0
      %v420 = vadd.f32 %v228, %v419
      %v421 = vpop.f32.mrb[0].mxu0
      %422 = vmatprep.mubr.bf16.mxu0 0
      %423 = vmatmul.mubr.bf16.gmra.mrb[0].mxu0 %v296
      %v424 = vpop.f32.mrb[0].mxu0
      %v425 = vadd.f32 %v228, %v424
      %v426 = vpop.f32.mrb[0].mxu0
      %v427 = vpop.f32.mrb[0].mxu0
      %v428 = vadd.f32 %v228, %v427
      %v429 = vpop.f32.mrb[0].mxu0
      %430 = vmatprep.mubr.bf16.mxu0 0
      %431 = vmatmul.mubr.bf16.gmra.mrb[0].mxu0 %v297
      %v432 = vpop.f32.mrb[0].mxu0
      %v433 = vadd.f32 %v228, %v432
      %v434 = vpop.f32.mrb[0].mxu0
      %v435 = vpop.f32.mrb[0].mxu0
      %v436 = vadd.f32 %v228, %v435
      %v437 = vpop.f32.mrb[0].mxu0
      %438 = vmatprep.mubr.bf16.mxu0 0
      %439 = vmatmul.mubr.bf16.gmra.mrb[0].mxu0 %v298
      %v440 = vpop.f32.mrb[0].mxu0
      %v441 = vadd.f32 %v228, %v440
      %v442 = vpop.f32.mrb[0].mxu0
      %v443 = vpop.f32.mrb[0].mxu0
      %v444 = vadd.f32 %v228, %v443
      %v445 = vpop.f32.mrb[0].mxu0
      %446 = vmatprep.mubr.bf16.mxu0 0
      %447 = vmatmul.mubr.bf16.gmra.mrb[0].mxu0 %v299
      %v448 = vpop.f32.mrb[0].mxu0
      %v449 = vadd.f32 %v228, %v448
      %v450 = vpop.f32.mrb[0].mxu0
      %v451 = vpop.f32.mrb[0].mxu0
      %v452 = vadd.f32 %v228, %v451
      %v453 = vpop.f32.mrb[0].mxu0
      %454 = vmatprep.mubr.bf16.mxu0 0
      %455 = vmatmul.mubr.bf16.gmra.mrb[0].mxu0 %v300
      %v456 = vpop.f32.mrb[0].mxu0
      %v457 = vadd.f32 %v228, %v456
      %v458 = vpop.f32.mrb[0].mxu0
      %v459 = vpop.f32.mrb[0].mxu0
      %v460 = vadd.f32 %v228, %v459
      %v461 = vpop.f32.mrb[0].mxu0
      %462 = vmatprep.mubr.bf16.mxu0 0
      %463 = vmatmul.mubr.bf16.gmra.mrb[0].mxu0 %v301
      %v464 = vpop.f32.mrb[0].mxu0
      %v465 = vadd.f32 %v228, %v464
      %v466 = vpop.f32.mrb[0].mxu0
      %v467 = vpop.f32.mrb[0].mxu0
      %v468 = vadd.f32 %v228, %v467
      %v469 = vpop.f32.mrb[0].mxu0
      %470 = vmatprep.mubr.bf16.mxu0 0
      %471 = vmatmul.mubr.bf16.gmra.mrb[0].mxu0 %v302
      %v472 = vpop.f32.mrb[0].mxu0
      %v473 = vadd.f32 %v228, %v472
      %v474 = vpop.f32.mrb[0].mxu0
      %v475 = vpop.f32.mrb[0].mxu0
      %v476 = vadd.f32 %v228, %v475
      %v477 = vpop.f32.mrb[0].mxu0
      %478 = vmatprep.mubr.bf16.mxu0 0
      %479 = vmatmul.mubr.bf16.gmra.mrb[0].mxu0 %v303
      %v480 = vpop.f32.mrb[0].mxu0
      %v481 = vadd.f32 %v228, %v480
      %v482 = vpop.f32.mrb[0].mxu0
      %v483 = vpop.f32.mrb[0].mxu0
      %v484 = vadd.f32 %v228, %v483
      %v485 = vpop.f32.mrb[0].mxu0
      %486 = vmatprep.mubr.bf16.mxu0 0
      %487 = vmatmul.mubr.bf16.gmra.mrb[0].mxu0 %v304
      %v488 = vpop.f32.mrb[0].mxu0
      %v489 = vadd.f32 %v228, %v488
      %v490 = vpop.f32.mrb[0].mxu0
      %v491 = vpop.f32.mrb[0].mxu0
      %v492 = vadd.f32 %v228, %v491
      %v493 = vpop.f32.mrb[0].mxu0
      %494 = vmatprep.mubr.bf16.mxu0 0
      %495 = vmatmul.mubr.bf16.gmra.mrb[0].mxu0 %v305
      %v496 = vpop.f32.mrb[0].mxu0
      %v497 = vadd.f32 %v228, %v496
      %v498 = vpop.f32.mrb[0].mxu0
      %v499 = vpop.f32.mrb[0].mxu0
      %v500 = vadd.f32 %v228, %v499
      %v501 = vpop.f32.mrb[0].mxu0
      %502 = vmatprep.mubr.bf16.mxu0 0
      %503 = vmatmul.mubr.bf16.gmra.mrb[0].mxu0 %v306
      %v504 = vpop.f32.mrb[0].mxu0
      %v505 = vadd.f32 %v228, %v504
      %v506 = vpop.f32.mrb[0].mxu0
      %v507 = vpop.f32.mrb[0].mxu0
      %v508 = vadd.f32 %v228, %v507
      %v509 = vpop.f32.mrb[0].mxu0
      %510 = vmatprep.mubr.bf16.mxu0 0
      %511 = vmatmul.mubr.bf16.gmra.mrb[0].mxu0 %v307
      %v512 = vpop.f32.mrb[0].mxu0
      %v513 = vadd.f32 %v228, %v512
      %v514 = vpop.f32.mrb[0].mxu0
      %v515 = vpop.f32.mrb[0].mxu0
      %v516 = vadd.f32 %v228, %v515
      %v517 = vpop.f32.mrb[0].mxu0
      %518 = vmatprep.mubr.bf16.mxu0 0
      %519 = vmatmul.mubr.bf16.gmra.mrb[0].mxu0 %v308
      %v520 = vpop.f32.mrb[0].mxu0
      %v521 = vadd.f32 %v228, %v520
      %v522 = vpop.f32.mrb[0].mxu0
      %v523 = vpop.f32.mrb[0].mxu0
      %v524 = vadd.f32 %v228, %v523
      %v525 = vpop.f32.mrb[0].mxu0
      %526 = vmatprep.mubr.bf16.mxu0 0
      %527 = vmatmul.mubr.bf16.gmra.mrb[0].mxu0 %v309
      %v528 = vpop.f32.mrb[0].mxu0
      %v529 = vadd.f32 %v228, %v528
      %v530 = vpop.f32.mrb[0].mxu0
      %v531 = vpop.f32.mrb[0].mxu0
      %v532 = vadd.f32 %v228, %v531
      %v533 = vpop.f32.mrb[0].mxu0
      %534 = vdwg.mxu0
      %v535 = vmax.f32 %v409, 0.0
      %v536 = vmax.f32 %v412, 0.0
      %v537 = vmax.f32 %v417, 0.0
      %v538 = vmax.f32 %v420, 0.0
      %v539 = vmax.f32 %v425, 0.0
      %v540 = vmax.f32 %v428, 0.0
      %v541 = vmax.f32 %v433, 0.0
      %v542 = vmax.f32 %v436, 0.0
      %v543 = vmax.f32 %v441, 0.0
      %v544 = vmax.f32 %v444, 0.0
      %v545 = vmax.f32 %v449, 0.0
      %v546 = vmax.f32 %v452, 0.0
      %v547 = vmax.f32 %v457, 0.0
      %v548 = vmax.f32 %v460, 0.0
      %v549 = vmax.f32 %v465, 0.0
      %v550 = vmax.f32 %v468, 0.0
      %v551 = vmax.f32 %v473, 0.0
      %v552 = vmax.f32 %v476, 0.0
      %v553 = vmax.f32 %v481, 0.0
      %v554 = vmax.f32 %v484, 0.0
      %v555 = vmax.f32 %v489, 0.0
      %v556 = vmax.f32 %v492, 0.0
      %v557 = vmax.f32 %v497, 0.0
      %v558 = vmax.f32 %v500, 0.0
      %v559 = vmax.f32 %v505, 0.0
      %v560 = vmax.f32 %v508, 0.0
      %v561 = vmax.f32 %v513, 0.0
      %v562 = vmax.f32 %v516, 0.0
      %v563 = vmax.f32 %v521, 0.0
      %v564 = vmax.f32 %v524, 0.0
      %v565 = vmax.f32 %v529, 0.0
      %v566 = vmax.f32 %v532, 0.0
      %v567 = vpack.c.bf16 %v536, %v535
      %v568 = vpack.c.bf16 %v538, %v537
      %v569 = vpack.c.bf16 %v540, %v539
      %v570 = vpack.c.bf16 %v542, %v541
      %v571 = vpack.c.bf16 %v544, %v543
      %v572 = vpack.c.bf16 %v546, %v545
      %v573 = vpack.c.bf16 %v548, %v547
      %v574 = vpack.c.bf16 %v550, %v549
      %v575 = vpack.c.bf16 %v552, %v551
      %v576 = vpack.c.bf16 %v554, %v553
      %v577 = vpack.c.bf16 %v556, %v555
      %v578 = vpack.c.bf16 %v558, %v557
      %v579 = vpack.c.bf16 %v560, %v559
      %v580 = vpack.c.bf16 %v562, %v561
      %v581 = vpack.c.bf16 %v564, %v563
      %v582 = vpack.c.bf16 %v566, %v565
      %v599 = vunpack.c.l.b16 %v567
      %v600 = vunpack.c.h.b16 %v567
      %v601 = vunpack.c.l.b16 %v568
      %v602 = vunpack.c.h.b16 %v568
      %v603 = vunpack.c.l.b16 %v569
      %v604 = vunpack.c.h.b16 %v569
      %v605 = vunpack.c.l.b16 %v570
      %v606 = vunpack.c.h.b16 %v570
      %v607 = vunpack.c.l.b16 %v571
      %v608 = vunpack.c.h.b16 %v571
      %v609 = vunpack.c.l.b16 %v572
      %v610 = vunpack.c.h.b16 %v572
      %v611 = vunpack.c.l.b16 %v573
      %v612 = vunpack.c.h.b16 %v573
      %v613 = vunpack.c.l.b16 %v574
      %v614 = vunpack.c.h.b16 %v574
      %v615 = vunpack.c.l.b16 %v575
      %v616 = vunpack.c.h.b16 %v575
      %v617 = vunpack.c.l.b16 %v576
      %v618 = vunpack.c.h.b16 %v576
      %v619 = vunpack.c.l.b16 %v577
      %v620 = vunpack.c.h.b16 %v577
      %v621 = vunpack.c.l.b16 %v578
      %v622 = vunpack.c.h.b16 %v578
      %v623 = vunpack.c.l.b16 %v579
      %v624 = vunpack.c.h.b16 %v579
      %v625 = vunpack.c.l.b16 %v580
      %v626 = vunpack.c.h.b16 %v580
      %v627 = vunpack.c.l.b16 %v581
      %v628 = vunpack.c.h.b16 %v581
      %v629 = vunpack.c.l.b16 %v582
      %v630 = vunpack.c.h.b16 %v582
      %v631 = vpack.c.b16 %v599, %v599
      %v632 = vpack.c.b16 %v600, %v600
      %v633 = vpack.c.b16 %v601, %v601
      %v634 = vpack.c.b16 %v602, %v602
      %v635 = vpack.c.b16 %v603, %v603
      %v636 = vpack.c.b16 %v604, %v604
      %v637 = vpack.c.b16 %v605, %v605
      %v638 = vpack.c.b16 %v606, %v606
      %v639 = vpack.c.b16 %v607, %v607
      %v640 = vpack.c.b16 %v608, %v608
      %v641 = vpack.c.b16 %v609, %v609
      %v642 = vpack.c.b16 %v610, %v610
      %v643 = vpack.c.b16 %v611, %v611
      %v644 = vpack.c.b16 %v612, %v612
      %v645 = vpack.c.b16 %v613, %v613
      %v646 = vpack.c.b16 %v614, %v614
      %v647 = vpack.c.b16 %v615, %v615
      %v648 = vpack.c.b16 %v616, %v616
      %v649 = vpack.c.b16 %v617, %v617
      %v650 = vpack.c.b16 %v618, %v618
      %v651 = vpack.c.b16 %v619, %v619
      %v652 = vpack.c.b16 %v620, %v620
      %v653 = vpack.c.b16 %v621, %v621
      %v654 = vpack.c.b16 %v622, %v622
      %v655 = vpack.c.b16 %v623, %v623
      %v656 = vpack.c.b16 %v624, %v624
      %v657 = vpack.c.b16 %v625, %v625
      %v658 = vpack.c.b16 %v626, %v626
      %v659 = vpack.c.b16 %v627, %v627
      %v660 = vpack.c.b16 %v628, %v628
      %v661 = vpack.c.b16 %v629, %v629
      %v662 = vpack.c.b16 %v630, %v630
      %695 = vst [vmem:[%s172] sm:$0xf] %v631
      %696 = vst [vmem:[%s172 + $0x4] sm:$0xf] %v632
      %697 = vst [vmem:[%s172 + $0x8] sm:$0xf] %v633
      %698 = vst [vmem:[%s172 + $0xc] sm:$0xf] %v634
      %699 = vst [vmem:[%s172 + $0x10] sm:$0xf] %v635
      %700 = vst [vmem:[%s172 + $0x14] sm:$0xf] %v636
      %701 = vst [vmem:[%s172 + $0x18] sm:$0xf] %v637
      %702 = vst [vmem:[%s172 + $0x1c] sm:$0xf] %v638
      %703 = vst [vmem:[%s172 + $0x20] sm:$0xf] %v639
      %704 = vst [vmem:[%s172 + $0x24] sm:$0xf] %v640
      %705 = vst [vmem:[%s172 + $0x28] sm:$0xf] %v641
      %706 = vst [vmem:[%s172 + $0x2c] sm:$0xf] %v642
      %707 = vst [vmem:[%s172 + $0x30] sm:$0xf] %v643
      %708 = vst [vmem:[%s172 + $0x34] sm:$0xf] %v644
      %709 = vst [vmem:[%s172 + $0x38] sm:$0xf] %v645
      %710 = vst [vmem:[%s172 + $0x3c] sm:$0xf] %v646
      %711 = vst [vmem:[%s172 + $0x40] sm:$0xf] %v647
      %712 = vst [vmem:[%s172 + $0x44] sm:$0xf] %v648
      %713 = vst [vmem:[%s172 + $0x48] sm:$0xf] %v649
      %714 = vst [vmem:[%s172 + $0x4c] sm:$0xf] %v650
      %715 = vst [vmem:[%s172 + $0x50] sm:$0xf] %v651
      %716 = vst [vmem:[%s172 + $0x54] sm:$0xf] %v652
      %717 = vst [vmem:[%s172 + $0x58] sm:$0xf] %v653
      %718 = vst [vmem:[%s172 + $0x5c] sm:$0xf] %v654
      %719 = vst [vmem:[%s172 + $0x60] sm:$0xf] %v655
      %720 = vst [vmem:[%s172 + $0x64] sm:$0xf] %v656
      %721 = vst [vmem:[%s172 + $0x68] sm:$0xf] %v657
      %722 = vst [vmem:[%s172 + $0x6c] sm:$0xf] %v658
      %723 = vst [vmem:[%s172 + $0x70] sm:$0xf] %v659
      %724 = vst [vmem:[%s172 + $0x74] sm:$0xf] %v660
      %725 = vst [vmem:[%s172 + $0x78] sm:$0xf] %v661
      %726 = vst [vmem:[%s172 + $0x7c] sm:$0xf] %v662
      %s727 = smul.u32 32, %s14
      %p728 = scmp.lt.s32.totalorder %s727, 63
      %s729 = scalar_select %p728, %s727, 63
      %s730 = smul.addr %s729, 4
      %s731 = scalar_lea.vmem %s3, %s730
      // Predicated region
      $region33: #{_lambda_.49} parent=31 // pred_check
        %p732 = pneg %p100
      $region34: #{_lambda_.49} parent=31 // pred_check_branch
        %734 = sbr.rel (%p732) target = $region36
      $region35: #{_lambda_.49} parent=31 // pred_region
        %s735 = smul.u32 32, %s14
      $region36: #{_lambda_.49} parent=31 // pred_fallthru
        _
    $region32: #{_lambda_.49} parent=5 // pred_fallthru
      _
    %p736 = scmp.le.s32.totalorder 2, %s9
    // Predicated region
    $region37: #{_lambda_.49} parent=5 // pred_check
      %p737 = pneg %p736
    $region38: #{_lambda_.49} parent=5 // pred_check_branch
      %739 = sbr.rel (%p737) target = $region40
    $region39: #{_lambda_.49} parent=5 // pred_region
      %s740 = ssub.s32 %s9, 2
      // Predicated region
      $region41: #{_lambda_.49} parent=39 // pred_check
        %p741 = pneg %p106
      $region42: #{_lambda_.49} parent=39 // pred_check_branch
        %743 = sbr.rel (%p741) target = $region44
      $region43: #{_lambda_.49} parent=39 // pred_region
        %s744 = smul.u32 32, %s15
        %p745 = scmp.lt.s32.totalorder %s744, 63
        %s746 = scalar_select %p745, %s744, 63
        %s747 = smul.addr %s746, 4
        %s748 = scalar_lea.vmem %s3, %s747
      $region44: #{_lambda_.49} parent=39 // pred_fallthru
        _
    $region40: #{_lambda_.49} parent=5 // pred_fallthru
      _
  $region6: #{_lambda_.49} parent=0 // loop_footer
    %s13 = sadd.s32 1, %s9
  $region7: #{_lambda_.49} parent=0 // loop_footer_branch
    %8 = sbr.rel target = $region3
  $region8: #{_lambda_.49} parent=0 // loop_exit
    _

// kernel: _lambda_.50
$region0: #{_lambda_.50}
  #allocation0 [shape = 'u32[]', space=smem, size = 0x4, offset = 0x4, fixed_abs, tag = 'smem constant byte address 0x4 - core index']
  #allocation1 [shape = 'u32[144,128]{1,0:T(1,128)}', space=vmem, size = 0x12000, scoped, tag = 'internal scratch']
  %s0 = inlined_call_operand.vmem [shape: bf16[512,128], index: 0, kind: input, shape index: {}]
  %s1 = inlined_call_operand.vmem [shape: bf16[128,128], index: 1, kind: input, shape index: {}]
  %s2 = inlined_call_operand.vmem [shape: f32[1,128], index: 2, kind: input, shape index: {}]
  %s3 = inlined_call_operand.vmem [shape: bf16[512,128], index: 3, kind: output, shape index: {}]
  %s4 = sld [smem:[#allocation0]]
  $region45: #{_lambda_.50} parent=0
    _
  %s6 = ssub.s32 1, %s4
  %s7 = scalar_select 0, %s6, %s4
  loop: start=0, step=1, limit=4
  $region2: #{_lambda_.50} parent=0 // loop_pre_header
    _
  $region3: #{_lambda_.50} parent=0 // loop_header
    %s9 = sphi 0, %s13
    %p10 = scmp.ge.s32.totalorder %s9, 4
    %s19 = sphi 0, %s21
    %s22 = sphi 0, %s19
    %s23 = sphi 0, %s22
    %s39 = sphi 0, %s23
    %s43 = sphi 0, %s43
    %s45 = sphi 0, %s43
    %s46 = sphi 0, %s45
    %s60 = sphi 0, %s46
    %s64 = sphi 0, %s64
    %s66 = sphi 0, %s64
    %s67 = sphi 0, %s66
    %s81 = sphi 0, %s67
    %s87 = sphi 0, %s89
    %s90 = sphi 0, %s87
    %s91 = sphi 0, %s90
    %s107 = sphi 0, %s91
  $region4: #{_lambda_.50} parent=0 // loop_header_branch
    %12 = sbr.rel (%p10) target = $region8
  $region5: #{_lambda_.50} parent=0 // loop_body
    %s14 = ssub.s32 %s9, 1
    %s15 = ssub.s32 %s9, 2
    %s16 = sadd.s32 %s9, 1
    %s17 = ssub.s32 %s9, %s16
    %p18 = scmp.eq.s32.totalorder %s17, 0
    %s20 = sadd.s32 %s19, 1
    %s21 = scalar_select %p18, %s19, %s20
    %p24 = pneg %p18
    %p25 = scmp.eq.s32.totalorder %s9, 1
    %p26 = por %p24, %p25
    %p27 = scmp.ne.s32.totalorder %s19, %s22
    %p28 = scmp.eq.s32.totalorder %s9, 0
    %p29 = por %p27, %p28
    %p30 = scmp.ne.s32.totalorder %s19, %s22
    %p31 = scmp.eq.s32.totalorder %s14, 1
    %p32 = por %p30, %p31
    %p33 = scmp.ne.s32.totalorder %s22, %s23
    %p34 = scmp.eq.s32.totalorder %s14, 0
    %p35 = por %p33, %p34
    %p36 = scmp.ne.s32.totalorder %s22, %s23
    %p37 = scmp.eq.s32.totalorder %s15, 1
    %p38 = por %p36, %p37
    %p40 = scmp.ne.s32.totalorder %s23, %s39
    %p41 = scmp.eq.s32.totalorder %s15, 0
    %p42 = por %p40, %p41
    %s44 = sadd.s32 %s43, 1
    %p47 = scmp.eq.s32.totalorder %s9, 1
    %p48 = scmp.ne.s32.totalorder %s43, %s45
    %p49 = scmp.eq.s32.totalorder %s9, 0
    %p50 = por %p48, %p49
    %p51 = scmp.ne.s32.totalorder %s43, %s45
    %p52 = scmp.eq.s32.totalorder %s14, 1
    %p53 = por %p51, %p52
    %p54 = scmp.ne.s32.totalorder %s45, %s46
    %p55 = scmp.eq.s32.totalorder %s14, 0
    %p56 = por %p54, %p55
    %p57 = scmp.ne.s32.totalorder %s45, %s46
    %p58 = scmp.eq.s32.totalorder %s15, 1
    %p59 = por %p57, %p58
    %p61 = scmp.ne.s32.totalorder %s46, %s60
    %p62 = scmp.eq.s32.totalorder %s15, 0
    %p63 = por %p61, %p62
    %s65 = sadd.s32 %s64, 1
    %p68 = scmp.eq.s32.totalorder %s9, 1
    %p69 = scmp.ne.s32.totalorder %s64, %s66
    %p70 = scmp.eq.s32.totalorder %s9, 0
    %p71 = por %p69, %p70
    %p72 = scmp.ne.s32.totalorder %s64, %s66
    %p73 = scmp.eq.s32.totalorder %s14, 1
    %p74 = por %p72, %p73
    %p75 = scmp.ne.s32.totalorder %s66, %s67
    %p76 = scmp.eq.s32.totalorder %s14, 0
    %p77 = por %p75, %p76
    %p78 = scmp.ne.s32.totalorder %s66, %s67
    %p79 = scmp.eq.s32.totalorder %s15, 1
    %p80 = por %p78, %p79
    %p82 = scmp.ne.s32.totalorder %s67, %s81
    %p83 = scmp.eq.s32.totalorder %s15, 0
    %p84 = por %p82, %p83
    %s85 = ssub.s32 %s9, %s16
    %p86 = scmp.eq.s32.totalorder %s85, 0
    %s88 = sadd.s32 %s87, 1
    %s89 = scalar_select %p86, %s87, %s88
    %p92 = pneg %p86
    %p93 = scmp.eq.s32.totalorder %s9, 1
    %p94 = por %p92, %p93
    %p95 = scmp.ne.s32.totalorder %s87, %s90
    %p96 = scmp.eq.s32.totalorder %s9, 0
    %p97 = por %p95, %p96
    %p98 = scmp.ne.s32.totalorder %s87, %s90
    %p99 = scmp.eq.s32.totalorder %s14, 1
    %p100 = por %p98, %p99
    %p101 = scmp.ne.s32.totalorder %s90, %s91
    %p102 = scmp.eq.s32.totalorder %s14, 0
    %p103 = por %p101, %p102
    %p104 = scmp.ne.s32.totalorder %s90, %s91
    %p105 = scmp.eq.s32.totalorder %s15, 1
    %p106 = por %p104, %p105
    %p108 = scmp.ne.s32.totalorder %s91, %s107
    %p109 = scmp.eq.s32.totalorder %s15, 0
    %p110 = por %p108, %p109
    %p111 = scmp.le.s32.totalorder 1, %s9
    %p112 = scmp.lt.s32.totalorder %s9, 3
    %p113 = pnand %p111, %p112
    %p114 = pneg %p113
    // Predicated region
    $region9: #{_lambda_.50} parent=5 // pred_check
      _
    $region10: #{_lambda_.50} parent=5 // pred_check_branch
      %116 = sbr.rel (%p113) target = $region12
    $region11: #{_lambda_.50} parent=5 // pred_region
      %s117 = ssub.s32 %s9, 1
      // Predicated region
      $region13: #{_lambda_.50} parent=11 // pred_check
        %p118 = pneg %p56
      $region14: #{_lambda_.50} parent=11 // pred_check_branch
        %120 = sbr.rel (%p118) target = $region16
      $region15: #{_lambda_.50} parent=11 // pred_region
        _
      $region16: #{_lambda_.50} parent=11 // pred_fallthru
        _
      // Predicated region
      $region17: #{_lambda_.50} parent=11 // pred_check
        %p121 = pneg %p77
      $region18: #{_lambda_.50} parent=11 // pred_check_branch
        %123 = sbr.rel (%p121) target = $region20
      $region19: #{_lambda_.50} parent=11 // pred_region
        _
      $region20: #{_lambda_.50} parent=11 // pred_fallthru
        _
    $region12: #{_lambda_.50} parent=5 // pred_fallthru
      _
    %p124 = scmp.lt.s32.totalorder %s9, 2
    // Predicated region
    $region21: #{_lambda_.50} parent=5 // pred_check
      %p125 = pneg %p124
    $region22: #{_lambda_.50} parent=5 // pred_check_branch
      %127 = sbr.rel (%p125) target = $region24
    $region23: #{_lambda_.50} parent=5 // pred_region
      // Predicated region
      $region25: #{_lambda_.50} parent=23 // pred_check
        %p128 = pneg %p29
      $region26: #{_lambda_.50} parent=23 // pred_check_branch
        %130 = sbr.rel (%p128) target = $region28
      $region27: #{_lambda_.50} parent=23 // pred_region
        %s131 = smul.u32 32, %s9
        %p132 = scmp.lt.s32.totalorder %s131, 63
        %s133 = scalar_select %p132, %s131, 63
        %s134 = smul.addr %s133, 4
        %s135 = scalar_lea.vmem %s0, %s134
        %s136 = smul.u32 32, %s9
      $region28: #{_lambda_.50} parent=23 // pred_fallthru
        _
    $region24: #{_lambda_.50} parent=5 // pred_fallthru
      _
    %p137 = scmp.le.s32.totalorder 1, %s9
    %p138 = scmp.lt.s32.totalorder %s9, 3
    %p139 = pnand %p137, %p138
    %p140 = pneg %p139
    // Predicated region
    $region29: #{_lambda_.50} parent=5 // pred_check
      _
    $region30: #{_lambda_.50} parent=5 // pred_check_branch
      %142 = sbr.rel (%p139) target = $region32
    $region31: #{_lambda_.50} parent=5 // pred_region
      %s143 = ssub.s32 %s9, 1
      %s144 = smul.u32 32, %s14
      %p145 = scmp.lt.s32.totalorder %s144, 63
      %s146 = scalar_select %p145, %s144, 63
      %s147 = smul.addr %s146, 4
      %s148 = scalar_lea.vmem %s0, %s147
      %p149 = pneg %p35
      %p150 = pneg %p32
      %p151 = pneg %p56
      %p152 = pneg %p53
      %p153 = pneg %p77
      %p154 = pneg %p74
      %p155 = pneg %p103
      %p156 = pneg %p100
      %s157 = smul.u32 32, %s14
      %p158 = scmp.lt.s32.totalorder %s157, 63
      %s159 = scalar_select %p158, %s157, 63
      %s160 = smul.addr %s159, 4
      %s161 = scalar_lea.vmem %s3, %s160
      %s162 = smul.u32 32, %s14
      %p163 = scmp.lt.s32.totalorder %s162, 63
      %s164 = scalar_select %p163, %s162, 63
      %s165 = smul.addr %s164, 4
      %s166 = scalar_lea.vmem %s0, %s165
      %s167 = smul.u32 32, %s14
      %s168 = smul.u32 32, %s14
      %p169 = scmp.lt.s32.totalorder %s168, 63
      %s170 = scalar_select %p169, %s168, 63
      %s171 = smul.addr %s170, 4
      %s172 = scalar_lea.vmem %s3, %s171
      %s173 = smul.u32 32, %s14
      %v175 = vld [vmem:[%s166] sm:$0xf]
      %v176 = vld [vmem:[%s166 + $0x4] sm:$0xf]
      %v177 = vld [vmem:[%s166 + $0x8] sm:$0xf]
      %v178 = vld [vmem:[%s166 + $0xc] sm:$0xf]
      %v179 = vld [vmem:[%s166 + $0x10] sm:$0xf]
      %v180 = vld [vmem:[%s166 + $0x14] sm:$0xf]
      %v181 = vld [vmem:[%s166 + $0x18] sm:$0xf]
      %v182 = vld [vmem:[%s166 + $0x1c] sm:$0xf]
      %v183 = vld [vmem:[%s166 + $0x20] sm:$0xf]
      %v184 = vld [vmem:[%s166 + $0x24] sm:$0xf]
      %v185 = vld [vmem:[%s166 + $0x28] sm:$0xf]
      %v186 = vld [vmem:[%s166 + $0x2c] sm:$0xf]
      %v187 = vld [vmem:[%s166 + $0x30] sm:$0xf]
      %v188 = vld [vmem:[%s166 + $0x34] sm:$0xf]
      %v189 = vld [vmem:[%s166 + $0x38] sm:$0xf]
      %v190 = vld [vmem:[%s166 + $0x3c] sm:$0xf]
      %v191 = vld [vmem:[%s166 + $0x40] sm:$0xf]
      %v192 = vld [vmem:[%s166 + $0x44] sm:$0xf]
      %v193 = vld [vmem:[%s166 + $0x48] sm:$0xf]
      %v194 = vld [vmem:[%s166 + $0x4c] sm:$0xf]
      %v195 = vld [vmem:[%s166 + $0x50] sm:$0xf]
      %v196 = vld [vmem:[%s166 + $0x54] sm:$0xf]
      %v197 = vld [vmem:[%s166 + $0x58] sm:$0xf]
      %v198 = vld [vmem:[%s166 + $0x5c] sm:$0xf]
      %v199 = vld [vmem:[%s166 + $0x60] sm:$0xf]
      %v200 = vld [vmem:[%s166 + $0x64] sm:$0xf]
      %v201 = vld [vmem:[%s166 + $0x68] sm:$0xf]
      %v202 = vld [vmem:[%s166 + $0x6c] sm:$0xf]
      %v203 = vld [vmem:[%s166 + $0x70] sm:$0xf]
      %v204 = vld [vmem:[%s166 + $0x74] sm:$0xf]
      %v205 = vld [vmem:[%s166 + $0x78] sm:$0xf]
      %v206 = vld [vmem:[%s166 + $0x7c] sm:$0xf]
      %v207 = vld [vmem:[%s1] sm:$0xf]
      %v208 = vld [vmem:[%s1 + $0x4] sm:$0xf]
      %v209 = vld [vmem:[%s1 + $0x8] sm:$0xf]
      %v210 = vld [vmem:[%s1 + $0xc] sm:$0xf]
      %v211 = vld [vmem:[%s1 + $0x10] sm:$0xf]
      %v212 = vld [vmem:[%s1 + $0x14] sm:$0xf]
      %v213 = vld [vmem:[%s1 + $0x18] sm:$0xf]
      %v214 = vld [vmem:[%s1 + $0x1c] sm:$0xf]
      %v215 = vld [vmem:[%s1 + $0x20] sm:$0xf]
      %v216 = vld [vmem:[%s1 + $0x24] sm:$0xf]
      %v217 = vld [vmem:[%s1 + $0x28] sm:$0xf]
      %v218 = vld [vmem:[%s1 + $0x2c] sm:$0xf]
      %v219 = vld [vmem:[%s1 + $0x30] sm:$0xf]
      %v220 = vld [vmem:[%s1 + $0x34] sm:$0xf]
      %v221 = vld [vmem:[%s1 + $0x38] sm:$0xf]
      %v222 = vld [vmem:[%s1 + $0x3c] sm:$0xf]
      %v223 = vld [vmem:[%s2] sm:$0x1]
      %v225 = vlaneseq
      %v226 = vshrl.u32 %v225, 7
      %v227 = vsub.s32 0, %v226
      %v228 = vrot.slane %v223, %v227
      %v262 = vunpack.c.l.b16 %v175
      %v263 = vunpack.c.l.b16 %v176
      %v264 = vunpack.c.l.b16 %v177
      %v265 = vunpack.c.l.b16 %v178
      %v266 = vunpack.c.l.b16 %v179
      %v267 = vunpack.c.l.b16 %v180
      %v268 = vunpack.c.l.b16 %v181
      %v269 = vunpack.c.l.b16 %v182
      %v270 = vunpack.c.l.b16 %v183
      %v271 = vunpack.c.l.b16 %v184
      %v272 = vunpack.c.l.b16 %v185
      %v273 = vunpack.c.l.b16 %v186
      %v274 = vunpack.c.l.b16 %v187
      %v275 = vunpack.c.l.b16 %v188
      %v276 = vunpack.c.l.b16 %v189
      %v277 = vunpack.c.l.b16 %v190
      %v278 = vunpack.c.l.b16 %v191
      %v279 = vunpack.c.l.b16 %v192
      %v280 = vunpack.c.l.b16 %v193
      %v281 = vunpack.c.l.b16 %v194
      %v282 = vunpack.c.l.b16 %v195
      %v283 = vunpack.c.l.b16 %v196
      %v284 = vunpack.c.l.b16 %v197
      %v285 = vunpack.c.l.b16 %v198
      %v286 = vunpack.c.l.b16 %v199
      %v287 = vunpack.c.l.b16 %v200
      %v288 = vunpack.c.l.b16 %v201
      %v289 = vunpack.c.l.b16 %v202
      %v290 = vunpack.c.l.b16 %v203
      %v291 = vunpack.c.l.b16 %v204
      %v292 = vunpack.c.l.b16 %v205
      %v293 = vunpack.c.l.b16 %v206
      %v294 = vpack.c.b16 %v263, %v262
      %v295 = vpack.c.b16 %v265, %v264
      %v296 = vpack.c.b16 %v267, %v266
      %v297 = vpack.c.b16 %v269, %v268
      %v298 = vpack.c.b16 %v271, %v270
      %v299 = vpack.c.b16 %v273, %v272
      %v300 = vpack.c.b16 %v275, %v274
      %v301 = vpack.c.b16 %v277, %v276
      %v302 = vpack.c.b16 %v279, %v278
      %v303 = vpack.c.b16 %v281, %v280
      %v304 = vpack.c.b16 %v283, %v282
      %v305 = vpack.c.b16 %v285, %v284
      %v306 = vpack.c.b16 %v287, %v286
      %v307 = vpack.c.b16 %v289, %v288
      %v308 = vpack.c.b16 %v291, %v290
      %v309 = vpack.c.b16 %v293, %v292
      %v342 = vunpack.c.l.b16 %v207
      %v343 = vunpack.c.l.b16 %v208
      %v344 = vunpack.c.l.b16 %v209
      %v345 = vunpack.c.l.b16 %v210
      %v346 = vunpack.c.l.b16 %v211
      %v347 = vunpack.c.l.b16 %v212
      %v348 = vunpack.c.l.b16 %v213
      %v349 = vunpack.c.l.b16 %v214
      %v350 = vunpack.c.l.b16 %v215
      %v351 = vunpack.c.l.b16 %v216
      %v352 = vunpack.c.l.b16 %v217
      %v353 = vunpack.c.l.b16 %v218
      %v354 = vunpack.c.l.b16 %v219
      %v355 = vunpack.c.l.b16 %v220
      %v356 = vunpack.c.l.b16 %v221
      %v357 = vunpack.c.l.b16 %v222
      %v358 = vpack.c.b16 %v343, %v342
      %v359 = vpack.c.b16 %v345, %v344
      %v360 = vpack.c.b16 %v347, %v346
      %v361 = vpack.c.b16 %v349, %v348
      %v362 = vpack.c.b16 %v351, %v350
      %v363 = vpack.c.b16 %v353, %v352
      %v364 = vpack.c.b16 %v355, %v354
      %v365 = vpack.c.b16 %v357, %v356
      %374 = vmatprep.subr.bf16.mxu0 0
      %375 = vmatpush1.bf16.msra.mxu0 %v358
      %376 = vmatprep.subr.bf16.mxu0 0
      %377 = vmatpush1.bf16.msra.mxu0 %v359
      %378 = vmatprep.subr.bf16.mxu0 0
      %379 = vmatpush1.bf16.msra.mxu0 %v360
      %380 = vmatprep.subr.bf16.mxu0 0
      %381 = vmatpush1.bf16.msra.mxu0 %v361
      %382 = vmatprep.subr.bf16.mxu0 0
      %383 = vmatpush1.bf16.msra.mxu0 %v362
      %384 = vmatprep.subr.bf16.mxu0 0
      %385 = vmatpush1.bf16.msra.mxu0 %v363
      %386 = vmatprep.subr.bf16.mxu0 0
      %387 = vmatpush1.bf16.msra.mxu0 %v364
      %388 = vmatprep.subr.bf16.mxu0 0
      %389 = vmatpush1.bf16.msra.mxu0 %v365
      %390 = vmatprep.subr.bf16.mxu0 0
      %391 = vmatpush1.bf16.msra.mxu0 0
      %392 = vmatprep.subr.bf16.mxu0 0
      %393 = vmatpush1.bf16.msra.mxu0 0
      %394 = vmatprep.subr.bf16.mxu0 0
      %395 = vmatpush1.bf16.msra.mxu0 0
      %396 = vmatprep.subr.bf16.mxu0 0
      %397 = vmatpush1.bf16.msra.mxu0 0
      %398 = vmatprep.subr.bf16.mxu0 0
      %399 = vmatpush1.bf16.msra.mxu0 0
      %400 = vmatprep.subr.bf16.mxu0 0
      %401 = vmatpush1.bf16.msra.mxu0 0
      %402 = vmatprep.subr.bf16.mxu0 0
      %403 = vmatpush1.bf16.msra.mxu0 0
      %404 = vmatprep.subr.bf16.mxu0 0
      %405 = vmatpush1.bf16.msra.mxu0 0
      %406 = vmatprep.mubr.bf16.mxu0 0
      %407 = vmatmul.mubr.bf16.gmra.mrb[0].mxu0 %v294
      %v408 = vpop.f32.mrb[0].mxu0
      %v409 = vadd.f32 %v228, %v408
      %v410 = vpop.f32.mrb[0].mxu0
      %v411 = vpop.f32.mrb[0].mxu0
      %v412 = vadd.f32 %v228, %v411
      %v413 = vpop.f32.mrb[0].mxu0
      %414 = vmatprep.mubr.bf16.mxu0 0
      %415 = vmatmul.mubr.bf16.gmra.mrb[0].mxu0 %v295
      %v416 = vpop.f32.mrb[0].mxu0
      %v417 = vadd.f32 %v228, %v416
      %v418 = vpop.f32.mrb[0].mxu0
      %v419 = vpop.f32.mrb[0].mxu0
      %v420 = vadd.f32 %v228, %v419
      %v421 = vpop.f32.mrb[0].mxu0
      %422 = vmatprep.mubr.bf16.mxu0 0
      %423 = vmatmul.mubr.bf16.gmra.mrb[0].mxu0 %v296
      %v424 = vpop.f32.mrb[0].mxu0
      %v425 = vadd.f32 %v228, %v424
      %v426 = vpop.f32.mrb[0].mxu0
      %v427 = vpop.f32.mrb[0].mxu0
      %v428 = vadd.f32 %v228, %v427
      %v429 = vpop.f32.mrb[0].mxu0
      %430 = vmatprep.mubr.bf16.mxu0 0
      %431 = vmatmul.mubr.bf16.gmra.mrb[0].mxu0 %v297
      %v432 = vpop.f32.mrb[0].mxu0
      %v433 = vadd.f32 %v228, %v432
      %v434 = vpop.f32.mrb[0].mxu0
      %v435 = vpop.f32.mrb[0].mxu0
      %v436 = vadd.f32 %v228, %v435
      %v437 = vpop.f32.mrb[0].mxu0
      %438 = vmatprep.mubr.bf16.mxu0 0
      %439 = vmatmul.mubr.bf16.gmra.mrb[0].mxu0 %v298
      %v440 = vpop.f32.mrb[0].mxu0
      %v441 = vadd.f32 %v228, %v440
      %v442 = vpop.f32.mrb[0].mxu0
      %v443 = vpop.f32.mrb[0].mxu0
      %v444 = vadd.f32 %v228, %v443
      %v445 = vpop.f32.mrb[0].mxu0
      %446 = vmatprep.mubr.bf16.mxu0 0
      %447 = vmatmul.mubr.bf16.gmra.mrb[0].mxu0 %v299
      %v448 = vpop.f32.mrb[0].mxu0
      %v449 = vadd.f32 %v228, %v448
      %v450 = vpop.f32.mrb[0].mxu0
      %v451 = vpop.f32.mrb[0].mxu0
      %v452 = vadd.f32 %v228, %v451
      %v453 = vpop.f32.mrb[0].mxu0
      %454 = vmatprep.mubr.bf16.mxu0 0
      %455 = vmatmul.mubr.bf16.gmra.mrb[0].mxu0 %v300
      %v456 = vpop.f32.mrb[0].mxu0
      %v457 = vadd.f32 %v228, %v456
      %v458 = vpop.f32.mrb[0].mxu0
      %v459 = vpop.f32.mrb[0].mxu0
      %v460 = vadd.f32 %v228, %v459
      %v461 = vpop.f32.mrb[0].mxu0
      %462 = vmatprep.mubr.bf16.mxu0 0
      %463 = vmatmul.mubr.bf16.gmra.mrb[0].mxu0 %v301
      %v464 = vpop.f32.mrb[0].mxu0
      %v465 = vadd.f32 %v228, %v464
      %v466 = vpop.f32.mrb[0].mxu0
      %v467 = vpop.f32.mrb[0].mxu0
      %v468 = vadd.f32 %v228, %v467
      %v469 = vpop.f32.mrb[0].mxu0
      %470 = vmatprep.mubr.bf16.mxu0 0
      %471 = vmatmul.mubr.bf16.gmra.mrb[0].mxu0 %v302
      %v472 = vpop.f32.mrb[0].mxu0
      %v473 = vadd.f32 %v228, %v472
      %v474 = vpop.f32.mrb[0].mxu0
      %v475 = vpop.f32.mrb[0].mxu0
      %v476 = vadd.f32 %v228, %v475
      %v477 = vpop.f32.mrb[0].mxu0
      %478 = vmatprep.mubr.bf16.mxu0 0
      %479 = vmatmul.mubr.bf16.gmra.mrb[0].mxu0 %v303
      %v480 = vpop.f32.mrb[0].mxu0
      %v481 = vadd.f32 %v228, %v480
      %v482 = vpop.f32.mrb[0].mxu0
      %v483 = vpop.f32.mrb[0].mxu0
      %v484 = vadd.f32 %v228, %v483
      %v485 = vpop.f32.mrb[0].mxu0
      %486 = vmatprep.mubr.bf16.mxu0 0
      %487 = vmatmul.mubr.bf16.gmra.mrb[0].mxu0 %v304
      %v488 = vpop.f32.mrb[0].mxu0
      %v489 = vadd.f32 %v228, %v488
      %v490 = vpop.f32.mrb[0].mxu0
      %v491 = vpop.f32.mrb[0].mxu0
      %v492 = vadd.f32 %v228, %v491
      %v493 = vpop.f32.mrb[0].mxu0
      %494 = vmatprep.mubr.bf16.mxu0 0
      %495 = vmatmul.mubr.bf16.gmra.mrb[0].mxu0 %v305
      %v496 = vpop.f32.mrb[0].mxu0
      %v497 = vadd.f32 %v228, %v496
      %v498 = vpop.f32.mrb[0].mxu0
      %v499 = vpop.f32.mrb[0].mxu0
      %v500 = vadd.f32 %v228, %v499
      %v501 = vpop.f32.mrb[0].mxu0
      %502 = vmatprep.mubr.bf16.mxu0 0
      %503 = vmatmul.mubr.bf16.gmra.mrb[0].mxu0 %v306
      %v504 = vpop.f32.mrb[0].mxu0
      %v505 = vadd.f32 %v228, %v504
      %v506 = vpop.f32.mrb[0].mxu0
      %v507 = vpop.f32.mrb[0].mxu0
      %v508 = vadd.f32 %v228, %v507
      %v509 = vpop.f32.mrb[0].mxu0
      %510 = vmatprep.mubr.bf16.mxu0 0
      %511 = vmatmul.mubr.bf16.gmra.mrb[0].mxu0 %v307
      %v512 = vpop.f32.mrb[0].mxu0
      %v513 = vadd.f32 %v228, %v512
      %v514 = vpop.f32.mrb[0].mxu0
      %v515 = vpop.f32.mrb[0].mxu0
      %v516 = vadd.f32 %v228, %v515
      %v517 = vpop.f32.mrb[0].mxu0
      %518 = vmatprep.mubr.bf16.mxu0 0
      %519 = vmatmul.mubr.bf16.gmra.mrb[0].mxu0 %v308
      %v520 = vpop.f32.mrb[0].mxu0
      %v521 = vadd.f32 %v228, %v520
      %v522 = vpop.f32.mrb[0].mxu0
      %v523 = vpop.f32.mrb[0].mxu0
      %v524 = vadd.f32 %v228, %v523
      %v525 = vpop.f32.mrb[0].mxu0
      %526 = vmatprep.mubr.bf16.mxu0 0
      %527 = vmatmul.mubr.bf16.gmra.mrb[0].mxu0 %v309
      %v528 = vpop.f32.mrb[0].mxu0
      %v529 = vadd.f32 %v228, %v528
      %v530 = vpop.f32.mrb[0].mxu0
      %v531 = vpop.f32.mrb[0].mxu0
      %v532 = vadd.f32 %v228, %v531
      %v533 = vpop.f32.mrb[0].mxu0
      %534 = vdwg.mxu0
      %v535 = vpack.c.bf16 %v412, %v409
      %v536 = vpack.c.bf16 %v420, %v417
      %v537 = vpack.c.bf16 %v428, %v425
      %v538 = vpack.c.bf16 %v436, %v433
      %v539 = vpack.c.bf16 %v444, %v441
      %v540 = vpack.c.bf16 %v452, %v449
      %v541 = vpack.c.bf16 %v460, %v457
      %v542 = vpack.c.bf16 %v468, %v465
      %v543 = vpack.c.bf16 %v476, %v473
      %v544 = vpack.c.bf16 %v484, %v481
      %v545 = vpack.c.bf16 %v492, %v489
      %v546 = vpack.c.bf16 %v500, %v497
      %v547 = vpack.c.bf16 %v508, %v505
      %v548 = vpack.c.bf16 %v516, %v513
      %v549 = vpack.c.bf16 %v524, %v521
      %v550 = vpack.c.bf16 %v532, %v529
      %v567 = vunpack.c.l.b16 %v535
      %v568 = vunpack.c.h.b16 %v535
      %v569 = vunpack.c.l.b16 %v536
      %v570 = vunpack.c.h.b16 %v536
      %v571 = vunpack.c.l.b16 %v537
      %v572 = vunpack.c.h.b16 %v537
      %v573 = vunpack.c.l.b16 %v538
      %v574 = vunpack.c.h.b16 %v538
      %v575 = vunpack.c.l.b16 %v539
      %v576 = vunpack.c.h.b16 %v539
      %v577 = vunpack.c.l.b16 %v540
      %v578 = vunpack.c.h.b16 %v540
      %v579 = vunpack.c.l.b16 %v541
      %v580 = vunpack.c.h.b16 %v541
      %v581 = vunpack.c.l.b16 %v542
      %v582 = vunpack.c.h.b16 %v542
      %v583 = vunpack.c.l.b16 %v543
      %v584 = vunpack.c.h.b16 %v543
      %v585 = vunpack.c.l.b16 %v544
      %v586 = vunpack.c.h.b16 %v544
      %v587 = vunpack.c.l.b16 %v545
      %v588 = vunpack.c.h.b16 %v545
      %v589 = vunpack.c.l.b16 %v546
      %v590 = vunpack.c.h.b16 %v546
      %v591 = vunpack.c.l.b16 %v547
      %v592 = vunpack.c.h.b16 %v547
      %v593 = vunpack.c.l.b16 %v548
      %v594 = vunpack.c.h.b16 %v548
      %v595 = vunpack.c.l.b16 %v549
      %v596 = vunpack.c.h.b16 %v549
      %v597 = vunpack.c.l.b16 %v550
      %v598 = vunpack.c.h.b16 %v550
      %v599 = vpack.c.b16 %v567, %v567
      %v600 = vpack.c.b16 %v568, %v568
      %v601 = vpack.c.b16 %v569, %v569
      %v602 = vpack.c.b16 %v570, %v570
      %v603 = vpack.c.b16 %v571, %v571
      %v604 = vpack.c.b16 %v572, %v572
      %v605 = vpack.c.b16 %v573, %v573
      %v606 = vpack.c.b16 %v574, %v574
      %v607 = vpack.c.b16 %v575, %v575
      %v608 = vpack.c.b16 %v576, %v576
      %v609 = vpack.c.b16 %v577, %v577
      %v610 = vpack.c.b16 %v578, %v578
      %v611 = vpack.c.b16 %v579, %v579
      %v612 = vpack.c.b16 %v580, %v580
      %v613 = vpack.c.b16 %v581, %v581
      %v614 = vpack.c.b16 %v582, %v582
      %v615 = vpack.c.b16 %v583, %v583
      %v616 = vpack.c.b16 %v584, %v584
      %v617 = vpack.c.b16 %v585, %v585
      %v618 = vpack.c.b16 %v586, %v586
      %v619 = vpack.c.b16 %v587, %v587
      %v620 = vpack.c.b16 %v588, %v588
      %v621 = vpack.c.b16 %v589, %v589
      %v622 = vpack.c.b16 %v590, %v590
      %v623 = vpack.c.b16 %v591, %v591
      %v624 = vpack.c.b16 %v592, %v592
      %v625 = vpack.c.b16 %v593, %v593
      %v626 = vpack.c.b16 %v594, %v594
      %v627 = vpack.c.b16 %v595, %v595
      %v628 = vpack.c.b16 %v596, %v596
      %v629 = vpack.c.b16 %v597, %v597
      %v630 = vpack.c.b16 %v598, %v598
      %663 = vst [vmem:[%s172] sm:$0xf] %v599
      %664 = vst [vmem:[%s172 + $0x4] sm:$0xf] %v600
      %665 = vst [vmem:[%s172 + $0x8] sm:$0xf] %v601
      %666 = vst [vmem:[%s172 + $0xc] sm:$0xf] %v602
      %667 = vst [vmem:[%s172 + $0x10] sm:$0xf] %v603
      %668 = vst [vmem:[%s172 + $0x14] sm:$0xf] %v604
      %669 = vst [vmem:[%s172 + $0x18] sm:$0xf] %v605
      %670 = vst [vmem:[%s172 + $0x1c] sm:$0xf] %v606
      %671 = vst [vmem:[%s172 + $0x20] sm:$0xf] %v607
      %672 = vst [vmem:[%s172 + $0x24] sm:$0xf] %v608
      %673 = vst [vmem:[%s172 + $0x28] sm:$0xf] %v609
      %674 = vst [vmem:[%s172 + $0x2c] sm:$0xf] %v610
      %675 = vst [vmem:[%s172 + $0x30] sm:$0xf] %v611
      %676 = vst [vmem:[%s172 + $0x34] sm:$0xf] %v612
      %677 = vst [vmem:[%s172 + $0x38] sm:$0xf] %v613
      %678 = vst [vmem:[%s172 + $0x3c] sm:$0xf] %v614
      %679 = vst [vmem:[%s172 + $0x40] sm:$0xf] %v615
      %680 = vst [vmem:[%s172 + $0x44] sm:$0xf] %v616
      %681 = vst [vmem:[%s172 + $0x48] sm:$0xf] %v617
      %682 = vst [vmem:[%s172 + $0x4c] sm:$0xf] %v618
      %683 = vst [vmem:[%s172 + $0x50] sm:$0xf] %v619
      %684 = vst [vmem:[%s172 + $0x54] sm:$0xf] %v620
      %685 = vst [vmem:[%s172 + $0x58] sm:$0xf] %v621
      %686 = vst [vmem:[%s172 + $0x5c] sm:$0xf] %v622
      %687 = vst [vmem:[%s172 + $0x60] sm:$0xf] %v623
      %688 = vst [vmem:[%s172 + $0x64] sm:$0xf] %v624
      %689 = vst [vmem:[%s172 + $0x68] sm:$0xf] %v625
      %690 = vst [vmem:[%s172 + $0x6c] sm:$0xf] %v626
      %691 = vst [vmem:[%s172 + $0x70] sm:$0xf] %v627
      %692 = vst [vmem:[%s172 + $0x74] sm:$0xf] %v628
      %693 = vst [vmem:[%s172 + $0x78] sm:$0xf] %v629
      %694 = vst [vmem:[%s172 + $0x7c] sm:$0xf] %v630
      %s695 = smul.u32 32, %s14
      %p696 = scmp.lt.s32.totalorder %s695, 63
      %s697 = scalar_select %p696, %s695, 63
      %s698 = smul.addr %s697, 4
      %s699 = scalar_lea.vmem %s3, %s698
      // Predicated region
      $region33: #{_lambda_.50} parent=31 // pred_check
        %p700 = pneg %p100
      $region34: #{_lambda_.50} parent=31 // pred_check_branch
        %702 = sbr.rel (%p700) target = $region36
      $region35: #{_lambda_.50} parent=31 // pred_region
        %s703 = smul.u32 32, %s14
      $region36: #{_lambda_.50} parent=31 // pred_fallthru
        _
    $region32: #{_lambda_.50} parent=5 // pred_fallthru
      _
    %p704 = scmp.le.s32.totalorder 2, %s9
    // Predicated region
    $region37: #{_lambda_.50} parent=5 // pred_check
      %p705 = pneg %p704
    $region38: #{_lambda_.50} parent=5 // pred_check_branch
      %707 = sbr.rel (%p705) target = $region40
    $region39: #{_lambda_.50} parent=5 // pred_region
      %s708 = ssub.s32 %s9, 2
      // Predicated region
      $region41: #{_lambda_.50} parent=39 // pred_check
        %p709 = pneg %p106
      $region42: #{_lambda_.50} parent=39 // pred_check_branch
        %711 = sbr.rel (%p709) target = $region44
      $region43: #{_lambda_.50} parent=39 // pred_region
        %s712 = smul.u32 32, %s15
        %p713 = scmp.lt.s32.totalorder %s712, 63
        %s714 = scalar_select %p713, %s712, 63
        %s715 = smul.addr %s714, 4
        %s716 = scalar_lea.vmem %s3, %s715
      $region44: #{_lambda_.50} parent=39 // pred_fallthru
        _
    $region40: #{_lambda_.50} parent=5 // pred_fallthru
      _
  $region6: #{_lambda_.50} parent=0 // loop_footer
    %s13 = sadd.s32 1, %s9
  $region7: #{_lambda_.50} parent=0 // loop_footer_branch
    %8 = sbr.rel target = $region3
  $region8: #{_lambda_.50} parent=0 // loop_exit
    _

// kernel: _lambda_.55
$region0: #{_lambda_.55}
  #allocation0 [shape = 'u32[]', space=smem, size = 0x4, offset = 0x4, fixed_abs, tag = 'smem constant byte address 0x4 - core index']
  #allocation1 [shape = 'u32[144,128]{1,0:T(1,128)}', space=vmem, size = 0x12000, scoped, tag = 'internal scratch']
  %s0 = inlined_call_operand.vmem [shape: bf16[512,128], index: 0, kind: input, shape index: {}]
  %s1 = inlined_call_operand.vmem [shape: bf16[128,128], index: 1, kind: input, shape index: {}]
  %s2 = inlined_call_operand.vmem [shape: f32[1,128], index: 2, kind: input, shape index: {}]
  %s3 = inlined_call_operand.vmem [shape: bf16[512,128], index: 3, kind: input, shape index: {}]
  %s4 = inlined_call_operand.vmem [shape: bf16[512,128], index: 4, kind: output, shape index: {}]
  %s5 = sld [smem:[#allocation0]]
  $region49: #{_lambda_.55} parent=0
    _
  %s7 = ssub.s32 1, %s5
  %s8 = scalar_select 0, %s7, %s5
  loop: start=0, step=1, limit=4
  $region2: #{_lambda_.55} parent=0 // loop_pre_header
    _
  $region3: #{_lambda_.55} parent=0 // loop_header
    %s10 = sphi 0, %s14
    %p11 = scmp.ge.s32.totalorder %s10, 4
    %s20 = sphi 0, %s22
    %s23 = sphi 0, %s20
    %s24 = sphi 0, %s23
    %s40 = sphi 0, %s24
    %s44 = sphi 0, %s44
    %s46 = sphi 0, %s44
    %s47 = sphi 0, %s46
    %s61 = sphi 0, %s47
    %s65 = sphi 0, %s65
    %s67 = sphi 0, %s65
    %s68 = sphi 0, %s67
    %s82 = sphi 0, %s68
    %s88 = sphi 0, %s90
    %s91 = sphi 0, %s88
    %s92 = sphi 0, %s91
    %s108 = sphi 0, %s92
    %s114 = sphi 0, %s116
    %s117 = sphi 0, %s114
    %s118 = sphi 0, %s117
    %s134 = sphi 0, %s118
  $region4: #{_lambda_.55} parent=0 // loop_header_branch
    %13 = sbr.rel (%p11) target = $region8
  $region5: #{_lambda_.55} parent=0 // loop_body
    %s15 = ssub.s32 %s10, 1
    %s16 = ssub.s32 %s10, 2
    %s17 = sadd.s32 %s10, 1
    %s18 = ssub.s32 %s10, %s17
    %p19 = scmp.eq.s32.totalorder %s18, 0
    %s21 = sadd.s32 %s20, 1
    %s22 = scalar_select %p19, %s20, %s21
    %p25 = pneg %p19
    %p26 = scmp.eq.s32.totalorder %s10, 1
    %p27 = por %p25, %p26
    %p28 = scmp.ne.s32.totalorder %s20, %s23
    %p29 = scmp.eq.s32.totalorder %s10, 0
    %p30 = por %p28, %p29
    %p31 = scmp.ne.s32.totalorder %s20, %s23
    %p32 = scmp.eq.s32.totalorder %s15, 1
    %p33 = por %p31, %p32
    %p34 = scmp.ne.s32.totalorder %s23, %s24
    %p35 = scmp.eq.s32.totalorder %s15, 0
    %p36 = por %p34, %p35
    %p37 = scmp.ne.s32.totalorder %s23, %s24
    %p38 = scmp.eq.s32.totalorder %s16, 1
    %p39 = por %p37, %p38
    %p41 = scmp.ne.s32.totalorder %s24, %s40
    %p42 = scmp.eq.s32.totalorder %s16, 0
    %p43 = por %p41, %p42
    %s45 = sadd.s32 %s44, 1
    %p48 = scmp.eq.s32.totalorder %s10, 1
    %p49 = scmp.ne.s32.totalorder %s44, %s46
    %p50 = scmp.eq.s32.totalorder %s10, 0
    %p51 = por %p49, %p50
    %p52 = scmp.ne.s32.totalorder %s44, %s46
    %p53 = scmp.eq.s32.totalorder %s15, 1
    %p54 = por %p52, %p53
    %p55 = scmp.ne.s32.totalorder %s46, %s47
    %p56 = scmp.eq.s32.totalorder %s15, 0
    %p57 = por %p55, %p56
    %p58 = scmp.ne.s32.totalorder %s46, %s47
    %p59 = scmp.eq.s32.totalorder %s16, 1
    %p60 = por %p58, %p59
    %p62 = scmp.ne.s32.totalorder %s47, %s61
    %p63 = scmp.eq.s32.totalorder %s16, 0
    %p64 = por %p62, %p63
    %s66 = sadd.s32 %s65, 1
    %p69 = scmp.eq.s32.totalorder %s10, 1
    %p70 = scmp.ne.s32.totalorder %s65, %s67
    %p71 = scmp.eq.s32.totalorder %s10, 0
    %p72 = por %p70, %p71
    %p73 = scmp.ne.s32.totalorder %s65, %s67
    %p74 = scmp.eq.s32.totalorder %s15, 1
    %p75 = por %p73, %p74
    %p76 = scmp.ne.s32.totalorder %s67, %s68
    %p77 = scmp.eq.s32.totalorder %s15, 0
    %p78 = por %p76, %p77
    %p79 = scmp.ne.s32.totalorder %s67, %s68
    %p80 = scmp.eq.s32.totalorder %s16, 1
    %p81 = por %p79, %p80
    %p83 = scmp.ne.s32.totalorder %s68, %s82
    %p84 = scmp.eq.s32.totalorder %s16, 0
    %p85 = por %p83, %p84
    %s86 = ssub.s32 %s10, %s17
    %p87 = scmp.eq.s32.totalorder %s86, 0
    %s89 = sadd.s32 %s88, 1
    %s90 = scalar_select %p87, %s88, %s89
    %p93 = pneg %p87
    %p94 = scmp.eq.s32.totalorder %s10, 1
    %p95 = por %p93, %p94
    %p96 = scmp.ne.s32.totalorder %s88, %s91
    %p97 = scmp.eq.s32.totalorder %s10, 0
    %p98 = por %p96, %p97
    %p99 = scmp.ne.s32.totalorder %s88, %s91
    %p100 = scmp.eq.s32.totalorder %s15, 1
    %p101 = por %p99, %p100
    %p102 = scmp.ne.s32.totalorder %s91, %s92
    %p103 = scmp.eq.s32.totalorder %s15, 0
    %p104 = por %p102, %p103
    %p105 = scmp.ne.s32.totalorder %s91, %s92
    %p106 = scmp.eq.s32.totalorder %s16, 1
    %p107 = por %p105, %p106
    %p109 = scmp.ne.s32.totalorder %s92, %s108
    %p110 = scmp.eq.s32.totalorder %s16, 0
    %p111 = por %p109, %p110
    %s112 = ssub.s32 %s10, %s17
    %p113 = scmp.eq.s32.totalorder %s112, 0
    %s115 = sadd.s32 %s114, 1
    %s116 = scalar_select %p113, %s114, %s115
    %p119 = pneg %p113
    %p120 = scmp.eq.s32.totalorder %s10, 1
    %p121 = por %p119, %p120
    %p122 = scmp.ne.s32.totalorder %s114, %s117
    %p123 = scmp.eq.s32.totalorder %s10, 0
    %p124 = por %p122, %p123
    %p125 = scmp.ne.s32.totalorder %s114, %s117
    %p126 = scmp.eq.s32.totalorder %s15, 1
    %p127 = por %p125, %p126
    %p128 = scmp.ne.s32.totalorder %s117, %s118
    %p129 = scmp.eq.s32.totalorder %s15, 0
    %p130 = por %p128, %p129
    %p131 = scmp.ne.s32.totalorder %s117, %s118
    %p132 = scmp.eq.s32.totalorder %s16, 1
    %p133 = por %p131, %p132
    %p135 = scmp.ne.s32.totalorder %s118, %s134
    %p136 = scmp.eq.s32.totalorder %s16, 0
    %p137 = por %p135, %p136
    %p138 = scmp.le.s32.totalorder 1, %s10
    %p139 = scmp.lt.s32.totalorder %s10, 3
    %p140 = pnand %p138, %p139
    %p141 = pneg %p140
    // Predicated region
    $region9: #{_lambda_.55} parent=5 // pred_check
      _
    $region10: #{_lambda_.55} parent=5 // pred_check_branch
      %143 = sbr.rel (%p140) target = $region12
    $region11: #{_lambda_.55} parent=5 // pred_region
      %s144 = ssub.s32 %s10, 1
      // Predicated region
      $region13: #{_lambda_.55} parent=11 // pred_check
        %p145 = pneg %p57
      $region14: #{_lambda_.55} parent=11 // pred_check_branch
        %147 = sbr.rel (%p145) target = $region16
      $region15: #{_lambda_.55} parent=11 // pred_region
        _
      $region16: #{_lambda_.55} parent=11 // pred_fallthru
        _
      // Predicated region
      $region17: #{_lambda_.55} parent=11 // pred_check
        %p148 = pneg %p78
      $region18: #{_lambda_.55} parent=11 // pred_check_branch
        %150 = sbr.rel (%p148) target = $region20
      $region19: #{_lambda_.55} parent=11 // pred_region
        _
      $region20: #{_lambda_.55} parent=11 // pred_fallthru
        _
    $region12: #{_lambda_.55} parent=5 // pred_fallthru
      _
    %p151 = scmp.lt.s32.totalorder %s10, 2
    // Predicated region
    $region21: #{_lambda_.55} parent=5 // pred_check
      %p152 = pneg %p151
    $region22: #{_lambda_.55} parent=5 // pred_check_branch
      %154 = sbr.rel (%p152) target = $region24
    $region23: #{_lambda_.55} parent=5 // pred_region
      // Predicated region
      $region25: #{_lambda_.55} parent=23 // pred_check
        %p155 = pneg %p30
      $region26: #{_lambda_.55} parent=23 // pred_check_branch
        %157 = sbr.rel (%p155) target = $region28
      $region27: #{_lambda_.55} parent=23 // pred_region
        %s158 = smul.u32 32, %s10
        %p159 = scmp.lt.s32.totalorder %s158, 63
        %s160 = scalar_select %p159, %s158, 63
        %s161 = smul.addr %s160, 4
        %s162 = scalar_lea.vmem %s0, %s161
        %s163 = smul.u32 32, %s10
      $region28: #{_lambda_.55} parent=23 // pred_fallthru
        _
      // Predicated region
      $region29: #{_lambda_.55} parent=23 // pred_check
        %p164 = pneg %p98
      $region30: #{_lambda_.55} parent=23 // pred_check_branch
        %166 = sbr.rel (%p164) target = $region32
      $region31: #{_lambda_.55} parent=23 // pred_region
        %s167 = smul.u32 32, %s10
        %p168 = scmp.lt.s32.totalorder %s167, 63
        %s169 = scalar_select %p168, %s167, 63
        %s170 = smul.addr %s169, 4
        %s171 = scalar_lea.vmem %s3, %s170
        %s172 = smul.u32 32, %s10
      $region32: #{_lambda_.55} parent=23 // pred_fallthru
        _
    $region24: #{_lambda_.55} parent=5 // pred_fallthru
      _
    %p173 = scmp.le.s32.totalorder 1, %s10
    %p174 = scmp.lt.s32.totalorder %s10, 3
    %p175 = pnand %p173, %p174
    %p176 = pneg %p175
    // Predicated region
    $region33: #{_lambda_.55} parent=5 // pred_check
      _
    $region34: #{_lambda_.55} parent=5 // pred_check_branch
      %178 = sbr.rel (%p175) target = $region36
    $region35: #{_lambda_.55} parent=5 // pred_region
      %s179 = ssub.s32 %s10, 1
      %s180 = smul.u32 32, %s15
      %p181 = scmp.lt.s32.totalorder %s180, 63
      %s182 = scalar_select %p181, %s180, 63
      %s183 = smul.addr %s182, 4
      %s184 = scalar_lea.vmem %s0, %s183
      %p185 = pneg %p36
      %p186 = pneg %p33
      %p187 = pneg %p57
      %p188 = pneg %p54
      %p189 = pneg %p78
      %p190 = pneg %p75
      %s191 = smul.u32 32, %s15
      %p192 = scmp.lt.s32.totalorder %s191, 63
      %s193 = scalar_select %p192, %s191, 63
      %s194 = smul.addr %s193, 4
      %s195 = scalar_lea.vmem %s3, %s194
      %p196 = pneg %p104
      %p197 = pneg %p101
      %p198 = pneg %p130
      %p199 = pneg %p127
      %s200 = smul.u32 32, %s15
      %p201 = scmp.lt.s32.totalorder %s200, 63
      %s202 = scalar_select %p201, %s200, 63
      %s203 = smul.addr %s202, 4
      %s204 = scalar_lea.vmem %s4, %s203
      %s205 = smul.u32 32, %s15
      %p206 = scmp.lt.s32.totalorder %s205, 63
      %s207 = scalar_select %p206, %s205, 63
      %s208 = smul.addr %s207, 4
      %s209 = scalar_lea.vmem %s0, %s208
      %s210 = smul.u32 32, %s15
      %s211 = smul.u32 32, %s15
      %p212 = scmp.lt.s32.totalorder %s211, 63
      %s213 = scalar_select %p212, %s211, 63
      %s214 = smul.addr %s213, 4
      %s215 = scalar_lea.vmem %s3, %s214
      %s216 = smul.u32 32, %s15
      %s217 = smul.u32 32, %s15
      %p218 = scmp.lt.s32.totalorder %s217, 63
      %s219 = scalar_select %p218, %s217, 63
      %s220 = smul.addr %s219, 4
      %s221 = scalar_lea.vmem %s4, %s220
      %s222 = smul.u32 32, %s15
      %v224 = vld [vmem:[%s209] sm:$0xf]
      %v225 = vld [vmem:[%s209 + $0x4] sm:$0xf]
      %v226 = vld [vmem:[%s209 + $0x8] sm:$0xf]
      %v227 = vld [vmem:[%s209 + $0xc] sm:$0xf]
      %v228 = vld [vmem:[%s209 + $0x10] sm:$0xf]
      %v229 = vld [vmem:[%s209 + $0x14] sm:$0xf]
      %v230 = vld [vmem:[%s209 + $0x18] sm:$0xf]
      %v231 = vld [vmem:[%s209 + $0x1c] sm:$0xf]
      %v232 = vld [vmem:[%s209 + $0x20] sm:$0xf]
      %v233 = vld [vmem:[%s209 + $0x24] sm:$0xf]
      %v234 = vld [vmem:[%s209 + $0x28] sm:$0xf]
      %v235 = vld [vmem:[%s209 + $0x2c] sm:$0xf]
      %v236 = vld [vmem:[%s209 + $0x30] sm:$0xf]
      %v237 = vld [vmem:[%s209 + $0x34] sm:$0xf]
      %v238 = vld [vmem:[%s209 + $0x38] sm:$0xf]
      %v239 = vld [vmem:[%s209 + $0x3c] sm:$0xf]
      %v240 = vld [vmem:[%s209 + $0x40] sm:$0xf]
      %v241 = vld [vmem:[%s209 + $0x44] sm:$0xf]
      %v242 = vld [vmem:[%s209 + $0x48] sm:$0xf]
      %v243 = vld [vmem:[%s209 + $0x4c] sm:$0xf]
      %v244 = vld [vmem:[%s209 + $0x50] sm:$0xf]
      %v245 = vld [vmem:[%s209 + $0x54] sm:$0xf]
      %v246 = vld [vmem:[%s209 + $0x58] sm:$0xf]
      %v247 = vld [vmem:[%s209 + $0x5c] sm:$0xf]
      %v248 = vld [vmem:[%s209 + $0x60] sm:$0xf]
      %v249 = vld [vmem:[%s209 + $0x64] sm:$0xf]
      %v250 = vld [vmem:[%s209 + $0x68] sm:$0xf]
      %v251 = vld [vmem:[%s209 + $0x6c] sm:$0xf]
      %v252 = vld [vmem:[%s209 + $0x70] sm:$0xf]
      %v253 = vld [vmem:[%s209 + $0x74] sm:$0xf]
      %v254 = vld [vmem:[%s209 + $0x78] sm:$0xf]
      %v255 = vld [vmem:[%s209 + $0x7c] sm:$0xf]
      %v256 = vld [vmem:[%s1] sm:$0xf]
      %v257 = vld [vmem:[%s1 + $0x4] sm:$0xf]
      %v258 = vld [vmem:[%s1 + $0x8] sm:$0xf]
      %v259 = vld [vmem:[%s1 + $0xc] sm:$0xf]
      %v260 = vld [vmem:[%s1 + $0x10] sm:$0xf]
      %v261 = vld [vmem:[%s1 + $0x14] sm:$0xf]
      %v262 = vld [vmem:[%s1 + $0x18] sm:$0xf]
      %v263 = vld [vmem:[%s1 + $0x1c] sm:$0xf]
      %v264 = vld [vmem:[%s1 + $0x20] sm:$0xf]
      %v265 = vld [vmem:[%s1 + $0x24] sm:$0xf]
      %v266 = vld [vmem:[%s1 + $0x28] sm:$0xf]
      %v267 = vld [vmem:[%s1 + $0x2c] sm:$0xf]
      %v268 = vld [vmem:[%s1 + $0x30] sm:$0xf]
      %v269 = vld [vmem:[%s1 + $0x34] sm:$0xf]
      %v270 = vld [vmem:[%s1 + $0x38] sm:$0xf]
      %v271 = vld [vmem:[%s1 + $0x3c] sm:$0xf]
      %v272 = vld [vmem:[%s2] sm:$0x1]
      %v274 = vlaneseq
      %v275 = vshrl.u32 %v274, 7
      %v276 = vsub.s32 0, %v275
      %v277 = vrot.slane %v272, %v276
      %v311 = vunpack.c.l.b16 %v224
      %v312 = vunpack.c.l.b16 %v225
      %v313 = vunpack.c.l.b16 %v226
      %v314 = vunpack.c.l.b16 %v227
      %v315 = vunpack.c.l.b16 %v228
      %v316 = vunpack.c.l.b16 %v229
      %v317 = vunpack.c.l.b16 %v230
      %v318 = vunpack.c.l.b16 %v231
      %v319 = vunpack.c.l.b16 %v232
      %v320 = vunpack.c.l.b16 %v233
      %v321 = vunpack.c.l.b16 %v234
      %v322 = vunpack.c.l.b16 %v235
      %v323 = vunpack.c.l.b16 %v236
      %v324 = vunpack.c.l.b16 %v237
      %v325 = vunpack.c.l.b16 %v238
      %v326 = vunpack.c.l.b16 %v239
      %v327 = vunpack.c.l.b16 %v240
      %v328 = vunpack.c.l.b16 %v241
      %v329 = vunpack.c.l.b16 %v242
      %v330 = vunpack.c.l.b16 %v243
      %v331 = vunpack.c.l.b16 %v244
      %v332 = vunpack.c.l.b16 %v245
      %v333 = vunpack.c.l.b16 %v246
      %v334 = vunpack.c.l.b16 %v247
      %v335 = vunpack.c.l.b16 %v248
      %v336 = vunpack.c.l.b16 %v249
      %v337 = vunpack.c.l.b16 %v250
      %v338 = vunpack.c.l.b16 %v251
      %v339 = vunpack.c.l.b16 %v252
      %v340 = vunpack.c.l.b16 %v253
      %v341 = vunpack.c.l.b16 %v254
      %v342 = vunpack.c.l.b16 %v255
      %v343 = vpack.c.b16 %v312, %v311
      %v344 = vpack.c.b16 %v314, %v313
      %v345 = vpack.c.b16 %v316, %v315
      %v346 = vpack.c.b16 %v318, %v317
      %v347 = vpack.c.b16 %v320, %v319
      %v348 = vpack.c.b16 %v322, %v321
      %v349 = vpack.c.b16 %v324, %v323
      %v350 = vpack.c.b16 %v326, %v325
      %v351 = vpack.c.b16 %v328, %v327
      %v352 = vpack.c.b16 %v330, %v329
      %v353 = vpack.c.b16 %v332, %v331
      %v354 = vpack.c.b16 %v334, %v333
      %v355 = vpack.c.b16 %v336, %v335
      %v356 = vpack.c.b16 %v338, %v337
      %v357 = vpack.c.b16 %v340, %v339
      %v358 = vpack.c.b16 %v342, %v341
      %v391 = vunpack.c.l.b16 %v256
      %v392 = vunpack.c.l.b16 %v257
      %v393 = vunpack.c.l.b16 %v258
      %v394 = vunpack.c.l.b16 %v259
      %v395 = vunpack.c.l.b16 %v260
      %v396 = vunpack.c.l.b16 %v261
      %v397 = vunpack.c.l.b16 %v262
      %v398 = vunpack.c.l.b16 %v263
      %v399 = vunpack.c.l.b16 %v264
      %v400 = vunpack.c.l.b16 %v265
      %v401 = vunpack.c.l.b16 %v266
      %v402 = vunpack.c.l.b16 %v267
      %v403 = vunpack.c.l.b16 %v268
      %v404 = vunpack.c.l.b16 %v269
      %v405 = vunpack.c.l.b16 %v270
      %v406 = vunpack.c.l.b16 %v271
      %v407 = vpack.c.b16 %v392, %v391
      %v408 = vpack.c.b16 %v394, %v393
      %v409 = vpack.c.b16 %v396, %v395
      %v410 = vpack.c.b16 %v398, %v397
      %v411 = vpack.c.b16 %v400, %v399
      %v412 = vpack.c.b16 %v402, %v401
      %v413 = vpack.c.b16 %v404, %v403
      %v414 = vpack.c.b16 %v406, %v405
      %423 = vmatprep.subr.bf16.mxu0 0
      %424 = vmatpush1.bf16.msra.mxu0 %v407
      %425 = vmatprep.subr.bf16.mxu0 0
      %426 = vmatpush1.bf16.msra.mxu0 %v408
      %427 = vmatprep.subr.bf16.mxu0 0
      %428 = vmatpush1.bf16.msra.mxu0 %v409
      %429 = vmatprep.subr.bf16.mxu0 0
      %430 = vmatpush1.bf16.msra.mxu0 %v410
      %431 = vmatprep.subr.bf16.mxu0 0
      %432 = vmatpush1.bf16.msra.mxu0 %v411
      %433 = vmatprep.subr.bf16.mxu0 0
      %434 = vmatpush1.bf16.msra.mxu0 %v412
      %435 = vmatprep.subr.bf16.mxu0 0
      %436 = vmatpush1.bf16.msra.mxu0 %v413
      %437 = vmatprep.subr.bf16.mxu0 0
      %438 = vmatpush1.bf16.msra.mxu0 %v414
      %439 = vmatprep.subr.bf16.mxu0 0
      %440 = vmatpush1.bf16.msra.mxu0 0
      %441 = vmatprep.subr.bf16.mxu0 0
      %442 = vmatpush1.bf16.msra.mxu0 0
      %443 = vmatprep.subr.bf16.mxu0 0
      %444 = vmatpush1.bf16.msra.mxu0 0
      %445 = vmatprep.subr.bf16.mxu0 0
      %446 = vmatpush1.bf16.msra.mxu0 0
      %447 = vmatprep.subr.bf16.mxu0 0
      %448 = vmatpush1.bf16.msra.mxu0 0
      %449 = vmatprep.subr.bf16.mxu0 0
      %450 = vmatpush1.bf16.msra.mxu0 0
      %451 = vmatprep.subr.bf16.mxu0 0
      %452 = vmatpush1.bf16.msra.mxu0 0
      %453 = vmatprep.subr.bf16.mxu0 0
      %454 = vmatpush1.bf16.msra.mxu0 0
      %455 = vmatprep.mubr.bf16.mxu0 0
      %456 = vmatmul.mubr.bf16.gmra.mrb[0].mxu0 %v343
      %v457 = vpop.f32.mrb[0].mxu0
      %v458 = vadd.f32 %v277, %v457
      %v459 = vpop.f32.mrb[0].mxu0
      %v460 = vpop.f32.mrb[0].mxu0
      %v461 = vadd.f32 %v277, %v460
      %v462 = vpop.f32.mrb[0].mxu0
      %463 = vmatprep.mubr.bf16.mxu0 0
      %464 = vmatmul.mubr.bf16.gmra.mrb[0].mxu0 %v344
      %v465 = vpop.f32.mrb[0].mxu0
      %v466 = vadd.f32 %v277, %v465
      %v467 = vpop.f32.mrb[0].mxu0
      %v468 = vpop.f32.mrb[0].mxu0
      %v469 = vadd.f32 %v277, %v468
      %v470 = vpop.f32.mrb[0].mxu0
      %471 = vmatprep.mubr.bf16.mxu0 0
      %472 = vmatmul.mubr.bf16.gmra.mrb[0].mxu0 %v345
      %v473 = vpop.f32.mrb[0].mxu0
      %v474 = vadd.f32 %v277, %v473
      %v475 = vpop.f32.mrb[0].mxu0
      %v476 = vpop.f32.mrb[0].mxu0
      %v477 = vadd.f32 %v277, %v476
      %v478 = vpop.f32.mrb[0].mxu0
      %479 = vmatprep.mubr.bf16.mxu0 0
      %480 = vmatmul.mubr.bf16.gmra.mrb[0].mxu0 %v346
      %v481 = vpop.f32.mrb[0].mxu0
      %v482 = vadd.f32 %v277, %v481
      %v483 = vpop.f32.mrb[0].mxu0
      %v484 = vpop.f32.mrb[0].mxu0
      %v485 = vadd.f32 %v277, %v484
      %v486 = vpop.f32.mrb[0].mxu0
      %487 = vmatprep.mubr.bf16.mxu0 0
      %488 = vmatmul.mubr.bf16.gmra.mrb[0].mxu0 %v347
      %v489 = vpop.f32.mrb[0].mxu0
      %v490 = vadd.f32 %v277, %v489
      %v491 = vpop.f32.mrb[0].mxu0
      %v492 = vpop.f32.mrb[0].mxu0
      %v493 = vadd.f32 %v277, %v492
      %v494 = vpop.f32.mrb[0].mxu0
      %495 = vmatprep.mubr.bf16.mxu0 0
      %496 = vmatmul.mubr.bf16.gmra.mrb[0].mxu0 %v348
      %v497 = vpop.f32.mrb[0].mxu0
      %v498 = vadd.f32 %v277, %v497
      %v499 = vpop.f32.mrb[0].mxu0
      %v500 = vpop.f32.mrb[0].mxu0
      %v501 = vadd.f32 %v277, %v500
      %v502 = vpop.f32.mrb[0].mxu0
      %503 = vmatprep.mubr.bf16.mxu0 0
      %504 = vmatmul.mubr.bf16.gmra.mrb[0].mxu0 %v349
      %v505 = vpop.f32.mrb[0].mxu0
      %v506 = vadd.f32 %v277, %v505
      %v507 = vpop.f32.mrb[0].mxu0
      %v508 = vpop.f32.mrb[0].mxu0
      %v509 = vadd.f32 %v277, %v508
      %v510 = vpop.f32.mrb[0].mxu0
      %511 = vmatprep.mubr.bf16.mxu0 0
      %512 = vmatmul.mubr.bf16.gmra.mrb[0].mxu0 %v350
      %v513 = vpop.f32.mrb[0].mxu0
      %v514 = vadd.f32 %v277, %v513
      %v515 = vpop.f32.mrb[0].mxu0
      %v516 = vpop.f32.mrb[0].mxu0
      %v517 = vadd.f32 %v277, %v516
      %v518 = vpop.f32.mrb[0].mxu0
      %519 = vmatprep.mubr.bf16.mxu0 0
      %520 = vmatmul.mubr.bf16.gmra.mrb[0].mxu0 %v351
      %v521 = vpop.f32.mrb[0].mxu0
      %v522 = vadd.f32 %v277, %v521
      %v523 = vpop.f32.mrb[0].mxu0
      %v524 = vpop.f32.mrb[0].mxu0
      %v525 = vadd.f32 %v277, %v524
      %v526 = vpop.f32.mrb[0].mxu0
      %527 = vmatprep.mubr.bf16.mxu0 0
      %528 = vmatmul.mubr.bf16.gmra.mrb[0].mxu0 %v352
      %v529 = vpop.f32.mrb[0].mxu0
      %v530 = vadd.f32 %v277, %v529
      %v531 = vpop.f32.mrb[0].mxu0
      %v532 = vpop.f32.mrb[0].mxu0
      %v533 = vadd.f32 %v277, %v532
      %v534 = vpop.f32.mrb[0].mxu0
      %535 = vmatprep.mubr.bf16.mxu0 0
      %536 = vmatmul.mubr.bf16.gmra.mrb[0].mxu0 %v353
      %v537 = vpop.f32.mrb[0].mxu0
      %v538 = vadd.f32 %v277, %v537
      %v539 = vpop.f32.mrb[0].mxu0
      %v540 = vpop.f32.mrb[0].mxu0
      %v541 = vadd.f32 %v277, %v540
      %v542 = vpop.f32.mrb[0].mxu0
      %543 = vmatprep.mubr.bf16.mxu0 0
      %544 = vmatmul.mubr.bf16.gmra.mrb[0].mxu0 %v354
      %v545 = vpop.f32.mrb[0].mxu0
      %v546 = vadd.f32 %v277, %v545
      %v547 = vpop.f32.mrb[0].mxu0
      %v548 = vpop.f32.mrb[0].mxu0
      %v549 = vadd.f32 %v277, %v548
      %v550 = vpop.f32.mrb[0].mxu0
      %551 = vmatprep.mubr.bf16.mxu0 0
      %552 = vmatmul.mubr.bf16.gmra.mrb[0].mxu0 %v355
      %v553 = vpop.f32.mrb[0].mxu0
      %v554 = vadd.f32 %v277, %v553
      %v555 = vpop.f32.mrb[0].mxu0
      %v556 = vpop.f32.mrb[0].mxu0
      %v557 = vadd.f32 %v277, %v556
      %v558 = vpop.f32.mrb[0].mxu0
      %559 = vmatprep.mubr.bf16.mxu0 0
      %560 = vmatmul.mubr.bf16.gmra.mrb[0].mxu0 %v356
      %v561 = vpop.f32.mrb[0].mxu0
      %v562 = vadd.f32 %v277, %v561
      %v563 = vpop.f32.mrb[0].mxu0
      %v564 = vpop.f32.mrb[0].mxu0
      %v565 = vadd.f32 %v277, %v564
      %v566 = vpop.f32.mrb[0].mxu0
      %567 = vmatprep.mubr.bf16.mxu0 0
      %568 = vmatmul.mubr.bf16.gmra.mrb[0].mxu0 %v357
      %v569 = vpop.f32.mrb[0].mxu0
      %v570 = vadd.f32 %v277, %v569
      %v571 = vpop.f32.mrb[0].mxu0
      %v572 = vpop.f32.mrb[0].mxu0
      %v573 = vadd.f32 %v277, %v572
      %v574 = vpop.f32.mrb[0].mxu0
      %575 = vmatprep.mubr.bf16.mxu0 0
      %576 = vmatmul.mubr.bf16.gmra.mrb[0].mxu0 %v358
      %v577 = vpop.f32.mrb[0].mxu0
      %v578 = vadd.f32 %v277, %v577
      %v579 = vpop.f32.mrb[0].mxu0
      %v580 = vpop.f32.mrb[0].mxu0
      %v581 = vadd.f32 %v277, %v580
      %v582 = vpop.f32.mrb[0].mxu0
      %583 = vdwg.mxu0
      %v584 = vld [vmem:[%s215] sm:$0xf]
      %v585 = vld [vmem:[%s215 + $0x4] sm:$0xf]
      %v586 = vld [vmem:[%s215 + $0x8] sm:$0xf]
      %v587 = vld [vmem:[%s215 + $0xc] sm:$0xf]
      %v588 = vld [vmem:[%s215 + $0x10] sm:$0xf]
      %v589 = vld [vmem:[%s215 + $0x14] sm:$0xf]
      %v590 = vld [vmem:[%s215 + $0x18] sm:$0xf]
      %v591 = vld [vmem:[%s215 + $0x1c] sm:$0xf]
      %v592 = vld [vmem:[%s215 + $0x20] sm:$0xf]
      %v593 = vld [vmem:[%s215 + $0x24] sm:$0xf]
      %v594 = vld [vmem:[%s215 + $0x28] sm:$0xf]
      %v595 = vld [vmem:[%s215 + $0x2c] sm:$0xf]
      %v596 = vld [vmem:[%s215 + $0x30] sm:$0xf]
      %v597 = vld [vmem:[%s215 + $0x34] sm:$0xf]
      %v598 = vld [vmem:[%s215 + $0x38] sm:$0xf]
      %v599 = vld [vmem:[%s215 + $0x3c] sm:$0xf]
      %v600 = vld [vmem:[%s215 + $0x40] sm:$0xf]
      %v601 = vld [vmem:[%s215 + $0x44] sm:$0xf]
      %v602 = vld [vmem:[%s215 + $0x48] sm:$0xf]
      %v603 = vld [vmem:[%s215 + $0x4c] sm:$0xf]
      %v604 = vld [vmem:[%s215 + $0x50] sm:$0xf]
      %v605 = vld [vmem:[%s215 + $0x54] sm:$0xf]
      %v606 = vld [vmem:[%s215 + $0x58] sm:$0xf]
      %v607 = vld [vmem:[%s215 + $0x5c] sm:$0xf]
      %v608 = vld [vmem:[%s215 + $0x60] sm:$0xf]
      %v609 = vld [vmem:[%s215 + $0x64] sm:$0xf]
      %v610 = vld [vmem:[%s215 + $0x68] sm:$0xf]
      %v611 = vld [vmem:[%s215 + $0x6c] sm:$0xf]
      %v612 = vld [vmem:[%s215 + $0x70] sm:$0xf]
      %v613 = vld [vmem:[%s215 + $0x74] sm:$0xf]
      %v614 = vld [vmem:[%s215 + $0x78] sm:$0xf]
      %v615 = vld [vmem:[%s215 + $0x7c] sm:$0xf]
      %v616 = vunpack.c.l.bf16 %v584
      %v617 = vunpack.c.l.bf16 %v585
      %v618 = vunpack.c.l.bf16 %v586
      %v619 = vunpack.c.l.bf16 %v587
      %v620 = vunpack.c.l.bf16 %v588
      %v621 = vunpack.c.l.bf16 %v589
      %v622 = vunpack.c.l.bf16 %v590
      %v623 = vunpack.c.l.bf16 %v591
      %v624 = vunpack.c.l.bf16 %v592
      %v625 = vunpack.c.l.bf16 %v593
      %v626 = vunpack.c.l.bf16 %v594
      %v627 = vunpack.c.l.bf16 %v595
      %v628 = vunpack.c.l.bf16 %v596
      %v629 = vunpack.c.l.bf16 %v597
      %v630 = vunpack.c.l.bf16 %v598
      %v631 = vunpack.c.l.bf16 %v599
      %v632 = vunpack.c.l.bf16 %v600
      %v633 = vunpack.c.l.bf16 %v601
      %v634 = vunpack.c.l.bf16 %v602
      %v635 = vunpack.c.l.bf16 %v603
      %v636 = vunpack.c.l.bf16 %v604
      %v637 = vunpack.c.l.bf16 %v605
      %v638 = vunpack.c.l.bf16 %v606
      %v639 = vunpack.c.l.bf16 %v607
      %v640 = vunpack.c.l.bf16 %v608
      %v641 = vunpack.c.l.bf16 %v609
      %v642 = vunpack.c.l.bf16 %v610
      %v643 = vunpack.c.l.bf16 %v611
      %v644 = vunpack.c.l.bf16 %v612
      %v645 = vunpack.c.l.bf16 %v613
      %v646 = vunpack.c.l.bf16 %v614
      %v647 = vunpack.c.l.bf16 %v615
      %v648 = vadd.f32 %v458, %v616
      %v649 = vadd.f32 %v461, %v617
      %v650 = vadd.f32 %v466, %v618
      %v651 = vadd.f32 %v469, %v619
      %v652 = vadd.f32 %v474, %v620
      %v653 = vadd.f32 %v477, %v621
      %v654 = vadd.f32 %v482, %v622
      %v655 = vadd.f32 %v485, %v623
      %v656 = vadd.f32 %v490, %v624
      %v657 = vadd.f32 %v493, %v625
      %v658 = vadd.f32 %v498, %v626
      %v659 = vadd.f32 %v501, %v627
      %v660 = vadd.f32 %v506, %v628
      %v661 = vadd.f32 %v509, %v629
      %v662 = vadd.f32 %v514, %v630
      %v663 = vadd.f32 %v517, %v631
      %v664 = vadd.f32 %v522, %v632
      %v665 = vadd.f32 %v525, %v633
      %v666 = vadd.f32 %v530, %v634
      %v667 = vadd.f32 %v533, %v635
      %v668 = vadd.f32 %v538, %v636
      %v669 = vadd.f32 %v541, %v637
      %v670 = vadd.f32 %v546, %v638
      %v671 = vadd.f32 %v549, %v639
      %v672 = vadd.f32 %v554, %v640
      %v673 = vadd.f32 %v557, %v641
      %v674 = vadd.f32 %v562, %v642
      %v675 = vadd.f32 %v565, %v643
      %v676 = vadd.f32 %v570, %v644
      %v677 = vadd.f32 %v573, %v645
      %v678 = vadd.f32 %v578, %v646
      %v679 = vadd.f32 %v581, %v647
      %v680 = vmax.f32 %v648, 0.0
      %v681 = vmax.f32 %v649, 0.0
      %v682 = vmax.f32 %v650, 0.0
      %v683 = vmax.f32 %v651, 0.0
      %v684 = vmax.f32 %v652, 0.0
      %v685 = vmax.f32 %v653, 0.0
      %v686 = vmax.f32 %v654, 0.0
      %v687 = vmax.f32 %v655, 0.0
      %v688 = vmax.f32 %v656, 0.0
      %v689 = vmax.f32 %v657, 0.0
      %v690 = vmax.f32 %v658, 0.0
      %v691 = vmax.f32 %v659, 0.0
      %v692 = vmax.f32 %v660, 0.0
      %v693 = vmax.f32 %v661, 0.0
      %v694 = vmax.f32 %v662, 0.0
      %v695 = vmax.f32 %v663, 0.0
      %v696 = vmax.f32 %v664, 0.0
      %v697 = vmax.f32 %v665, 0.0
      %v698 = vmax.f32 %v666, 0.0
      %v699 = vmax.f32 %v667, 0.0
      %v700 = vmax.f32 %v668, 0.0
      %v701 = vmax.f32 %v669, 0.0
      %v702 = vmax.f32 %v670, 0.0
      %v703 = vmax.f32 %v671, 0.0
      %v704 = vmax.f32 %v672, 0.0
      %v705 = vmax.f32 %v673, 0.0
      %v706 = vmax.f32 %v674, 0.0
      %v707 = vmax.f32 %v675, 0.0
      %v708 = vmax.f32 %v676, 0.0
      %v709 = vmax.f32 %v677, 0.0
      %v710 = vmax.f32 %v678, 0.0
      %v711 = vmax.f32 %v679, 0.0
      %v712 = vpack.c.bf16 %v681, %v680
      %v713 = vpack.c.bf16 %v683, %v682
      %v714 = vpack.c.bf16 %v685, %v684
      %v715 = vpack.c.bf16 %v687, %v686
      %v716 = vpack.c.bf16 %v689, %v688
      %v717 = vpack.c.bf16 %v691, %v690
      %v718 = vpack.c.bf16 %v693, %v692
      %v719 = vpack.c.bf16 %v695, %v694
      %v720 = vpack.c.bf16 %v697, %v696
      %v721 = vpack.c.bf16 %v699, %v698
      %v722 = vpack.c.bf16 %v701, %v700
      %v723 = vpack.c.bf16 %v703, %v702
      %v724 = vpack.c.bf16 %v705, %v704
      %v725 = vpack.c.bf16 %v707, %v706
      %v726 = vpack.c.bf16 %v709, %v708
      %v727 = vpack.c.bf16 %v711, %v710
      %v744 = vunpack.c.l.b16 %v712
      %v745 = vunpack.c.h.b16 %v712
      %v746 = vunpack.c.l.b16 %v713
      %v747 = vunpack.c.h.b16 %v713
      %v748 = vunpack.c.l.b16 %v714
      %v749 = vunpack.c.h.b16 %v714
      %v750 = vunpack.c.l.b16 %v715
      %v751 = vunpack.c.h.b16 %v715
      %v752 = vunpack.c.l.b16 %v716
      %v753 = vunpack.c.h.b16 %v716
      %v754 = vunpack.c.l.b16 %v717
      %v755 = vunpack.c.h.b16 %v717
      %v756 = vunpack.c.l.b16 %v718
      %v757 = vunpack.c.h.b16 %v718
      %v758 = vunpack.c.l.b16 %v719
      %v759 = vunpack.c.h.b16 %v719
      %v760 = vunpack.c.l.b16 %v720
      %v761 = vunpack.c.h.b16 %v720
      %v762 = vunpack.c.l.b16 %v721
      %v763 = vunpack.c.h.b16 %v721
      %v764 = vunpack.c.l.b16 %v722
      %v765 = vunpack.c.h.b16 %v722
      %v766 = vunpack.c.l.b16 %v723
      %v767 = vunpack.c.h.b16 %v723
      %v768 = vunpack.c.l.b16 %v724
      %v769 = vunpack.c.h.b16 %v724
      %v770 = vunpack.c.l.b16 %v725
      %v771 = vunpack.c.h.b16 %v725
      %v772 = vunpack.c.l.b16 %v726
      %v773 = vunpack.c.h.b16 %v726
      %v774 = vunpack.c.l.b16 %v727
      %v775 = vunpack.c.h.b16 %v727
      %v776 = vpack.c.b16 %v744, %v744
      %v777 = vpack.c.b16 %v745, %v745
      %v778 = vpack.c.b16 %v746, %v746
      %v779 = vpack.c.b16 %v747, %v747
      %v780 = vpack.c.b16 %v748, %v748
      %v781 = vpack.c.b16 %v749, %v749
      %v782 = vpack.c.b16 %v750, %v750
      %v783 = vpack.c.b16 %v751, %v751
      %v784 = vpack.c.b16 %v752, %v752
      %v785 = vpack.c.b16 %v753, %v753
      %v786 = vpack.c.b16 %v754, %v754
      %v787 = vpack.c.b16 %v755, %v755
      %v788 = vpack.c.b16 %v756, %v756
      %v789 = vpack.c.b16 %v757, %v757
      %v790 = vpack.c.b16 %v758, %v758
      %v791 = vpack.c.b16 %v759, %v759
      %v792 = vpack.c.b16 %v760, %v760
      %v793 = vpack.c.b16 %v761, %v761
      %v794 = vpack.c.b16 %v762, %v762
      %v795 = vpack.c.b16 %v763, %v763
      %v796 = vpack.c.b16 %v764, %v764
      %v797 = vpack.c.b16 %v765, %v765
      %v798 = vpack.c.b16 %v766, %v766
      %v799 = vpack.c.b16 %v767, %v767
      %v800 = vpack.c.b16 %v768, %v768
      %v801 = vpack.c.b16 %v769, %v769
      %v802 = vpack.c.b16 %v770, %v770
      %v803 = vpack.c.b16 %v771, %v771
      %v804 = vpack.c.b16 %v772, %v772
      %v805 = vpack.c.b16 %v773, %v773
      %v806 = vpack.c.b16 %v774, %v774
      %v807 = vpack.c.b16 %v775, %v775
      %840 = vst [vmem:[%s221] sm:$0xf] %v776
      %841 = vst [vmem:[%s221 + $0x4] sm:$0xf] %v777
      %842 = vst [vmem:[%s221 + $0x8] sm:$0xf] %v778
      %843 = vst [vmem:[%s221 + $0xc] sm:$0xf] %v779
      %844 = vst [vmem:[%s221 + $0x10] sm:$0xf] %v780
      %845 = vst [vmem:[%s221 + $0x14] sm:$0xf] %v781
      %846 = vst [vmem:[%s221 + $0x18] sm:$0xf] %v782
      %847 = vst [vmem:[%s221 + $0x1c] sm:$0xf] %v783
      %848 = vst [vmem:[%s221 + $0x20] sm:$0xf] %v784
      %849 = vst [vmem:[%s221 + $0x24] sm:$0xf] %v785
      %850 = vst [vmem:[%s221 + $0x28] sm:$0xf] %v786
      %851 = vst [vmem:[%s221 + $0x2c] sm:$0xf] %v787
      %852 = vst [vmem:[%s221 + $0x30] sm:$0xf] %v788
      %853 = vst [vmem:[%s221 + $0x34] sm:$0xf] %v789
      %854 = vst [vmem:[%s221 + $0x38] sm:$0xf] %v790
      %855 = vst [vmem:[%s221 + $0x3c] sm:$0xf] %v791
      %856 = vst [vmem:[%s221 + $0x40] sm:$0xf] %v792
      %857 = vst [vmem:[%s221 + $0x44] sm:$0xf] %v793
      %858 = vst [vmem:[%s221 + $0x48] sm:$0xf] %v794
      %859 = vst [vmem:[%s221 + $0x4c] sm:$0xf] %v795
      %860 = vst [vmem:[%s221 + $0x50] sm:$0xf] %v796
      %861 = vst [vmem:[%s221 + $0x54] sm:$0xf] %v797
      %862 = vst [vmem:[%s221 + $0x58] sm:$0xf] %v798
      %863 = vst [vmem:[%s221 + $0x5c] sm:$0xf] %v799
      %864 = vst [vmem:[%s221 + $0x60] sm:$0xf] %v800
      %865 = vst [vmem:[%s221 + $0x64] sm:$0xf] %v801
      %866 = vst [vmem:[%s221 + $0x68] sm:$0xf] %v802
      %867 = vst [vmem:[%s221 + $0x6c] sm:$0xf] %v803
      %868 = vst [vmem:[%s221 + $0x70] sm:$0xf] %v804
      %869 = vst [vmem:[%s221 + $0x74] sm:$0xf] %v805
      %870 = vst [vmem:[%s221 + $0x78] sm:$0xf] %v806
      %871 = vst [vmem:[%s221 + $0x7c] sm:$0xf] %v807
      %s872 = smul.u32 32, %s15
      %p873 = scmp.lt.s32.totalorder %s872, 63
      %s874 = scalar_select %p873, %s872, 63
      %s875 = smul.addr %s874, 4
      %s876 = scalar_lea.vmem %s4, %s875
      // Predicated region
      $region37: #{_lambda_.55} parent=35 // pred_check
        %p877 = pneg %p127
      $region38: #{_lambda_.55} parent=35 // pred_check_branch
        %879 = sbr.rel (%p877) target = $region40
      $region39: #{_lambda_.55} parent=35 // pred_region
        %s880 = smul.u32 32, %s15
      $region40: #{_lambda_.55} parent=35 // pred_fallthru
        _
    $region36: #{_lambda_.55} parent=5 // pred_fallthru
      _
    %p881 = scmp.le.s32.totalorder 2, %s10
    // Predicated region
    $region41: #{_lambda_.55} parent=5 // pred_check
      %p882 = pneg %p881
    $region42: #{_lambda_.55} parent=5 // pred_check_branch
      %884 = sbr.rel (%p882) target = $region44
    $region43: #{_lambda_.55} parent=5 // pred_region
      %s885 = ssub.s32 %s10, 2
      // Predicated region
      $region45: #{_lambda_.55} parent=43 // pred_check
        %p886 = pneg %p133
      $region46: #{_lambda_.55} parent=43 // pred_check_branch
        %888 = sbr.rel (%p886) target = $region48
      $region47: #{_lambda_.55} parent=43 // pred_region
        %s889 = smul.u32 32, %s16
        %p890 = scmp.lt.s32.totalorder %s889, 63
        %s891 = scalar_select %p890, %s889, 63
        %s892 = smul.addr %s891, 4
        %s893 = scalar_lea.vmem %s4, %s892
      $region48: #{_lambda_.55} parent=43 // pred_fallthru
        _
    $region44: #{_lambda_.55} parent=5 // pred_fallthru
      _
  $region6: #{_lambda_.55} parent=0 // loop_footer
    %s14 = sadd.s32 1, %s10
  $region7: #{_lambda_.55} parent=0 // loop_footer_branch
    %9 = sbr.rel target = $region3
  $region8: #{_lambda_.55} parent=0 // loop_exit
    _

// kernel: _lambda_.64
$region0: #{_lambda_.64}
  #allocation0 [shape = 'u32[]', space=smem, size = 0x4, offset = 0x4, fixed_abs, tag = 'smem constant byte address 0x4 - core index']
  #allocation1 [shape = 'u32[144,128]{1,0:T(1,128)}', space=vmem, size = 0x12000, scoped, tag = 'internal scratch']
  %s0 = inlined_call_operand.vmem [shape: bf16[128,256], index: 0, kind: input, shape index: {}]
  %s1 = inlined_call_operand.vmem [shape: bf16[256,128], index: 1, kind: input, shape index: {}]
  %s2 = inlined_call_operand.vmem [shape: f32[1,128], index: 2, kind: input, shape index: {}]
  %s3 = inlined_call_operand.vmem [shape: bf16[128,128], index: 3, kind: output, shape index: {}]
  %s4 = sld [smem:[#allocation0]]
  $region45: #{_lambda_.64} parent=0
    _
  %s6 = ssub.s32 1, %s4
  %s7 = scalar_select 0, %s6, %s4
  loop: start=0, step=1, limit=4
  $region2: #{_lambda_.64} parent=0 // loop_pre_header
    _
  $region3: #{_lambda_.64} parent=0 // loop_header
    %s9 = sphi 0, %s13
    %p10 = scmp.ge.s32.totalorder %s9, 4
    %s19 = sphi 0, %s21
    %s22 = sphi 0, %s19
    %s23 = sphi 0, %s22
    %s39 = sphi 0, %s23
    %s43 = sphi 0, %s43
    %s45 = sphi 0, %s43
    %s46 = sphi 0, %s45
    %s60 = sphi 0, %s46
    %s64 = sphi 0, %s64
    %s66 = sphi 0, %s64
    %s67 = sphi 0, %s66
    %s81 = sphi 0, %s67
    %s87 = sphi 0, %s89
    %s90 = sphi 0, %s87
    %s91 = sphi 0, %s90
    %s107 = sphi 0, %s91
  $region4: #{_lambda_.64} parent=0 // loop_header_branch
    %12 = sbr.rel (%p10) target = $region8
  $region5: #{_lambda_.64} parent=0 // loop_body
    %s14 = ssub.s32 %s9, 1
    %s15 = ssub.s32 %s9, 2
    %s16 = sadd.s32 %s9, 1
    %s17 = ssub.s32 %s9, %s16
    %p18 = scmp.eq.s32.totalorder %s17, 0
    %s20 = sadd.s32 %s19, 1
    %s21 = scalar_select %p18, %s19, %s20
    %p24 = pneg %p18
    %p25 = scmp.eq.s32.totalorder %s9, 1
    %p26 = por %p24, %p25
    %p27 = scmp.ne.s32.totalorder %s19, %s22
    %p28 = scmp.eq.s32.totalorder %s9, 0
    %p29 = por %p27, %p28
    %p30 = scmp.ne.s32.totalorder %s19, %s22
    %p31 = scmp.eq.s32.totalorder %s14, 1
    %p32 = por %p30, %p31
    %p33 = scmp.ne.s32.totalorder %s22, %s23
    %p34 = scmp.eq.s32.totalorder %s14, 0
    %p35 = por %p33, %p34
    %p36 = scmp.ne.s32.totalorder %s22, %s23
    %p37 = scmp.eq.s32.totalorder %s15, 1
    %p38 = por %p36, %p37
    %p40 = scmp.ne.s32.totalorder %s23, %s39
    %p41 = scmp.eq.s32.totalorder %s15, 0
    %p42 = por %p40, %p41
    %s44 = sadd.s32 %s43, 1
    %p47 = scmp.eq.s32.totalorder %s9, 1
    %p48 = scmp.ne.s32.totalorder %s43, %s45
    %p49 = scmp.eq.s32.totalorder %s9, 0
    %p50 = por %p48, %p49
    %p51 = scmp.ne.s32.totalorder %s43, %s45
    %p52 = scmp.eq.s32.totalorder %s14, 1
    %p53 = por %p51, %p52
    %p54 = scmp.ne.s32.totalorder %s45, %s46
    %p55 = scmp.eq.s32.totalorder %s14, 0
    %p56 = por %p54, %p55
    %p57 = scmp.ne.s32.totalorder %s45, %s46
    %p58 = scmp.eq.s32.totalorder %s15, 1
    %p59 = por %p57, %p58
    %p61 = scmp.ne.s32.totalorder %s46, %s60
    %p62 = scmp.eq.s32.totalorder %s15, 0
    %p63 = por %p61, %p62
    %s65 = sadd.s32 %s64, 1
    %p68 = scmp.eq.s32.totalorder %s9, 1
    %p69 = scmp.ne.s32.totalorder %s64, %s66
    %p70 = scmp.eq.s32.totalorder %s9, 0
    %p71 = por %p69, %p70
    %p72 = scmp.ne.s32.totalorder %s64, %s66
    %p73 = scmp.eq.s32.totalorder %s14, 1
    %p74 = por %p72, %p73
    %p75 = scmp.ne.s32.totalorder %s66, %s67
    %p76 = scmp.eq.s32.totalorder %s14, 0
    %p77 = por %p75, %p76
    %p78 = scmp.ne.s32.totalorder %s66, %s67
    %p79 = scmp.eq.s32.totalorder %s15, 1
    %p80 = por %p78, %p79
    %p82 = scmp.ne.s32.totalorder %s67, %s81
    %p83 = scmp.eq.s32.totalorder %s15, 0
    %p84 = por %p82, %p83
    %s85 = ssub.s32 %s9, %s16
    %p86 = scmp.eq.s32.totalorder %s85, 0
    %s88 = sadd.s32 %s87, 1
    %s89 = scalar_select %p86, %s87, %s88
    %p92 = pneg %p86
    %p93 = scmp.eq.s32.totalorder %s9, 1
    %p94 = por %p92, %p93
    %p95 = scmp.ne.s32.totalorder %s87, %s90
    %p96 = scmp.eq.s32.totalorder %s9, 0
    %p97 = por %p95, %p96
    %p98 = scmp.ne.s32.totalorder %s87, %s90
    %p99 = scmp.eq.s32.totalorder %s14, 1
    %p100 = por %p98, %p99
    %p101 = scmp.ne.s32.totalorder %s90, %s91
    %p102 = scmp.eq.s32.totalorder %s14, 0
    %p103 = por %p101, %p102
    %p104 = scmp.ne.s32.totalorder %s90, %s91
    %p105 = scmp.eq.s32.totalorder %s15, 1
    %p106 = por %p104, %p105
    %p108 = scmp.ne.s32.totalorder %s91, %s107
    %p109 = scmp.eq.s32.totalorder %s15, 0
    %p110 = por %p108, %p109
    %p111 = scmp.le.s32.totalorder 1, %s9
    %p112 = scmp.lt.s32.totalorder %s9, 3
    %p113 = pnand %p111, %p112
    %p114 = pneg %p113
    // Predicated region
    $region9: #{_lambda_.64} parent=5 // pred_check
      _
    $region10: #{_lambda_.64} parent=5 // pred_check_branch
      %116 = sbr.rel (%p113) target = $region12
    $region11: #{_lambda_.64} parent=5 // pred_region
      %s117 = ssub.s32 %s9, 1
      // Predicated region
      $region13: #{_lambda_.64} parent=11 // pred_check
        %p118 = pneg %p56
      $region14: #{_lambda_.64} parent=11 // pred_check_branch
        %120 = sbr.rel (%p118) target = $region16
      $region15: #{_lambda_.64} parent=11 // pred_region
        _
      $region16: #{_lambda_.64} parent=11 // pred_fallthru
        _
      // Predicated region
      $region17: #{_lambda_.64} parent=11 // pred_check
        %p121 = pneg %p77
      $region18: #{_lambda_.64} parent=11 // pred_check_branch
        %123 = sbr.rel (%p121) target = $region20
      $region19: #{_lambda_.64} parent=11 // pred_region
        _
      $region20: #{_lambda_.64} parent=11 // pred_fallthru
        _
    $region12: #{_lambda_.64} parent=5 // pred_fallthru
      _
    %p124 = scmp.lt.s32.totalorder %s9, 2
    // Predicated region
    $region21: #{_lambda_.64} parent=5 // pred_check
      %p125 = pneg %p124
    $region22: #{_lambda_.64} parent=5 // pred_check_branch
      %127 = sbr.rel (%p125) target = $region24
    $region23: #{_lambda_.64} parent=5 // pred_region
      // Predicated region
      $region25: #{_lambda_.64} parent=23 // pred_check
        %p128 = pneg %p29
      $region26: #{_lambda_.64} parent=23 // pred_check_branch
        %130 = sbr.rel (%p128) target = $region28
      $region27: #{_lambda_.64} parent=23 // pred_region
        %s131 = smul.u32 8, %s9
        %p132 = scmp.lt.s32.totalorder %s131, 15
        %s133 = scalar_select %p132, %s131, 15
        %s134 = smul.addr %s133, 2
        %s135 = smul.addr %s134, 4
        %s136 = scalar_lea.vmem %s0, %s135
        %s137 = smul.u32 8, %s9
      $region28: #{_lambda_.64} parent=23 // pred_fallthru
        _
    $region24: #{_lambda_.64} parent=5 // pred_fallthru
      _
    %p138 = scmp.le.s32.totalorder 1, %s9
    %p139 = scmp.lt.s32.totalorder %s9, 3
    %p140 = pnand %p138, %p139
    %p141 = pneg %p140
    // Predicated region
    $region29: #{_lambda_.64} parent=5 // pred_check
      _
    $region30: #{_lambda_.64} parent=5 // pred_check_branch
      %143 = sbr.rel (%p140) target = $region32
    $region31: #{_lambda_.64} parent=5 // pred_region
      %s144 = ssub.s32 %s9, 1
      %s145 = smul.u32 8, %s14
      %p146 = scmp.lt.s32.totalorder %s145, 15
      %s147 = scalar_select %p146, %s145, 15
      %s148 = smul.addr %s147, 2
      %s149 = smul.addr %s148, 4
      %s150 = scalar_lea.vmem %s0, %s149
      %p151 = pneg %p35
      %p152 = pneg %p32
      %p153 = pneg %p56
      %p154 = pneg %p53
      %p155 = pneg %p77
      %p156 = pneg %p74
      %p157 = pneg %p103
      %p158 = pneg %p100
      %s159 = smul.u32 8, %s14
      %p160 = scmp.lt.s32.totalorder %s159, 15
      %s161 = scalar_select %p160, %s159, 15
      %s162 = smul.addr %s161, 4
      %s163 = scalar_lea.vmem %s3, %s162
      %s164 = smul.u32 8, %s14
      %p165 = scmp.lt.s32.totalorder %s164, 15
      %s166 = scalar_select %p165, %s164, 15
      %s167 = smul.addr %s166, 2
      %s168 = smul.addr %s167, 4
      %s169 = scalar_lea.vmem %s0, %s168
      %s170 = smul.u32 8, %s14
      %s171 = smul.u32 8, %s14
      %p172 = scmp.lt.s32.totalorder %s171, 15
      %s173 = scalar_select %p172, %s171, 15
      %s174 = smul.addr %s173, 4
      %s175 = scalar_lea.vmem %s3, %s174
      %s176 = smul.u32 8, %s14
      %v178 = vld [vmem:[%s169] sm:$0xff]
      %v179 = vld [vmem:[%s169 + $0x8] sm:$0xff]
      %v180 = vld [vmem:[%s169 + $0x10] sm:$0xff]
      %v181 = vld [vmem:[%s169 + $0x18] sm:$0xff]
      %v182 = vld [vmem:[%s169 + $0x20] sm:$0xff]
      %v183 = vld [vmem:[%s169 + $0x28] sm:$0xff]
      %v184 = vld [vmem:[%s169 + $0x30] sm:$0xff]
      %v185 = vld [vmem:[%s169 + $0x38] sm:$0xff]
      %v186 = vld [vmem:[%s1] sm:$0xf]
      %v187 = vld [vmem:[%s1 + $0x4] sm:$0xf]
      %v188 = vld [vmem:[%s1 + $0x8] sm:$0xf]
      %v189 = vld [vmem:[%s1 + $0xc] sm:$0xf]
      %v190 = vld [vmem:[%s1 + $0x10] sm:$0xf]
      %v191 = vld [vmem:[%s1 + $0x14] sm:$0xf]
      %v192 = vld [vmem:[%s1 + $0x18] sm:$0xf]
      %v193 = vld [vmem:[%s1 + $0x1c] sm:$0xf]
      %v194 = vld [vmem:[%s1 + $0x20] sm:$0xf]
      %v195 = vld [vmem:[%s1 + $0x24] sm:$0xf]
      %v196 = vld [vmem:[%s1 + $0x28] sm:$0xf]
      %v197 = vld [vmem:[%s1 + $0x2c] sm:$0xf]
      %v198 = vld [vmem:[%s1 + $0x30] sm:$0xf]
      %v199 = vld [vmem:[%s1 + $0x34] sm:$0xf]
      %v200 = vld [vmem:[%s1 + $0x38] sm:$0xf]
      %v201 = vld [vmem:[%s1 + $0x3c] sm:$0xf]
      %v202 = vld [vmem:[%s1 + $0x40] sm:$0xf]
      %v203 = vld [vmem:[%s1 + $0x44] sm:$0xf]
      %v204 = vld [vmem:[%s1 + $0x48] sm:$0xf]
      %v205 = vld [vmem:[%s1 + $0x4c] sm:$0xf]
      %v206 = vld [vmem:[%s1 + $0x50] sm:$0xf]
      %v207 = vld [vmem:[%s1 + $0x54] sm:$0xf]
      %v208 = vld [vmem:[%s1 + $0x58] sm:$0xf]
      %v209 = vld [vmem:[%s1 + $0x5c] sm:$0xf]
      %v210 = vld [vmem:[%s1 + $0x60] sm:$0xf]
      %v211 = vld [vmem:[%s1 + $0x64] sm:$0xf]
      %v212 = vld [vmem:[%s1 + $0x68] sm:$0xf]
      %v213 = vld [vmem:[%s1 + $0x6c] sm:$0xf]
      %v214 = vld [vmem:[%s1 + $0x70] sm:$0xf]
      %v215 = vld [vmem:[%s1 + $0x74] sm:$0xf]
      %v216 = vld [vmem:[%s1 + $0x78] sm:$0xf]
      %v217 = vld [vmem:[%s1 + $0x7c] sm:$0xf]
      %v218 = vld [vmem:[%s2] sm:$0x1]
      %v220 = vlaneseq
      %v221 = vshrl.u32 %v220, 7
      %v222 = vsub.s32 0, %v221
      %v223 = vrot.slane %v218, %v222
      %v233 = vunpack.c.l.b16 %v178
      %v234 = vunpack.c.h.b16 %v178
      %v235 = vunpack.c.l.b16 %v179
      %v236 = vunpack.c.h.b16 %v179
      %v237 = vunpack.c.l.b16 %v180
      %v238 = vunpack.c.h.b16 %v180
      %v239 = vunpack.c.l.b16 %v181
      %v240 = vunpack.c.h.b16 %v181
      %v241 = vunpack.c.l.b16 %v182
      %v242 = vunpack.c.h.b16 %v182
      %v243 = vunpack.c.l.b16 %v183
      %v244 = vunpack.c.h.b16 %v183
      %v245 = vunpack.c.l.b16 %v184
      %v246 = vunpack.c.h.b16 %v184
      %v247 = vunpack.c.l.b16 %v185
      %v248 = vunpack.c.h.b16 %v185
      %v249 = vpack.c.b16 %v235, %v233
      %v250 = vpack.c.b16 %v236, %v234
      %v251 = vpack.c.b16 %v239, %v237
      %v252 = vpack.c.b16 %v240, %v238
      %v253 = vpack.c.b16 %v243, %v241
      %v254 = vpack.c.b16 %v244, %v242
      %v255 = vpack.c.b16 %v247, %v245
      %v256 = vpack.c.b16 %v248, %v246
      %v297 = vunpack.c.l.b16 %v186
      %v298 = vunpack.c.l.b16 %v187
      %v299 = vunpack.c.l.b16 %v188
      %v300 = vunpack.c.l.b16 %v189
      %v301 = vunpack.c.l.b16 %v190
      %v302 = vunpack.c.l.b16 %v191
      %v303 = vunpack.c.l.b16 %v192
      %v304 = vunpack.c.l.b16 %v193
      %v305 = vunpack.c.l.b16 %v194
      %v306 = vunpack.c.l.b16 %v195
      %v307 = vunpack.c.l.b16 %v196
      %v308 = vunpack.c.l.b16 %v197
      %v309 = vunpack.c.l.b16 %v198
      %v310 = vunpack.c.l.b16 %v199
      %v311 = vunpack.c.l.b16 %v200
      %v312 = vunpack.c.l.b16 %v201
      %v313 = vunpack.c.l.b16 %v202
      %v314 = vunpack.c.l.b16 %v203
      %v315 = vunpack.c.l.b16 %v204
      %v316 = vunpack.c.l.b16 %v205
      %v317 = vunpack.c.l.b16 %v206
      %v318 = vunpack.c.l.b16 %v207
      %v319 = vunpack.c.l.b16 %v208
      %v320 = vunpack.c.l.b16 %v209
      %v321 = vunpack.c.l.b16 %v210
      %v322 = vunpack.c.l.b16 %v211
      %v323 = vunpack.c.l.b16 %v212
      %v324 = vunpack.c.l.b16 %v213
      %v325 = vunpack.c.l.b16 %v214
      %v326 = vunpack.c.l.b16 %v215
      %v327 = vunpack.c.l.b16 %v216
      %v328 = vunpack.c.l.b16 %v217
      %v329 = vpack.c.b16 %v298, %v297
      %v330 = vpack.c.b16 %v300, %v299
      %v331 = vpack.c.b16 %v302, %v301
      %v332 = vpack.c.b16 %v304, %v303
      %v333 = vpack.c.b16 %v306, %v305
      %v334 = vpack.c.b16 %v308, %v307
      %v335 = vpack.c.b16 %v310, %v309
      %v336 = vpack.c.b16 %v312, %v311
      %v337 = vpack.c.b16 %v314, %v313
      %v338 = vpack.c.b16 %v316, %v315
      %v339 = vpack.c.b16 %v318, %v317
      %v340 = vpack.c.b16 %v320, %v319
      %v341 = vpack.c.b16 %v322, %v321
      %v342 = vpack.c.b16 %v324, %v323
      %v343 = vpack.c.b16 %v326, %v325
      %v344 = vpack.c.b16 %v328, %v327
      %361 = vmatprep.subr.bf16.mxu0 0
      %362 = vmatpush1.bf16.msra.mxu0 %v329
      %363 = vmatprep.subr.bf16.mxu0 0
      %364 = vmatpush1.bf16.msra.mxu0 %v330
      %365 = vmatprep.subr.bf16.mxu0 0
      %366 = vmatpush1.bf16.msra.mxu0 %v331
      %367 = vmatprep.subr.bf16.mxu0 0
      %368 = vmatpush1.bf16.msra.mxu0 %v332
      %369 = vmatprep.subr.bf16.mxu0 0
      %370 = vmatpush1.bf16.msra.mxu0 %v333
      %371 = vmatprep.subr.bf16.mxu0 0
      %372 = vmatpush1.bf16.msra.mxu0 %v334
      %373 = vmatprep.subr.bf16.mxu0 0
      %374 = vmatpush1.bf16.msra.mxu0 %v335
      %375 = vmatprep.subr.bf16.mxu0 0
      %376 = vmatpush1.bf16.msra.mxu0 %v336
      %377 = vmatprep.subr.bf16.mxu0 0
      %378 = vmatpush1.bf16.msra.mxu0 %v337
      %379 = vmatprep.subr.bf16.mxu0 0
      %380 = vmatpush1.bf16.msra.mxu0 %v338
      %381 = vmatprep.subr.bf16.mxu0 0
      %382 = vmatpush1.bf16.msra.mxu0 %v339
      %383 = vmatprep.subr.bf16.mxu0 0
      %384 = vmatpush1.bf16.msra.mxu0 %v340
      %385 = vmatprep.subr.bf16.mxu0 0
      %386 = vmatpush1.bf16.msra.mxu0 %v341
      %387 = vmatprep.subr.bf16.mxu0 0
      %388 = vmatpush1.bf16.msra.mxu0 %v342
      %389 = vmatprep.subr.bf16.mxu0 0
      %390 = vmatpush1.bf16.msra.mxu0 %v343
      %391 = vmatprep.subr.bf16.mxu0 0
      %392 = vmatpush1.bf16.msra.mxu0 %v344
      %393 = vmatprep.mubr.bf16.mxu0 %v250
      %394 = vmatmul.mubr.bf16.gmra.mrb[0].mxu0 %v249
      %v395 = vpop.f32.mrb[0].mxu0
      %v396 = vadd.f32 %v223, %v395
      %v397 = vpop.f32.mrb[0].mxu0
      %v398 = vpop.f32.mrb[0].mxu0
      %v399 = vadd.f32 %v223, %v398
      %v400 = vpop.f32.mrb[0].mxu0
      %401 = vmatprep.mubr.bf16.mxu0 %v252
      %402 = vmatmul.mubr.bf16.gmra.mrb[0].mxu0 %v251
      %v403 = vpop.f32.mrb[0].mxu0
      %v404 = vadd.f32 %v223, %v403
      %v405 = vpop.f32.mrb[0].mxu0
      %v406 = vpop.f32.mrb[0].mxu0
      %v407 = vadd.f32 %v223, %v406
      %v408 = vpop.f32.mrb[0].mxu0
      %409 = vmatprep.mubr.bf16.mxu0 %v254
      %410 = vmatmul.mubr.bf16.gmra.mrb[0].mxu0 %v253
      %v411 = vpop.f32.mrb[0].mxu0
      %v412 = vadd.f32 %v223, %v411
      %v413 = vpop.f32.mrb[0].mxu0
      %v414 = vpop.f32.mrb[0].mxu0
      %v415 = vadd.f32 %v223, %v414
      %v416 = vpop.f32.mrb[0].mxu0
      %417 = vmatprep.mubr.bf16.mxu0 %v256
      %418 = vmatmul.mubr.bf16.gmra.mrb[0].mxu0 %v255
      %v419 = vpop.f32.mrb[0].mxu0
      %v420 = vadd.f32 %v223, %v419
      %v421 = vpop.f32.mrb[0].mxu0
      %v422 = vpop.f32.mrb[0].mxu0
      %v423 = vadd.f32 %v223, %v422
      %v424 = vpop.f32.mrb[0].mxu0
      %425 = vdwg.mxu0
      %v426 = vmax.f32 %v396, 0.0
      %v427 = vmax.f32 %v399, 0.0
      %v428 = vmax.f32 %v404, 0.0
      %v429 = vmax.f32 %v407, 0.0
      %v430 = vmax.f32 %v412, 0.0
      %v431 = vmax.f32 %v415, 0.0
      %v432 = vmax.f32 %v420, 0.0
      %v433 = vmax.f32 %v423, 0.0
      %v434 = vpack.c.bf16 %v427, %v426
      %v435 = vpack.c.bf16 %v429, %v428
      %v436 = vpack.c.bf16 %v431, %v430
      %v437 = vpack.c.bf16 %v433, %v432
      %v442 = vunpack.c.l.b16 %v434
      %v443 = vunpack.c.h.b16 %v434
      %v444 = vunpack.c.l.b16 %v435
      %v445 = vunpack.c.h.b16 %v435
      %v446 = vunpack.c.l.b16 %v436
      %v447 = vunpack.c.h.b16 %v436
      %v448 = vunpack.c.l.b16 %v437
      %v449 = vunpack.c.h.b16 %v437
      %v450 = vpack.c.b16 %v442, %v442
      %v451 = vpack.c.b16 %v443, %v443
      %v452 = vpack.c.b16 %v444, %v444
      %v453 = vpack.c.b16 %v445, %v445
      %v454 = vpack.c.b16 %v446, %v446
      %v455 = vpack.c.b16 %v447, %v447
      %v456 = vpack.c.b16 %v448, %v448
      %v457 = vpack.c.b16 %v449, %v449
      %466 = vst [vmem:[%s175] sm:$0xf] %v450
      %467 = vst [vmem:[%s175 + $0x4] sm:$0xf] %v451
      %468 = vst [vmem:[%s175 + $0x8] sm:$0xf] %v452
      %469 = vst [vmem:[%s175 + $0xc] sm:$0xf] %v453
      %470 = vst [vmem:[%s175 + $0x10] sm:$0xf] %v454
      %471 = vst [vmem:[%s175 + $0x14] sm:$0xf] %v455
      %472 = vst [vmem:[%s175 + $0x18] sm:$0xf] %v456
      %473 = vst [vmem:[%s175 + $0x1c] sm:$0xf] %v457
      %s474 = smul.u32 8, %s14
      %p475 = scmp.lt.s32.totalorder %s474, 15
      %s476 = scalar_select %p475, %s474, 15
      %s477 = smul.addr %s476, 4
      %s478 = scalar_lea.vmem %s3, %s477
      // Predicated region
      $region33: #{_lambda_.64} parent=31 // pred_check
        %p479 = pneg %p100
      $region34: #{_lambda_.64} parent=31 // pred_check_branch
        %481 = sbr.rel (%p479) target = $region36
      $region35: #{_lambda_.64} parent=31 // pred_region
        %s482 = smul.u32 8, %s14
      $region36: #{_lambda_.64} parent=31 // pred_fallthru
        _
    $region32: #{_lambda_.64} parent=5 // pred_fallthru
      _
    %p483 = scmp.le.s32.totalorder 2, %s9
    // Predicated region
    $region37: #{_lambda_.64} parent=5 // pred_check
      %p484 = pneg %p483
    $region38: #{_lambda_.64} parent=5 // pred_check_branch
      %486 = sbr.rel (%p484) target = $region40
    $region39: #{_lambda_.64} parent=5 // pred_region
      %s487 = ssub.s32 %s9, 2
      // Predicated region
      $region41: #{_lambda_.64} parent=39 // pred_check
        %p488 = pneg %p106
      $region42: #{_lambda_.64} parent=39 // pred_check_branch
        %490 = sbr.rel (%p488) target = $region44
      $region43: #{_lambda_.64} parent=39 // pred_region
        %s491 = smul.u32 8, %s15
        %p492 = scmp.lt.s32.totalorder %s491, 15
        %s493 = scalar_select %p492, %s491, 15
        %s494 = smul.addr %s493, 4
        %s495 = scalar_lea.vmem %s3, %s494
      $region44: #{_lambda_.64} parent=39 // pred_fallthru
        _
    $region40: #{_lambda_.64} parent=5 // pred_fallthru
      _
  $region6: #{_lambda_.64} parent=0 // loop_footer
    %s13 = sadd.s32 1, %s9
  $region7: #{_lambda_.64} parent=0 // loop_footer_branch
    %8 = sbr.rel target = $region3
  $region8: #{_lambda_.64} parent=0 // loop_exit
    _

// kernel: _lambda_.62
$region0: #{_lambda_.62}
  #allocation0 [shape = 'u32[]', space=smem, size = 0x4, offset = 0x4, fixed_abs, tag = 'smem constant byte address 0x4 - core index']
  #allocation1 [shape = 'u32[144,128]{1,0:T(1,128)}', space=vmem, size = 0x12000, scoped, tag = 'internal scratch']
  %s0 = inlined_call_operand.vmem [shape: bf16[128,128], index: 0, kind: input, shape index: {}]
  %s1 = inlined_call_operand.vmem [shape: bf16[128,128], index: 1, kind: input, shape index: {}]
  %s2 = inlined_call_operand.vmem [shape: bf16[128,128], index: 2, kind: input, shape index: {}]
  %s3 = inlined_call_operand.vmem [shape: bf16[128,128], index: 3, kind: input, shape index: {}]
  %s4 = inlined_call_operand.vmem [shape: bf16[128,128], index: 4, kind: output, shape index: {}]
  %s5 = sld [smem:[#allocation0]]
  $region49: #{_lambda_.62} parent=0
    _
  %s7 = ssub.s32 1, %s5
  %s8 = scalar_select 0, %s7, %s5
  loop: start=0, step=1, limit=4
  $region2: #{_lambda_.62} parent=0 // loop_pre_header
    _
  $region3: #{_lambda_.62} parent=0 // loop_header
    %s10 = sphi 0, %s14
    %p11 = scmp.ge.s32.totalorder %s10, 4
    %s20 = sphi 0, %s22
    %s23 = sphi 0, %s20
    %s24 = sphi 0, %s23
    %s40 = sphi 0, %s24
    %s46 = sphi 0, %s48
    %s49 = sphi 0, %s46
    %s50 = sphi 0, %s49
    %s66 = sphi 0, %s50
    %s72 = sphi 0, %s74
    %s75 = sphi 0, %s72
    %s76 = sphi 0, %s75
    %s92 = sphi 0, %s76
    %s98 = sphi 0, %s100
    %s101 = sphi 0, %s98
    %s102 = sphi 0, %s101
    %s118 = sphi 0, %s102
    %s124 = sphi 0, %s126
    %s127 = sphi 0, %s124
    %s128 = sphi 0, %s127
    %s144 = sphi 0, %s128
  $region4: #{_lambda_.62} parent=0 // loop_header_branch
    %13 = sbr.rel (%p11) target = $region8
  $region5: #{_lambda_.62} parent=0 // loop_body
    %s15 = ssub.s32 %s10, 1
    %s16 = ssub.s32 %s10, 2
    %s17 = sadd.s32 %s10, 1
    %s18 = ssub.s32 %s10, %s17
    %p19 = scmp.eq.s32.totalorder %s18, 0
    %s21 = sadd.s32 %s20, 1
    %s22 = scalar_select %p19, %s20, %s21
    %p25 = pneg %p19
    %p26 = scmp.eq.s32.totalorder %s10, 1
    %p27 = por %p25, %p26
    %p28 = scmp.ne.s32.totalorder %s20, %s23
    %p29 = scmp.eq.s32.totalorder %s10, 0
    %p30 = por %p28, %p29
    %p31 = scmp.ne.s32.totalorder %s20, %s23
    %p32 = scmp.eq.s32.totalorder %s15, 1
    %p33 = por %p31, %p32
    %p34 = scmp.ne.s32.totalorder %s23, %s24
    %p35 = scmp.eq.s32.totalorder %s15, 0
    %p36 = por %p34, %p35
    %p37 = scmp.ne.s32.totalorder %s23, %s24
    %p38 = scmp.eq.s32.totalorder %s16, 1
    %p39 = por %p37, %p38
    %p41 = scmp.ne.s32.totalorder %s24, %s40
    %p42 = scmp.eq.s32.totalorder %s16, 0
    %p43 = por %p41, %p42
    %s44 = ssub.s32 %s10, %s17
    %p45 = scmp.eq.s32.totalorder %s44, 0
    %s47 = sadd.s32 %s46, 1
    %s48 = scalar_select %p45, %s46, %s47
    %p51 = pneg %p45
    %p52 = scmp.eq.s32.totalorder %s10, 1
    %p53 = por %p51, %p52
    %p54 = scmp.ne.s32.totalorder %s46, %s49
    %p55 = scmp.eq.s32.totalorder %s10, 0
    %p56 = por %p54, %p55
    %p57 = scmp.ne.s32.totalorder %s46, %s49
    %p58 = scmp.eq.s32.totalorder %s15, 1
    %p59 = por %p57, %p58
    %p60 = scmp.ne.s32.totalorder %s49, %s50
    %p61 = scmp.eq.s32.totalorder %s15, 0
    %p62 = por %p60, %p61
    %p63 = scmp.ne.s32.totalorder %s49, %s50
    %p64 = scmp.eq.s32.totalorder %s16, 1
    %p65 = por %p63, %p64
    %p67 = scmp.ne.s32.totalorder %s50, %s66
    %p68 = scmp.eq.s32.totalorder %s16, 0
    %p69 = por %p67, %p68
    %s70 = ssub.s32 %s10, %s17
    %p71 = scmp.eq.s32.totalorder %s70, 0
    %s73 = sadd.s32 %s72, 1
    %s74 = scalar_select %p71, %s72, %s73
    %p77 = pneg %p71
    %p78 = scmp.eq.s32.totalorder %s10, 1
    %p79 = por %p77, %p78
    %p80 = scmp.ne.s32.totalorder %s72, %s75
    %p81 = scmp.eq.s32.totalorder %s10, 0
    %p82 = por %p80, %p81
    %p83 = scmp.ne.s32.totalorder %s72, %s75
    %p84 = scmp.eq.s32.totalorder %s15, 1
    %p85 = por %p83, %p84
    %p86 = scmp.ne.s32.totalorder %s75, %s76
    %p87 = scmp.eq.s32.totalorder %s15, 0
    %p88 = por %p86, %p87
    %p89 = scmp.ne.s32.totalorder %s75, %s76
    %p90 = scmp.eq.s32.totalorder %s16, 1
    %p91 = por %p89, %p90
    %p93 = scmp.ne.s32.totalorder %s76, %s92
    %p94 = scmp.eq.s32.totalorder %s16, 0
    %p95 = por %p93, %p94
    %s96 = ssub.s32 %s10, %s17
    %p97 = scmp.eq.s32.totalorder %s96, 0
    %s99 = sadd.s32 %s98, 1
    %s100 = scalar_select %p97, %s98, %s99
    %p103 = pneg %p97
    %p104 = scmp.eq.s32.totalorder %s10, 1
    %p105 = por %p103, %p104
    %p106 = scmp.ne.s32.totalorder %s98, %s101
    %p107 = scmp.eq.s32.totalorder %s10, 0
    %p108 = por %p106, %p107
    %p109 = scmp.ne.s32.totalorder %s98, %s101
    %p110 = scmp.eq.s32.totalorder %s15, 1
    %p111 = por %p109, %p110
    %p112 = scmp.ne.s32.totalorder %s101, %s102
    %p113 = scmp.eq.s32.totalorder %s15, 0
    %p114 = por %p112, %p113
    %p115 = scmp.ne.s32.totalorder %s101, %s102
    %p116 = scmp.eq.s32.totalorder %s16, 1
    %p117 = por %p115, %p116
    %p119 = scmp.ne.s32.totalorder %s102, %s118
    %p120 = scmp.eq.s32.totalorder %s16, 0
    %p121 = por %p119, %p120
    %s122 = ssub.s32 %s10, %s17
    %p123 = scmp.eq.s32.totalorder %s122, 0
    %s125 = sadd.s32 %s124, 1
    %s126 = scalar_select %p123, %s124, %s125
    %p129 = pneg %p123
    %p130 = scmp.eq.s32.totalorder %s10, 1
    %p131 = por %p129, %p130
    %p132 = scmp.ne.s32.totalorder %s124, %s127
    %p133 = scmp.eq.s32.totalorder %s10, 0
    %p134 = por %p132, %p133
    %p135 = scmp.ne.s32.totalorder %s124, %s127
    %p136 = scmp.eq.s32.totalorder %s15, 1
    %p137 = por %p135, %p136
    %p138 = scmp.ne.s32.totalorder %s127, %s128
    %p139 = scmp.eq.s32.totalorder %s15, 0
    %p140 = por %p138, %p139
    %p141 = scmp.ne.s32.totalorder %s127, %s128
    %p142 = scmp.eq.s32.totalorder %s16, 1
    %p143 = por %p141, %p142
    %p145 = scmp.ne.s32.totalorder %s128, %s144
    %p146 = scmp.eq.s32.totalorder %s16, 0
    %p147 = por %p145, %p146
    %p148 = scmp.le.s32.totalorder 1, %s10
    %p149 = scmp.lt.s32.totalorder %s10, 3
    %p150 = pnand %p148, %p149
    %p151 = pneg %p150
    // Predicated region
    $region9: #{_lambda_.62} parent=5 // pred_check
      _
    $region10: #{_lambda_.62} parent=5 // pred_check_branch
      %153 = sbr.rel (%p150) target = $region12
    $region11: #{_lambda_.62} parent=5 // pred_region
      %s154 = ssub.s32 %s10, 1
    $region12: #{_lambda_.62} parent=5 // pred_fallthru
      _
    %p155 = scmp.lt.s32.totalorder %s10, 2
    // Predicated region
    $region13: #{_lambda_.62} parent=5 // pred_check
      %p156 = pneg %p155
    $region14: #{_lambda_.62} parent=5 // pred_check_branch
      %158 = sbr.rel (%p156) target = $region16
    $region15: #{_lambda_.62} parent=5 // pred_region
      // Predicated region
      $region17: #{_lambda_.62} parent=15 // pred_check
        %p159 = pneg %p30
      $region18: #{_lambda_.62} parent=15 // pred_check_branch
        %161 = sbr.rel (%p159) target = $region20
      $region19: #{_lambda_.62} parent=15 // pred_region
        %s162 = smul.u32 8, %s10
        %p163 = scmp.lt.s32.totalorder %s162, 15
        %s164 = scalar_select %p163, %s162, 15
        %s165 = smul.addr %s164, 4
        %s166 = scalar_lea.vmem %s0, %s165
        %s167 = smul.u32 8, %s10
      $region20: #{_lambda_.62} parent=15 // pred_fallthru
        _
      // Predicated region
      $region21: #{_lambda_.62} parent=15 // pred_check
        %p168 = pneg %p56
      $region22: #{_lambda_.62} parent=15 // pred_check_branch
        %170 = sbr.rel (%p168) target = $region24
      $region23: #{_lambda_.62} parent=15 // pred_region
        %s171 = smul.u32 8, %s10
        %p172 = scmp.lt.s32.totalorder %s171, 15
        %s173 = scalar_select %p172, %s171, 15
        %s174 = smul.addr %s173, 4
        %s175 = scalar_lea.vmem %s1, %s174
        %s176 = smul.u32 8, %s10
      $region24: #{_lambda_.62} parent=15 // pred_fallthru
        _
      // Predicated region
      $region25: #{_lambda_.62} parent=15 // pred_check
        %p177 = pneg %p82
      $region26: #{_lambda_.62} parent=15 // pred_check_branch
        %179 = sbr.rel (%p177) target = $region28
      $region27: #{_lambda_.62} parent=15 // pred_region
        %s180 = smul.u32 8, %s10
        %p181 = scmp.lt.s32.totalorder %s180, 15
        %s182 = scalar_select %p181, %s180, 15
        %s183 = smul.addr %s182, 4
        %s184 = scalar_lea.vmem %s2, %s183
        %s185 = smul.u32 8, %s10
      $region28: #{_lambda_.62} parent=15 // pred_fallthru
        _
      // Predicated region
      $region29: #{_lambda_.62} parent=15 // pred_check
        %p186 = pneg %p108
      $region30: #{_lambda_.62} parent=15 // pred_check_branch
        %188 = sbr.rel (%p186) target = $region32
      $region31: #{_lambda_.62} parent=15 // pred_region
        %s189 = smul.u32 8, %s10
        %p190 = scmp.lt.s32.totalorder %s189, 15
        %s191 = scalar_select %p190, %s189, 15
        %s192 = smul.addr %s191, 4
        %s193 = scalar_lea.vmem %s3, %s192
        %s194 = smul.u32 8, %s10
      $region32: #{_lambda_.62} parent=15 // pred_fallthru
        _
    $region16: #{_lambda_.62} parent=5 // pred_fallthru
      _
    %p195 = scmp.le.s32.totalorder 1, %s10
    %p196 = scmp.lt.s32.totalorder %s10, 3
    %p197 = pnand %p195, %p196
    %p198 = pneg %p197
    // Predicated region
    $region33: #{_lambda_.62} parent=5 // pred_check
      _
    $region34: #{_lambda_.62} parent=5 // pred_check_branch
      %200 = sbr.rel (%p197) target = $region36
    $region35: #{_lambda_.62} parent=5 // pred_region
      %s201 = ssub.s32 %s10, 1
      %s202 = smul.u32 8, %s15
      %p203 = scmp.lt.s32.totalorder %s202, 15
      %s204 = scalar_select %p203, %s202, 15
      %s205 = smul.addr %s204, 4
      %s206 = scalar_lea.vmem %s0, %s205
      %p207 = pneg %p36
      %p208 = pneg %p33
      %s209 = smul.u32 8, %s15
      %p210 = scmp.lt.s32.totalorder %s209, 15
      %s211 = scalar_select %p210, %s209, 15
      %s212 = smul.addr %s211, 4
      %s213 = scalar_lea.vmem %s1, %s212
      %p214 = pneg %p62
      %p215 = pneg %p59
      %s216 = smul.u32 8, %s15
      %p217 = scmp.lt.s32.totalorder %s216, 15
      %s218 = scalar_select %p217, %s216, 15
      %s219 = smul.addr %s218, 4
      %s220 = scalar_lea.vmem %s2, %s219
      %p221 = pneg %p88
      %p222 = pneg %p85
      %s223 = smul.u32 8, %s15
      %p224 = scmp.lt.s32.totalorder %s223, 15
      %s225 = scalar_select %p224, %s223, 15
      %s226 = smul.addr %s225, 4
      %s227 = scalar_lea.vmem %s3, %s226
      %p228 = pneg %p114
      %p229 = pneg %p111
      %p230 = pneg %p140
      %p231 = pneg %p137
      %s232 = smul.u32 8, %s15
      %p233 = scmp.lt.s32.totalorder %s232, 15
      %s234 = scalar_select %p233, %s232, 15
      %s235 = smul.addr %s234, 4
      %s236 = scalar_lea.vmem %s4, %s235
      %s237 = smul.u32 8, %s15
      %p238 = scmp.lt.s32.totalorder %s237, 15
      %s239 = scalar_select %p238, %s237, 15
      %s240 = smul.addr %s239, 4
      %s241 = scalar_lea.vmem %s0, %s240
      %s242 = smul.u32 8, %s15
      %s243 = smul.u32 8, %s15
      %p244 = scmp.lt.s32.totalorder %s243, 15
      %s245 = scalar_select %p244, %s243, 15
      %s246 = smul.addr %s245, 4
      %s247 = scalar_lea.vmem %s1, %s246
      %s248 = smul.u32 8, %s15
      %s249 = smul.u32 8, %s15
      %p250 = scmp.lt.s32.totalorder %s249, 15
      %s251 = scalar_select %p250, %s249, 15
      %s252 = smul.addr %s251, 4
      %s253 = scalar_lea.vmem %s2, %s252
      %s254 = smul.u32 8, %s15
      %s255 = smul.u32 8, %s15
      %p256 = scmp.lt.s32.totalorder %s255, 15
      %s257 = scalar_select %p256, %s255, 15
      %s258 = smul.addr %s257, 4
      %s259 = scalar_lea.vmem %s3, %s258
      %s260 = smul.u32 8, %s15
      %s261 = smul.u32 8, %s15
      %p262 = scmp.lt.s32.totalorder %s261, 15
      %s263 = scalar_select %p262, %s261, 15
      %s264 = smul.addr %s263, 4
      %s265 = scalar_lea.vmem %s4, %s264
      %s266 = smul.u32 8, %s15
      %v267 = vld [vmem:[%s241] sm:$0xf]
      %v268 = vld [vmem:[%s241 + $0x4] sm:$0xf]
      %v269 = vld [vmem:[%s241 + $0x8] sm:$0xf]
      %v270 = vld [vmem:[%s241 + $0xc] sm:$0xf]
      %v271 = vld [vmem:[%s241 + $0x10] sm:$0xf]
      %v272 = vld [vmem:[%s241 + $0x14] sm:$0xf]
      %v273 = vld [vmem:[%s241 + $0x18] sm:$0xf]
      %v274 = vld [vmem:[%s241 + $0x1c] sm:$0xf]
      %v275 = vld [vmem:[%s247] sm:$0xf]
      %v276 = vld [vmem:[%s247 + $0x4] sm:$0xf]
      %v277 = vld [vmem:[%s247 + $0x8] sm:$0xf]
      %v278 = vld [vmem:[%s247 + $0xc] sm:$0xf]
      %v279 = vld [vmem:[%s247 + $0x10] sm:$0xf]
      %v280 = vld [vmem:[%s247 + $0x14] sm:$0xf]
      %v281 = vld [vmem:[%s247 + $0x18] sm:$0xf]
      %v282 = vld [vmem:[%s247 + $0x1c] sm:$0xf]
      %v283 = vmax.bf16 %v267, %v275
      %v284 = vmax.bf16 %v268, %v276
      %v285 = vmax.bf16 %v269, %v277
      %v286 = vmax.bf16 %v270, %v278
      %v287 = vmax.bf16 %v271, %v279
      %v288 = vmax.bf16 %v272, %v280
      %v289 = vmax.bf16 %v273, %v281
      %v290 = vmax.bf16 %v274, %v282
      %v291 = vld [vmem:[%s253] sm:$0xf]
      %v292 = vld [vmem:[%s253 + $0x4] sm:$0xf]
      %v293 = vld [vmem:[%s253 + $0x8] sm:$0xf]
      %v294 = vld [vmem:[%s253 + $0xc] sm:$0xf]
      %v295 = vld [vmem:[%s253 + $0x10] sm:$0xf]
      %v296 = vld [vmem:[%s253 + $0x14] sm:$0xf]
      %v297 = vld [vmem:[%s253 + $0x18] sm:$0xf]
      %v298 = vld [vmem:[%s253 + $0x1c] sm:$0xf]
      %v299 = vmax.bf16 %v283, %v291
      %v300 = vmax.bf16 %v284, %v292
      %v301 = vmax.bf16 %v285, %v293
      %v302 = vmax.bf16 %v286, %v294
      %v303 = vmax.bf16 %v287, %v295
      %v304 = vmax.bf16 %v288, %v296
      %v305 = vmax.bf16 %v289, %v297
      %v306 = vmax.bf16 %v290, %v298
      %v307 = vld [vmem:[%s259] sm:$0xf]
      %v308 = vld [vmem:[%s259 + $0x4] sm:$0xf]
      %v309 = vld [vmem:[%s259 + $0x8] sm:$0xf]
      %v310 = vld [vmem:[%s259 + $0xc] sm:$0xf]
      %v311 = vld [vmem:[%s259 + $0x10] sm:$0xf]
      %v312 = vld [vmem:[%s259 + $0x14] sm:$0xf]
      %v313 = vld [vmem:[%s259 + $0x18] sm:$0xf]
      %v314 = vld [vmem:[%s259 + $0x1c] sm:$0xf]
      %v315 = vmax.bf16 %v299, %v307
      %v316 = vmax.bf16 %v300, %v308
      %v317 = vmax.bf16 %v301, %v309
      %v318 = vmax.bf16 %v302, %v310
      %v319 = vmax.bf16 %v303, %v311
      %v320 = vmax.bf16 %v304, %v312
      %v321 = vmax.bf16 %v305, %v313
      %v322 = vmax.bf16 %v306, %v314
      %323 = vst [vmem:[%s265] sm:$0xf] %v315
      %324 = vst [vmem:[%s265 + $0x4] sm:$0xf] %v316
      %325 = vst [vmem:[%s265 + $0x8] sm:$0xf] %v317
      %326 = vst [vmem:[%s265 + $0xc] sm:$0xf] %v318
      %327 = vst [vmem:[%s265 + $0x10] sm:$0xf] %v319
      %328 = vst [vmem:[%s265 + $0x14] sm:$0xf] %v320
      %329 = vst [vmem:[%s265 + $0x18] sm:$0xf] %v321
      %330 = vst [vmem:[%s265 + $0x1c] sm:$0xf] %v322
      %s331 = smul.u32 8, %s15
      %p332 = scmp.lt.s32.totalorder %s331, 15
      %s333 = scalar_select %p332, %s331, 15
      %s334 = smul.addr %s333, 4
      %s335 = scalar_lea.vmem %s4, %s334
      // Predicated region
      $region37: #{_lambda_.62} parent=35 // pred_check
        %p336 = pneg %p137
      $region38: #{_lambda_.62} parent=35 // pred_check_branch
        %338 = sbr.rel (%p336) target = $region40
      $region39: #{_lambda_.62} parent=35 // pred_region
        %s339 = smul.u32 8, %s15
      $region40: #{_lambda_.62} parent=35 // pred_fallthru
        _
    $region36: #{_lambda_.62} parent=5 // pred_fallthru
      _
    %p340 = scmp.le.s32.totalorder 2, %s10
    // Predicated region
    $region41: #{_lambda_.62} parent=5 // pred_check
      %p341 = pneg %p340
    $region42: #{_lambda_.62} parent=5 // pred_check_branch
      %343 = sbr.rel (%p341) target = $region44
    $region43: #{_lambda_.62} parent=5 // pred_region
      %s344 = ssub.s32 %s10, 2
      // Predicated region
      $region45: #{_lambda_.62} parent=43 // pred_check
        %p345 = pneg %p143
      $region46: #{_lambda_.62} parent=43 // pred_check_branch
        %347 = sbr.rel (%p345) target = $region48
      $region47: #{_lambda_.62} parent=43 // pred_region
        %s348 = smul.u32 8, %s16
        %p349 = scmp.lt.s32.totalorder %s348, 15
        %s350 = scalar_select %p349, %s348, 15
        %s351 = smul.addr %s350, 4
        %s352 = scalar_lea.vmem %s4, %s351
      $region48: #{_lambda_.62} parent=43 // pred_fallthru
        _
    $region44: #{_lambda_.62} parent=5 // pred_fallthru
      _
  $region6: #{_lambda_.62} parent=0 // loop_footer
    %s14 = sadd.s32 1, %s10
  $region7: #{_lambda_.62} parent=0 // loop_footer_branch
    %9 = sbr.rel target = $region3
  $region8: #{_lambda_.62} parent=0 // loop_exit
    _

// kernel: _lambda_.65
$region0: #{_lambda_.65}
  #allocation0 [shape = 'u32[]', space=smem, size = 0x4, offset = 0x4, fixed_abs, tag = 'smem constant byte address 0x4 - core index']
  #allocation1 [shape = 'u32[144,128]{1,0:T(1,128)}', space=vmem, size = 0x12000, scoped, tag = 'internal scratch']
  %s0 = inlined_call_operand.vmem [shape: bf16[128,128], index: 0, kind: input, shape index: {}]
  %s1 = inlined_call_operand.vmem [shape: bf16[128,128], index: 1, kind: input, shape index: {}]
  %s2 = inlined_call_operand.vmem [shape: f32[1,128], index: 2, kind: input, shape index: {}]
  %s3 = inlined_call_operand.vmem [shape: bf16[128,128], index: 3, kind: input, shape index: {}]
  %s4 = inlined_call_operand.vmem [shape: bf16[128,128], index: 4, kind: output, shape index: {}]
  %s5 = sld [smem:[#allocation0]]
  $region49: #{_lambda_.65} parent=0
    _
  %s7 = ssub.s32 1, %s5
  %s8 = scalar_select 0, %s7, %s5
  loop: start=0, step=1, limit=4
  $region2: #{_lambda_.65} parent=0 // loop_pre_header
    _
  $region3: #{_lambda_.65} parent=0 // loop_header
    %s10 = sphi 0, %s14
    %p11 = scmp.ge.s32.totalorder %s10, 4
    %s20 = sphi 0, %s22
    %s23 = sphi 0, %s20
    %s24 = sphi 0, %s23
    %s40 = sphi 0, %s24
    %s44 = sphi 0, %s44
    %s46 = sphi 0, %s44
    %s47 = sphi 0, %s46
    %s61 = sphi 0, %s47
    %s65 = sphi 0, %s65
    %s67 = sphi 0, %s65
    %s68 = sphi 0, %s67
    %s82 = sphi 0, %s68
    %s88 = sphi 0, %s90
    %s91 = sphi 0, %s88
    %s92 = sphi 0, %s91
    %s108 = sphi 0, %s92
    %s114 = sphi 0, %s116
    %s117 = sphi 0, %s114
    %s118 = sphi 0, %s117
    %s134 = sphi 0, %s118
  $region4: #{_lambda_.65} parent=0 // loop_header_branch
    %13 = sbr.rel (%p11) target = $region8
  $region5: #{_lambda_.65} parent=0 // loop_body
    %s15 = ssub.s32 %s10, 1
    %s16 = ssub.s32 %s10, 2
    %s17 = sadd.s32 %s10, 1
    %s18 = ssub.s32 %s10, %s17
    %p19 = scmp.eq.s32.totalorder %s18, 0
    %s21 = sadd.s32 %s20, 1
    %s22 = scalar_select %p19, %s20, %s21
    %p25 = pneg %p19
    %p26 = scmp.eq.s32.totalorder %s10, 1
    %p27 = por %p25, %p26
    %p28 = scmp.ne.s32.totalorder %s20, %s23
    %p29 = scmp.eq.s32.totalorder %s10, 0
    %p30 = por %p28, %p29
    %p31 = scmp.ne.s32.totalorder %s20, %s23
    %p32 = scmp.eq.s32.totalorder %s15, 1
    %p33 = por %p31, %p32
    %p34 = scmp.ne.s32.totalorder %s23, %s24
    %p35 = scmp.eq.s32.totalorder %s15, 0
    %p36 = por %p34, %p35
    %p37 = scmp.ne.s32.totalorder %s23, %s24
    %p38 = scmp.eq.s32.totalorder %s16, 1
    %p39 = por %p37, %p38
    %p41 = scmp.ne.s32.totalorder %s24, %s40
    %p42 = scmp.eq.s32.totalorder %s16, 0
    %p43 = por %p41, %p42
    %s45 = sadd.s32 %s44, 1
    %p48 = scmp.eq.s32.totalorder %s10, 1
    %p49 = scmp.ne.s32.totalorder %s44, %s46
    %p50 = scmp.eq.s32.totalorder %s10, 0
    %p51 = por %p49, %p50
    %p52 = scmp.ne.s32.totalorder %s44, %s46
    %p53 = scmp.eq.s32.totalorder %s15, 1
    %p54 = por %p52, %p53
    %p55 = scmp.ne.s32.totalorder %s46, %s47
    %p56 = scmp.eq.s32.totalorder %s15, 0
    %p57 = por %p55, %p56
    %p58 = scmp.ne.s32.totalorder %s46, %s47
    %p59 = scmp.eq.s32.totalorder %s16, 1
    %p60 = por %p58, %p59
    %p62 = scmp.ne.s32.totalorder %s47, %s61
    %p63 = scmp.eq.s32.totalorder %s16, 0
    %p64 = por %p62, %p63
    %s66 = sadd.s32 %s65, 1
    %p69 = scmp.eq.s32.totalorder %s10, 1
    %p70 = scmp.ne.s32.totalorder %s65, %s67
    %p71 = scmp.eq.s32.totalorder %s10, 0
    %p72 = por %p70, %p71
    %p73 = scmp.ne.s32.totalorder %s65, %s67
    %p74 = scmp.eq.s32.totalorder %s15, 1
    %p75 = por %p73, %p74
    %p76 = scmp.ne.s32.totalorder %s67, %s68
    %p77 = scmp.eq.s32.totalorder %s15, 0
    %p78 = por %p76, %p77
    %p79 = scmp.ne.s32.totalorder %s67, %s68
    %p80 = scmp.eq.s32.totalorder %s16, 1
    %p81 = por %p79, %p80
    %p83 = scmp.ne.s32.totalorder %s68, %s82
    %p84 = scmp.eq.s32.totalorder %s16, 0
    %p85 = por %p83, %p84
    %s86 = ssub.s32 %s10, %s17
    %p87 = scmp.eq.s32.totalorder %s86, 0
    %s89 = sadd.s32 %s88, 1
    %s90 = scalar_select %p87, %s88, %s89
    %p93 = pneg %p87
    %p94 = scmp.eq.s32.totalorder %s10, 1
    %p95 = por %p93, %p94
    %p96 = scmp.ne.s32.totalorder %s88, %s91
    %p97 = scmp.eq.s32.totalorder %s10, 0
    %p98 = por %p96, %p97
    %p99 = scmp.ne.s32.totalorder %s88, %s91
    %p100 = scmp.eq.s32.totalorder %s15, 1
    %p101 = por %p99, %p100
    %p102 = scmp.ne.s32.totalorder %s91, %s92
    %p103 = scmp.eq.s32.totalorder %s15, 0
    %p104 = por %p102, %p103
    %p105 = scmp.ne.s32.totalorder %s91, %s92
    %p106 = scmp.eq.s32.totalorder %s16, 1
    %p107 = por %p105, %p106
    %p109 = scmp.ne.s32.totalorder %s92, %s108
    %p110 = scmp.eq.s32.totalorder %s16, 0
    %p111 = por %p109, %p110
    %s112 = ssub.s32 %s10, %s17
    %p113 = scmp.eq.s32.totalorder %s112, 0
    %s115 = sadd.s32 %s114, 1
    %s116 = scalar_select %p113, %s114, %s115
    %p119 = pneg %p113
    %p120 = scmp.eq.s32.totalorder %s10, 1
    %p121 = por %p119, %p120
    %p122 = scmp.ne.s32.totalorder %s114, %s117
    %p123 = scmp.eq.s32.totalorder %s10, 0
    %p124 = por %p122, %p123
    %p125 = scmp.ne.s32.totalorder %s114, %s117
    %p126 = scmp.eq.s32.totalorder %s15, 1
    %p127 = por %p125, %p126
    %p128 = scmp.ne.s32.totalorder %s117, %s118
    %p129 = scmp.eq.s32.totalorder %s15, 0
    %p130 = por %p128, %p129
    %p131 = scmp.ne.s32.totalorder %s117, %s118
    %p132 = scmp.eq.s32.totalorder %s16, 1
    %p133 = por %p131, %p132
    %p135 = scmp.ne.s32.totalorder %s118, %s134
    %p136 = scmp.eq.s32.totalorder %s16, 0
    %p137 = por %p135, %p136
    %p138 = scmp.le.s32.totalorder 1, %s10
    %p139 = scmp.lt.s32.totalorder %s10, 3
    %p140 = pnand %p138, %p139
    %p141 = pneg %p140
    // Predicated region
    $region9: #{_lambda_.65} parent=5 // pred_check
      _
    $region10: #{_lambda_.65} parent=5 // pred_check_branch
      %143 = sbr.rel (%p140) target = $region12
    $region11: #{_lambda_.65} parent=5 // pred_region
      %s144 = ssub.s32 %s10, 1
      // Predicated region
      $region13: #{_lambda_.65} parent=11 // pred_check
        %p145 = pneg %p57
      $region14: #{_lambda_.65} parent=11 // pred_check_branch
        %147 = sbr.rel (%p145) target = $region16
      $region15: #{_lambda_.65} parent=11 // pred_region
        _
      $region16: #{_lambda_.65} parent=11 // pred_fallthru
        _
      // Predicated region
      $region17: #{_lambda_.65} parent=11 // pred_check
        %p148 = pneg %p78
      $region18: #{_lambda_.65} parent=11 // pred_check_branch
        %150 = sbr.rel (%p148) target = $region20
      $region19: #{_lambda_.65} parent=11 // pred_region
        _
      $region20: #{_lambda_.65} parent=11 // pred_fallthru
        _
    $region12: #{_lambda_.65} parent=5 // pred_fallthru
      _
    %p151 = scmp.lt.s32.totalorder %s10, 2
    // Predicated region
    $region21: #{_lambda_.65} parent=5 // pred_check
      %p152 = pneg %p151
    $region22: #{_lambda_.65} parent=5 // pred_check_branch
      %154 = sbr.rel (%p152) target = $region24
    $region23: #{_lambda_.65} parent=5 // pred_region
      // Predicated region
      $region25: #{_lambda_.65} parent=23 // pred_check
        %p155 = pneg %p30
      $region26: #{_lambda_.65} parent=23 // pred_check_branch
        %157 = sbr.rel (%p155) target = $region28
      $region27: #{_lambda_.65} parent=23 // pred_region
        %s158 = smul.u32 8, %s10
        %p159 = scmp.lt.s32.totalorder %s158, 15
        %s160 = scalar_select %p159, %s158, 15
        %s161 = smul.addr %s160, 4
        %s162 = scalar_lea.vmem %s0, %s161
        %s163 = smul.u32 8, %s10
      $region28: #{_lambda_.65} parent=23 // pred_fallthru
        _
      // Predicated region
      $region29: #{_lambda_.65} parent=23 // pred_check
        %p164 = pneg %p98
      $region30: #{_lambda_.65} parent=23 // pred_check_branch
        %166 = sbr.rel (%p164) target = $region32
      $region31: #{_lambda_.65} parent=23 // pred_region
        %s167 = smul.u32 8, %s10
        %p168 = scmp.lt.s32.totalorder %s167, 15
        %s169 = scalar_select %p168, %s167, 15
        %s170 = smul.addr %s169, 4
        %s171 = scalar_lea.vmem %s3, %s170
        %s172 = smul.u32 8, %s10
      $region32: #{_lambda_.65} parent=23 // pred_fallthru
        _
    $region24: #{_lambda_.65} parent=5 // pred_fallthru
      _
    %p173 = scmp.le.s32.totalorder 1, %s10
    %p174 = scmp.lt.s32.totalorder %s10, 3
    %p175 = pnand %p173, %p174
    %p176 = pneg %p175
    // Predicated region
    $region33: #{_lambda_.65} parent=5 // pred_check
      _
    $region34: #{_lambda_.65} parent=5 // pred_check_branch
      %178 = sbr.rel (%p175) target = $region36
    $region35: #{_lambda_.65} parent=5 // pred_region
      %s179 = ssub.s32 %s10, 1
      %s180 = smul.u32 8, %s15
      %p181 = scmp.lt.s32.totalorder %s180, 15
      %s182 = scalar_select %p181, %s180, 15
      %s183 = smul.addr %s182, 4
      %s184 = scalar_lea.vmem %s0, %s183
      %p185 = pneg %p36
      %p186 = pneg %p33
      %p187 = pneg %p57
      %p188 = pneg %p54
      %p189 = pneg %p78
      %p190 = pneg %p75
      %s191 = smul.u32 8, %s15
      %p192 = scmp.lt.s32.totalorder %s191, 15
      %s193 = scalar_select %p192, %s191, 15
      %s194 = smul.addr %s193, 4
      %s195 = scalar_lea.vmem %s3, %s194
      %p196 = pneg %p104
      %p197 = pneg %p101
      %p198 = pneg %p130
      %p199 = pneg %p127
      %s200 = smul.u32 8, %s15
      %p201 = scmp.lt.s32.totalorder %s200, 15
      %s202 = scalar_select %p201, %s200, 15
      %s203 = smul.addr %s202, 4
      %s204 = scalar_lea.vmem %s4, %s203
      %s205 = smul.u32 8, %s15
      %p206 = scmp.lt.s32.totalorder %s205, 15
      %s207 = scalar_select %p206, %s205, 15
      %s208 = smul.addr %s207, 4
      %s209 = scalar_lea.vmem %s0, %s208
      %s210 = smul.u32 8, %s15
      %s211 = smul.u32 8, %s15
      %p212 = scmp.lt.s32.totalorder %s211, 15
      %s213 = scalar_select %p212, %s211, 15
      %s214 = smul.addr %s213, 4
      %s215 = scalar_lea.vmem %s3, %s214
      %s216 = smul.u32 8, %s15
      %s217 = smul.u32 8, %s15
      %p218 = scmp.lt.s32.totalorder %s217, 15
      %s219 = scalar_select %p218, %s217, 15
      %s220 = smul.addr %s219, 4
      %s221 = scalar_lea.vmem %s4, %s220
      %s222 = smul.u32 8, %s15
      %v224 = vld [vmem:[%s209] sm:$0xf]
      %v225 = vld [vmem:[%s209 + $0x4] sm:$0xf]
      %v226 = vld [vmem:[%s209 + $0x8] sm:$0xf]
      %v227 = vld [vmem:[%s209 + $0xc] sm:$0xf]
      %v228 = vld [vmem:[%s209 + $0x10] sm:$0xf]
      %v229 = vld [vmem:[%s209 + $0x14] sm:$0xf]
      %v230 = vld [vmem:[%s209 + $0x18] sm:$0xf]
      %v231 = vld [vmem:[%s209 + $0x1c] sm:$0xf]
      %v232 = vld [vmem:[%s1] sm:$0xf]
      %v233 = vld [vmem:[%s1 + $0x4] sm:$0xf]
      %v234 = vld [vmem:[%s1 + $0x8] sm:$0xf]
      %v235 = vld [vmem:[%s1 + $0xc] sm:$0xf]
      %v236 = vld [vmem:[%s1 + $0x10] sm:$0xf]
      %v237 = vld [vmem:[%s1 + $0x14] sm:$0xf]
      %v238 = vld [vmem:[%s1 + $0x18] sm:$0xf]
      %v239 = vld [vmem:[%s1 + $0x1c] sm:$0xf]
      %v240 = vld [vmem:[%s1 + $0x20] sm:$0xf]
      %v241 = vld [vmem:[%s1 + $0x24] sm:$0xf]
      %v242 = vld [vmem:[%s1 + $0x28] sm:$0xf]
      %v243 = vld [vmem:[%s1 + $0x2c] sm:$0xf]
      %v244 = vld [vmem:[%s1 + $0x30] sm:$0xf]
      %v245 = vld [vmem:[%s1 + $0x34] sm:$0xf]
      %v246 = vld [vmem:[%s1 + $0x38] sm:$0xf]
      %v247 = vld [vmem:[%s1 + $0x3c] sm:$0xf]
      %v248 = vld [vmem:[%s2] sm:$0x1]
      %v250 = vlaneseq
      %v251 = vshrl.u32 %v250, 7
      %v252 = vsub.s32 0, %v251
      %v253 = vrot.slane %v248, %v252
      %v263 = vunpack.c.l.b16 %v224
      %v264 = vunpack.c.l.b16 %v225
      %v265 = vunpack.c.l.b16 %v226
      %v266 = vunpack.c.l.b16 %v227
      %v267 = vunpack.c.l.b16 %v228
      %v268 = vunpack.c.l.b16 %v229
      %v269 = vunpack.c.l.b16 %v230
      %v270 = vunpack.c.l.b16 %v231
      %v271 = vpack.c.b16 %v264, %v263
      %v272 = vpack.c.b16 %v266, %v265
      %v273 = vpack.c.b16 %v268, %v267
      %v274 = vpack.c.b16 %v270, %v269
      %v295 = vunpack.c.l.b16 %v232
      %v296 = vunpack.c.l.b16 %v233
      %v297 = vunpack.c.l.b16 %v234
      %v298 = vunpack.c.l.b16 %v235
      %v299 = vunpack.c.l.b16 %v236
      %v300 = vunpack.c.l.b16 %v237
      %v301 = vunpack.c.l.b16 %v238
      %v302 = vunpack.c.l.b16 %v239
      %v303 = vunpack.c.l.b16 %v240
      %v304 = vunpack.c.l.b16 %v241
      %v305 = vunpack.c.l.b16 %v242
      %v306 = vunpack.c.l.b16 %v243
      %v307 = vunpack.c.l.b16 %v244
      %v308 = vunpack.c.l.b16 %v245
      %v309 = vunpack.c.l.b16 %v246
      %v310 = vunpack.c.l.b16 %v247
      %v311 = vpack.c.b16 %v296, %v295
      %v312 = vpack.c.b16 %v298, %v297
      %v313 = vpack.c.b16 %v300, %v299
      %v314 = vpack.c.b16 %v302, %v301
      %v315 = vpack.c.b16 %v304, %v303
      %v316 = vpack.c.b16 %v306, %v305
      %v317 = vpack.c.b16 %v308, %v307
      %v318 = vpack.c.b16 %v310, %v309
      %327 = vmatprep.subr.bf16.mxu0 0
      %328 = vmatpush1.bf16.msra.mxu0 %v311
      %329 = vmatprep.subr.bf16.mxu0 0
      %330 = vmatpush1.bf16.msra.mxu0 %v312
      %331 = vmatprep.subr.bf16.mxu0 0
      %332 = vmatpush1.bf16.msra.mxu0 %v313
      %333 = vmatprep.subr.bf16.mxu0 0
      %334 = vmatpush1.bf16.msra.mxu0 %v314
      %335 = vmatprep.subr.bf16.mxu0 0
      %336 = vmatpush1.bf16.msra.mxu0 %v315
      %337 = vmatprep.subr.bf16.mxu0 0
      %338 = vmatpush1.bf16.msra.mxu0 %v316
      %339 = vmatprep.subr.bf16.mxu0 0
      %340 = vmatpush1.bf16.msra.mxu0 %v317
      %341 = vmatprep.subr.bf16.mxu0 0
      %342 = vmatpush1.bf16.msra.mxu0 %v318
      %343 = vmatprep.subr.bf16.mxu0 0
      %344 = vmatpush1.bf16.msra.mxu0 0
      %345 = vmatprep.subr.bf16.mxu0 0
      %346 = vmatpush1.bf16.msra.mxu0 0
      %347 = vmatprep.subr.bf16.mxu0 0
      %348 = vmatpush1.bf16.msra.mxu0 0
      %349 = vmatprep.subr.bf16.mxu0 0
      %350 = vmatpush1.bf16.msra.mxu0 0
      %351 = vmatprep.subr.bf16.mxu0 0
      %352 = vmatpush1.bf16.msra.mxu0 0
      %353 = vmatprep.subr.bf16.mxu0 0
      %354 = vmatpush1.bf16.msra.mxu0 0
      %355 = vmatprep.subr.bf16.mxu0 0
      %356 = vmatpush1.bf16.msra.mxu0 0
      %357 = vmatprep.subr.bf16.mxu0 0
      %358 = vmatpush1.bf16.msra.mxu0 0
      %359 = vmatprep.mubr.bf16.mxu0 0
      %360 = vmatmul.mubr.bf16.gmra.mrb[0].mxu0 %v271
      %v361 = vpop.f32.mrb[0].mxu0
      %v362 = vadd.f32 %v253, %v361
      %v363 = vpop.f32.mrb[0].mxu0
      %v364 = vpop.f32.mrb[0].mxu0
      %v365 = vadd.f32 %v253, %v364
      %v366 = vpop.f32.mrb[0].mxu0
      %367 = vmatprep.mubr.bf16.mxu0 0
      %368 = vmatmul.mubr.bf16.gmra.mrb[0].mxu0 %v272
      %v369 = vpop.f32.mrb[0].mxu0
      %v370 = vadd.f32 %v253, %v369
      %v371 = vpop.f32.mrb[0].mxu0
      %v372 = vpop.f32.mrb[0].mxu0
      %v373 = vadd.f32 %v253, %v372
      %v374 = vpop.f32.mrb[0].mxu0
      %375 = vmatprep.mubr.bf16.mxu0 0
      %376 = vmatmul.mubr.bf16.gmra.mrb[0].mxu0 %v273
      %v377 = vpop.f32.mrb[0].mxu0
      %v378 = vadd.f32 %v253, %v377
      %v379 = vpop.f32.mrb[0].mxu0
      %v380 = vpop.f32.mrb[0].mxu0
      %v381 = vadd.f32 %v253, %v380
      %v382 = vpop.f32.mrb[0].mxu0
      %383 = vmatprep.mubr.bf16.mxu0 0
      %384 = vmatmul.mubr.bf16.gmra.mrb[0].mxu0 %v274
      %v385 = vpop.f32.mrb[0].mxu0
      %v386 = vadd.f32 %v253, %v385
      %v387 = vpop.f32.mrb[0].mxu0
      %v388 = vpop.f32.mrb[0].mxu0
      %v389 = vadd.f32 %v253, %v388
      %v390 = vpop.f32.mrb[0].mxu0
      %391 = vdwg.mxu0
      %v392 = vld [vmem:[%s215] sm:$0xf]
      %v393 = vld [vmem:[%s215 + $0x4] sm:$0xf]
      %v394 = vld [vmem:[%s215 + $0x8] sm:$0xf]
      %v395 = vld [vmem:[%s215 + $0xc] sm:$0xf]
      %v396 = vld [vmem:[%s215 + $0x10] sm:$0xf]
      %v397 = vld [vmem:[%s215 + $0x14] sm:$0xf]
      %v398 = vld [vmem:[%s215 + $0x18] sm:$0xf]
      %v399 = vld [vmem:[%s215 + $0x1c] sm:$0xf]
      %v400 = vunpack.c.l.bf16 %v392
      %v401 = vunpack.c.l.bf16 %v393
      %v402 = vunpack.c.l.bf16 %v394
      %v403 = vunpack.c.l.bf16 %v395
      %v404 = vunpack.c.l.bf16 %v396
      %v405 = vunpack.c.l.bf16 %v397
      %v406 = vunpack.c.l.bf16 %v398
      %v407 = vunpack.c.l.bf16 %v399
      %v408 = vadd.f32 %v362, %v400
      %v409 = vadd.f32 %v365, %v401
      %v410 = vadd.f32 %v370, %v402
      %v411 = vadd.f32 %v373, %v403
      %v412 = vadd.f32 %v378, %v404
      %v413 = vadd.f32 %v381, %v405
      %v414 = vadd.f32 %v386, %v406
      %v415 = vadd.f32 %v389, %v407
      %v416 = vmax.f32 %v408, 0.0
      %v417 = vmax.f32 %v409, 0.0
      %v418 = vmax.f32 %v410, 0.0
      %v419 = vmax.f32 %v411, 0.0
      %v420 = vmax.f32 %v412, 0.0
      %v421 = vmax.f32 %v413, 0.0
      %v422 = vmax.f32 %v414, 0.0
      %v423 = vmax.f32 %v415, 0.0
      %v424 = vpack.c.bf16 %v417, %v416
      %v425 = vpack.c.bf16 %v419, %v418
      %v426 = vpack.c.bf16 %v421, %v420
      %v427 = vpack.c.bf16 %v423, %v422
      %v432 = vunpack.c.l.b16 %v424
      %v433 = vunpack.c.h.b16 %v424
      %v434 = vunpack.c.l.b16 %v425
      %v435 = vunpack.c.h.b16 %v425
      %v436 = vunpack.c.l.b16 %v426
      %v437 = vunpack.c.h.b16 %v426
      %v438 = vunpack.c.l.b16 %v427
      %v439 = vunpack.c.h.b16 %v427
      %v440 = vpack.c.b16 %v432, %v432
      %v441 = vpack.c.b16 %v433, %v433
      %v442 = vpack.c.b16 %v434, %v434
      %v443 = vpack.c.b16 %v435, %v435
      %v444 = vpack.c.b16 %v436, %v436
      %v445 = vpack.c.b16 %v437, %v437
      %v446 = vpack.c.b16 %v438, %v438
      %v447 = vpack.c.b16 %v439, %v439
      %456 = vst [vmem:[%s221] sm:$0xf] %v440
      %457 = vst [vmem:[%s221 + $0x4] sm:$0xf] %v441
      %458 = vst [vmem:[%s221 + $0x8] sm:$0xf] %v442
      %459 = vst [vmem:[%s221 + $0xc] sm:$0xf] %v443
      %460 = vst [vmem:[%s221 + $0x10] sm:$0xf] %v444
      %461 = vst [vmem:[%s221 + $0x14] sm:$0xf] %v445
      %462 = vst [vmem:[%s221 + $0x18] sm:$0xf] %v446
      %463 = vst [vmem:[%s221 + $0x1c] sm:$0xf] %v447
      %s464 = smul.u32 8, %s15
      %p465 = scmp.lt.s32.totalorder %s464, 15
      %s466 = scalar_select %p465, %s464, 15
      %s467 = smul.addr %s466, 4
      %s468 = scalar_lea.vmem %s4, %s467
      // Predicated region
      $region37: #{_lambda_.65} parent=35 // pred_check
        %p469 = pneg %p127
      $region38: #{_lambda_.65} parent=35 // pred_check_branch
        %471 = sbr.rel (%p469) target = $region40
      $region39: #{_lambda_.65} parent=35 // pred_region
        %s472 = smul.u32 8, %s15
      $region40: #{_lambda_.65} parent=35 // pred_fallthru
        _
    $region36: #{_lambda_.65} parent=5 // pred_fallthru
      _
    %p473 = scmp.le.s32.totalorder 2, %s10
    // Predicated region
    $region41: #{_lambda_.65} parent=5 // pred_check
      %p474 = pneg %p473
    $region42: #{_lambda_.65} parent=5 // pred_check_branch
      %476 = sbr.rel (%p474) target = $region44
    $region43: #{_lambda_.65} parent=5 // pred_region
      %s477 = ssub.s32 %s10, 2
      // Predicated region
      $region45: #{_lambda_.65} parent=43 // pred_check
        %p478 = pneg %p133
      $region46: #{_lambda_.65} parent=43 // pred_check_branch
        %480 = sbr.rel (%p478) target = $region48
      $region47: #{_lambda_.65} parent=43 // pred_region
        %s481 = smul.u32 8, %s16
        %p482 = scmp.lt.s32.totalorder %s481, 15
        %s483 = scalar_select %p482, %s481, 15
        %s484 = smul.addr %s483, 4
        %s485 = scalar_lea.vmem %s4, %s484
      $region48: #{_lambda_.65} parent=43 // pred_fallthru
        _
    $region44: #{_lambda_.65} parent=5 // pred_fallthru
      _
  $region6: #{_lambda_.65} parent=0 // loop_footer
    %s14 = sadd.s32 1, %s10
  $region7: #{_lambda_.65} parent=0 // loop_footer_branch
    %9 = sbr.rel target = $region3
  $region8: #{_lambda_.65} parent=0 // loop_exit
    _

// kernel: _lambda_.66
$region0: #{_lambda_.66}
  #allocation0 [shape = 'u32[]', space=smem, size = 0x4, offset = 0x4, fixed_abs, tag = 'smem constant byte address 0x4 - core index']
  #allocation1 [shape = 'u32[144,128]{1,0:T(1,128)}', space=vmem, size = 0x12000, scoped, tag = 'internal scratch']
  %s0 = inlined_call_operand.vmem [shape: bf16[128,128], index: 0, kind: input, shape index: {}]
  %s1 = inlined_call_operand.vmem [shape: bf16[128,128], index: 1, kind: input, shape index: {}]
  %s2 = inlined_call_operand.vmem [shape: f32[1,128], index: 2, kind: input, shape index: {}]
  %s3 = inlined_call_operand.vmem [shape: bf16[128,128], index: 3, kind: output, shape index: {}]
  %s4 = sld [smem:[#allocation0]]
  $region45: #{_lambda_.66} parent=0
    _
  %s6 = ssub.s32 1, %s4
  %s7 = scalar_select 0, %s6, %s4
  loop: start=0, step=1, limit=4
  $region2: #{_lambda_.66} parent=0 // loop_pre_header
    _
  $region3: #{_lambda_.66} parent=0 // loop_header
    %s9 = sphi 0, %s13
    %p10 = scmp.ge.s32.totalorder %s9, 4
    %s19 = sphi 0, %s21
    %s22 = sphi 0, %s19
    %s23 = sphi 0, %s22
    %s39 = sphi 0, %s23
    %s43 = sphi 0, %s43
    %s45 = sphi 0, %s43
    %s46 = sphi 0, %s45
    %s60 = sphi 0, %s46
    %s64 = sphi 0, %s64
    %s66 = sphi 0, %s64
    %s67 = sphi 0, %s66
    %s81 = sphi 0, %s67
    %s87 = sphi 0, %s89
    %s90 = sphi 0, %s87
    %s91 = sphi 0, %s90
    %s107 = sphi 0, %s91
  $region4: #{_lambda_.66} parent=0 // loop_header_branch
    %12 = sbr.rel (%p10) target = $region8
  $region5: #{_lambda_.66} parent=0 // loop_body
    %s14 = ssub.s32 %s9, 1
    %s15 = ssub.s32 %s9, 2
    %s16 = sadd.s32 %s9, 1
    %s17 = ssub.s32 %s9, %s16
    %p18 = scmp.eq.s32.totalorder %s17, 0
    %s20 = sadd.s32 %s19, 1
    %s21 = scalar_select %p18, %s19, %s20
    %p24 = pneg %p18
    %p25 = scmp.eq.s32.totalorder %s9, 1
    %p26 = por %p24, %p25
    %p27 = scmp.ne.s32.totalorder %s19, %s22
    %p28 = scmp.eq.s32.totalorder %s9, 0
    %p29 = por %p27, %p28
    %p30 = scmp.ne.s32.totalorder %s19, %s22
    %p31 = scmp.eq.s32.totalorder %s14, 1
    %p32 = por %p30, %p31
    %p33 = scmp.ne.s32.totalorder %s22, %s23
    %p34 = scmp.eq.s32.totalorder %s14, 0
    %p35 = por %p33, %p34
    %p36 = scmp.ne.s32.totalorder %s22, %s23
    %p37 = scmp.eq.s32.totalorder %s15, 1
    %p38 = por %p36, %p37
    %p40 = scmp.ne.s32.totalorder %s23, %s39
    %p41 = scmp.eq.s32.totalorder %s15, 0
    %p42 = por %p40, %p41
    %s44 = sadd.s32 %s43, 1
    %p47 = scmp.eq.s32.totalorder %s9, 1
    %p48 = scmp.ne.s32.totalorder %s43, %s45
    %p49 = scmp.eq.s32.totalorder %s9, 0
    %p50 = por %p48, %p49
    %p51 = scmp.ne.s32.totalorder %s43, %s45
    %p52 = scmp.eq.s32.totalorder %s14, 1
    %p53 = por %p51, %p52
    %p54 = scmp.ne.s32.totalorder %s45, %s46
    %p55 = scmp.eq.s32.totalorder %s14, 0
    %p56 = por %p54, %p55
    %p57 = scmp.ne.s32.totalorder %s45, %s46
    %p58 = scmp.eq.s32.totalorder %s15, 1
    %p59 = por %p57, %p58
    %p61 = scmp.ne.s32.totalorder %s46, %s60
    %p62 = scmp.eq.s32.totalorder %s15, 0
    %p63 = por %p61, %p62
    %s65 = sadd.s32 %s64, 1
    %p68 = scmp.eq.s32.totalorder %s9, 1
    %p69 = scmp.ne.s32.totalorder %s64, %s66
    %p70 = scmp.eq.s32.totalorder %s9, 0
    %p71 = por %p69, %p70
    %p72 = scmp.ne.s32.totalorder %s64, %s66
    %p73 = scmp.eq.s32.totalorder %s14, 1
    %p74 = por %p72, %p73
    %p75 = scmp.ne.s32.totalorder %s66, %s67
    %p76 = scmp.eq.s32.totalorder %s14, 0
    %p77 = por %p75, %p76
    %p78 = scmp.ne.s32.totalorder %s66, %s67
    %p79 = scmp.eq.s32.totalorder %s15, 1
    %p80 = por %p78, %p79
    %p82 = scmp.ne.s32.totalorder %s67, %s81
    %p83 = scmp.eq.s32.totalorder %s15, 0
    %p84 = por %p82, %p83
    %s85 = ssub.s32 %s9, %s16
    %p86 = scmp.eq.s32.totalorder %s85, 0
    %s88 = sadd.s32 %s87, 1
    %s89 = scalar_select %p86, %s87, %s88
    %p92 = pneg %p86
    %p93 = scmp.eq.s32.totalorder %s9, 1
    %p94 = por %p92, %p93
    %p95 = scmp.ne.s32.totalorder %s87, %s90
    %p96 = scmp.eq.s32.totalorder %s9, 0
    %p97 = por %p95, %p96
    %p98 = scmp.ne.s32.totalorder %s87, %s90
    %p99 = scmp.eq.s32.totalorder %s14, 1
    %p100 = por %p98, %p99
    %p101 = scmp.ne.s32.totalorder %s90, %s91
    %p102 = scmp.eq.s32.totalorder %s14, 0
    %p103 = por %p101, %p102
    %p104 = scmp.ne.s32.totalorder %s90, %s91
    %p105 = scmp.eq.s32.totalorder %s15, 1
    %p106 = por %p104, %p105
    %p108 = scmp.ne.s32.totalorder %s91, %s107
    %p109 = scmp.eq.s32.totalorder %s15, 0
    %p110 = por %p108, %p109
    %p111 = scmp.le.s32.totalorder 1, %s9
    %p112 = scmp.lt.s32.totalorder %s9, 3
    %p113 = pnand %p111, %p112
    %p114 = pneg %p113
    // Predicated region
    $region9: #{_lambda_.66} parent=5 // pred_check
      _
    $region10: #{_lambda_.66} parent=5 // pred_check_branch
      %116 = sbr.rel (%p113) target = $region12
    $region11: #{_lambda_.66} parent=5 // pred_region
      %s117 = ssub.s32 %s9, 1
      // Predicated region
      $region13: #{_lambda_.66} parent=11 // pred_check
        %p118 = pneg %p56
      $region14: #{_lambda_.66} parent=11 // pred_check_branch
        %120 = sbr.rel (%p118) target = $region16
      $region15: #{_lambda_.66} parent=11 // pred_region
        _
      $region16: #{_lambda_.66} parent=11 // pred_fallthru
        _
      // Predicated region
      $region17: #{_lambda_.66} parent=11 // pred_check
        %p121 = pneg %p77
      $region18: #{_lambda_.66} parent=11 // pred_check_branch
        %123 = sbr.rel (%p121) target = $region20
      $region19: #{_lambda_.66} parent=11 // pred_region
        _
      $region20: #{_lambda_.66} parent=11 // pred_fallthru
        _
    $region12: #{_lambda_.66} parent=5 // pred_fallthru
      _
    %p124 = scmp.lt.s32.totalorder %s9, 2
    // Predicated region
    $region21: #{_lambda_.66} parent=5 // pred_check
      %p125 = pneg %p124
    $region22: #{_lambda_.66} parent=5 // pred_check_branch
      %127 = sbr.rel (%p125) target = $region24
    $region23: #{_lambda_.66} parent=5 // pred_region
      // Predicated region
      $region25: #{_lambda_.66} parent=23 // pred_check
        %p128 = pneg %p29
      $region26: #{_lambda_.66} parent=23 // pred_check_branch
        %130 = sbr.rel (%p128) target = $region28
      $region27: #{_lambda_.66} parent=23 // pred_region
        %s131 = smul.u32 8, %s9
        %p132 = scmp.lt.s32.totalorder %s131, 15
        %s133 = scalar_select %p132, %s131, 15
        %s134 = smul.addr %s133, 4
        %s135 = scalar_lea.vmem %s0, %s134
        %s136 = smul.u32 8, %s9
      $region28: #{_lambda_.66} parent=23 // pred_fallthru
        _
    $region24: #{_lambda_.66} parent=5 // pred_fallthru
      _
    %p137 = scmp.le.s32.totalorder 1, %s9
    %p138 = scmp.lt.s32.totalorder %s9, 3
    %p139 = pnand %p137, %p138
    %p140 = pneg %p139
    // Predicated region
    $region29: #{_lambda_.66} parent=5 // pred_check
      _
    $region30: #{_lambda_.66} parent=5 // pred_check_branch
      %142 = sbr.rel (%p139) target = $region32
    $region31: #{_lambda_.66} parent=5 // pred_region
      %s143 = ssub.s32 %s9, 1
      %s144 = smul.u32 8, %s14
      %p145 = scmp.lt.s32.totalorder %s144, 15
      %s146 = scalar_select %p145, %s144, 15
      %s147 = smul.addr %s146, 4
      %s148 = scalar_lea.vmem %s0, %s147
      %p149 = pneg %p35
      %p150 = pneg %p32
      %p151 = pneg %p56
      %p152 = pneg %p53
      %p153 = pneg %p77
      %p154 = pneg %p74
      %p155 = pneg %p103
      %p156 = pneg %p100
      %s157 = smul.u32 8, %s14
      %p158 = scmp.lt.s32.totalorder %s157, 15
      %s159 = scalar_select %p158, %s157, 15
      %s160 = smul.addr %s159, 4
      %s161 = scalar_lea.vmem %s3, %s160
      %s162 = smul.u32 8, %s14
      %p163 = scmp.lt.s32.totalorder %s162, 15
      %s164 = scalar_select %p163, %s162, 15
      %s165 = smul.addr %s164, 4
      %s166 = scalar_lea.vmem %s0, %s165
      %s167 = smul.u32 8, %s14
      %s168 = smul.u32 8, %s14
      %p169 = scmp.lt.s32.totalorder %s168, 15
      %s170 = scalar_select %p169, %s168, 15
      %s171 = smul.addr %s170, 4
      %s172 = scalar_lea.vmem %s3, %s171
      %s173 = smul.u32 8, %s14
      %v175 = vld [vmem:[%s166] sm:$0xf]
      %v176 = vld [vmem:[%s166 + $0x4] sm:$0xf]
      %v177 = vld [vmem:[%s166 + $0x8] sm:$0xf]
      %v178 = vld [vmem:[%s166 + $0xc] sm:$0xf]
      %v179 = vld [vmem:[%s166 + $0x10] sm:$0xf]
      %v180 = vld [vmem:[%s166 + $0x14] sm:$0xf]
      %v181 = vld [vmem:[%s166 + $0x18] sm:$0xf]
      %v182 = vld [vmem:[%s166 + $0x1c] sm:$0xf]
      %v183 = vld [vmem:[%s1] sm:$0xf]
      %v184 = vld [vmem:[%s1 + $0x4] sm:$0xf]
      %v185 = vld [vmem:[%s1 + $0x8] sm:$0xf]
      %v186 = vld [vmem:[%s1 + $0xc] sm:$0xf]
      %v187 = vld [vmem:[%s1 + $0x10] sm:$0xf]
      %v188 = vld [vmem:[%s1 + $0x14] sm:$0xf]
      %v189 = vld [vmem:[%s1 + $0x18] sm:$0xf]
      %v190 = vld [vmem:[%s1 + $0x1c] sm:$0xf]
      %v191 = vld [vmem:[%s1 + $0x20] sm:$0xf]
      %v192 = vld [vmem:[%s1 + $0x24] sm:$0xf]
      %v193 = vld [vmem:[%s1 + $0x28] sm:$0xf]
      %v194 = vld [vmem:[%s1 + $0x2c] sm:$0xf]
      %v195 = vld [vmem:[%s1 + $0x30] sm:$0xf]
      %v196 = vld [vmem:[%s1 + $0x34] sm:$0xf]
      %v197 = vld [vmem:[%s1 + $0x38] sm:$0xf]
      %v198 = vld [vmem:[%s1 + $0x3c] sm:$0xf]
      %v199 = vld [vmem:[%s2] sm:$0x1]
      %v201 = vlaneseq
      %v202 = vshrl.u32 %v201, 7
      %v203 = vsub.s32 0, %v202
      %v204 = vrot.slane %v199, %v203
      %v214 = vunpack.c.l.b16 %v175
      %v215 = vunpack.c.l.b16 %v176
      %v216 = vunpack.c.l.b16 %v177
      %v217 = vunpack.c.l.b16 %v178
      %v218 = vunpack.c.l.b16 %v179
      %v219 = vunpack.c.l.b16 %v180
      %v220 = vunpack.c.l.b16 %v181
      %v221 = vunpack.c.l.b16 %v182
      %v222 = vpack.c.b16 %v215, %v214
      %v223 = vpack.c.b16 %v217, %v216
      %v224 = vpack.c.b16 %v219, %v218
      %v225 = vpack.c.b16 %v221, %v220
      %v246 = vunpack.c.l.b16 %v183
      %v247 = vunpack.c.l.b16 %v184
      %v248 = vunpack.c.l.b16 %v185
      %v249 = vunpack.c.l.b16 %v186
      %v250 = vunpack.c.l.b16 %v187
      %v251 = vunpack.c.l.b16 %v188
      %v252 = vunpack.c.l.b16 %v189
      %v253 = vunpack.c.l.b16 %v190
      %v254 = vunpack.c.l.b16 %v191
      %v255 = vunpack.c.l.b16 %v192
      %v256 = vunpack.c.l.b16 %v193
      %v257 = vunpack.c.l.b16 %v194
      %v258 = vunpack.c.l.b16 %v195
      %v259 = vunpack.c.l.b16 %v196
      %v260 = vunpack.c.l.b16 %v197
      %v261 = vunpack.c.l.b16 %v198
      %v262 = vpack.c.b16 %v247, %v246
      %v263 = vpack.c.b16 %v249, %v248
      %v264 = vpack.c.b16 %v251, %v250
      %v265 = vpack.c.b16 %v253, %v252
      %v266 = vpack.c.b16 %v255, %v254
      %v267 = vpack.c.b16 %v257, %v256
      %v268 = vpack.c.b16 %v259, %v258
      %v269 = vpack.c.b16 %v261, %v260
      %278 = vmatprep.subr.bf16.mxu0 0
      %279 = vmatpush1.bf16.msra.mxu0 %v262
      %280 = vmatprep.subr.bf16.mxu0 0
      %281 = vmatpush1.bf16.msra.mxu0 %v263
      %282 = vmatprep.subr.bf16.mxu0 0
      %283 = vmatpush1.bf16.msra.mxu0 %v264
      %284 = vmatprep.subr.bf16.mxu0 0
      %285 = vmatpush1.bf16.msra.mxu0 %v265
      %286 = vmatprep.subr.bf16.mxu0 0
      %287 = vmatpush1.bf16.msra.mxu0 %v266
      %288 = vmatprep.subr.bf16.mxu0 0
      %289 = vmatpush1.bf16.msra.mxu0 %v267
      %290 = vmatprep.subr.bf16.mxu0 0
      %291 = vmatpush1.bf16.msra.mxu0 %v268
      %292 = vmatprep.subr.bf16.mxu0 0
      %293 = vmatpush1.bf16.msra.mxu0 %v269
      %294 = vmatprep.subr.bf16.mxu0 0
      %295 = vmatpush1.bf16.msra.mxu0 0
      %296 = vmatprep.subr.bf16.mxu0 0
      %297 = vmatpush1.bf16.msra.mxu0 0
      %298 = vmatprep.subr.bf16.mxu0 0
      %299 = vmatpush1.bf16.msra.mxu0 0
      %300 = vmatprep.subr.bf16.mxu0 0
      %301 = vmatpush1.bf16.msra.mxu0 0
      %302 = vmatprep.subr.bf16.mxu0 0
      %303 = vmatpush1.bf16.msra.mxu0 0
      %304 = vmatprep.subr.bf16.mxu0 0
      %305 = vmatpush1.bf16.msra.mxu0 0
      %306 = vmatprep.subr.bf16.mxu0 0
      %307 = vmatpush1.bf16.msra.mxu0 0
      %308 = vmatprep.subr.bf16.mxu0 0
      %309 = vmatpush1.bf16.msra.mxu0 0
      %310 = vmatprep.mubr.bf16.mxu0 0
      %311 = vmatmul.mubr.bf16.gmra.mrb[0].mxu0 %v222
      %v312 = vpop.f32.mrb[0].mxu0
      %v313 = vadd.f32 %v204, %v312
      %v314 = vpop.f32.mrb[0].mxu0
      %v315 = vpop.f32.mrb[0].mxu0
      %v316 = vadd.f32 %v204, %v315
      %v317 = vpop.f32.mrb[0].mxu0
      %318 = vmatprep.mubr.bf16.mxu0 0
      %319 = vmatmul.mubr.bf16.gmra.mrb[0].mxu0 %v223
      %v320 = vpop.f32.mrb[0].mxu0
      %v321 = vadd.f32 %v204, %v320
      %v322 = vpop.f32.mrb[0].mxu0
      %v323 = vpop.f32.mrb[0].mxu0
      %v324 = vadd.f32 %v204, %v323
      %v325 = vpop.f32.mrb[0].mxu0
      %326 = vmatprep.mubr.bf16.mxu0 0
      %327 = vmatmul.mubr.bf16.gmra.mrb[0].mxu0 %v224
      %v328 = vpop.f32.mrb[0].mxu0
      %v329 = vadd.f32 %v204, %v328
      %v330 = vpop.f32.mrb[0].mxu0
      %v331 = vpop.f32.mrb[0].mxu0
      %v332 = vadd.f32 %v204, %v331
      %v333 = vpop.f32.mrb[0].mxu0
      %334 = vmatprep.mubr.bf16.mxu0 0
      %335 = vmatmul.mubr.bf16.gmra.mrb[0].mxu0 %v225
      %v336 = vpop.f32.mrb[0].mxu0
      %v337 = vadd.f32 %v204, %v336
      %v338 = vpop.f32.mrb[0].mxu0
      %v339 = vpop.f32.mrb[0].mxu0
      %v340 = vadd.f32 %v204, %v339
      %v341 = vpop.f32.mrb[0].mxu0
      %342 = vdwg.mxu0
      %v343 = vmax.f32 %v313, 0.0
      %v344 = vmax.f32 %v316, 0.0
      %v345 = vmax.f32 %v321, 0.0
      %v346 = vmax.f32 %v324, 0.0
      %v347 = vmax.f32 %v329, 0.0
      %v348 = vmax.f32 %v332, 0.0
      %v349 = vmax.f32 %v337, 0.0
      %v350 = vmax.f32 %v340, 0.0
      %v351 = vpack.c.bf16 %v344, %v343
      %v352 = vpack.c.bf16 %v346, %v345
      %v353 = vpack.c.bf16 %v348, %v347
      %v354 = vpack.c.bf16 %v350, %v349
      %v359 = vunpack.c.l.b16 %v351
      %v360 = vunpack.c.h.b16 %v351
      %v361 = vunpack.c.l.b16 %v352
      %v362 = vunpack.c.h.b16 %v352
      %v363 = vunpack.c.l.b16 %v353
      %v364 = vunpack.c.h.b16 %v353
      %v365 = vunpack.c.l.b16 %v354
      %v366 = vunpack.c.h.b16 %v354
      %v367 = vpack.c.b16 %v359, %v359
      %v368 = vpack.c.b16 %v360, %v360
      %v369 = vpack.c.b16 %v361, %v361
      %v370 = vpack.c.b16 %v362, %v362
      %v371 = vpack.c.b16 %v363, %v363
      %v372 = vpack.c.b16 %v364, %v364
      %v373 = vpack.c.b16 %v365, %v365
      %v374 = vpack.c.b16 %v366, %v366
      %383 = vst [vmem:[%s172] sm:$0xf] %v367
      %384 = vst [vmem:[%s172 + $0x4] sm:$0xf] %v368
      %385 = vst [vmem:[%s172 + $0x8] sm:$0xf] %v369
      %386 = vst [vmem:[%s172 + $0xc] sm:$0xf] %v370
      %387 = vst [vmem:[%s172 + $0x10] sm:$0xf] %v371
      %388 = vst [vmem:[%s172 + $0x14] sm:$0xf] %v372
      %389 = vst [vmem:[%s172 + $0x18] sm:$0xf] %v373
      %390 = vst [vmem:[%s172 + $0x1c] sm:$0xf] %v374
      %s391 = smul.u32 8, %s14
      %p392 = scmp.lt.s32.totalorder %s391, 15
      %s393 = scalar_select %p392, %s391, 15
      %s394 = smul.addr %s393, 4
      %s395 = scalar_lea.vmem %s3, %s394
      // Predicated region
      $region33: #{_lambda_.66} parent=31 // pred_check
        %p396 = pneg %p100
      $region34: #{_lambda_.66} parent=31 // pred_check_branch
        %398 = sbr.rel (%p396) target = $region36
      $region35: #{_lambda_.66} parent=31 // pred_region
        %s399 = smul.u32 8, %s14
      $region36: #{_lambda_.66} parent=31 // pred_fallthru
        _
    $region32: #{_lambda_.66} parent=5 // pred_fallthru
      _
    %p400 = scmp.le.s32.totalorder 2, %s9
    // Predicated region
    $region37: #{_lambda_.66} parent=5 // pred_check
      %p401 = pneg %p400
    $region38: #{_lambda_.66} parent=5 // pred_check_branch
      %403 = sbr.rel (%p401) target = $region40
    $region39: #{_lambda_.66} parent=5 // pred_region
      %s404 = ssub.s32 %s9, 2
      // Predicated region
      $region41: #{_lambda_.66} parent=39 // pred_check
        %p405 = pneg %p106
      $region42: #{_lambda_.66} parent=39 // pred_check_branch
        %407 = sbr.rel (%p405) target = $region44
      $region43: #{_lambda_.66} parent=39 // pred_region
        %s408 = smul.u32 8, %s15
        %p409 = scmp.lt.s32.totalorder %s408, 15
        %s410 = scalar_select %p409, %s408, 15
        %s411 = smul.addr %s410, 4
        %s412 = scalar_lea.vmem %s3, %s411
      $region44: #{_lambda_.66} parent=39 // pred_fallthru
        _
    $region40: #{_lambda_.66} parent=5 // pred_fallthru
      _
  $region6: #{_lambda_.66} parent=0 // loop_footer
    %s13 = sadd.s32 1, %s9
  $region7: #{_lambda_.66} parent=0 // loop_footer_branch
    %8 = sbr.rel target = $region3
  $region8: #{_lambda_.66} parent=0 // loop_exit
    _

// kernel: _lambda_.75
$region0: #{_lambda_.75}
  #allocation0 [shape = 'u32[]', space=smem, size = 0x4, offset = 0x4, fixed_abs, tag = 'smem constant byte address 0x4 - core index']
  #allocation1 [shape = 'u32[144,128]{1,0:T(1,128)}', space=vmem, size = 0x12000, scoped, tag = 'internal scratch']
  %s0 = inlined_call_operand.vmem [shape: bf16[32,384], index: 0, kind: input, shape index: {}]
  %s1 = inlined_call_operand.vmem [shape: bf16[384,128], index: 1, kind: input, shape index: {}]
  %s2 = inlined_call_operand.vmem [shape: f32[1,128], index: 2, kind: input, shape index: {}]
  %s3 = inlined_call_operand.vmem [shape: bf16[32,128], index: 3, kind: output, shape index: {}]
  %s4 = sld [smem:[#allocation0]]
  $region45: #{_lambda_.75} parent=0
    _
  %s6 = ssub.s32 1, %s4
  %s7 = scalar_select 0, %s6, %s4
  loop: start=0, step=1, limit=4
  $region2: #{_lambda_.75} parent=0 // loop_pre_header
    _
  $region3: #{_lambda_.75} parent=0 // loop_header
    %s9 = sphi 0, %s13
    %p10 = scmp.ge.s32.totalorder %s9, 4
    %s19 = sphi 0, %s21
    %s22 = sphi 0, %s19
    %s23 = sphi 0, %s22
    %s39 = sphi 0, %s23
    %s43 = sphi 0, %s43
    %s45 = sphi 0, %s43
    %s46 = sphi 0, %s45
    %s60 = sphi 0, %s46
    %s64 = sphi 0, %s64
    %s66 = sphi 0, %s64
    %s67 = sphi 0, %s66
    %s81 = sphi 0, %s67
    %s87 = sphi 0, %s89
    %s90 = sphi 0, %s87
    %s91 = sphi 0, %s90
    %s107 = sphi 0, %s91
  $region4: #{_lambda_.75} parent=0 // loop_header_branch
    %12 = sbr.rel (%p10) target = $region8
  $region5: #{_lambda_.75} parent=0 // loop_body
    %s14 = ssub.s32 %s9, 1
    %s15 = ssub.s32 %s9, 2
    %s16 = sadd.s32 %s9, 1
    %s17 = ssub.s32 %s9, %s16
    %p18 = scmp.eq.s32.totalorder %s17, 0
    %s20 = sadd.s32 %s19, 1
    %s21 = scalar_select %p18, %s19, %s20
    %p24 = pneg %p18
    %p25 = scmp.eq.s32.totalorder %s9, 1
    %p26 = por %p24, %p25
    %p27 = scmp.ne.s32.totalorder %s19, %s22
    %p28 = scmp.eq.s32.totalorder %s9, 0
    %p29 = por %p27, %p28
    %p30 = scmp.ne.s32.totalorder %s19, %s22
    %p31 = scmp.eq.s32.totalorder %s14, 1
    %p32 = por %p30, %p31
    %p33 = scmp.ne.s32.totalorder %s22, %s23
    %p34 = scmp.eq.s32.totalorder %s14, 0
    %p35 = por %p33, %p34
    %p36 = scmp.ne.s32.totalorder %s22, %s23
    %p37 = scmp.eq.s32.totalorder %s15, 1
    %p38 = por %p36, %p37
    %p40 = scmp.ne.s32.totalorder %s23, %s39
    %p41 = scmp.eq.s32.totalorder %s15, 0
    %p42 = por %p40, %p41
    %s44 = sadd.s32 %s43, 1
    %p47 = scmp.eq.s32.totalorder %s9, 1
    %p48 = scmp.ne.s32.totalorder %s43, %s45
    %p49 = scmp.eq.s32.totalorder %s9, 0
    %p50 = por %p48, %p49
    %p51 = scmp.ne.s32.totalorder %s43, %s45
    %p52 = scmp.eq.s32.totalorder %s14, 1
    %p53 = por %p51, %p52
    %p54 = scmp.ne.s32.totalorder %s45, %s46
    %p55 = scmp.eq.s32.totalorder %s14, 0
    %p56 = por %p54, %p55
    %p57 = scmp.ne.s32.totalorder %s45, %s46
    %p58 = scmp.eq.s32.totalorder %s15, 1
    %p59 = por %p57, %p58
    %p61 = scmp.ne.s32.totalorder %s46, %s60
    %p62 = scmp.eq.s32.totalorder %s15, 0
    %p63 = por %p61, %p62
    %s65 = sadd.s32 %s64, 1
    %p68 = scmp.eq.s32.totalorder %s9, 1
    %p69 = scmp.ne.s32.totalorder %s64, %s66
    %p70 = scmp.eq.s32.totalorder %s9, 0
    %p71 = por %p69, %p70
    %p72 = scmp.ne.s32.totalorder %s64, %s66
    %p73 = scmp.eq.s32.totalorder %s14, 1
    %p74 = por %p72, %p73
    %p75 = scmp.ne.s32.totalorder %s66, %s67
    %p76 = scmp.eq.s32.totalorder %s14, 0
    %p77 = por %p75, %p76
    %p78 = scmp.ne.s32.totalorder %s66, %s67
    %p79 = scmp.eq.s32.totalorder %s15, 1
    %p80 = por %p78, %p79
    %p82 = scmp.ne.s32.totalorder %s67, %s81
    %p83 = scmp.eq.s32.totalorder %s15, 0
    %p84 = por %p82, %p83
    %s85 = ssub.s32 %s9, %s16
    %p86 = scmp.eq.s32.totalorder %s85, 0
    %s88 = sadd.s32 %s87, 1
    %s89 = scalar_select %p86, %s87, %s88
    %p92 = pneg %p86
    %p93 = scmp.eq.s32.totalorder %s9, 1
    %p94 = por %p92, %p93
    %p95 = scmp.ne.s32.totalorder %s87, %s90
    %p96 = scmp.eq.s32.totalorder %s9, 0
    %p97 = por %p95, %p96
    %p98 = scmp.ne.s32.totalorder %s87, %s90
    %p99 = scmp.eq.s32.totalorder %s14, 1
    %p100 = por %p98, %p99
    %p101 = scmp.ne.s32.totalorder %s90, %s91
    %p102 = scmp.eq.s32.totalorder %s14, 0
    %p103 = por %p101, %p102
    %p104 = scmp.ne.s32.totalorder %s90, %s91
    %p105 = scmp.eq.s32.totalorder %s15, 1
    %p106 = por %p104, %p105
    %p108 = scmp.ne.s32.totalorder %s91, %s107
    %p109 = scmp.eq.s32.totalorder %s15, 0
    %p110 = por %p108, %p109
    %p111 = scmp.le.s32.totalorder 1, %s9
    %p112 = scmp.lt.s32.totalorder %s9, 3
    %p113 = pnand %p111, %p112
    %p114 = pneg %p113
    // Predicated region
    $region9: #{_lambda_.75} parent=5 // pred_check
      _
    $region10: #{_lambda_.75} parent=5 // pred_check_branch
      %116 = sbr.rel (%p113) target = $region12
    $region11: #{_lambda_.75} parent=5 // pred_region
      %s117 = ssub.s32 %s9, 1
      // Predicated region
      $region13: #{_lambda_.75} parent=11 // pred_check
        %p118 = pneg %p56
      $region14: #{_lambda_.75} parent=11 // pred_check_branch
        %120 = sbr.rel (%p118) target = $region16
      $region15: #{_lambda_.75} parent=11 // pred_region
        _
      $region16: #{_lambda_.75} parent=11 // pred_fallthru
        _
      // Predicated region
      $region17: #{_lambda_.75} parent=11 // pred_check
        %p121 = pneg %p77
      $region18: #{_lambda_.75} parent=11 // pred_check_branch
        %123 = sbr.rel (%p121) target = $region20
      $region19: #{_lambda_.75} parent=11 // pred_region
        _
      $region20: #{_lambda_.75} parent=11 // pred_fallthru
        _
    $region12: #{_lambda_.75} parent=5 // pred_fallthru
      _
    %p124 = scmp.lt.s32.totalorder %s9, 2
    // Predicated region
    $region21: #{_lambda_.75} parent=5 // pred_check
      %p125 = pneg %p124
    $region22: #{_lambda_.75} parent=5 // pred_check_branch
      %127 = sbr.rel (%p125) target = $region24
    $region23: #{_lambda_.75} parent=5 // pred_region
      // Predicated region
      $region25: #{_lambda_.75} parent=23 // pred_check
        %p128 = pneg %p29
      $region26: #{_lambda_.75} parent=23 // pred_check_branch
        %130 = sbr.rel (%p128) target = $region28
      $region27: #{_lambda_.75} parent=23 // pred_region
        %s131 = smul.u32 2, %s9
        %p132 = scmp.lt.s32.totalorder %s131, 3
        %s133 = scalar_select %p132, %s131, 3
        %s134 = smul.addr %s133, 3
        %s135 = smul.addr %s134, 4
        %s136 = scalar_lea.vmem %s0, %s135
        %s137 = smul.u32 2, %s9
      $region28: #{_lambda_.75} parent=23 // pred_fallthru
        _
    $region24: #{_lambda_.75} parent=5 // pred_fallthru
      _
    %p138 = scmp.le.s32.totalorder 1, %s9
    %p139 = scmp.lt.s32.totalorder %s9, 3
    %p140 = pnand %p138, %p139
    %p141 = pneg %p140
    // Predicated region
    $region29: #{_lambda_.75} parent=5 // pred_check
      _
    $region30: #{_lambda_.75} parent=5 // pred_check_branch
      %143 = sbr.rel (%p140) target = $region32
    $region31: #{_lambda_.75} parent=5 // pred_region
      %s144 = ssub.s32 %s9, 1
      %s145 = smul.u32 2, %s14
      %p146 = scmp.lt.s32.totalorder %s145, 3
      %s147 = scalar_select %p146, %s145, 3
      %s148 = smul.addr %s147, 3
      %s149 = smul.addr %s148, 4
      %s150 = scalar_lea.vmem %s0, %s149
      %p151 = pneg %p35
      %p152 = pneg %p32
      %p153 = pneg %p56
      %p154 = pneg %p53
      %p155 = pneg %p77
      %p156 = pneg %p74
      %p157 = pneg %p103
      %p158 = pneg %p100
      %s159 = smul.u32 2, %s14
      %p160 = scmp.lt.s32.totalorder %s159, 3
      %s161 = scalar_select %p160, %s159, 3
      %s162 = smul.addr %s161, 4
      %s163 = scalar_lea.vmem %s3, %s162
      %s164 = smul.u32 2, %s14
      %p165 = scmp.lt.s32.totalorder %s164, 3
      %s166 = scalar_select %p165, %s164, 3
      %s167 = smul.addr %s166, 3
      %s168 = smul.addr %s167, 4
      %s169 = scalar_lea.vmem %s0, %s168
      %s170 = smul.u32 2, %s14
      %s171 = smul.u32 2, %s14
      %p172 = scmp.lt.s32.totalorder %s171, 3
      %s173 = scalar_select %p172, %s171, 3
      %s174 = smul.addr %s173, 4
      %s175 = scalar_lea.vmem %s3, %s174
      %s176 = smul.u32 2, %s14
      %v178 = vld [vmem:[%s169] sm:$0xff]
      %v179 = vld [vmem:[%s169 + $0x8] sm:$0xf]
      %v180 = vld [vmem:[%s169 + $0xc] sm:$0xff]
      %v181 = vld [vmem:[%s169 + $0x14] sm:$0xf]
      %v182 = vld [vmem:[%s1] sm:$0xf]
      %v183 = vld [vmem:[%s1 + $0x4] sm:$0xf]
      %v184 = vld [vmem:[%s1 + $0x8] sm:$0xf]
      %v185 = vld [vmem:[%s1 + $0xc] sm:$0xf]
      %v186 = vld [vmem:[%s1 + $0x10] sm:$0xf]
      %v187 = vld [vmem:[%s1 + $0x14] sm:$0xf]
      %v188 = vld [vmem:[%s1 + $0x18] sm:$0xf]
      %v189 = vld [vmem:[%s1 + $0x1c] sm:$0xf]
      %v190 = vld [vmem:[%s1 + $0x20] sm:$0xf]
      %v191 = vld [vmem:[%s1 + $0x24] sm:$0xf]
      %v192 = vld [vmem:[%s1 + $0x28] sm:$0xf]
      %v193 = vld [vmem:[%s1 + $0x2c] sm:$0xf]
      %v194 = vld [vmem:[%s1 + $0x30] sm:$0xf]
      %v195 = vld [vmem:[%s1 + $0x34] sm:$0xf]
      %v196 = vld [vmem:[%s1 + $0x38] sm:$0xf]
      %v197 = vld [vmem:[%s1 + $0x3c] sm:$0xf]
      %v198 = vld [vmem:[%s1 + $0x40] sm:$0xf]
      %v199 = vld [vmem:[%s1 + $0x44] sm:$0xf]
      %v200 = vld [vmem:[%s1 + $0x48] sm:$0xf]
      %v201 = vld [vmem:[%s1 + $0x4c] sm:$0xf]
      %v202 = vld [vmem:[%s1 + $0x50] sm:$0xf]
      %v203 = vld [vmem:[%s1 + $0x54] sm:$0xf]
      %v204 = vld [vmem:[%s1 + $0x58] sm:$0xf]
      %v205 = vld [vmem:[%s1 + $0x5c] sm:$0xf]
      %v206 = vld [vmem:[%s1 + $0x60] sm:$0xf]
      %v207 = vld [vmem:[%s1 + $0x64] sm:$0xf]
      %v208 = vld [vmem:[%s1 + $0x68] sm:$0xf]
      %v209 = vld [vmem:[%s1 + $0x6c] sm:$0xf]
      %v210 = vld [vmem:[%s1 + $0x70] sm:$0xf]
      %v211 = vld [vmem:[%s1 + $0x74] sm:$0xf]
      %v212 = vld [vmem:[%s1 + $0x78] sm:$0xf]
      %v213 = vld [vmem:[%s1 + $0x7c] sm:$0xf]
      %v214 = vld [vmem:[%s1 + $0x80] sm:$0xf]
      %v215 = vld [vmem:[%s1 + $0x84] sm:$0xf]
      %v216 = vld [vmem:[%s1 + $0x88] sm:$0xf]
      %v217 = vld [vmem:[%s1 + $0x8c] sm:$0xf]
      %v218 = vld [vmem:[%s1 + $0x90] sm:$0xf]
      %v219 = vld [vmem:[%s1 + $0x94] sm:$0xf]
      %v220 = vld [vmem:[%s1 + $0x98] sm:$0xf]
      %v221 = vld [vmem:[%s1 + $0x9c] sm:$0xf]
      %v222 = vld [vmem:[%s1 + $0xa0] sm:$0xf]
      %v223 = vld [vmem:[%s1 + $0xa4] sm:$0xf]
      %v224 = vld [vmem:[%s1 + $0xa8] sm:$0xf]
      %v225 = vld [vmem:[%s1 + $0xac] sm:$0xf]
      %v226 = vld [vmem:[%s1 + $0xb0] sm:$0xf]
      %v227 = vld [vmem:[%s1 + $0xb4] sm:$0xf]
      %v228 = vld [vmem:[%s1 + $0xb8] sm:$0xf]
      %v229 = vld [vmem:[%s1 + $0xbc] sm:$0xf]
      %v230 = vld [vmem:[%s2] sm:$0x1]
      %v232 = vlaneseq
      %v233 = vshrl.u32 %v232, 7
      %v234 = vsub.s32 0, %v233
      %v235 = vrot.slane %v230, %v234
      %v241 = vunpack.c.l.b16 %v178
      %v242 = vunpack.c.h.b16 %v178
      %v243 = vunpack.c.l.b16 %v179
      %v244 = vunpack.c.l.b16 %v180
      %v245 = vunpack.c.h.b16 %v180
      %v246 = vunpack.c.l.b16 %v181
      %v247 = vpack.c.b16 %v244, %v241
      %v248 = vpack.c.b16 %v245, %v242
      %v249 = vpack.c.b16 %v246, %v243
      %v301 = vunpack.c.l.b16 %v182
      %v302 = vunpack.c.l.b16 %v183
      %v303 = vunpack.c.l.b16 %v184
      %v304 = vunpack.c.l.b16 %v185
      %v305 = vunpack.c.l.b16 %v186
      %v306 = vunpack.c.l.b16 %v187
      %v307 = vunpack.c.l.b16 %v188
      %v308 = vunpack.c.l.b16 %v189
      %v309 = vunpack.c.l.b16 %v190
      %v310 = vunpack.c.l.b16 %v191
      %v311 = vunpack.c.l.b16 %v192
      %v312 = vunpack.c.l.b16 %v193
      %v313 = vunpack.c.l.b16 %v194
      %v314 = vunpack.c.l.b16 %v195
      %v315 = vunpack.c.l.b16 %v196
      %v316 = vunpack.c.l.b16 %v197
      %v317 = vunpack.c.l.b16 %v198
      %v318 = vunpack.c.l.b16 %v199
      %v319 = vunpack.c.l.b16 %v200
      %v320 = vunpack.c.l.b16 %v201
      %v321 = vunpack.c.l.b16 %v202
      %v322 = vunpack.c.l.b16 %v203
      %v323 = vunpack.c.l.b16 %v204
      %v324 = vunpack.c.l.b16 %v205
      %v325 = vunpack.c.l.b16 %v206
      %v326 = vunpack.c.l.b16 %v207
      %v327 = vunpack.c.l.b16 %v208
      %v328 = vunpack.c.l.b16 %v209
      %v329 = vunpack.c.l.b16 %v210
      %v330 = vunpack.c.l.b16 %v211
      %v331 = vunpack.c.l.b16 %v212
      %v332 = vunpack.c.l.b16 %v213
      %v333 = vunpack.c.l.b16 %v214
      %v334 = vunpack.c.l.b16 %v215
      %v335 = vunpack.c.l.b16 %v216
      %v336 = vunpack.c.l.b16 %v217
      %v337 = vunpack.c.l.b16 %v218
      %v338 = vunpack.c.l.b16 %v219
      %v339 = vunpack.c.l.b16 %v220
      %v340 = vunpack.c.l.b16 %v221
      %v341 = vunpack.c.l.b16 %v222
      %v342 = vunpack.c.l.b16 %v223
      %v343 = vunpack.c.l.b16 %v224
      %v344 = vunpack.c.l.b16 %v225
      %v345 = vunpack.c.l.b16 %v226
      %v346 = vunpack.c.l.b16 %v227
      %v347 = vunpack.c.l.b16 %v228
      %v348 = vunpack.c.l.b16 %v229
      %v349 = vpack.c.b16 %v302, %v301
      %v350 = vpack.c.b16 %v304, %v303
      %v351 = vpack.c.b16 %v306, %v305
      %v352 = vpack.c.b16 %v308, %v307
      %v353 = vpack.c.b16 %v310, %v309
      %v354 = vpack.c.b16 %v312, %v311
      %v355 = vpack.c.b16 %v314, %v313
      %v356 = vpack.c.b16 %v316, %v315
      %v357 = vpack.c.b16 %v318, %v317
      %v358 = vpack.c.b16 %v320, %v319
      %v359 = vpack.c.b16 %v322, %v321
      %v360 = vpack.c.b16 %v324, %v323
      %v361 = vpack.c.b16 %v326, %v325
      %v362 = vpack.c.b16 %v328, %v327
      %v363 = vpack.c.b16 %v330, %v329
      %v364 = vpack.c.b16 %v332, %v331
      %v365 = vpack.c.b16 %v334, %v333
      %v366 = vpack.c.b16 %v336, %v335
      %v367 = vpack.c.b16 %v338, %v337
      %v368 = vpack.c.b16 %v340, %v339
      %v369 = vpack.c.b16 %v342, %v341
      %v370 = vpack.c.b16 %v344, %v343
      %v371 = vpack.c.b16 %v346, %v345
      %v372 = vpack.c.b16 %v348, %v347
      %397 = vmatprep.subr.bf16.mxu0 0
      %398 = vmatpush1.bf16.msra.mxu0 %v349
      %399 = vmatprep.subr.bf16.mxu0 0
      %400 = vmatpush1.bf16.msra.mxu0 %v350
      %401 = vmatprep.subr.bf16.mxu0 0
      %402 = vmatpush1.bf16.msra.mxu0 %v351
      %403 = vmatprep.subr.bf16.mxu0 0
      %404 = vmatpush1.bf16.msra.mxu0 %v352
      %405 = vmatprep.subr.bf16.mxu0 0
      %406 = vmatpush1.bf16.msra.mxu0 %v353
      %407 = vmatprep.subr.bf16.mxu0 0
      %408 = vmatpush1.bf16.msra.mxu0 %v354
      %409 = vmatprep.subr.bf16.mxu0 0
      %410 = vmatpush1.bf16.msra.mxu0 %v355
      %411 = vmatprep.subr.bf16.mxu0 0
      %412 = vmatpush1.bf16.msra.mxu0 %v356
      %413 = vmatprep.subr.bf16.mxu0 0
      %414 = vmatpush1.bf16.msra.mxu0 %v357
      %415 = vmatprep.subr.bf16.mxu0 0
      %416 = vmatpush1.bf16.msra.mxu0 %v358
      %417 = vmatprep.subr.bf16.mxu0 0
      %418 = vmatpush1.bf16.msra.mxu0 %v359
      %419 = vmatprep.subr.bf16.mxu0 0
      %420 = vmatpush1.bf16.msra.mxu0 %v360
      %421 = vmatprep.subr.bf16.mxu0 0
      %422 = vmatpush1.bf16.msra.mxu0 %v361
      %423 = vmatprep.subr.bf16.mxu0 0
      %424 = vmatpush1.bf16.msra.mxu0 %v362
      %425 = vmatprep.subr.bf16.mxu0 0
      %426 = vmatpush1.bf16.msra.mxu0 %v363
      %427 = vmatprep.subr.bf16.mxu0 0
      %428 = vmatpush1.bf16.msra.mxu0 %v364
      %429 = vmatprep.mubr.bf16.mxu0 %v248
      %430 = vmatmul.mubr.bf16.gmra.mrb[0].mxu0 %v247
      %v431 = vpop.f32.mrb[0].mxu0
      %v432 = vadd.f32 %v235, %v431
      %v433 = vpop.f32.mrb[0].mxu0
      %v434 = vpop.f32.mrb[0].mxu0
      %v435 = vadd.f32 %v235, %v434
      %v436 = vpop.f32.mrb[0].mxu0
      %437 = vdwg.mxu0
      %438 = vmatprep.subr.bf16.mxu0 0
      %439 = vmatpush1.bf16.msra.mxu0 %v365
      %440 = vmatprep.subr.bf16.mxu0 0
      %441 = vmatpush1.bf16.msra.mxu0 %v366
      %442 = vmatprep.subr.bf16.mxu0 0
      %443 = vmatpush1.bf16.msra.mxu0 %v367
      %444 = vmatprep.subr.bf16.mxu0 0
      %445 = vmatpush1.bf16.msra.mxu0 %v368
      %446 = vmatprep.subr.bf16.mxu0 0
      %447 = vmatpush1.bf16.msra.mxu0 %v369
      %448 = vmatprep.subr.bf16.mxu0 0
      %449 = vmatpush1.bf16.msra.mxu0 %v370
      %450 = vmatprep.subr.bf16.mxu0 0
      %451 = vmatpush1.bf16.msra.mxu0 %v371
      %452 = vmatprep.subr.bf16.mxu0 0
      %453 = vmatpush1.bf16.msra.mxu0 %v372
      %454 = vmatprep.subr.bf16.mxu0 0
      %455 = vmatpush1.bf16.msra.mxu0 0
      %456 = vmatprep.subr.bf16.mxu0 0
      %457 = vmatpush1.bf16.msra.mxu0 0
      %458 = vmatprep.subr.bf16.mxu0 0
      %459 = vmatpush1.bf16.msra.mxu0 0
      %460 = vmatprep.subr.bf16.mxu0 0
      %461 = vmatpush1.bf16.msra.mxu0 0
      %462 = vmatprep.subr.bf16.mxu0 0
      %463 = vmatpush1.bf16.msra.mxu0 0
      %464 = vmatprep.subr.bf16.mxu0 0
      %465 = vmatpush1.bf16.msra.mxu0 0
      %466 = vmatprep.subr.bf16.mxu0 0
      %467 = vmatpush1.bf16.msra.mxu0 0
      %468 = vmatprep.subr.bf16.mxu0 0
      %469 = vmatpush1.bf16.msra.mxu0 0
      %470 = vmatprep.mubr.bf16.mxu0 0
      %471 = vmatmul.mubr.bf16.gmra.mrb[0].mxu0 %v249
      %v472 = vpop.f32.mrb[0].mxu0
      %v473 = vadd.f32 %v432, %v472
      %v474 = vpop.f32.mrb[0].mxu0
      %v475 = vpop.f32.mrb[0].mxu0
      %v476 = vadd.f32 %v435, %v475
      %v477 = vpop.f32.mrb[0].mxu0
      %478 = vdwg.mxu0
      %v479 = vmax.f32 %v473, 0.0
      %v480 = vmax.f32 %v476, 0.0
      %v481 = vpack.c.bf16 %v480, %v479
      %v483 = vunpack.c.l.b16 %v481
      %v484 = vunpack.c.h.b16 %v481
      %v485 = vpack.c.b16 %v483, %v483
      %v486 = vpack.c.b16 %v484, %v484
      %489 = vst [vmem:[%s175] sm:$0xf] %v485
      %490 = vst [vmem:[%s175 + $0x4] sm:$0xf] %v486
      %s491 = smul.u32 2, %s14
      %p492 = scmp.lt.s32.totalorder %s491, 3
      %s493 = scalar_select %p492, %s491, 3
      %s494 = smul.addr %s493, 4
      %s495 = scalar_lea.vmem %s3, %s494
      // Predicated region
      $region33: #{_lambda_.75} parent=31 // pred_check
        %p496 = pneg %p100
      $region34: #{_lambda_.75} parent=31 // pred_check_branch
        %498 = sbr.rel (%p496) target = $region36
      $region35: #{_lambda_.75} parent=31 // pred_region
        %s499 = smul.u32 2, %s14
      $region36: #{_lambda_.75} parent=31 // pred_fallthru
        _
    $region32: #{_lambda_.75} parent=5 // pred_fallthru
      _
    %p500 = scmp.le.s32.totalorder 2, %s9
    // Predicated region
    $region37: #{_lambda_.75} parent=5 // pred_check
      %p501 = pneg %p500
    $region38: #{_lambda_.75} parent=5 // pred_check_branch
      %503 = sbr.rel (%p501) target = $region40
    $region39: #{_lambda_.75} parent=5 // pred_region
      %s504 = ssub.s32 %s9, 2
      // Predicated region
      $region41: #{_lambda_.75} parent=39 // pred_check
        %p505 = pneg %p106
      $region42: #{_lambda_.75} parent=39 // pred_check_branch
        %507 = sbr.rel (%p505) target = $region44
      $region43: #{_lambda_.75} parent=39 // pred_region
        %s508 = smul.u32 2, %s15
        %p509 = scmp.lt.s32.totalorder %s508, 3
        %s510 = scalar_select %p509, %s508, 3
        %s511 = smul.addr %s510, 4
        %s512 = scalar_lea.vmem %s3, %s511
      $region44: #{_lambda_.75} parent=39 // pred_fallthru
        _
    $region40: #{_lambda_.75} parent=5 // pred_fallthru
      _
  $region6: #{_lambda_.75} parent=0 // loop_footer
    %s13 = sadd.s32 1, %s9
  $region7: #{_lambda_.75} parent=0 // loop_footer_branch
    %8 = sbr.rel target = $region3
  $region8: #{_lambda_.75} parent=0 // loop_exit
    _

// kernel: _lambda_.72
$region0: #{_lambda_.72}
  #allocation0 [shape = 'u32[]', space=smem, size = 0x4, offset = 0x4, fixed_abs, tag = 'smem constant byte address 0x4 - core index']
  #allocation1 [shape = 'u32[144,128]{1,0:T(1,128)}', space=vmem, size = 0x12000, scoped, tag = 'internal scratch']
  %s0 = inlined_call_operand.vmem [shape: bf16[32,128], index: 0, kind: input, shape index: {}]
  %s1 = inlined_call_operand.vmem [shape: bf16[32,128], index: 1, kind: input, shape index: {}]
  %s2 = inlined_call_operand.vmem [shape: bf16[32,128], index: 2, kind: input, shape index: {}]
  %s3 = inlined_call_operand.vmem [shape: bf16[32,128], index: 3, kind: input, shape index: {}]
  %s4 = inlined_call_operand.vmem [shape: bf16[32,128], index: 4, kind: output, shape index: {}]
  %s5 = sld [smem:[#allocation0]]
  $region49: #{_lambda_.72} parent=0
    _
  %s7 = ssub.s32 1, %s5
  %s8 = scalar_select 0, %s7, %s5
  loop: start=0, step=1, limit=4
  $region2: #{_lambda_.72} parent=0 // loop_pre_header
    _
  $region3: #{_lambda_.72} parent=0 // loop_header
    %s10 = sphi 0, %s14
    %p11 = scmp.ge.s32.totalorder %s10, 4
    %s20 = sphi 0, %s22
    %s23 = sphi 0, %s20
    %s24 = sphi 0, %s23
    %s40 = sphi 0, %s24
    %s46 = sphi 0, %s48
    %s49 = sphi 0, %s46
    %s50 = sphi 0, %s49
    %s66 = sphi 0, %s50
    %s72 = sphi 0, %s74
    %s75 = sphi 0, %s72
    %s76 = sphi 0, %s75
    %s92 = sphi 0, %s76
    %s98 = sphi 0, %s100
    %s101 = sphi 0, %s98
    %s102 = sphi 0, %s101
    %s118 = sphi 0, %s102
    %s124 = sphi 0, %s126
    %s127 = sphi 0, %s124
    %s128 = sphi 0, %s127
    %s144 = sphi 0, %s128
  $region4: #{_lambda_.72} parent=0 // loop_header_branch
    %13 = sbr.rel (%p11) target = $region8
  $region5: #{_lambda_.72} parent=0 // loop_body
    %s15 = ssub.s32 %s10, 1
    %s16 = ssub.s32 %s10, 2
    %s17 = sadd.s32 %s10, 1
    %s18 = ssub.s32 %s10, %s17
    %p19 = scmp.eq.s32.totalorder %s18, 0
    %s21 = sadd.s32 %s20, 1
    %s22 = scalar_select %p19, %s20, %s21
    %p25 = pneg %p19
    %p26 = scmp.eq.s32.totalorder %s10, 1
    %p27 = por %p25, %p26
    %p28 = scmp.ne.s32.totalorder %s20, %s23
    %p29 = scmp.eq.s32.totalorder %s10, 0
    %p30 = por %p28, %p29
    %p31 = scmp.ne.s32.totalorder %s20, %s23
    %p32 = scmp.eq.s32.totalorder %s15, 1
    %p33 = por %p31, %p32
    %p34 = scmp.ne.s32.totalorder %s23, %s24
    %p35 = scmp.eq.s32.totalorder %s15, 0
    %p36 = por %p34, %p35
    %p37 = scmp.ne.s32.totalorder %s23, %s24
    %p38 = scmp.eq.s32.totalorder %s16, 1
    %p39 = por %p37, %p38
    %p41 = scmp.ne.s32.totalorder %s24, %s40
    %p42 = scmp.eq.s32.totalorder %s16, 0
    %p43 = por %p41, %p42
    %s44 = ssub.s32 %s10, %s17
    %p45 = scmp.eq.s32.totalorder %s44, 0
    %s47 = sadd.s32 %s46, 1
    %s48 = scalar_select %p45, %s46, %s47
    %p51 = pneg %p45
    %p52 = scmp.eq.s32.totalorder %s10, 1
    %p53 = por %p51, %p52
    %p54 = scmp.ne.s32.totalorder %s46, %s49
    %p55 = scmp.eq.s32.totalorder %s10, 0
    %p56 = por %p54, %p55
    %p57 = scmp.ne.s32.totalorder %s46, %s49
    %p58 = scmp.eq.s32.totalorder %s15, 1
    %p59 = por %p57, %p58
    %p60 = scmp.ne.s32.totalorder %s49, %s50
    %p61 = scmp.eq.s32.totalorder %s15, 0
    %p62 = por %p60, %p61
    %p63 = scmp.ne.s32.totalorder %s49, %s50
    %p64 = scmp.eq.s32.totalorder %s16, 1
    %p65 = por %p63, %p64
    %p67 = scmp.ne.s32.totalorder %s50, %s66
    %p68 = scmp.eq.s32.totalorder %s16, 0
    %p69 = por %p67, %p68
    %s70 = ssub.s32 %s10, %s17
    %p71 = scmp.eq.s32.totalorder %s70, 0
    %s73 = sadd.s32 %s72, 1
    %s74 = scalar_select %p71, %s72, %s73
    %p77 = pneg %p71
    %p78 = scmp.eq.s32.totalorder %s10, 1
    %p79 = por %p77, %p78
    %p80 = scmp.ne.s32.totalorder %s72, %s75
    %p81 = scmp.eq.s32.totalorder %s10, 0
    %p82 = por %p80, %p81
    %p83 = scmp.ne.s32.totalorder %s72, %s75
    %p84 = scmp.eq.s32.totalorder %s15, 1
    %p85 = por %p83, %p84
    %p86 = scmp.ne.s32.totalorder %s75, %s76
    %p87 = scmp.eq.s32.totalorder %s15, 0
    %p88 = por %p86, %p87
    %p89 = scmp.ne.s32.totalorder %s75, %s76
    %p90 = scmp.eq.s32.totalorder %s16, 1
    %p91 = por %p89, %p90
    %p93 = scmp.ne.s32.totalorder %s76, %s92
    %p94 = scmp.eq.s32.totalorder %s16, 0
    %p95 = por %p93, %p94
    %s96 = ssub.s32 %s10, %s17
    %p97 = scmp.eq.s32.totalorder %s96, 0
    %s99 = sadd.s32 %s98, 1
    %s100 = scalar_select %p97, %s98, %s99
    %p103 = pneg %p97
    %p104 = scmp.eq.s32.totalorder %s10, 1
    %p105 = por %p103, %p104
    %p106 = scmp.ne.s32.totalorder %s98, %s101
    %p107 = scmp.eq.s32.totalorder %s10, 0
    %p108 = por %p106, %p107
    %p109 = scmp.ne.s32.totalorder %s98, %s101
    %p110 = scmp.eq.s32.totalorder %s15, 1
    %p111 = por %p109, %p110
    %p112 = scmp.ne.s32.totalorder %s101, %s102
    %p113 = scmp.eq.s32.totalorder %s15, 0
    %p114 = por %p112, %p113
    %p115 = scmp.ne.s32.totalorder %s101, %s102
    %p116 = scmp.eq.s32.totalorder %s16, 1
    %p117 = por %p115, %p116
    %p119 = scmp.ne.s32.totalorder %s102, %s118
    %p120 = scmp.eq.s32.totalorder %s16, 0
    %p121 = por %p119, %p120
    %s122 = ssub.s32 %s10, %s17
    %p123 = scmp.eq.s32.totalorder %s122, 0
    %s125 = sadd.s32 %s124, 1
    %s126 = scalar_select %p123, %s124, %s125
    %p129 = pneg %p123
    %p130 = scmp.eq.s32.totalorder %s10, 1
    %p131 = por %p129, %p130
    %p132 = scmp.ne.s32.totalorder %s124, %s127
    %p133 = scmp.eq.s32.totalorder %s10, 0
    %p134 = por %p132, %p133
    %p135 = scmp.ne.s32.totalorder %s124, %s127
    %p136 = scmp.eq.s32.totalorder %s15, 1
    %p137 = por %p135, %p136
    %p138 = scmp.ne.s32.totalorder %s127, %s128
    %p139 = scmp.eq.s32.totalorder %s15, 0
    %p140 = por %p138, %p139
    %p141 = scmp.ne.s32.totalorder %s127, %s128
    %p142 = scmp.eq.s32.totalorder %s16, 1
    %p143 = por %p141, %p142
    %p145 = scmp.ne.s32.totalorder %s128, %s144
    %p146 = scmp.eq.s32.totalorder %s16, 0
    %p147 = por %p145, %p146
    %p148 = scmp.le.s32.totalorder 1, %s10
    %p149 = scmp.lt.s32.totalorder %s10, 3
    %p150 = pnand %p148, %p149
    %p151 = pneg %p150
    // Predicated region
    $region9: #{_lambda_.72} parent=5 // pred_check
      _
    $region10: #{_lambda_.72} parent=5 // pred_check_branch
      %153 = sbr.rel (%p150) target = $region12
    $region11: #{_lambda_.72} parent=5 // pred_region
      %s154 = ssub.s32 %s10, 1
    $region12: #{_lambda_.72} parent=5 // pred_fallthru
      _
    %p155 = scmp.lt.s32.totalorder %s10, 2
    // Predicated region
    $region13: #{_lambda_.72} parent=5 // pred_check
      %p156 = pneg %p155
    $region14: #{_lambda_.72} parent=5 // pred_check_branch
      %158 = sbr.rel (%p156) target = $region16
    $region15: #{_lambda_.72} parent=5 // pred_region
      // Predicated region
      $region17: #{_lambda_.72} parent=15 // pred_check
        %p159 = pneg %p30
      $region18: #{_lambda_.72} parent=15 // pred_check_branch
        %161 = sbr.rel (%p159) target = $region20
      $region19: #{_lambda_.72} parent=15 // pred_region
        %s162 = smul.u32 2, %s10
        %p163 = scmp.lt.s32.totalorder %s162, 3
        %s164 = scalar_select %p163, %s162, 3
        %s165 = smul.addr %s164, 4
        %s166 = scalar_lea.vmem %s0, %s165
        %s167 = smul.u32 2, %s10
      $region20: #{_lambda_.72} parent=15 // pred_fallthru
        _
      // Predicated region
      $region21: #{_lambda_.72} parent=15 // pred_check
        %p168 = pneg %p56
      $region22: #{_lambda_.72} parent=15 // pred_check_branch
        %170 = sbr.rel (%p168) target = $region24
      $region23: #{_lambda_.72} parent=15 // pred_region
        %s171 = smul.u32 2, %s10
        %p172 = scmp.lt.s32.totalorder %s171, 3
        %s173 = scalar_select %p172, %s171, 3
        %s174 = smul.addr %s173, 4
        %s175 = scalar_lea.vmem %s1, %s174
        %s176 = smul.u32 2, %s10
      $region24: #{_lambda_.72} parent=15 // pred_fallthru
        _
      // Predicated region
      $region25: #{_lambda_.72} parent=15 // pred_check
        %p177 = pneg %p82
      $region26: #{_lambda_.72} parent=15 // pred_check_branch
        %179 = sbr.rel (%p177) target = $region28
      $region27: #{_lambda_.72} parent=15 // pred_region
        %s180 = smul.u32 2, %s10
        %p181 = scmp.lt.s32.totalorder %s180, 3
        %s182 = scalar_select %p181, %s180, 3
        %s183 = smul.addr %s182, 4
        %s184 = scalar_lea.vmem %s2, %s183
        %s185 = smul.u32 2, %s10
      $region28: #{_lambda_.72} parent=15 // pred_fallthru
        _
      // Predicated region
      $region29: #{_lambda_.72} parent=15 // pred_check
        %p186 = pneg %p108
      $region30: #{_lambda_.72} parent=15 // pred_check_branch
        %188 = sbr.rel (%p186) target = $region32
      $region31: #{_lambda_.72} parent=15 // pred_region
        %s189 = smul.u32 2, %s10
        %p190 = scmp.lt.s32.totalorder %s189, 3
        %s191 = scalar_select %p190, %s189, 3
        %s192 = smul.addr %s191, 4
        %s193 = scalar_lea.vmem %s3, %s192
        %s194 = smul.u32 2, %s10
      $region32: #{_lambda_.72} parent=15 // pred_fallthru
        _
    $region16: #{_lambda_.72} parent=5 // pred_fallthru
      _
    %p195 = scmp.le.s32.totalorder 1, %s10
    %p196 = scmp.lt.s32.totalorder %s10, 3
    %p197 = pnand %p195, %p196
    %p198 = pneg %p197
    // Predicated region
    $region33: #{_lambda_.72} parent=5 // pred_check
      _
    $region34: #{_lambda_.72} parent=5 // pred_check_branch
      %200 = sbr.rel (%p197) target = $region36
    $region35: #{_lambda_.72} parent=5 // pred_region
      %s201 = ssub.s32 %s10, 1
      %s202 = smul.u32 2, %s15
      %p203 = scmp.lt.s32.totalorder %s202, 3
      %s204 = scalar_select %p203, %s202, 3
      %s205 = smul.addr %s204, 4
      %s206 = scalar_lea.vmem %s0, %s205
      %p207 = pneg %p36
      %p208 = pneg %p33
      %s209 = smul.u32 2, %s15
      %p210 = scmp.lt.s32.totalorder %s209, 3
      %s211 = scalar_select %p210, %s209, 3
      %s212 = smul.addr %s211, 4
      %s213 = scalar_lea.vmem %s1, %s212
      %p214 = pneg %p62
      %p215 = pneg %p59
      %s216 = smul.u32 2, %s15
      %p217 = scmp.lt.s32.totalorder %s216, 3
      %s218 = scalar_select %p217, %s216, 3
      %s219 = smul.addr %s218, 4
      %s220 = scalar_lea.vmem %s2, %s219
      %p221 = pneg %p88
      %p222 = pneg %p85
      %s223 = smul.u32 2, %s15
      %p224 = scmp.lt.s32.totalorder %s223, 3
      %s225 = scalar_select %p224, %s223, 3
      %s226 = smul.addr %s225, 4
      %s227 = scalar_lea.vmem %s3, %s226
      %p228 = pneg %p114
      %p229 = pneg %p111
      %p230 = pneg %p140
      %p231 = pneg %p137
      %s232 = smul.u32 2, %s15
      %p233 = scmp.lt.s32.totalorder %s232, 3
      %s234 = scalar_select %p233, %s232, 3
      %s235 = smul.addr %s234, 4
      %s236 = scalar_lea.vmem %s4, %s235
      %s237 = smul.u32 2, %s15
      %p238 = scmp.lt.s32.totalorder %s237, 3
      %s239 = scalar_select %p238, %s237, 3
      %s240 = smul.addr %s239, 4
      %s241 = scalar_lea.vmem %s0, %s240
      %s242 = smul.u32 2, %s15
      %s243 = smul.u32 2, %s15
      %p244 = scmp.lt.s32.totalorder %s243, 3
      %s245 = scalar_select %p244, %s243, 3
      %s246 = smul.addr %s245, 4
      %s247 = scalar_lea.vmem %s1, %s246
      %s248 = smul.u32 2, %s15
      %s249 = smul.u32 2, %s15
      %p250 = scmp.lt.s32.totalorder %s249, 3
      %s251 = scalar_select %p250, %s249, 3
      %s252 = smul.addr %s251, 4
      %s253 = scalar_lea.vmem %s2, %s252
      %s254 = smul.u32 2, %s15
      %s255 = smul.u32 2, %s15
      %p256 = scmp.lt.s32.totalorder %s255, 3
      %s257 = scalar_select %p256, %s255, 3
      %s258 = smul.addr %s257, 4
      %s259 = scalar_lea.vmem %s3, %s258
      %s260 = smul.u32 2, %s15
      %s261 = smul.u32 2, %s15
      %p262 = scmp.lt.s32.totalorder %s261, 3
      %s263 = scalar_select %p262, %s261, 3
      %s264 = smul.addr %s263, 4
      %s265 = scalar_lea.vmem %s4, %s264
      %s266 = smul.u32 2, %s15
      %v267 = vld [vmem:[%s241] sm:$0xf]
      %v268 = vld [vmem:[%s241 + $0x4] sm:$0xf]
      %v269 = vld [vmem:[%s247] sm:$0xf]
      %v270 = vld [vmem:[%s247 + $0x4] sm:$0xf]
      %v271 = vmax.bf16 %v267, %v269
      %v272 = vmax.bf16 %v268, %v270
      %v273 = vld [vmem:[%s253] sm:$0xf]
      %v274 = vld [vmem:[%s253 + $0x4] sm:$0xf]
      %v275 = vmax.bf16 %v271, %v273
      %v276 = vmax.bf16 %v272, %v274
      %v277 = vld [vmem:[%s259] sm:$0xf]
      %v278 = vld [vmem:[%s259 + $0x4] sm:$0xf]
      %v279 = vmax.bf16 %v275, %v277
      %v280 = vmax.bf16 %v276, %v278
      %281 = vst [vmem:[%s265] sm:$0xf] %v279
      %282 = vst [vmem:[%s265 + $0x4] sm:$0xf] %v280
      %s283 = smul.u32 2, %s15
      %p284 = scmp.lt.s32.totalorder %s283, 3
      %s285 = scalar_select %p284, %s283, 3
      %s286 = smul.addr %s285, 4
      %s287 = scalar_lea.vmem %s4, %s286
      // Predicated region
      $region37: #{_lambda_.72} parent=35 // pred_check
        %p288 = pneg %p137
      $region38: #{_lambda_.72} parent=35 // pred_check_branch
        %290 = sbr.rel (%p288) target = $region40
      $region39: #{_lambda_.72} parent=35 // pred_region
        %s291 = smul.u32 2, %s15
      $region40: #{_lambda_.72} parent=35 // pred_fallthru
        _
    $region36: #{_lambda_.72} parent=5 // pred_fallthru
      _
    %p292 = scmp.le.s32.totalorder 2, %s10
    // Predicated region
    $region41: #{_lambda_.72} parent=5 // pred_check
      %p293 = pneg %p292
    $region42: #{_lambda_.72} parent=5 // pred_check_branch
      %295 = sbr.rel (%p293) target = $region44
    $region43: #{_lambda_.72} parent=5 // pred_region
      %s296 = ssub.s32 %s10, 2
      // Predicated region
      $region45: #{_lambda_.72} parent=43 // pred_check
        %p297 = pneg %p143
      $region46: #{_lambda_.72} parent=43 // pred_check_branch
        %299 = sbr.rel (%p297) target = $region48
      $region47: #{_lambda_.72} parent=43 // pred_region
        %s300 = smul.u32 2, %s16
        %p301 = scmp.lt.s32.totalorder %s300, 3
        %s302 = scalar_select %p301, %s300, 3
        %s303 = smul.addr %s302, 4
        %s304 = scalar_lea.vmem %s4, %s303
      $region48: #{_lambda_.72} parent=43 // pred_fallthru
        _
    $region44: #{_lambda_.72} parent=5 // pred_fallthru
      _
  $region6: #{_lambda_.72} parent=0 // loop_footer
    %s14 = sadd.s32 1, %s10
  $region7: #{_lambda_.72} parent=0 // loop_footer_branch
    %9 = sbr.rel target = $region3
  $region8: #{_lambda_.72} parent=0 // loop_exit
    _

// kernel: _lambda_.76
$region0: #{_lambda_.76}
  #allocation0 [shape = 'u32[]', space=smem, size = 0x4, offset = 0x4, fixed_abs, tag = 'smem constant byte address 0x4 - core index']
  #allocation1 [shape = 'u32[144,128]{1,0:T(1,128)}', space=vmem, size = 0x12000, scoped, tag = 'internal scratch']
  %s0 = inlined_call_operand.vmem [shape: bf16[32,256], index: 0, kind: input, shape index: {}]
  %s1 = inlined_call_operand.vmem [shape: bf16[256,128], index: 1, kind: input, shape index: {}]
  %s2 = inlined_call_operand.vmem [shape: f32[1,128], index: 2, kind: input, shape index: {}]
  %s3 = inlined_call_operand.vmem [shape: bf16[32,128], index: 3, kind: input, shape index: {}]
  %s4 = inlined_call_operand.vmem [shape: bf16[32,128], index: 4, kind: output, shape index: {}]
  %s5 = sld [smem:[#allocation0]]
  $region49: #{_lambda_.76} parent=0
    _
  %s7 = ssub.s32 1, %s5
  %s8 = scalar_select 0, %s7, %s5
  loop: start=0, step=1, limit=4
  $region2: #{_lambda_.76} parent=0 // loop_pre_header
    _
  $region3: #{_lambda_.76} parent=0 // loop_header
    %s10 = sphi 0, %s14
    %p11 = scmp.ge.s32.totalorder %s10, 4
    %s20 = sphi 0, %s22
    %s23 = sphi 0, %s20
    %s24 = sphi 0, %s23
    %s40 = sphi 0, %s24
    %s44 = sphi 0, %s44
    %s46 = sphi 0, %s44
    %s47 = sphi 0, %s46
    %s61 = sphi 0, %s47
    %s65 = sphi 0, %s65
    %s67 = sphi 0, %s65
    %s68 = sphi 0, %s67
    %s82 = sphi 0, %s68
    %s88 = sphi 0, %s90
    %s91 = sphi 0, %s88
    %s92 = sphi 0, %s91
    %s108 = sphi 0, %s92
    %s114 = sphi 0, %s116
    %s117 = sphi 0, %s114
    %s118 = sphi 0, %s117
    %s134 = sphi 0, %s118
  $region4: #{_lambda_.76} parent=0 // loop_header_branch
    %13 = sbr.rel (%p11) target = $region8
  $region5: #{_lambda_.76} parent=0 // loop_body
    %s15 = ssub.s32 %s10, 1
    %s16 = ssub.s32 %s10, 2
    %s17 = sadd.s32 %s10, 1
    %s18 = ssub.s32 %s10, %s17
    %p19 = scmp.eq.s32.totalorder %s18, 0
    %s21 = sadd.s32 %s20, 1
    %s22 = scalar_select %p19, %s20, %s21
    %p25 = pneg %p19
    %p26 = scmp.eq.s32.totalorder %s10, 1
    %p27 = por %p25, %p26
    %p28 = scmp.ne.s32.totalorder %s20, %s23
    %p29 = scmp.eq.s32.totalorder %s10, 0
    %p30 = por %p28, %p29
    %p31 = scmp.ne.s32.totalorder %s20, %s23
    %p32 = scmp.eq.s32.totalorder %s15, 1
    %p33 = por %p31, %p32
    %p34 = scmp.ne.s32.totalorder %s23, %s24
    %p35 = scmp.eq.s32.totalorder %s15, 0
    %p36 = por %p34, %p35
    %p37 = scmp.ne.s32.totalorder %s23, %s24
    %p38 = scmp.eq.s32.totalorder %s16, 1
    %p39 = por %p37, %p38
    %p41 = scmp.ne.s32.totalorder %s24, %s40
    %p42 = scmp.eq.s32.totalorder %s16, 0
    %p43 = por %p41, %p42
    %s45 = sadd.s32 %s44, 1
    %p48 = scmp.eq.s32.totalorder %s10, 1
    %p49 = scmp.ne.s32.totalorder %s44, %s46
    %p50 = scmp.eq.s32.totalorder %s10, 0
    %p51 = por %p49, %p50
    %p52 = scmp.ne.s32.totalorder %s44, %s46
    %p53 = scmp.eq.s32.totalorder %s15, 1
    %p54 = por %p52, %p53
    %p55 = scmp.ne.s32.totalorder %s46, %s47
    %p56 = scmp.eq.s32.totalorder %s15, 0
    %p57 = por %p55, %p56
    %p58 = scmp.ne.s32.totalorder %s46, %s47
    %p59 = scmp.eq.s32.totalorder %s16, 1
    %p60 = por %p58, %p59
    %p62 = scmp.ne.s32.totalorder %s47, %s61
    %p63 = scmp.eq.s32.totalorder %s16, 0
    %p64 = por %p62, %p63
    %s66 = sadd.s32 %s65, 1
    %p69 = scmp.eq.s32.totalorder %s10, 1
    %p70 = scmp.ne.s32.totalorder %s65, %s67
    %p71 = scmp.eq.s32.totalorder %s10, 0
    %p72 = por %p70, %p71
    %p73 = scmp.ne.s32.totalorder %s65, %s67
    %p74 = scmp.eq.s32.totalorder %s15, 1
    %p75 = por %p73, %p74
    %p76 = scmp.ne.s32.totalorder %s67, %s68
    %p77 = scmp.eq.s32.totalorder %s15, 0
    %p78 = por %p76, %p77
    %p79 = scmp.ne.s32.totalorder %s67, %s68
    %p80 = scmp.eq.s32.totalorder %s16, 1
    %p81 = por %p79, %p80
    %p83 = scmp.ne.s32.totalorder %s68, %s82
    %p84 = scmp.eq.s32.totalorder %s16, 0
    %p85 = por %p83, %p84
    %s86 = ssub.s32 %s10, %s17
    %p87 = scmp.eq.s32.totalorder %s86, 0
    %s89 = sadd.s32 %s88, 1
    %s90 = scalar_select %p87, %s88, %s89
    %p93 = pneg %p87
    %p94 = scmp.eq.s32.totalorder %s10, 1
    %p95 = por %p93, %p94
    %p96 = scmp.ne.s32.totalorder %s88, %s91
    %p97 = scmp.eq.s32.totalorder %s10, 0
    %p98 = por %p96, %p97
    %p99 = scmp.ne.s32.totalorder %s88, %s91
    %p100 = scmp.eq.s32.totalorder %s15, 1
    %p101 = por %p99, %p100
    %p102 = scmp.ne.s32.totalorder %s91, %s92
    %p103 = scmp.eq.s32.totalorder %s15, 0
    %p104 = por %p102, %p103
    %p105 = scmp.ne.s32.totalorder %s91, %s92
    %p106 = scmp.eq.s32.totalorder %s16, 1
    %p107 = por %p105, %p106
    %p109 = scmp.ne.s32.totalorder %s92, %s108
    %p110 = scmp.eq.s32.totalorder %s16, 0
    %p111 = por %p109, %p110
    %s112 = ssub.s32 %s10, %s17
    %p113 = scmp.eq.s32.totalorder %s112, 0
    %s115 = sadd.s32 %s114, 1
    %s116 = scalar_select %p113, %s114, %s115
    %p119 = pneg %p113
    %p120 = scmp.eq.s32.totalorder %s10, 1
    %p121 = por %p119, %p120
    %p122 = scmp.ne.s32.totalorder %s114, %s117
    %p123 = scmp.eq.s32.totalorder %s10, 0
    %p124 = por %p122, %p123
    %p125 = scmp.ne.s32.totalorder %s114, %s117
    %p126 = scmp.eq.s32.totalorder %s15, 1
    %p127 = por %p125, %p126
    %p128 = scmp.ne.s32.totalorder %s117, %s118
    %p129 = scmp.eq.s32.totalorder %s15, 0
    %p130 = por %p128, %p129
    %p131 = scmp.ne.s32.totalorder %s117, %s118
    %p132 = scmp.eq.s32.totalorder %s16, 1
    %p133 = por %p131, %p132
    %p135 = scmp.ne.s32.totalorder %s118, %s134
    %p136 = scmp.eq.s32.totalorder %s16, 0
    %p137 = por %p135, %p136
    %p138 = scmp.le.s32.totalorder 1, %s10
    %p139 = scmp.lt.s32.totalorder %s10, 3
    %p140 = pnand %p138, %p139
    %p141 = pneg %p140
    // Predicated region
    $region9: #{_lambda_.76} parent=5 // pred_check
      _
    $region10: #{_lambda_.76} parent=5 // pred_check_branch
      %143 = sbr.rel (%p140) target = $region12
    $region11: #{_lambda_.76} parent=5 // pred_region
      %s144 = ssub.s32 %s10, 1
      // Predicated region
      $region13: #{_lambda_.76} parent=11 // pred_check
        %p145 = pneg %p57
      $region14: #{_lambda_.76} parent=11 // pred_check_branch
        %147 = sbr.rel (%p145) target = $region16
      $region15: #{_lambda_.76} parent=11 // pred_region
        _
      $region16: #{_lambda_.76} parent=11 // pred_fallthru
        _
      // Predicated region
      $region17: #{_lambda_.76} parent=11 // pred_check
        %p148 = pneg %p78
      $region18: #{_lambda_.76} parent=11 // pred_check_branch
        %150 = sbr.rel (%p148) target = $region20
      $region19: #{_lambda_.76} parent=11 // pred_region
        _
      $region20: #{_lambda_.76} parent=11 // pred_fallthru
        _
    $region12: #{_lambda_.76} parent=5 // pred_fallthru
      _
    %p151 = scmp.lt.s32.totalorder %s10, 2
    // Predicated region
    $region21: #{_lambda_.76} parent=5 // pred_check
      %p152 = pneg %p151
    $region22: #{_lambda_.76} parent=5 // pred_check_branch
      %154 = sbr.rel (%p152) target = $region24
    $region23: #{_lambda_.76} parent=5 // pred_region
      // Predicated region
      $region25: #{_lambda_.76} parent=23 // pred_check
        %p155 = pneg %p30
      $region26: #{_lambda_.76} parent=23 // pred_check_branch
        %157 = sbr.rel (%p155) target = $region28
      $region27: #{_lambda_.76} parent=23 // pred_region
        %s158 = smul.u32 2, %s10
        %p159 = scmp.lt.s32.totalorder %s158, 3
        %s160 = scalar_select %p159, %s158, 3
        %s161 = smul.addr %s160, 2
        %s162 = smul.addr %s161, 4
        %s163 = scalar_lea.vmem %s0, %s162
        %s164 = smul.u32 2, %s10
      $region28: #{_lambda_.76} parent=23 // pred_fallthru
        _
      // Predicated region
      $region29: #{_lambda_.76} parent=23 // pred_check
        %p165 = pneg %p98
      $region30: #{_lambda_.76} parent=23 // pred_check_branch
        %167 = sbr.rel (%p165) target = $region32
      $region31: #{_lambda_.76} parent=23 // pred_region
        %s168 = smul.u32 2, %s10
        %p169 = scmp.lt.s32.totalorder %s168, 3
        %s170 = scalar_select %p169, %s168, 3
        %s171 = smul.addr %s170, 4
        %s172 = scalar_lea.vmem %s3, %s171
        %s173 = smul.u32 2, %s10
      $region32: #{_lambda_.76} parent=23 // pred_fallthru
        _
    $region24: #{_lambda_.76} parent=5 // pred_fallthru
      _
    %p174 = scmp.le.s32.totalorder 1, %s10
    %p175 = scmp.lt.s32.totalorder %s10, 3
    %p176 = pnand %p174, %p175
    %p177 = pneg %p176
    // Predicated region
    $region33: #{_lambda_.76} parent=5 // pred_check
      _
    $region34: #{_lambda_.76} parent=5 // pred_check_branch
      %179 = sbr.rel (%p176) target = $region36
    $region35: #{_lambda_.76} parent=5 // pred_region
      %s180 = ssub.s32 %s10, 1
      %s181 = smul.u32 2, %s15
      %p182 = scmp.lt.s32.totalorder %s181, 3
      %s183 = scalar_select %p182, %s181, 3
      %s184 = smul.addr %s183, 2
      %s185 = smul.addr %s184, 4
      %s186 = scalar_lea.vmem %s0, %s185
      %p187 = pneg %p36
      %p188 = pneg %p33
      %p189 = pneg %p57
      %p190 = pneg %p54
      %p191 = pneg %p78
      %p192 = pneg %p75
      %s193 = smul.u32 2, %s15
      %p194 = scmp.lt.s32.totalorder %s193, 3
      %s195 = scalar_select %p194, %s193, 3
      %s196 = smul.addr %s195, 4
      %s197 = scalar_lea.vmem %s3, %s196
      %p198 = pneg %p104
      %p199 = pneg %p101
      %p200 = pneg %p130
      %p201 = pneg %p127
      %s202 = smul.u32 2, %s15
      %p203 = scmp.lt.s32.totalorder %s202, 3
      %s204 = scalar_select %p203, %s202, 3
      %s205 = smul.addr %s204, 4
      %s206 = scalar_lea.vmem %s4, %s205
      %s207 = smul.u32 2, %s15
      %p208 = scmp.lt.s32.totalorder %s207, 3
      %s209 = scalar_select %p208, %s207, 3
      %s210 = smul.addr %s209, 2
      %s211 = smul.addr %s210, 4
      %s212 = scalar_lea.vmem %s0, %s211
      %s213 = smul.u32 2, %s15
      %s214 = smul.u32 2, %s15
      %p215 = scmp.lt.s32.totalorder %s214, 3
      %s216 = scalar_select %p215, %s214, 3
      %s217 = smul.addr %s216, 4
      %s218 = scalar_lea.vmem %s3, %s217
      %s219 = smul.u32 2, %s15
      %s220 = smul.u32 2, %s15
      %p221 = scmp.lt.s32.totalorder %s220, 3
      %s222 = scalar_select %p221, %s220, 3
      %s223 = smul.addr %s222, 4
      %s224 = scalar_lea.vmem %s4, %s223
      %s225 = smul.u32 2, %s15
      %v227 = vld [vmem:[%s212] sm:$0xff]
      %v228 = vld [vmem:[%s212 + $0x8] sm:$0xff]
      %v229 = vld [vmem:[%s1] sm:$0xf]
      %v230 = vld [vmem:[%s1 + $0x4] sm:$0xf]
      %v231 = vld [vmem:[%s1 + $0x8] sm:$0xf]
      %v232 = vld [vmem:[%s1 + $0xc] sm:$0xf]
      %v233 = vld [vmem:[%s1 + $0x10] sm:$0xf]
      %v234 = vld [vmem:[%s1 + $0x14] sm:$0xf]
      %v235 = vld [vmem:[%s1 + $0x18] sm:$0xf]
      %v236 = vld [vmem:[%s1 + $0x1c] sm:$0xf]
      %v237 = vld [vmem:[%s1 + $0x20] sm:$0xf]
      %v238 = vld [vmem:[%s1 + $0x24] sm:$0xf]
      %v239 = vld [vmem:[%s1 + $0x28] sm:$0xf]
      %v240 = vld [vmem:[%s1 + $0x2c] sm:$0xf]
      %v241 = vld [vmem:[%s1 + $0x30] sm:$0xf]
      %v242 = vld [vmem:[%s1 + $0x34] sm:$0xf]
      %v243 = vld [vmem:[%s1 + $0x38] sm:$0xf]
      %v244 = vld [vmem:[%s1 + $0x3c] sm:$0xf]
      %v245 = vld [vmem:[%s1 + $0x40] sm:$0xf]
      %v246 = vld [vmem:[%s1 + $0x44] sm:$0xf]
      %v247 = vld [vmem:[%s1 + $0x48] sm:$0xf]
      %v248 = vld [vmem:[%s1 + $0x4c] sm:$0xf]
      %v249 = vld [vmem:[%s1 + $0x50] sm:$0xf]
      %v250 = vld [vmem:[%s1 + $0x54] sm:$0xf]
      %v251 = vld [vmem:[%s1 + $0x58] sm:$0xf]
      %v252 = vld [vmem:[%s1 + $0x5c] sm:$0xf]
      %v253 = vld [vmem:[%s1 + $0x60] sm:$0xf]
      %v254 = vld [vmem:[%s1 + $0x64] sm:$0xf]
      %v255 = vld [vmem:[%s1 + $0x68] sm:$0xf]
      %v256 = vld [vmem:[%s1 + $0x6c] sm:$0xf]
      %v257 = vld [vmem:[%s1 + $0x70] sm:$0xf]
      %v258 = vld [vmem:[%s1 + $0x74] sm:$0xf]
      %v259 = vld [vmem:[%s1 + $0x78] sm:$0xf]
      %v260 = vld [vmem:[%s1 + $0x7c] sm:$0xf]
      %v261 = vld [vmem:[%s2] sm:$0x1]
      %v263 = vlaneseq
      %v264 = vshrl.u32 %v263, 7
      %v265 = vsub.s32 0, %v264
      %v266 = vrot.slane %v261, %v265
      %v270 = vunpack.c.l.b16 %v227
      %v271 = vunpack.c.h.b16 %v227
      %v272 = vunpack.c.l.b16 %v228
      %v273 = vunpack.c.h.b16 %v228
      %v274 = vpack.c.b16 %v272, %v270
      %v275 = vpack.c.b16 %v273, %v271
      %v310 = vunpack.c.l.b16 %v229
      %v311 = vunpack.c.l.b16 %v230
      %v312 = vunpack.c.l.b16 %v231
      %v313 = vunpack.c.l.b16 %v232
      %v314 = vunpack.c.l.b16 %v233
      %v315 = vunpack.c.l.b16 %v234
      %v316 = vunpack.c.l.b16 %v235
      %v317 = vunpack.c.l.b16 %v236
      %v318 = vunpack.c.l.b16 %v237
      %v319 = vunpack.c.l.b16 %v238
      %v320 = vunpack.c.l.b16 %v239
      %v321 = vunpack.c.l.b16 %v240
      %v322 = vunpack.c.l.b16 %v241
      %v323 = vunpack.c.l.b16 %v242
      %v324 = vunpack.c.l.b16 %v243
      %v325 = vunpack.c.l.b16 %v244
      %v326 = vunpack.c.l.b16 %v245
      %v327 = vunpack.c.l.b16 %v246
      %v328 = vunpack.c.l.b16 %v247
      %v329 = vunpack.c.l.b16 %v248
      %v330 = vunpack.c.l.b16 %v249
      %v331 = vunpack.c.l.b16 %v250
      %v332 = vunpack.c.l.b16 %v251
      %v333 = vunpack.c.l.b16 %v252
      %v334 = vunpack.c.l.b16 %v253
      %v335 = vunpack.c.l.b16 %v254
      %v336 = vunpack.c.l.b16 %v255
      %v337 = vunpack.c.l.b16 %v256
      %v338 = vunpack.c.l.b16 %v257
      %v339 = vunpack.c.l.b16 %v258
      %v340 = vunpack.c.l.b16 %v259
      %v341 = vunpack.c.l.b16 %v260
      %v342 = vpack.c.b16 %v311, %v310
      %v343 = vpack.c.b16 %v313, %v312
      %v344 = vpack.c.b16 %v315, %v314
      %v345 = vpack.c.b16 %v317, %v316
      %v346 = vpack.c.b16 %v319, %v318
      %v347 = vpack.c.b16 %v321, %v320
      %v348 = vpack.c.b16 %v323, %v322
      %v349 = vpack.c.b16 %v325, %v324
      %v350 = vpack.c.b16 %v327, %v326
      %v351 = vpack.c.b16 %v329, %v328
      %v352 = vpack.c.b16 %v331, %v330
      %v353 = vpack.c.b16 %v333, %v332
      %v354 = vpack.c.b16 %v335, %v334
      %v355 = vpack.c.b16 %v337, %v336
      %v356 = vpack.c.b16 %v339, %v338
      %v357 = vpack.c.b16 %v341, %v340
      %374 = vmatprep.subr.bf16.mxu0 0
      %375 = vmatpush1.bf16.msra.mxu0 %v342
      %376 = vmatprep.subr.bf16.mxu0 0
      %377 = vmatpush1.bf16.msra.mxu0 %v343
      %378 = vmatprep.subr.bf16.mxu0 0
      %379 = vmatpush1.bf16.msra.mxu0 %v344
      %380 = vmatprep.subr.bf16.mxu0 0
      %381 = vmatpush1.bf16.msra.mxu0 %v345
      %382 = vmatprep.subr.bf16.mxu0 0
      %383 = vmatpush1.bf16.msra.mxu0 %v346
      %384 = vmatprep.subr.bf16.mxu0 0
      %385 = vmatpush1.bf16.msra.mxu0 %v347
      %386 = vmatprep.subr.bf16.mxu0 0
      %387 = vmatpush1.bf16.msra.mxu0 %v348
      %388 = vmatprep.subr.bf16.mxu0 0
      %389 = vmatpush1.bf16.msra.mxu0 %v349
      %390 = vmatprep.subr.bf16.mxu0 0
      %391 = vmatpush1.bf16.msra.mxu0 %v350
      %392 = vmatprep.subr.bf16.mxu0 0
      %393 = vmatpush1.bf16.msra.mxu0 %v351
      %394 = vmatprep.subr.bf16.mxu0 0
      %395 = vmatpush1.bf16.msra.mxu0 %v352
      %396 = vmatprep.subr.bf16.mxu0 0
      %397 = vmatpush1.bf16.msra.mxu0 %v353
      %398 = vmatprep.subr.bf16.mxu0 0
      %399 = vmatpush1.bf16.msra.mxu0 %v354
      %400 = vmatprep.subr.bf16.mxu0 0
      %401 = vmatpush1.bf16.msra.mxu0 %v355
      %402 = vmatprep.subr.bf16.mxu0 0
      %403 = vmatpush1.bf16.msra.mxu0 %v356
      %404 = vmatprep.subr.bf16.mxu0 0
      %405 = vmatpush1.bf16.msra.mxu0 %v357
      %406 = vmatprep.mubr.bf16.mxu0 %v275
      %407 = vmatmul.mubr.bf16.gmra.mrb[0].mxu0 %v274
      %v408 = vpop.f32.mrb[0].mxu0
      %v409 = vadd.f32 %v266, %v408
      %v410 = vpop.f32.mrb[0].mxu0
      %v411 = vpop.f32.mrb[0].mxu0
      %v412 = vadd.f32 %v266, %v411
      %v413 = vpop.f32.mrb[0].mxu0
      %414 = vdwg.mxu0
      %v415 = vld [vmem:[%s218] sm:$0xf]
      %v416 = vld [vmem:[%s218 + $0x4] sm:$0xf]
      %v417 = vunpack.c.l.bf16 %v415
      %v418 = vunpack.c.l.bf16 %v416
      %v419 = vadd.f32 %v409, %v417
      %v420 = vadd.f32 %v412, %v418
      %v421 = vmax.f32 %v419, 0.0
      %v422 = vmax.f32 %v420, 0.0
      %v423 = vpack.c.bf16 %v422, %v421
      %v425 = vunpack.c.l.b16 %v423
      %v426 = vunpack.c.h.b16 %v423
      %v427 = vpack.c.b16 %v425, %v425
      %v428 = vpack.c.b16 %v426, %v426
      %431 = vst [vmem:[%s224] sm:$0xf] %v427
      %432 = vst [vmem:[%s224 + $0x4] sm:$0xf] %v428
      %s433 = smul.u32 2, %s15
      %p434 = scmp.lt.s32.totalorder %s433, 3
      %s435 = scalar_select %p434, %s433, 3
      %s436 = smul.addr %s435, 4
      %s437 = scalar_lea.vmem %s4, %s436
      // Predicated region
      $region37: #{_lambda_.76} parent=35 // pred_check
        %p438 = pneg %p127
      $region38: #{_lambda_.76} parent=35 // pred_check_branch
        %440 = sbr.rel (%p438) target = $region40
      $region39: #{_lambda_.76} parent=35 // pred_region
        %s441 = smul.u32 2, %s15
      $region40: #{_lambda_.76} parent=35 // pred_fallthru
        _
    $region36: #{_lambda_.76} parent=5 // pred_fallthru
      _
    %p442 = scmp.le.s32.totalorder 2, %s10
    // Predicated region
    $region41: #{_lambda_.76} parent=5 // pred_check
      %p443 = pneg %p442
    $region42: #{_lambda_.76} parent=5 // pred_check_branch
      %445 = sbr.rel (%p443) target = $region44
    $region43: #{_lambda_.76} parent=5 // pred_region
      %s446 = ssub.s32 %s10, 2
      // Predicated region
      $region45: #{_lambda_.76} parent=43 // pred_check
        %p447 = pneg %p133
      $region46: #{_lambda_.76} parent=43 // pred_check_branch
        %449 = sbr.rel (%p447) target = $region48
      $region47: #{_lambda_.76} parent=43 // pred_region
        %s450 = smul.u32 2, %s16
        %p451 = scmp.lt.s32.totalorder %s450, 3
        %s452 = scalar_select %p451, %s450, 3
        %s453 = smul.addr %s452, 4
        %s454 = scalar_lea.vmem %s4, %s453
      $region48: #{_lambda_.76} parent=43 // pred_fallthru
        _
    $region44: #{_lambda_.76} parent=5 // pred_fallthru
      _
  $region6: #{_lambda_.76} parent=0 // loop_footer
    %s14 = sadd.s32 1, %s10
  $region7: #{_lambda_.76} parent=0 // loop_footer_branch
    %9 = sbr.rel target = $region3
  $region8: #{_lambda_.76} parent=0 // loop_exit
    _

// kernel: _lambda_.73
$region0: #{_lambda_.73}
  #allocation0 [shape = 'u32[]', space=smem, size = 0x4, offset = 0x4, fixed_abs, tag = 'smem constant byte address 0x4 - core index']
  #allocation1 [shape = 'u32[144,128]{1,0:T(1,128)}', space=vmem, size = 0x12000, scoped, tag = 'internal scratch']
  %s0 = inlined_call_operand.vmem [shape: bf16[32,128], index: 0, kind: input, shape index: {}]
  %s1 = inlined_call_operand.vmem [shape: bf16[128,128], index: 1, kind: input, shape index: {}]
  %s2 = inlined_call_operand.vmem [shape: f32[1,128], index: 2, kind: input, shape index: {}]
  %s3 = inlined_call_operand.vmem [shape: bf16[32,128], index: 3, kind: output, shape index: {}]
  %s4 = sld [smem:[#allocation0]]
  $region45: #{_lambda_.73} parent=0
    _
  %s6 = ssub.s32 1, %s4
  %s7 = scalar_select 0, %s6, %s4
  loop: start=0, step=1, limit=4
  $region2: #{_lambda_.73} parent=0 // loop_pre_header
    _
  $region3: #{_lambda_.73} parent=0 // loop_header
    %s9 = sphi 0, %s13
    %p10 = scmp.ge.s32.totalorder %s9, 4
    %s19 = sphi 0, %s21
    %s22 = sphi 0, %s19
    %s23 = sphi 0, %s22
    %s39 = sphi 0, %s23
    %s43 = sphi 0, %s43
    %s45 = sphi 0, %s43
    %s46 = sphi 0, %s45
    %s60 = sphi 0, %s46
    %s64 = sphi 0, %s64
    %s66 = sphi 0, %s64
    %s67 = sphi 0, %s66
    %s81 = sphi 0, %s67
    %s87 = sphi 0, %s89
    %s90 = sphi 0, %s87
    %s91 = sphi 0, %s90
    %s107 = sphi 0, %s91
  $region4: #{_lambda_.73} parent=0 // loop_header_branch
    %12 = sbr.rel (%p10) target = $region8
  $region5: #{_lambda_.73} parent=0 // loop_body
    %s14 = ssub.s32 %s9, 1
    %s15 = ssub.s32 %s9, 2
    %s16 = sadd.s32 %s9, 1
    %s17 = ssub.s32 %s9, %s16
    %p18 = scmp.eq.s32.totalorder %s17, 0
    %s20 = sadd.s32 %s19, 1
    %s21 = scalar_select %p18, %s19, %s20
    %p24 = pneg %p18
    %p25 = scmp.eq.s32.totalorder %s9, 1
    %p26 = por %p24, %p25
    %p27 = scmp.ne.s32.totalorder %s19, %s22
    %p28 = scmp.eq.s32.totalorder %s9, 0
    %p29 = por %p27, %p28
    %p30 = scmp.ne.s32.totalorder %s19, %s22
    %p31 = scmp.eq.s32.totalorder %s14, 1
    %p32 = por %p30, %p31
    %p33 = scmp.ne.s32.totalorder %s22, %s23
    %p34 = scmp.eq.s32.totalorder %s14, 0
    %p35 = por %p33, %p34
    %p36 = scmp.ne.s32.totalorder %s22, %s23
    %p37 = scmp.eq.s32.totalorder %s15, 1
    %p38 = por %p36, %p37
    %p40 = scmp.ne.s32.totalorder %s23, %s39
    %p41 = scmp.eq.s32.totalorder %s15, 0
    %p42 = por %p40, %p41
    %s44 = sadd.s32 %s43, 1
    %p47 = scmp.eq.s32.totalorder %s9, 1
    %p48 = scmp.ne.s32.totalorder %s43, %s45
    %p49 = scmp.eq.s32.totalorder %s9, 0
    %p50 = por %p48, %p49
    %p51 = scmp.ne.s32.totalorder %s43, %s45
    %p52 = scmp.eq.s32.totalorder %s14, 1
    %p53 = por %p51, %p52
    %p54 = scmp.ne.s32.totalorder %s45, %s46
    %p55 = scmp.eq.s32.totalorder %s14, 0
    %p56 = por %p54, %p55
    %p57 = scmp.ne.s32.totalorder %s45, %s46
    %p58 = scmp.eq.s32.totalorder %s15, 1
    %p59 = por %p57, %p58
    %p61 = scmp.ne.s32.totalorder %s46, %s60
    %p62 = scmp.eq.s32.totalorder %s15, 0
    %p63 = por %p61, %p62
    %s65 = sadd.s32 %s64, 1
    %p68 = scmp.eq.s32.totalorder %s9, 1
    %p69 = scmp.ne.s32.totalorder %s64, %s66
    %p70 = scmp.eq.s32.totalorder %s9, 0
    %p71 = por %p69, %p70
    %p72 = scmp.ne.s32.totalorder %s64, %s66
    %p73 = scmp.eq.s32.totalorder %s14, 1
    %p74 = por %p72, %p73
    %p75 = scmp.ne.s32.totalorder %s66, %s67
    %p76 = scmp.eq.s32.totalorder %s14, 0
    %p77 = por %p75, %p76
    %p78 = scmp.ne.s32.totalorder %s66, %s67
    %p79 = scmp.eq.s32.totalorder %s15, 1
    %p80 = por %p78, %p79
    %p82 = scmp.ne.s32.totalorder %s67, %s81
    %p83 = scmp.eq.s32.totalorder %s15, 0
    %p84 = por %p82, %p83
    %s85 = ssub.s32 %s9, %s16
    %p86 = scmp.eq.s32.totalorder %s85, 0
    %s88 = sadd.s32 %s87, 1
    %s89 = scalar_select %p86, %s87, %s88
    %p92 = pneg %p86
    %p93 = scmp.eq.s32.totalorder %s9, 1
    %p94 = por %p92, %p93
    %p95 = scmp.ne.s32.totalorder %s87, %s90
    %p96 = scmp.eq.s32.totalorder %s9, 0
    %p97 = por %p95, %p96
    %p98 = scmp.ne.s32.totalorder %s87, %s90
    %p99 = scmp.eq.s32.totalorder %s14, 1
    %p100 = por %p98, %p99
    %p101 = scmp.ne.s32.totalorder %s90, %s91
    %p102 = scmp.eq.s32.totalorder %s14, 0
    %p103 = por %p101, %p102
    %p104 = scmp.ne.s32.totalorder %s90, %s91
    %p105 = scmp.eq.s32.totalorder %s15, 1
    %p106 = por %p104, %p105
    %p108 = scmp.ne.s32.totalorder %s91, %s107
    %p109 = scmp.eq.s32.totalorder %s15, 0
    %p110 = por %p108, %p109
    %p111 = scmp.le.s32.totalorder 1, %s9
    %p112 = scmp.lt.s32.totalorder %s9, 3
    %p113 = pnand %p111, %p112
    %p114 = pneg %p113
    // Predicated region
    $region9: #{_lambda_.73} parent=5 // pred_check
      _
    $region10: #{_lambda_.73} parent=5 // pred_check_branch
      %116 = sbr.rel (%p113) target = $region12
    $region11: #{_lambda_.73} parent=5 // pred_region
      %s117 = ssub.s32 %s9, 1
      // Predicated region
      $region13: #{_lambda_.73} parent=11 // pred_check
        %p118 = pneg %p56
      $region14: #{_lambda_.73} parent=11 // pred_check_branch
        %120 = sbr.rel (%p118) target = $region16
      $region15: #{_lambda_.73} parent=11 // pred_region
        _
      $region16: #{_lambda_.73} parent=11 // pred_fallthru
        _
      // Predicated region
      $region17: #{_lambda_.73} parent=11 // pred_check
        %p121 = pneg %p77
      $region18: #{_lambda_.73} parent=11 // pred_check_branch
        %123 = sbr.rel (%p121) target = $region20
      $region19: #{_lambda_.73} parent=11 // pred_region
        _
      $region20: #{_lambda_.73} parent=11 // pred_fallthru
        _
    $region12: #{_lambda_.73} parent=5 // pred_fallthru
      _
    %p124 = scmp.lt.s32.totalorder %s9, 2
    // Predicated region
    $region21: #{_lambda_.73} parent=5 // pred_check
      %p125 = pneg %p124
    $region22: #{_lambda_.73} parent=5 // pred_check_branch
      %127 = sbr.rel (%p125) target = $region24
    $region23: #{_lambda_.73} parent=5 // pred_region
      // Predicated region
      $region25: #{_lambda_.73} parent=23 // pred_check
        %p128 = pneg %p29
      $region26: #{_lambda_.73} parent=23 // pred_check_branch
        %130 = sbr.rel (%p128) target = $region28
      $region27: #{_lambda_.73} parent=23 // pred_region
        %s131 = smul.u32 2, %s9
        %p132 = scmp.lt.s32.totalorder %s131, 3
        %s133 = scalar_select %p132, %s131, 3
        %s134 = smul.addr %s133, 4
        %s135 = scalar_lea.vmem %s0, %s134
        %s136 = smul.u32 2, %s9
      $region28: #{_lambda_.73} parent=23 // pred_fallthru
        _
    $region24: #{_lambda_.73} parent=5 // pred_fallthru
      _
    %p137 = scmp.le.s32.totalorder 1, %s9
    %p138 = scmp.lt.s32.totalorder %s9, 3
    %p139 = pnand %p137, %p138
    %p140 = pneg %p139
    // Predicated region
    $region29: #{_lambda_.73} parent=5 // pred_check
      _
    $region30: #{_lambda_.73} parent=5 // pred_check_branch
      %142 = sbr.rel (%p139) target = $region32
    $region31: #{_lambda_.73} parent=5 // pred_region
      %s143 = ssub.s32 %s9, 1
      %s144 = smul.u32 2, %s14
      %p145 = scmp.lt.s32.totalorder %s144, 3
      %s146 = scalar_select %p145, %s144, 3
      %s147 = smul.addr %s146, 4
      %s148 = scalar_lea.vmem %s0, %s147
      %p149 = pneg %p35
      %p150 = pneg %p32
      %p151 = pneg %p56
      %p152 = pneg %p53
      %p153 = pneg %p77
      %p154 = pneg %p74
      %p155 = pneg %p103
      %p156 = pneg %p100
      %s157 = smul.u32 2, %s14
      %p158 = scmp.lt.s32.totalorder %s157, 3
      %s159 = scalar_select %p158, %s157, 3
      %s160 = smul.addr %s159, 4
      %s161 = scalar_lea.vmem %s3, %s160
      %s162 = smul.u32 2, %s14
      %p163 = scmp.lt.s32.totalorder %s162, 3
      %s164 = scalar_select %p163, %s162, 3
      %s165 = smul.addr %s164, 4
      %s166 = scalar_lea.vmem %s0, %s165
      %s167 = smul.u32 2, %s14
      %s168 = smul.u32 2, %s14
      %p169 = scmp.lt.s32.totalorder %s168, 3
      %s170 = scalar_select %p169, %s168, 3
      %s171 = smul.addr %s170, 4
      %s172 = scalar_lea.vmem %s3, %s171
      %s173 = smul.u32 2, %s14
      %v175 = vld [vmem:[%s166] sm:$0xf]
      %v176 = vld [vmem:[%s166 + $0x4] sm:$0xf]
      %v177 = vld [vmem:[%s1] sm:$0xf]
      %v178 = vld [vmem:[%s1 + $0x4] sm:$0xf]
      %v179 = vld [vmem:[%s1 + $0x8] sm:$0xf]
      %v180 = vld [vmem:[%s1 + $0xc] sm:$0xf]
      %v181 = vld [vmem:[%s1 + $0x10] sm:$0xf]
      %v182 = vld [vmem:[%s1 + $0x14] sm:$0xf]
      %v183 = vld [vmem:[%s1 + $0x18] sm:$0xf]
      %v184 = vld [vmem:[%s1 + $0x1c] sm:$0xf]
      %v185 = vld [vmem:[%s1 + $0x20] sm:$0xf]
      %v186 = vld [vmem:[%s1 + $0x24] sm:$0xf]
      %v187 = vld [vmem:[%s1 + $0x28] sm:$0xf]
      %v188 = vld [vmem:[%s1 + $0x2c] sm:$0xf]
      %v189 = vld [vmem:[%s1 + $0x30] sm:$0xf]
      %v190 = vld [vmem:[%s1 + $0x34] sm:$0xf]
      %v191 = vld [vmem:[%s1 + $0x38] sm:$0xf]
      %v192 = vld [vmem:[%s1 + $0x3c] sm:$0xf]
      %v193 = vld [vmem:[%s2] sm:$0x1]
      %v195 = vlaneseq
      %v196 = vshrl.u32 %v195, 7
      %v197 = vsub.s32 0, %v196
      %v198 = vrot.slane %v193, %v197
      %v202 = vunpack.c.l.b16 %v175
      %v203 = vunpack.c.l.b16 %v176
      %v204 = vpack.c.b16 %v203, %v202
      %v222 = vunpack.c.l.b16 %v177
      %v223 = vunpack.c.l.b16 %v178
      %v224 = vunpack.c.l.b16 %v179
      %v225 = vunpack.c.l.b16 %v180
      %v226 = vunpack.c.l.b16 %v181
      %v227 = vunpack.c.l.b16 %v182
      %v228 = vunpack.c.l.b16 %v183
      %v229 = vunpack.c.l.b16 %v184
      %v230 = vunpack.c.l.b16 %v185
      %v231 = vunpack.c.l.b16 %v186
      %v232 = vunpack.c.l.b16 %v187
      %v233 = vunpack.c.l.b16 %v188
      %v234 = vunpack.c.l.b16 %v189
      %v235 = vunpack.c.l.b16 %v190
      %v236 = vunpack.c.l.b16 %v191
      %v237 = vunpack.c.l.b16 %v192
      %v238 = vpack.c.b16 %v223, %v222
      %v239 = vpack.c.b16 %v225, %v224
      %v240 = vpack.c.b16 %v227, %v226
      %v241 = vpack.c.b16 %v229, %v228
      %v242 = vpack.c.b16 %v231, %v230
      %v243 = vpack.c.b16 %v233, %v232
      %v244 = vpack.c.b16 %v235, %v234
      %v245 = vpack.c.b16 %v237, %v236
      %254 = vmatprep.subr.bf16.mxu0 0
      %255 = vmatpush1.bf16.msra.mxu0 %v238
      %256 = vmatprep.subr.bf16.mxu0 0
      %257 = vmatpush1.bf16.msra.mxu0 %v239
      %258 = vmatprep.subr.bf16.mxu0 0
      %259 = vmatpush1.bf16.msra.mxu0 %v240
      %260 = vmatprep.subr.bf16.mxu0 0
      %261 = vmatpush1.bf16.msra.mxu0 %v241
      %262 = vmatprep.subr.bf16.mxu0 0
      %263 = vmatpush1.bf16.msra.mxu0 %v242
      %264 = vmatprep.subr.bf16.mxu0 0
      %265 = vmatpush1.bf16.msra.mxu0 %v243
      %266 = vmatprep.subr.bf16.mxu0 0
      %267 = vmatpush1.bf16.msra.mxu0 %v244
      %268 = vmatprep.subr.bf16.mxu0 0
      %269 = vmatpush1.bf16.msra.mxu0 %v245
      %270 = vmatprep.subr.bf16.mxu0 0
      %271 = vmatpush1.bf16.msra.mxu0 0
      %272 = vmatprep.subr.bf16.mxu0 0
      %273 = vmatpush1.bf16.msra.mxu0 0
      %274 = vmatprep.subr.bf16.mxu0 0
      %275 = vmatpush1.bf16.msra.mxu0 0
      %276 = vmatprep.subr.bf16.mxu0 0
      %277 = vmatpush1.bf16.msra.mxu0 0
      %278 = vmatprep.subr.bf16.mxu0 0
      %279 = vmatpush1.bf16.msra.mxu0 0
      %280 = vmatprep.subr.bf16.mxu0 0
      %281 = vmatpush1.bf16.msra.mxu0 0
      %282 = vmatprep.subr.bf16.mxu0 0
      %283 = vmatpush1.bf16.msra.mxu0 0
      %284 = vmatprep.subr.bf16.mxu0 0
      %285 = vmatpush1.bf16.msra.mxu0 0
      %286 = vmatprep.mubr.bf16.mxu0 0
      %287 = vmatmul.mubr.bf16.gmra.mrb[0].mxu0 %v204
      %v288 = vpop.f32.mrb[0].mxu0
      %v289 = vadd.f32 %v198, %v288
      %v290 = vpop.f32.mrb[0].mxu0
      %v291 = vpop.f32.mrb[0].mxu0
      %v292 = vadd.f32 %v198, %v291
      %v293 = vpop.f32.mrb[0].mxu0
      %294 = vdwg.mxu0
      %v295 = vpack.c.bf16 %v292, %v289
      %v297 = vunpack.c.l.b16 %v295
      %v298 = vunpack.c.h.b16 %v295
      %v299 = vpack.c.b16 %v297, %v297
      %v300 = vpack.c.b16 %v298, %v298
      %303 = vst [vmem:[%s172] sm:$0xf] %v299
      %304 = vst [vmem:[%s172 + $0x4] sm:$0xf] %v300
      %s305 = smul.u32 2, %s14
      %p306 = scmp.lt.s32.totalorder %s305, 3
      %s307 = scalar_select %p306, %s305, 3
      %s308 = smul.addr %s307, 4
      %s309 = scalar_lea.vmem %s3, %s308
      // Predicated region
      $region33: #{_lambda_.73} parent=31 // pred_check
        %p310 = pneg %p100
      $region34: #{_lambda_.73} parent=31 // pred_check_branch
        %312 = sbr.rel (%p310) target = $region36
      $region35: #{_lambda_.73} parent=31 // pred_region
        %s313 = smul.u32 2, %s14
      $region36: #{_lambda_.73} parent=31 // pred_fallthru
        _
    $region32: #{_lambda_.73} parent=5 // pred_fallthru
      _
    %p314 = scmp.le.s32.totalorder 2, %s9
    // Predicated region
    $region37: #{_lambda_.73} parent=5 // pred_check
      %p315 = pneg %p314
    $region38: #{_lambda_.73} parent=5 // pred_check_branch
      %317 = sbr.rel (%p315) target = $region40
    $region39: #{_lambda_.73} parent=5 // pred_region
      %s318 = ssub.s32 %s9, 2
      // Predicated region
      $region41: #{_lambda_.73} parent=39 // pred_check
        %p319 = pneg %p106
      $region42: #{_lambda_.73} parent=39 // pred_check_branch
        %321 = sbr.rel (%p319) target = $region44
      $region43: #{_lambda_.73} parent=39 // pred_region
        %s322 = smul.u32 2, %s15
        %p323 = scmp.lt.s32.totalorder %s322, 3
        %s324 = scalar_select %p323, %s322, 3
        %s325 = smul.addr %s324, 4
        %s326 = scalar_lea.vmem %s3, %s325
      $region44: #{_lambda_.73} parent=39 // pred_fallthru
        _
    $region40: #{_lambda_.73} parent=5 // pred_fallthru
      _
  $region6: #{_lambda_.73} parent=0 // loop_footer
    %s13 = sadd.s32 1, %s9
  $region7: #{_lambda_.73} parent=0 // loop_footer_branch
    %8 = sbr.rel target = $region3
  $region8: #{_lambda_.73} parent=0 // loop_exit
    _

// kernel: _lambda_.77
$region0: #{_lambda_.77}
  #allocation0 [shape = 'u32[]', space=smem, size = 0x4, offset = 0x4, fixed_abs, tag = 'smem constant byte address 0x4 - core index']
  #allocation1 [shape = 'u32[144,128]{1,0:T(1,128)}', space=vmem, size = 0x12000, scoped, tag = 'internal scratch']
  %s0 = inlined_call_operand.vmem [shape: bf16[32,128], index: 0, kind: input, shape index: {}]
  %s1 = inlined_call_operand.vmem [shape: bf16[128,128], index: 1, kind: input, shape index: {}]
  %s2 = inlined_call_operand.vmem [shape: f32[1,128], index: 2, kind: input, shape index: {}]
  %s3 = inlined_call_operand.vmem [shape: bf16[32,128], index: 3, kind: output, shape index: {}]
  %s4 = sld [smem:[#allocation0]]
  $region45: #{_lambda_.77} parent=0
    _
  %s6 = ssub.s32 1, %s4
  %s7 = scalar_select 0, %s6, %s4
  loop: start=0, step=1, limit=4
  $region2: #{_lambda_.77} parent=0 // loop_pre_header
    _
  $region3: #{_lambda_.77} parent=0 // loop_header
    %s9 = sphi 0, %s13
    %p10 = scmp.ge.s32.totalorder %s9, 4
    %s19 = sphi 0, %s21
    %s22 = sphi 0, %s19
    %s23 = sphi 0, %s22
    %s39 = sphi 0, %s23
    %s43 = sphi 0, %s43
    %s45 = sphi 0, %s43
    %s46 = sphi 0, %s45
    %s60 = sphi 0, %s46
    %s64 = sphi 0, %s64
    %s66 = sphi 0, %s64
    %s67 = sphi 0, %s66
    %s81 = sphi 0, %s67
    %s87 = sphi 0, %s89
    %s90 = sphi 0, %s87
    %s91 = sphi 0, %s90
    %s107 = sphi 0, %s91
  $region4: #{_lambda_.77} parent=0 // loop_header_branch
    %12 = sbr.rel (%p10) target = $region8
  $region5: #{_lambda_.77} parent=0 // loop_body
    %s14 = ssub.s32 %s9, 1
    %s15 = ssub.s32 %s9, 2
    %s16 = sadd.s32 %s9, 1
    %s17 = ssub.s32 %s9, %s16
    %p18 = scmp.eq.s32.totalorder %s17, 0
    %s20 = sadd.s32 %s19, 1
    %s21 = scalar_select %p18, %s19, %s20
    %p24 = pneg %p18
    %p25 = scmp.eq.s32.totalorder %s9, 1
    %p26 = por %p24, %p25
    %p27 = scmp.ne.s32.totalorder %s19, %s22
    %p28 = scmp.eq.s32.totalorder %s9, 0
    %p29 = por %p27, %p28
    %p30 = scmp.ne.s32.totalorder %s19, %s22
    %p31 = scmp.eq.s32.totalorder %s14, 1
    %p32 = por %p30, %p31
    %p33 = scmp.ne.s32.totalorder %s22, %s23
    %p34 = scmp.eq.s32.totalorder %s14, 0
    %p35 = por %p33, %p34
    %p36 = scmp.ne.s32.totalorder %s22, %s23
    %p37 = scmp.eq.s32.totalorder %s15, 1
    %p38 = por %p36, %p37
    %p40 = scmp.ne.s32.totalorder %s23, %s39
    %p41 = scmp.eq.s32.totalorder %s15, 0
    %p42 = por %p40, %p41
    %s44 = sadd.s32 %s43, 1
    %p47 = scmp.eq.s32.totalorder %s9, 1
    %p48 = scmp.ne.s32.totalorder %s43, %s45
    %p49 = scmp.eq.s32.totalorder %s9, 0
    %p50 = por %p48, %p49
    %p51 = scmp.ne.s32.totalorder %s43, %s45
    %p52 = scmp.eq.s32.totalorder %s14, 1
    %p53 = por %p51, %p52
    %p54 = scmp.ne.s32.totalorder %s45, %s46
    %p55 = scmp.eq.s32.totalorder %s14, 0
    %p56 = por %p54, %p55
    %p57 = scmp.ne.s32.totalorder %s45, %s46
    %p58 = scmp.eq.s32.totalorder %s15, 1
    %p59 = por %p57, %p58
    %p61 = scmp.ne.s32.totalorder %s46, %s60
    %p62 = scmp.eq.s32.totalorder %s15, 0
    %p63 = por %p61, %p62
    %s65 = sadd.s32 %s64, 1
    %p68 = scmp.eq.s32.totalorder %s9, 1
    %p69 = scmp.ne.s32.totalorder %s64, %s66
    %p70 = scmp.eq.s32.totalorder %s9, 0
    %p71 = por %p69, %p70
    %p72 = scmp.ne.s32.totalorder %s64, %s66
    %p73 = scmp.eq.s32.totalorder %s14, 1
    %p74 = por %p72, %p73
    %p75 = scmp.ne.s32.totalorder %s66, %s67
    %p76 = scmp.eq.s32.totalorder %s14, 0
    %p77 = por %p75, %p76
    %p78 = scmp.ne.s32.totalorder %s66, %s67
    %p79 = scmp.eq.s32.totalorder %s15, 1
    %p80 = por %p78, %p79
    %p82 = scmp.ne.s32.totalorder %s67, %s81
    %p83 = scmp.eq.s32.totalorder %s15, 0
    %p84 = por %p82, %p83
    %s85 = ssub.s32 %s9, %s16
    %p86 = scmp.eq.s32.totalorder %s85, 0
    %s88 = sadd.s32 %s87, 1
    %s89 = scalar_select %p86, %s87, %s88
    %p92 = pneg %p86
    %p93 = scmp.eq.s32.totalorder %s9, 1
    %p94 = por %p92, %p93
    %p95 = scmp.ne.s32.totalorder %s87, %s90
    %p96 = scmp.eq.s32.totalorder %s9, 0
    %p97 = por %p95, %p96
    %p98 = scmp.ne.s32.totalorder %s87, %s90
    %p99 = scmp.eq.s32.totalorder %s14, 1
    %p100 = por %p98, %p99
    %p101 = scmp.ne.s32.totalorder %s90, %s91
    %p102 = scmp.eq.s32.totalorder %s14, 0
    %p103 = por %p101, %p102
    %p104 = scmp.ne.s32.totalorder %s90, %s91
    %p105 = scmp.eq.s32.totalorder %s15, 1
    %p106 = por %p104, %p105
    %p108 = scmp.ne.s32.totalorder %s91, %s107
    %p109 = scmp.eq.s32.totalorder %s15, 0
    %p110 = por %p108, %p109
    %p111 = scmp.le.s32.totalorder 1, %s9
    %p112 = scmp.lt.s32.totalorder %s9, 3
    %p113 = pnand %p111, %p112
    %p114 = pneg %p113
    // Predicated region
    $region9: #{_lambda_.77} parent=5 // pred_check
      _
    $region10: #{_lambda_.77} parent=5 // pred_check_branch
      %116 = sbr.rel (%p113) target = $region12
    $region11: #{_lambda_.77} parent=5 // pred_region
      %s117 = ssub.s32 %s9, 1
      // Predicated region
      $region13: #{_lambda_.77} parent=11 // pred_check
        %p118 = pneg %p56
      $region14: #{_lambda_.77} parent=11 // pred_check_branch
        %120 = sbr.rel (%p118) target = $region16
      $region15: #{_lambda_.77} parent=11 // pred_region
        _
      $region16: #{_lambda_.77} parent=11 // pred_fallthru
        _
      // Predicated region
      $region17: #{_lambda_.77} parent=11 // pred_check
        %p121 = pneg %p77
      $region18: #{_lambda_.77} parent=11 // pred_check_branch
        %123 = sbr.rel (%p121) target = $region20
      $region19: #{_lambda_.77} parent=11 // pred_region
        _
      $region20: #{_lambda_.77} parent=11 // pred_fallthru
        _
    $region12: #{_lambda_.77} parent=5 // pred_fallthru
      _
    %p124 = scmp.lt.s32.totalorder %s9, 2
    // Predicated region
    $region21: #{_lambda_.77} parent=5 // pred_check
      %p125 = pneg %p124
    $region22: #{_lambda_.77} parent=5 // pred_check_branch
      %127 = sbr.rel (%p125) target = $region24
    $region23: #{_lambda_.77} parent=5 // pred_region
      // Predicated region
      $region25: #{_lambda_.77} parent=23 // pred_check
        %p128 = pneg %p29
      $region26: #{_lambda_.77} parent=23 // pred_check_branch
        %130 = sbr.rel (%p128) target = $region28
      $region27: #{_lambda_.77} parent=23 // pred_region
        %s131 = smul.u32 2, %s9
        %p132 = scmp.lt.s32.totalorder %s131, 3
        %s133 = scalar_select %p132, %s131, 3
        %s134 = smul.addr %s133, 4
        %s135 = scalar_lea.vmem %s0, %s134
        %s136 = smul.u32 2, %s9
      $region28: #{_lambda_.77} parent=23 // pred_fallthru
        _
    $region24: #{_lambda_.77} parent=5 // pred_fallthru
      _
    %p137 = scmp.le.s32.totalorder 1, %s9
    %p138 = scmp.lt.s32.totalorder %s9, 3
    %p139 = pnand %p137, %p138
    %p140 = pneg %p139
    // Predicated region
    $region29: #{_lambda_.77} parent=5 // pred_check
      _
    $region30: #{_lambda_.77} parent=5 // pred_check_branch
      %142 = sbr.rel (%p139) target = $region32
    $region31: #{_lambda_.77} parent=5 // pred_region
      %s143 = ssub.s32 %s9, 1
      %s144 = smul.u32 2, %s14
      %p145 = scmp.lt.s32.totalorder %s144, 3
      %s146 = scalar_select %p145, %s144, 3
      %s147 = smul.addr %s146, 4
      %s148 = scalar_lea.vmem %s0, %s147
      %p149 = pneg %p35
      %p150 = pneg %p32
      %p151 = pneg %p56
      %p152 = pneg %p53
      %p153 = pneg %p77
      %p154 = pneg %p74
      %p155 = pneg %p103
      %p156 = pneg %p100
      %s157 = smul.u32 2, %s14
      %p158 = scmp.lt.s32.totalorder %s157, 3
      %s159 = scalar_select %p158, %s157, 3
      %s160 = smul.addr %s159, 4
      %s161 = scalar_lea.vmem %s3, %s160
      %s162 = smul.u32 2, %s14
      %p163 = scmp.lt.s32.totalorder %s162, 3
      %s164 = scalar_select %p163, %s162, 3
      %s165 = smul.addr %s164, 4
      %s166 = scalar_lea.vmem %s0, %s165
      %s167 = smul.u32 2, %s14
      %s168 = smul.u32 2, %s14
      %p169 = scmp.lt.s32.totalorder %s168, 3
      %s170 = scalar_select %p169, %s168, 3
      %s171 = smul.addr %s170, 4
      %s172 = scalar_lea.vmem %s3, %s171
      %s173 = smul.u32 2, %s14
      %v175 = vld [vmem:[%s166] sm:$0xf]
      %v176 = vld [vmem:[%s166 + $0x4] sm:$0xf]
      %v177 = vld [vmem:[%s1] sm:$0xf]
      %v178 = vld [vmem:[%s1 + $0x4] sm:$0xf]
      %v179 = vld [vmem:[%s1 + $0x8] sm:$0xf]
      %v180 = vld [vmem:[%s1 + $0xc] sm:$0xf]
      %v181 = vld [vmem:[%s1 + $0x10] sm:$0xf]
      %v182 = vld [vmem:[%s1 + $0x14] sm:$0xf]
      %v183 = vld [vmem:[%s1 + $0x18] sm:$0xf]
      %v184 = vld [vmem:[%s1 + $0x1c] sm:$0xf]
      %v185 = vld [vmem:[%s1 + $0x20] sm:$0xf]
      %v186 = vld [vmem:[%s1 + $0x24] sm:$0xf]
      %v187 = vld [vmem:[%s1 + $0x28] sm:$0xf]
      %v188 = vld [vmem:[%s1 + $0x2c] sm:$0xf]
      %v189 = vld [vmem:[%s1 + $0x30] sm:$0xf]
      %v190 = vld [vmem:[%s1 + $0x34] sm:$0xf]
      %v191 = vld [vmem:[%s1 + $0x38] sm:$0xf]
      %v192 = vld [vmem:[%s1 + $0x3c] sm:$0xf]
      %v193 = vld [vmem:[%s2] sm:$0x1]
      %v195 = vlaneseq
      %v196 = vshrl.u32 %v195, 7
      %v197 = vsub.s32 0, %v196
      %v198 = vrot.slane %v193, %v197
      %v202 = vunpack.c.l.b16 %v175
      %v203 = vunpack.c.l.b16 %v176
      %v204 = vpack.c.b16 %v203, %v202
      %v222 = vunpack.c.l.b16 %v177
      %v223 = vunpack.c.l.b16 %v178
      %v224 = vunpack.c.l.b16 %v179
      %v225 = vunpack.c.l.b16 %v180
      %v226 = vunpack.c.l.b16 %v181
      %v227 = vunpack.c.l.b16 %v182
      %v228 = vunpack.c.l.b16 %v183
      %v229 = vunpack.c.l.b16 %v184
      %v230 = vunpack.c.l.b16 %v185
      %v231 = vunpack.c.l.b16 %v186
      %v232 = vunpack.c.l.b16 %v187
      %v233 = vunpack.c.l.b16 %v188
      %v234 = vunpack.c.l.b16 %v189
      %v235 = vunpack.c.l.b16 %v190
      %v236 = vunpack.c.l.b16 %v191
      %v237 = vunpack.c.l.b16 %v192
      %v238 = vpack.c.b16 %v223, %v222
      %v239 = vpack.c.b16 %v225, %v224
      %v240 = vpack.c.b16 %v227, %v226
      %v241 = vpack.c.b16 %v229, %v228
      %v242 = vpack.c.b16 %v231, %v230
      %v243 = vpack.c.b16 %v233, %v232
      %v244 = vpack.c.b16 %v235, %v234
      %v245 = vpack.c.b16 %v237, %v236
      %254 = vmatprep.subr.bf16.mxu0 0
      %255 = vmatpush1.bf16.msra.mxu0 %v238
      %256 = vmatprep.subr.bf16.mxu0 0
      %257 = vmatpush1.bf16.msra.mxu0 %v239
      %258 = vmatprep.subr.bf16.mxu0 0
      %259 = vmatpush1.bf16.msra.mxu0 %v240
      %260 = vmatprep.subr.bf16.mxu0 0
      %261 = vmatpush1.bf16.msra.mxu0 %v241
      %262 = vmatprep.subr.bf16.mxu0 0
      %263 = vmatpush1.bf16.msra.mxu0 %v242
      %264 = vmatprep.subr.bf16.mxu0 0
      %265 = vmatpush1.bf16.msra.mxu0 %v243
      %266 = vmatprep.subr.bf16.mxu0 0
      %267 = vmatpush1.bf16.msra.mxu0 %v244
      %268 = vmatprep.subr.bf16.mxu0 0
      %269 = vmatpush1.bf16.msra.mxu0 %v245
      %270 = vmatprep.subr.bf16.mxu0 0
      %271 = vmatpush1.bf16.msra.mxu0 0
      %272 = vmatprep.subr.bf16.mxu0 0
      %273 = vmatpush1.bf16.msra.mxu0 0
      %274 = vmatprep.subr.bf16.mxu0 0
      %275 = vmatpush1.bf16.msra.mxu0 0
      %276 = vmatprep.subr.bf16.mxu0 0
      %277 = vmatpush1.bf16.msra.mxu0 0
      %278 = vmatprep.subr.bf16.mxu0 0
      %279 = vmatpush1.bf16.msra.mxu0 0
      %280 = vmatprep.subr.bf16.mxu0 0
      %281 = vmatpush1.bf16.msra.mxu0 0
      %282 = vmatprep.subr.bf16.mxu0 0
      %283 = vmatpush1.bf16.msra.mxu0 0
      %284 = vmatprep.subr.bf16.mxu0 0
      %285 = vmatpush1.bf16.msra.mxu0 0
      %286 = vmatprep.mubr.bf16.mxu0 0
      %287 = vmatmul.mubr.bf16.gmra.mrb[0].mxu0 %v204
      %v288 = vpop.f32.mrb[0].mxu0
      %v289 = vadd.f32 %v198, %v288
      %v290 = vpop.f32.mrb[0].mxu0
      %v291 = vpop.f32.mrb[0].mxu0
      %v292 = vadd.f32 %v198, %v291
      %v293 = vpop.f32.mrb[0].mxu0
      %294 = vdwg.mxu0
      %v295 = vmax.f32 %v289, 0.0
      %v296 = vmax.f32 %v292, 0.0
      %v297 = vpack.c.bf16 %v296, %v295
      %v299 = vunpack.c.l.b16 %v297
      %v300 = vunpack.c.h.b16 %v297
      %v301 = vpack.c.b16 %v299, %v299
      %v302 = vpack.c.b16 %v300, %v300
      %305 = vst [vmem:[%s172] sm:$0xf] %v301
      %306 = vst [vmem:[%s172 + $0x4] sm:$0xf] %v302
      %s307 = smul.u32 2, %s14
      %p308 = scmp.lt.s32.totalorder %s307, 3
      %s309 = scalar_select %p308, %s307, 3
      %s310 = smul.addr %s309, 4
      %s311 = scalar_lea.vmem %s3, %s310
      // Predicated region
      $region33: #{_lambda_.77} parent=31 // pred_check
        %p312 = pneg %p100
      $region34: #{_lambda_.77} parent=31 // pred_check_branch
        %314 = sbr.rel (%p312) target = $region36
      $region35: #{_lambda_.77} parent=31 // pred_region
        %s315 = smul.u32 2, %s14
      $region36: #{_lambda_.77} parent=31 // pred_fallthru
        _
    $region32: #{_lambda_.77} parent=5 // pred_fallthru
      _
    %p316 = scmp.le.s32.totalorder 2, %s9
    // Predicated region
    $region37: #{_lambda_.77} parent=5 // pred_check
      %p317 = pneg %p316
    $region38: #{_lambda_.77} parent=5 // pred_check_branch
      %319 = sbr.rel (%p317) target = $region40
    $region39: #{_lambda_.77} parent=5 // pred_region
      %s320 = ssub.s32 %s9, 2
      // Predicated region
      $region41: #{_lambda_.77} parent=39 // pred_check
        %p321 = pneg %p106
      $region42: #{_lambda_.77} parent=39 // pred_check_branch
        %323 = sbr.rel (%p321) target = $region44
      $region43: #{_lambda_.77} parent=39 // pred_region
        %s324 = smul.u32 2, %s15
        %p325 = scmp.lt.s32.totalorder %s324, 3
        %s326 = scalar_select %p325, %s324, 3
        %s327 = smul.addr %s326, 4
        %s328 = scalar_lea.vmem %s3, %s327
      $region44: #{_lambda_.77} parent=39 // pred_fallthru
        _
    $region40: #{_lambda_.77} parent=5 // pred_fallthru
      _
  $region6: #{_lambda_.77} parent=0 // loop_footer
    %s13 = sadd.s32 1, %s9
  $region7: #{_lambda_.77} parent=0 // loop_footer_branch
    %8 = sbr.rel target = $region3
  $region8: #{_lambda_.77} parent=0 // loop_exit
    _

// kernel: _lambda_.81
$region0: #{_lambda_.81}
  #allocation0 [shape = 'u32[]', space=smem, size = 0x4, offset = 0x4, fixed_abs, tag = 'smem constant byte address 0x4 - core index']
  #allocation1 [shape = 'u32[144,128]{1,0:T(1,128)}', space=vmem, size = 0x12000, scoped, tag = 'internal scratch']
  %s0 = inlined_call_operand.vmem [shape: bf16[32,128], index: 0, kind: input, shape index: {}]
  %s1 = inlined_call_operand.vmem [shape: bf16[128,128], index: 1, kind: input, shape index: {}]
  %s2 = inlined_call_operand.vmem [shape: f32[1,128], index: 2, kind: input, shape index: {}]
  %s3 = inlined_call_operand.vmem [shape: bf16[32,128], index: 3, kind: input, shape index: {}]
  %s4 = inlined_call_operand.vmem [shape: bf16[32,128], index: 4, kind: output, shape index: {}]
  %s5 = sld [smem:[#allocation0]]
  $region49: #{_lambda_.81} parent=0
    _
  %s7 = ssub.s32 1, %s5
  %s8 = scalar_select 0, %s7, %s5
  loop: start=0, step=1, limit=4
  $region2: #{_lambda_.81} parent=0 // loop_pre_header
    _
  $region3: #{_lambda_.81} parent=0 // loop_header
    %s10 = sphi 0, %s14
    %p11 = scmp.ge.s32.totalorder %s10, 4
    %s20 = sphi 0, %s22
    %s23 = sphi 0, %s20
    %s24 = sphi 0, %s23
    %s40 = sphi 0, %s24
    %s44 = sphi 0, %s44
    %s46 = sphi 0, %s44
    %s47 = sphi 0, %s46
    %s61 = sphi 0, %s47
    %s65 = sphi 0, %s65
    %s67 = sphi 0, %s65
    %s68 = sphi 0, %s67
    %s82 = sphi 0, %s68
    %s88 = sphi 0, %s90
    %s91 = sphi 0, %s88
    %s92 = sphi 0, %s91
    %s108 = sphi 0, %s92
    %s114 = sphi 0, %s116
    %s117 = sphi 0, %s114
    %s118 = sphi 0, %s117
    %s134 = sphi 0, %s118
  $region4: #{_lambda_.81} parent=0 // loop_header_branch
    %13 = sbr.rel (%p11) target = $region8
  $region5: #{_lambda_.81} parent=0 // loop_body
    %s15 = ssub.s32 %s10, 1
    %s16 = ssub.s32 %s10, 2
    %s17 = sadd.s32 %s10, 1
    %s18 = ssub.s32 %s10, %s17
    %p19 = scmp.eq.s32.totalorder %s18, 0
    %s21 = sadd.s32 %s20, 1
    %s22 = scalar_select %p19, %s20, %s21
    %p25 = pneg %p19
    %p26 = scmp.eq.s32.totalorder %s10, 1
    %p27 = por %p25, %p26
    %p28 = scmp.ne.s32.totalorder %s20, %s23
    %p29 = scmp.eq.s32.totalorder %s10, 0
    %p30 = por %p28, %p29
    %p31 = scmp.ne.s32.totalorder %s20, %s23
    %p32 = scmp.eq.s32.totalorder %s15, 1
    %p33 = por %p31, %p32
    %p34 = scmp.ne.s32.totalorder %s23, %s24
    %p35 = scmp.eq.s32.totalorder %s15, 0
    %p36 = por %p34, %p35
    %p37 = scmp.ne.s32.totalorder %s23, %s24
    %p38 = scmp.eq.s32.totalorder %s16, 1
    %p39 = por %p37, %p38
    %p41 = scmp.ne.s32.totalorder %s24, %s40
    %p42 = scmp.eq.s32.totalorder %s16, 0
    %p43 = por %p41, %p42
    %s45 = sadd.s32 %s44, 1
    %p48 = scmp.eq.s32.totalorder %s10, 1
    %p49 = scmp.ne.s32.totalorder %s44, %s46
    %p50 = scmp.eq.s32.totalorder %s10, 0
    %p51 = por %p49, %p50
    %p52 = scmp.ne.s32.totalorder %s44, %s46
    %p53 = scmp.eq.s32.totalorder %s15, 1
    %p54 = por %p52, %p53
    %p55 = scmp.ne.s32.totalorder %s46, %s47
    %p56 = scmp.eq.s32.totalorder %s15, 0
    %p57 = por %p55, %p56
    %p58 = scmp.ne.s32.totalorder %s46, %s47
    %p59 = scmp.eq.s32.totalorder %s16, 1
    %p60 = por %p58, %p59
    %p62 = scmp.ne.s32.totalorder %s47, %s61
    %p63 = scmp.eq.s32.totalorder %s16, 0
    %p64 = por %p62, %p63
    %s66 = sadd.s32 %s65, 1
    %p69 = scmp.eq.s32.totalorder %s10, 1
    %p70 = scmp.ne.s32.totalorder %s65, %s67
    %p71 = scmp.eq.s32.totalorder %s10, 0
    %p72 = por %p70, %p71
    %p73 = scmp.ne.s32.totalorder %s65, %s67
    %p74 = scmp.eq.s32.totalorder %s15, 1
    %p75 = por %p73, %p74
    %p76 = scmp.ne.s32.totalorder %s67, %s68
    %p77 = scmp.eq.s32.totalorder %s15, 0
    %p78 = por %p76, %p77
    %p79 = scmp.ne.s32.totalorder %s67, %s68
    %p80 = scmp.eq.s32.totalorder %s16, 1
    %p81 = por %p79, %p80
    %p83 = scmp.ne.s32.totalorder %s68, %s82
    %p84 = scmp.eq.s32.totalorder %s16, 0
    %p85 = por %p83, %p84
    %s86 = ssub.s32 %s10, %s17
    %p87 = scmp.eq.s32.totalorder %s86, 0
    %s89 = sadd.s32 %s88, 1
    %s90 = scalar_select %p87, %s88, %s89
    %p93 = pneg %p87
    %p94 = scmp.eq.s32.totalorder %s10, 1
    %p95 = por %p93, %p94
    %p96 = scmp.ne.s32.totalorder %s88, %s91
    %p97 = scmp.eq.s32.totalorder %s10, 0
    %p98 = por %p96, %p97
    %p99 = scmp.ne.s32.totalorder %s88, %s91
    %p100 = scmp.eq.s32.totalorder %s15, 1
    %p101 = por %p99, %p100
    %p102 = scmp.ne.s32.totalorder %s91, %s92
    %p103 = scmp.eq.s32.totalorder %s15, 0
    %p104 = por %p102, %p103
    %p105 = scmp.ne.s32.totalorder %s91, %s92
    %p106 = scmp.eq.s32.totalorder %s16, 1
    %p107 = por %p105, %p106
    %p109 = scmp.ne.s32.totalorder %s92, %s108
    %p110 = scmp.eq.s32.totalorder %s16, 0
    %p111 = por %p109, %p110
    %s112 = ssub.s32 %s10, %s17
    %p113 = scmp.eq.s32.totalorder %s112, 0
    %s115 = sadd.s32 %s114, 1
    %s116 = scalar_select %p113, %s114, %s115
    %p119 = pneg %p113
    %p120 = scmp.eq.s32.totalorder %s10, 1
    %p121 = por %p119, %p120
    %p122 = scmp.ne.s32.totalorder %s114, %s117
    %p123 = scmp.eq.s32.totalorder %s10, 0
    %p124 = por %p122, %p123
    %p125 = scmp.ne.s32.totalorder %s114, %s117
    %p126 = scmp.eq.s32.totalorder %s15, 1
    %p127 = por %p125, %p126
    %p128 = scmp.ne.s32.totalorder %s117, %s118
    %p129 = scmp.eq.s32.totalorder %s15, 0
    %p130 = por %p128, %p129
    %p131 = scmp.ne.s32.totalorder %s117, %s118
    %p132 = scmp.eq.s32.totalorder %s16, 1
    %p133 = por %p131, %p132
    %p135 = scmp.ne.s32.totalorder %s118, %s134
    %p136 = scmp.eq.s32.totalorder %s16, 0
    %p137 = por %p135, %p136
    %p138 = scmp.le.s32.totalorder 1, %s10
    %p139 = scmp.lt.s32.totalorder %s10, 3
    %p140 = pnand %p138, %p139
    %p141 = pneg %p140
    // Predicated region
    $region9: #{_lambda_.81} parent=5 // pred_check
      _
    $region10: #{_lambda_.81} parent=5 // pred_check_branch
      %143 = sbr.rel (%p140) target = $region12
    $region11: #{_lambda_.81} parent=5 // pred_region
      %s144 = ssub.s32 %s10, 1
      // Predicated region
      $region13: #{_lambda_.81} parent=11 // pred_check
        %p145 = pneg %p57
      $region14: #{_lambda_.81} parent=11 // pred_check_branch
        %147 = sbr.rel (%p145) target = $region16
      $region15: #{_lambda_.81} parent=11 // pred_region
        _
      $region16: #{_lambda_.81} parent=11 // pred_fallthru
        _
      // Predicated region
      $region17: #{_lambda_.81} parent=11 // pred_check
        %p148 = pneg %p78
      $region18: #{_lambda_.81} parent=11 // pred_check_branch
        %150 = sbr.rel (%p148) target = $region20
      $region19: #{_lambda_.81} parent=11 // pred_region
        _
      $region20: #{_lambda_.81} parent=11 // pred_fallthru
        _
    $region12: #{_lambda_.81} parent=5 // pred_fallthru
      _
    %p151 = scmp.lt.s32.totalorder %s10, 2
    // Predicated region
    $region21: #{_lambda_.81} parent=5 // pred_check
      %p152 = pneg %p151
    $region22: #{_lambda_.81} parent=5 // pred_check_branch
      %154 = sbr.rel (%p152) target = $region24
    $region23: #{_lambda_.81} parent=5 // pred_region
      // Predicated region
      $region25: #{_lambda_.81} parent=23 // pred_check
        %p155 = pneg %p30
      $region26: #{_lambda_.81} parent=23 // pred_check_branch
        %157 = sbr.rel (%p155) target = $region28
      $region27: #{_lambda_.81} parent=23 // pred_region
        %s158 = smul.u32 2, %s10
        %p159 = scmp.lt.s32.totalorder %s158, 3
        %s160 = scalar_select %p159, %s158, 3
        %s161 = smul.addr %s160, 4
        %s162 = scalar_lea.vmem %s0, %s161
        %s163 = smul.u32 2, %s10
      $region28: #{_lambda_.81} parent=23 // pred_fallthru
        _
      // Predicated region
      $region29: #{_lambda_.81} parent=23 // pred_check
        %p164 = pneg %p98
      $region30: #{_lambda_.81} parent=23 // pred_check_branch
        %166 = sbr.rel (%p164) target = $region32
      $region31: #{_lambda_.81} parent=23 // pred_region
        %s167 = smul.u32 2, %s10
        %p168 = scmp.lt.s32.totalorder %s167, 3
        %s169 = scalar_select %p168, %s167, 3
        %s170 = smul.addr %s169, 4
        %s171 = scalar_lea.vmem %s3, %s170
        %s172 = smul.u32 2, %s10
      $region32: #{_lambda_.81} parent=23 // pred_fallthru
        _
    $region24: #{_lambda_.81} parent=5 // pred_fallthru
      _
    %p173 = scmp.le.s32.totalorder 1, %s10
    %p174 = scmp.lt.s32.totalorder %s10, 3
    %p175 = pnand %p173, %p174
    %p176 = pneg %p175
    // Predicated region
    $region33: #{_lambda_.81} parent=5 // pred_check
      _
    $region34: #{_lambda_.81} parent=5 // pred_check_branch
      %178 = sbr.rel (%p175) target = $region36
    $region35: #{_lambda_.81} parent=5 // pred_region
      %s179 = ssub.s32 %s10, 1
      %s180 = smul.u32 2, %s15
      %p181 = scmp.lt.s32.totalorder %s180, 3
      %s182 = scalar_select %p181, %s180, 3
      %s183 = smul.addr %s182, 4
      %s184 = scalar_lea.vmem %s0, %s183
      %p185 = pneg %p36
      %p186 = pneg %p33
      %p187 = pneg %p57
      %p188 = pneg %p54
      %p189 = pneg %p78
      %p190 = pneg %p75
      %s191 = smul.u32 2, %s15
      %p192 = scmp.lt.s32.totalorder %s191, 3
      %s193 = scalar_select %p192, %s191, 3
      %s194 = smul.addr %s193, 4
      %s195 = scalar_lea.vmem %s3, %s194
      %p196 = pneg %p104
      %p197 = pneg %p101
      %p198 = pneg %p130
      %p199 = pneg %p127
      %s200 = smul.u32 2, %s15
      %p201 = scmp.lt.s32.totalorder %s200, 3
      %s202 = scalar_select %p201, %s200, 3
      %s203 = smul.addr %s202, 4
      %s204 = scalar_lea.vmem %s4, %s203
      %s205 = smul.u32 2, %s15
      %p206 = scmp.lt.s32.totalorder %s205, 3
      %s207 = scalar_select %p206, %s205, 3
      %s208 = smul.addr %s207, 4
      %s209 = scalar_lea.vmem %s0, %s208
      %s210 = smul.u32 2, %s15
      %s211 = smul.u32 2, %s15
      %p212 = scmp.lt.s32.totalorder %s211, 3
      %s213 = scalar_select %p212, %s211, 3
      %s214 = smul.addr %s213, 4
      %s215 = scalar_lea.vmem %s3, %s214
      %s216 = smul.u32 2, %s15
      %s217 = smul.u32 2, %s15
      %p218 = scmp.lt.s32.totalorder %s217, 3
      %s219 = scalar_select %p218, %s217, 3
      %s220 = smul.addr %s219, 4
      %s221 = scalar_lea.vmem %s4, %s220
      %s222 = smul.u32 2, %s15
      %v224 = vld [vmem:[%s209] sm:$0xf]
      %v225 = vld [vmem:[%s209 + $0x4] sm:$0xf]
      %v226 = vld [vmem:[%s1] sm:$0xf]
      %v227 = vld [vmem:[%s1 + $0x4] sm:$0xf]
      %v228 = vld [vmem:[%s1 + $0x8] sm:$0xf]
      %v229 = vld [vmem:[%s1 + $0xc] sm:$0xf]
      %v230 = vld [vmem:[%s1 + $0x10] sm:$0xf]
      %v231 = vld [vmem:[%s1 + $0x14] sm:$0xf]
      %v232 = vld [vmem:[%s1 + $0x18] sm:$0xf]
      %v233 = vld [vmem:[%s1 + $0x1c] sm:$0xf]
      %v234 = vld [vmem:[%s1 + $0x20] sm:$0xf]
      %v235 = vld [vmem:[%s1 + $0x24] sm:$0xf]
      %v236 = vld [vmem:[%s1 + $0x28] sm:$0xf]
      %v237 = vld [vmem:[%s1 + $0x2c] sm:$0xf]
      %v238 = vld [vmem:[%s1 + $0x30] sm:$0xf]
      %v239 = vld [vmem:[%s1 + $0x34] sm:$0xf]
      %v240 = vld [vmem:[%s1 + $0x38] sm:$0xf]
      %v241 = vld [vmem:[%s1 + $0x3c] sm:$0xf]
      %v242 = vld [vmem:[%s2] sm:$0x1]
      %v244 = vlaneseq
      %v245 = vshrl.u32 %v244, 7
      %v246 = vsub.s32 0, %v245
      %v247 = vrot.slane %v242, %v246
      %v251 = vunpack.c.l.b16 %v224
      %v252 = vunpack.c.l.b16 %v225
      %v253 = vpack.c.b16 %v252, %v251
      %v271 = vunpack.c.l.b16 %v226
      %v272 = vunpack.c.l.b16 %v227
      %v273 = vunpack.c.l.b16 %v228
      %v274 = vunpack.c.l.b16 %v229
      %v275 = vunpack.c.l.b16 %v230
      %v276 = vunpack.c.l.b16 %v231
      %v277 = vunpack.c.l.b16 %v232
      %v278 = vunpack.c.l.b16 %v233
      %v279 = vunpack.c.l.b16 %v234
      %v280 = vunpack.c.l.b16 %v235
      %v281 = vunpack.c.l.b16 %v236
      %v282 = vunpack.c.l.b16 %v237
      %v283 = vunpack.c.l.b16 %v238
      %v284 = vunpack.c.l.b16 %v239
      %v285 = vunpack.c.l.b16 %v240
      %v286 = vunpack.c.l.b16 %v241
      %v287 = vpack.c.b16 %v272, %v271
      %v288 = vpack.c.b16 %v274, %v273
      %v289 = vpack.c.b16 %v276, %v275
      %v290 = vpack.c.b16 %v278, %v277
      %v291 = vpack.c.b16 %v280, %v279
      %v292 = vpack.c.b16 %v282, %v281
      %v293 = vpack.c.b16 %v284, %v283
      %v294 = vpack.c.b16 %v286, %v285
      %303 = vmatprep.subr.bf16.mxu0 0
      %304 = vmatpush1.bf16.msra.mxu0 %v287
      %305 = vmatprep.subr.bf16.mxu0 0
      %306 = vmatpush1.bf16.msra.mxu0 %v288
      %307 = vmatprep.subr.bf16.mxu0 0
      %308 = vmatpush1.bf16.msra.mxu0 %v289
      %309 = vmatprep.subr.bf16.mxu0 0
      %310 = vmatpush1.bf16.msra.mxu0 %v290
      %311 = vmatprep.subr.bf16.mxu0 0
      %312 = vmatpush1.bf16.msra.mxu0 %v291
      %313 = vmatprep.subr.bf16.mxu0 0
      %314 = vmatpush1.bf16.msra.mxu0 %v292
      %315 = vmatprep.subr.bf16.mxu0 0
      %316 = vmatpush1.bf16.msra.mxu0 %v293
      %317 = vmatprep.subr.bf16.mxu0 0
      %318 = vmatpush1.bf16.msra.mxu0 %v294
      %319 = vmatprep.subr.bf16.mxu0 0
      %320 = vmatpush1.bf16.msra.mxu0 0
      %321 = vmatprep.subr.bf16.mxu0 0
      %322 = vmatpush1.bf16.msra.mxu0 0
      %323 = vmatprep.subr.bf16.mxu0 0
      %324 = vmatpush1.bf16.msra.mxu0 0
      %325 = vmatprep.subr.bf16.mxu0 0
      %326 = vmatpush1.bf16.msra.mxu0 0
      %327 = vmatprep.subr.bf16.mxu0 0
      %328 = vmatpush1.bf16.msra.mxu0 0
      %329 = vmatprep.subr.bf16.mxu0 0
      %330 = vmatpush1.bf16.msra.mxu0 0
      %331 = vmatprep.subr.bf16.mxu0 0
      %332 = vmatpush1.bf16.msra.mxu0 0
      %333 = vmatprep.subr.bf16.mxu0 0
      %334 = vmatpush1.bf16.msra.mxu0 0
      %335 = vmatprep.mubr.bf16.mxu0 0
      %336 = vmatmul.mubr.bf16.gmra.mrb[0].mxu0 %v253
      %v337 = vpop.f32.mrb[0].mxu0
      %v338 = vadd.f32 %v247, %v337
      %v339 = vpop.f32.mrb[0].mxu0
      %v340 = vpop.f32.mrb[0].mxu0
      %v341 = vadd.f32 %v247, %v340
      %v342 = vpop.f32.mrb[0].mxu0
      %343 = vdwg.mxu0
      %v344 = vld [vmem:[%s215] sm:$0xf]
      %v345 = vld [vmem:[%s215 + $0x4] sm:$0xf]
      %v346 = vunpack.c.l.bf16 %v344
      %v347 = vunpack.c.l.bf16 %v345
      %v348 = vadd.f32 %v338, %v346
      %v349 = vadd.f32 %v341, %v347
      %v350 = vmax.f32 %v348, 0.0
      %v351 = vmax.f32 %v349, 0.0
      %v352 = vpack.c.bf16 %v351, %v350
      %v354 = vunpack.c.l.b16 %v352
      %v355 = vunpack.c.h.b16 %v352
      %v356 = vpack.c.b16 %v354, %v354
      %v357 = vpack.c.b16 %v355, %v355
      %360 = vst [vmem:[%s221] sm:$0xf] %v356
      %361 = vst [vmem:[%s221 + $0x4] sm:$0xf] %v357
      %s362 = smul.u32 2, %s15
      %p363 = scmp.lt.s32.totalorder %s362, 3
      %s364 = scalar_select %p363, %s362, 3
      %s365 = smul.addr %s364, 4
      %s366 = scalar_lea.vmem %s4, %s365
      // Predicated region
      $region37: #{_lambda_.81} parent=35 // pred_check
        %p367 = pneg %p127
      $region38: #{_lambda_.81} parent=35 // pred_check_branch
        %369 = sbr.rel (%p367) target = $region40
      $region39: #{_lambda_.81} parent=35 // pred_region
        %s370 = smul.u32 2, %s15
      $region40: #{_lambda_.81} parent=35 // pred_fallthru
        _
    $region36: #{_lambda_.81} parent=5 // pred_fallthru
      _
    %p371 = scmp.le.s32.totalorder 2, %s10
    // Predicated region
    $region41: #{_lambda_.81} parent=5 // pred_check
      %p372 = pneg %p371
    $region42: #{_lambda_.81} parent=5 // pred_check_branch
      %374 = sbr.rel (%p372) target = $region44
    $region43: #{_lambda_.81} parent=5 // pred_region
      %s375 = ssub.s32 %s10, 2
      // Predicated region
      $region45: #{_lambda_.81} parent=43 // pred_check
        %p376 = pneg %p133
      $region46: #{_lambda_.81} parent=43 // pred_check_branch
        %378 = sbr.rel (%p376) target = $region48
      $region47: #{_lambda_.81} parent=43 // pred_region
        %s379 = smul.u32 2, %s16
        %p380 = scmp.lt.s32.totalorder %s379, 3
        %s381 = scalar_select %p380, %s379, 3
        %s382 = smul.addr %s381, 4
        %s383 = scalar_lea.vmem %s4, %s382
      $region48: #{_lambda_.81} parent=43 // pred_fallthru
        _
    $region44: #{_lambda_.81} parent=5 // pred_fallthru
      _
  $region6: #{_lambda_.81} parent=0 // loop_footer
    %s14 = sadd.s32 1, %s10
  $region7: #{_lambda_.81} parent=0 // loop_footer_branch
    %9 = sbr.rel target = $region3
  $region8: #{_lambda_.81} parent=0 // loop_exit
    _

// kernel: _lambda_.82
$region0: #{_lambda_.82}
  #allocation0 [shape = 'u32[]', space=smem, size = 0x4, offset = 0x4, fixed_abs, tag = 'smem constant byte address 0x4 - core index']
  #allocation1 [shape = 'u32[144,128]{1,0:T(1,128)}', space=vmem, size = 0x12000, scoped, tag = 'internal scratch']
  %s0 = inlined_call_operand.vmem [shape: bf16[32,256], index: 0, kind: input, shape index: {}]
  %s1 = inlined_call_operand.vmem [shape: bf16[256,128], index: 1, kind: input, shape index: {}]
  %s2 = inlined_call_operand.vmem [shape: f32[1,128], index: 2, kind: input, shape index: {}]
  %s3 = inlined_call_operand.vmem [shape: bf16[32,128], index: 3, kind: output, shape index: {}]
  %s4 = sld [smem:[#allocation0]]
  $region45: #{_lambda_.82} parent=0
    _
  %s6 = ssub.s32 1, %s4
  %s7 = scalar_select 0, %s6, %s4
  loop: start=0, step=1, limit=4
  $region2: #{_lambda_.82} parent=0 // loop_pre_header
    _
  $region3: #{_lambda_.82} parent=0 // loop_header
    %s9 = sphi 0, %s13
    %p10 = scmp.ge.s32.totalorder %s9, 4
    %s19 = sphi 0, %s21
    %s22 = sphi 0, %s19
    %s23 = sphi 0, %s22
    %s39 = sphi 0, %s23
    %s43 = sphi 0, %s43
    %s45 = sphi 0, %s43
    %s46 = sphi 0, %s45
    %s60 = sphi 0, %s46
    %s64 = sphi 0, %s64
    %s66 = sphi 0, %s64
    %s67 = sphi 0, %s66
    %s81 = sphi 0, %s67
    %s87 = sphi 0, %s89
    %s90 = sphi 0, %s87
    %s91 = sphi 0, %s90
    %s107 = sphi 0, %s91
  $region4: #{_lambda_.82} parent=0 // loop_header_branch
    %12 = sbr.rel (%p10) target = $region8
  $region5: #{_lambda_.82} parent=0 // loop_body
    %s14 = ssub.s32 %s9, 1
    %s15 = ssub.s32 %s9, 2
    %s16 = sadd.s32 %s9, 1
    %s17 = ssub.s32 %s9, %s16
    %p18 = scmp.eq.s32.totalorder %s17, 0
    %s20 = sadd.s32 %s19, 1
    %s21 = scalar_select %p18, %s19, %s20
    %p24 = pneg %p18
    %p25 = scmp.eq.s32.totalorder %s9, 1
    %p26 = por %p24, %p25
    %p27 = scmp.ne.s32.totalorder %s19, %s22
    %p28 = scmp.eq.s32.totalorder %s9, 0
    %p29 = por %p27, %p28
    %p30 = scmp.ne.s32.totalorder %s19, %s22
    %p31 = scmp.eq.s32.totalorder %s14, 1
    %p32 = por %p30, %p31
    %p33 = scmp.ne.s32.totalorder %s22, %s23
    %p34 = scmp.eq.s32.totalorder %s14, 0
    %p35 = por %p33, %p34
    %p36 = scmp.ne.s32.totalorder %s22, %s23
    %p37 = scmp.eq.s32.totalorder %s15, 1
    %p38 = por %p36, %p37
    %p40 = scmp.ne.s32.totalorder %s23, %s39
    %p41 = scmp.eq.s32.totalorder %s15, 0
    %p42 = por %p40, %p41
    %s44 = sadd.s32 %s43, 1
    %p47 = scmp.eq.s32.totalorder %s9, 1
    %p48 = scmp.ne.s32.totalorder %s43, %s45
    %p49 = scmp.eq.s32.totalorder %s9, 0
    %p50 = por %p48, %p49
    %p51 = scmp.ne.s32.totalorder %s43, %s45
    %p52 = scmp.eq.s32.totalorder %s14, 1
    %p53 = por %p51, %p52
    %p54 = scmp.ne.s32.totalorder %s45, %s46
    %p55 = scmp.eq.s32.totalorder %s14, 0
    %p56 = por %p54, %p55
    %p57 = scmp.ne.s32.totalorder %s45, %s46
    %p58 = scmp.eq.s32.totalorder %s15, 1
    %p59 = por %p57, %p58
    %p61 = scmp.ne.s32.totalorder %s46, %s60
    %p62 = scmp.eq.s32.totalorder %s15, 0
    %p63 = por %p61, %p62
    %s65 = sadd.s32 %s64, 1
    %p68 = scmp.eq.s32.totalorder %s9, 1
    %p69 = scmp.ne.s32.totalorder %s64, %s66
    %p70 = scmp.eq.s32.totalorder %s9, 0
    %p71 = por %p69, %p70
    %p72 = scmp.ne.s32.totalorder %s64, %s66
    %p73 = scmp.eq.s32.totalorder %s14, 1
    %p74 = por %p72, %p73
    %p75 = scmp.ne.s32.totalorder %s66, %s67
    %p76 = scmp.eq.s32.totalorder %s14, 0
    %p77 = por %p75, %p76
    %p78 = scmp.ne.s32.totalorder %s66, %s67
    %p79 = scmp.eq.s32.totalorder %s15, 1
    %p80 = por %p78, %p79
    %p82 = scmp.ne.s32.totalorder %s67, %s81
    %p83 = scmp.eq.s32.totalorder %s15, 0
    %p84 = por %p82, %p83
    %s85 = ssub.s32 %s9, %s16
    %p86 = scmp.eq.s32.totalorder %s85, 0
    %s88 = sadd.s32 %s87, 1
    %s89 = scalar_select %p86, %s87, %s88
    %p92 = pneg %p86
    %p93 = scmp.eq.s32.totalorder %s9, 1
    %p94 = por %p92, %p93
    %p95 = scmp.ne.s32.totalorder %s87, %s90
    %p96 = scmp.eq.s32.totalorder %s9, 0
    %p97 = por %p95, %p96
    %p98 = scmp.ne.s32.totalorder %s87, %s90
    %p99 = scmp.eq.s32.totalorder %s14, 1
    %p100 = por %p98, %p99
    %p101 = scmp.ne.s32.totalorder %s90, %s91
    %p102 = scmp.eq.s32.totalorder %s14, 0
    %p103 = por %p101, %p102
    %p104 = scmp.ne.s32.totalorder %s90, %s91
    %p105 = scmp.eq.s32.totalorder %s15, 1
    %p106 = por %p104, %p105
    %p108 = scmp.ne.s32.totalorder %s91, %s107
    %p109 = scmp.eq.s32.totalorder %s15, 0
    %p110 = por %p108, %p109
    %p111 = scmp.le.s32.totalorder 1, %s9
    %p112 = scmp.lt.s32.totalorder %s9, 3
    %p113 = pnand %p111, %p112
    %p114 = pneg %p113
    // Predicated region
    $region9: #{_lambda_.82} parent=5 // pred_check
      _
    $region10: #{_lambda_.82} parent=5 // pred_check_branch
      %116 = sbr.rel (%p113) target = $region12
    $region11: #{_lambda_.82} parent=5 // pred_region
      %s117 = ssub.s32 %s9, 1
      // Predicated region
      $region13: #{_lambda_.82} parent=11 // pred_check
        %p118 = pneg %p56
      $region14: #{_lambda_.82} parent=11 // pred_check_branch
        %120 = sbr.rel (%p118) target = $region16
      $region15: #{_lambda_.82} parent=11 // pred_region
        _
      $region16: #{_lambda_.82} parent=11 // pred_fallthru
        _
      // Predicated region
      $region17: #{_lambda_.82} parent=11 // pred_check
        %p121 = pneg %p77
      $region18: #{_lambda_.82} parent=11 // pred_check_branch
        %123 = sbr.rel (%p121) target = $region20
      $region19: #{_lambda_.82} parent=11 // pred_region
        _
      $region20: #{_lambda_.82} parent=11 // pred_fallthru
        _
    $region12: #{_lambda_.82} parent=5 // pred_fallthru
      _
    %p124 = scmp.lt.s32.totalorder %s9, 2
    // Predicated region
    $region21: #{_lambda_.82} parent=5 // pred_check
      %p125 = pneg %p124
    $region22: #{_lambda_.82} parent=5 // pred_check_branch
      %127 = sbr.rel (%p125) target = $region24
    $region23: #{_lambda_.82} parent=5 // pred_region
      // Predicated region
      $region25: #{_lambda_.82} parent=23 // pred_check
        %p128 = pneg %p29
      $region26: #{_lambda_.82} parent=23 // pred_check_branch
        %130 = sbr.rel (%p128) target = $region28
      $region27: #{_lambda_.82} parent=23 // pred_region
        %s131 = smul.u32 2, %s9
        %p132 = scmp.lt.s32.totalorder %s131, 3
        %s133 = scalar_select %p132, %s131, 3
        %s134 = smul.addr %s133, 2
        %s135 = smul.addr %s134, 4
        %s136 = scalar_lea.vmem %s0, %s135
        %s137 = smul.u32 2, %s9
      $region28: #{_lambda_.82} parent=23 // pred_fallthru
        _
    $region24: #{_lambda_.82} parent=5 // pred_fallthru
      _
    %p138 = scmp.le.s32.totalorder 1, %s9
    %p139 = scmp.lt.s32.totalorder %s9, 3
    %p140 = pnand %p138, %p139
    %p141 = pneg %p140
    // Predicated region
    $region29: #{_lambda_.82} parent=5 // pred_check
      _
    $region30: #{_lambda_.82} parent=5 // pred_check_branch
      %143 = sbr.rel (%p140) target = $region32
    $region31: #{_lambda_.82} parent=5 // pred_region
      %s144 = ssub.s32 %s9, 1
      %s145 = smul.u32 2, %s14
      %p146 = scmp.lt.s32.totalorder %s145, 3
      %s147 = scalar_select %p146, %s145, 3
      %s148 = smul.addr %s147, 2
      %s149 = smul.addr %s148, 4
      %s150 = scalar_lea.vmem %s0, %s149
      %p151 = pneg %p35
      %p152 = pneg %p32
      %p153 = pneg %p56
      %p154 = pneg %p53
      %p155 = pneg %p77
      %p156 = pneg %p74
      %p157 = pneg %p103
      %p158 = pneg %p100
      %s159 = smul.u32 2, %s14
      %p160 = scmp.lt.s32.totalorder %s159, 3
      %s161 = scalar_select %p160, %s159, 3
      %s162 = smul.addr %s161, 4
      %s163 = scalar_lea.vmem %s3, %s162
      %s164 = smul.u32 2, %s14
      %p165 = scmp.lt.s32.totalorder %s164, 3
      %s166 = scalar_select %p165, %s164, 3
      %s167 = smul.addr %s166, 2
      %s168 = smul.addr %s167, 4
      %s169 = scalar_lea.vmem %s0, %s168
      %s170 = smul.u32 2, %s14
      %s171 = smul.u32 2, %s14
      %p172 = scmp.lt.s32.totalorder %s171, 3
      %s173 = scalar_select %p172, %s171, 3
      %s174 = smul.addr %s173, 4
      %s175 = scalar_lea.vmem %s3, %s174
      %s176 = smul.u32 2, %s14
      %v178 = vld [vmem:[%s169] sm:$0xff]
      %v179 = vld [vmem:[%s169 + $0x8] sm:$0xff]
      %v180 = vld [vmem:[%s1] sm:$0xf]
      %v181 = vld [vmem:[%s1 + $0x4] sm:$0xf]
      %v182 = vld [vmem:[%s1 + $0x8] sm:$0xf]
      %v183 = vld [vmem:[%s1 + $0xc] sm:$0xf]
      %v184 = vld [vmem:[%s1 + $0x10] sm:$0xf]
      %v185 = vld [vmem:[%s1 + $0x14] sm:$0xf]
      %v186 = vld [vmem:[%s1 + $0x18] sm:$0xf]
      %v187 = vld [vmem:[%s1 + $0x1c] sm:$0xf]
      %v188 = vld [vmem:[%s1 + $0x20] sm:$0xf]
      %v189 = vld [vmem:[%s1 + $0x24] sm:$0xf]
      %v190 = vld [vmem:[%s1 + $0x28] sm:$0xf]
      %v191 = vld [vmem:[%s1 + $0x2c] sm:$0xf]
      %v192 = vld [vmem:[%s1 + $0x30] sm:$0xf]
      %v193 = vld [vmem:[%s1 + $0x34] sm:$0xf]
      %v194 = vld [vmem:[%s1 + $0x38] sm:$0xf]
      %v195 = vld [vmem:[%s1 + $0x3c] sm:$0xf]
      %v196 = vld [vmem:[%s1 + $0x40] sm:$0xf]
      %v197 = vld [vmem:[%s1 + $0x44] sm:$0xf]
      %v198 = vld [vmem:[%s1 + $0x48] sm:$0xf]
      %v199 = vld [vmem:[%s1 + $0x4c] sm:$0xf]
      %v200 = vld [vmem:[%s1 + $0x50] sm:$0xf]
      %v201 = vld [vmem:[%s1 + $0x54] sm:$0xf]
      %v202 = vld [vmem:[%s1 + $0x58] sm:$0xf]
      %v203 = vld [vmem:[%s1 + $0x5c] sm:$0xf]
      %v204 = vld [vmem:[%s1 + $0x60] sm:$0xf]
      %v205 = vld [vmem:[%s1 + $0x64] sm:$0xf]
      %v206 = vld [vmem:[%s1 + $0x68] sm:$0xf]
      %v207 = vld [vmem:[%s1 + $0x6c] sm:$0xf]
      %v208 = vld [vmem:[%s1 + $0x70] sm:$0xf]
      %v209 = vld [vmem:[%s1 + $0x74] sm:$0xf]
      %v210 = vld [vmem:[%s1 + $0x78] sm:$0xf]
      %v211 = vld [vmem:[%s1 + $0x7c] sm:$0xf]
      %v212 = vld [vmem:[%s2] sm:$0x1]
      %v214 = vlaneseq
      %v215 = vshrl.u32 %v214, 7
      %v216 = vsub.s32 0, %v215
      %v217 = vrot.slane %v212, %v216
      %v221 = vunpack.c.l.b16 %v178
      %v222 = vunpack.c.h.b16 %v178
      %v223 = vunpack.c.l.b16 %v179
      %v224 = vunpack.c.h.b16 %v179
      %v225 = vpack.c.b16 %v223, %v221
      %v226 = vpack.c.b16 %v224, %v222
      %v261 = vunpack.c.l.b16 %v180
      %v262 = vunpack.c.l.b16 %v181
      %v263 = vunpack.c.l.b16 %v182
      %v264 = vunpack.c.l.b16 %v183
      %v265 = vunpack.c.l.b16 %v184
      %v266 = vunpack.c.l.b16 %v185
      %v267 = vunpack.c.l.b16 %v186
      %v268 = vunpack.c.l.b16 %v187
      %v269 = vunpack.c.l.b16 %v188
      %v270 = vunpack.c.l.b16 %v189
      %v271 = vunpack.c.l.b16 %v190
      %v272 = vunpack.c.l.b16 %v191
      %v273 = vunpack.c.l.b16 %v192
      %v274 = vunpack.c.l.b16 %v193
      %v275 = vunpack.c.l.b16 %v194
      %v276 = vunpack.c.l.b16 %v195
      %v277 = vunpack.c.l.b16 %v196
      %v278 = vunpack.c.l.b16 %v197
      %v279 = vunpack.c.l.b16 %v198
      %v280 = vunpack.c.l.b16 %v199
      %v281 = vunpack.c.l.b16 %v200
      %v282 = vunpack.c.l.b16 %v201
      %v283 = vunpack.c.l.b16 %v202
      %v284 = vunpack.c.l.b16 %v203
      %v285 = vunpack.c.l.b16 %v204
      %v286 = vunpack.c.l.b16 %v205
      %v287 = vunpack.c.l.b16 %v206
      %v288 = vunpack.c.l.b16 %v207
      %v289 = vunpack.c.l.b16 %v208
      %v290 = vunpack.c.l.b16 %v209
      %v291 = vunpack.c.l.b16 %v210
      %v292 = vunpack.c.l.b16 %v211
      %v293 = vpack.c.b16 %v262, %v261
      %v294 = vpack.c.b16 %v264, %v263
      %v295 = vpack.c.b16 %v266, %v265
      %v296 = vpack.c.b16 %v268, %v267
      %v297 = vpack.c.b16 %v270, %v269
      %v298 = vpack.c.b16 %v272, %v271
      %v299 = vpack.c.b16 %v274, %v273
      %v300 = vpack.c.b16 %v276, %v275
      %v301 = vpack.c.b16 %v278, %v277
      %v302 = vpack.c.b16 %v280, %v279
      %v303 = vpack.c.b16 %v282, %v281
      %v304 = vpack.c.b16 %v284, %v283
      %v305 = vpack.c.b16 %v286, %v285
      %v306 = vpack.c.b16 %v288, %v287
      %v307 = vpack.c.b16 %v290, %v289
      %v308 = vpack.c.b16 %v292, %v291
      %325 = vmatprep.subr.bf16.mxu0 0
      %326 = vmatpush1.bf16.msra.mxu0 %v293
      %327 = vmatprep.subr.bf16.mxu0 0
      %328 = vmatpush1.bf16.msra.mxu0 %v294
      %329 = vmatprep.subr.bf16.mxu0 0
      %330 = vmatpush1.bf16.msra.mxu0 %v295
      %331 = vmatprep.subr.bf16.mxu0 0
      %332 = vmatpush1.bf16.msra.mxu0 %v296
      %333 = vmatprep.subr.bf16.mxu0 0
      %334 = vmatpush1.bf16.msra.mxu0 %v297
      %335 = vmatprep.subr.bf16.mxu0 0
      %336 = vmatpush1.bf16.msra.mxu0 %v298
      %337 = vmatprep.subr.bf16.mxu0 0
      %338 = vmatpush1.bf16.msra.mxu0 %v299
      %339 = vmatprep.subr.bf16.mxu0 0
      %340 = vmatpush1.bf16.msra.mxu0 %v300
      %341 = vmatprep.subr.bf16.mxu0 0
      %342 = vmatpush1.bf16.msra.mxu0 %v301
      %343 = vmatprep.subr.bf16.mxu0 0
      %344 = vmatpush1.bf16.msra.mxu0 %v302
      %345 = vmatprep.subr.bf16.mxu0 0
      %346 = vmatpush1.bf16.msra.mxu0 %v303
      %347 = vmatprep.subr.bf16.mxu0 0
      %348 = vmatpush1.bf16.msra.mxu0 %v304
      %349 = vmatprep.subr.bf16.mxu0 0
      %350 = vmatpush1.bf16.msra.mxu0 %v305
      %351 = vmatprep.subr.bf16.mxu0 0
      %352 = vmatpush1.bf16.msra.mxu0 %v306
      %353 = vmatprep.subr.bf16.mxu0 0
      %354 = vmatpush1.bf16.msra.mxu0 %v307
      %355 = vmatprep.subr.bf16.mxu0 0
      %356 = vmatpush1.bf16.msra.mxu0 %v308
      %357 = vmatprep.mubr.bf16.mxu0 %v226
      %358 = vmatmul.mubr.bf16.gmra.mrb[0].mxu0 %v225
      %v359 = vpop.f32.mrb[0].mxu0
      %v360 = vadd.f32 %v217, %v359
      %v361 = vpop.f32.mrb[0].mxu0
      %v362 = vpop.f32.mrb[0].mxu0
      %v363 = vadd.f32 %v217, %v362
      %v364 = vpop.f32.mrb[0].mxu0
      %365 = vdwg.mxu0
      %v366 = vmax.f32 %v360, 0.0
      %v367 = vmax.f32 %v363, 0.0
      %v368 = vpack.c.bf16 %v367, %v366
      %v370 = vunpack.c.l.b16 %v368
      %v371 = vunpack.c.h.b16 %v368
      %v372 = vpack.c.b16 %v370, %v370
      %v373 = vpack.c.b16 %v371, %v371
      %376 = vst [vmem:[%s175] sm:$0xf] %v372
      %377 = vst [vmem:[%s175 + $0x4] sm:$0xf] %v373
      %s378 = smul.u32 2, %s14
      %p379 = scmp.lt.s32.totalorder %s378, 3
      %s380 = scalar_select %p379, %s378, 3
      %s381 = smul.addr %s380, 4
      %s382 = scalar_lea.vmem %s3, %s381
      // Predicated region
      $region33: #{_lambda_.82} parent=31 // pred_check
        %p383 = pneg %p100
      $region34: #{_lambda_.82} parent=31 // pred_check_branch
        %385 = sbr.rel (%p383) target = $region36
      $region35: #{_lambda_.82} parent=31 // pred_region
        %s386 = smul.u32 2, %s14
      $region36: #{_lambda_.82} parent=31 // pred_fallthru
        _
    $region32: #{_lambda_.82} parent=5 // pred_fallthru
      _
    %p387 = scmp.le.s32.totalorder 2, %s9
    // Predicated region
    $region37: #{_lambda_.82} parent=5 // pred_check
      %p388 = pneg %p387
    $region38: #{_lambda_.82} parent=5 // pred_check_branch
      %390 = sbr.rel (%p388) target = $region40
    $region39: #{_lambda_.82} parent=5 // pred_region
      %s391 = ssub.s32 %s9, 2
      // Predicated region
      $region41: #{_lambda_.82} parent=39 // pred_check
        %p392 = pneg %p106
      $region42: #{_lambda_.82} parent=39 // pred_check_branch
        %394 = sbr.rel (%p392) target = $region44
      $region43: #{_lambda_.82} parent=39 // pred_region
        %s395 = smul.u32 2, %s15
        %p396 = scmp.lt.s32.totalorder %s395, 3
        %s397 = scalar_select %p396, %s395, 3
        %s398 = smul.addr %s397, 4
        %s399 = scalar_lea.vmem %s3, %s398
      $region44: #{_lambda_.82} parent=39 // pred_fallthru
        _
    $region40: #{_lambda_.82} parent=5 // pred_fallthru
      _
  $region6: #{_lambda_.82} parent=0 // loop_footer
    %s13 = sadd.s32 1, %s9
  $region7: #{_lambda_.82} parent=0 // loop_footer_branch
    %8 = sbr.rel target = $region3
  $region8: #{_lambda_.82} parent=0 // loop_exit
    _

// kernel: _lambda_.85
$region0: #{_lambda_.85}
  #allocation0 [shape = 'u32[]', space=smem, size = 0x4, offset = 0x4, fixed_abs, tag = 'smem constant byte address 0x4 - core index']
  #allocation1 [shape = 'u32[144,128]{1,0:T(1,128)}', space=vmem, size = 0x12000, scoped, tag = 'internal scratch']
  %s0 = inlined_call_operand.vmem [shape: bf16[16,384], index: 0, kind: input, shape index: {}]
  %s1 = inlined_call_operand.vmem [shape: bf16[384,128], index: 1, kind: input, shape index: {}]
  %s2 = inlined_call_operand.vmem [shape: f32[1,128], index: 2, kind: input, shape index: {}]
  %s3 = inlined_call_operand.vmem [shape: bf16[16,128], index: 3, kind: output, shape index: {}]
  %s4 = sld [smem:[#allocation0]]
  $region22: #{_lambda_.85} parent=0
    _
  %s6 = ssub.s32 1, %s4
  %s7 = scalar_select 0, %s6, %s4
  // Predicated region
  $region2: #{_lambda_.85} parent=0 // pred_check
    _
  $region3: #{_lambda_.85} parent=0 // pred_check_branch
    %9 = sbr.rel (0) target = $region5
  $region4: #{_lambda_.85} parent=0 // pred_region
    _
  $region5: #{_lambda_.85} parent=0 // pred_fallthru
    _
  // Predicated region
  $region6: #{_lambda_.85} parent=0 // pred_check
    _
  $region7: #{_lambda_.85} parent=0 // pred_check_branch
    %11 = sbr.rel (0) target = $region9
  $region8: #{_lambda_.85} parent=0 // pred_region
    _
  $region9: #{_lambda_.85} parent=0 // pred_fallthru
    _
  // Predicated region
  $region10: #{_lambda_.85} parent=0 // pred_check
    _
  $region11: #{_lambda_.85} parent=0 // pred_check_branch
    %13 = sbr.rel (0) target = $region13
  $region12: #{_lambda_.85} parent=0 // pred_region
    _
  $region13: #{_lambda_.85} parent=0 // pred_fallthru
    _
  %v15 = vld [vmem:[%s0] sm:$0xff]
  %v16 = vld [vmem:[%s0 + $0x8] sm:$0xf]
  %v17 = vld [vmem:[%s0 + $0xc] sm:$0xff]
  %v18 = vld [vmem:[%s0 + $0x14] sm:$0xf]
  %v19 = vld [vmem:[%s1] sm:$0xf]
  %v20 = vld [vmem:[%s1 + $0x4] sm:$0xf]
  %v21 = vld [vmem:[%s1 + $0x8] sm:$0xf]
  %v22 = vld [vmem:[%s1 + $0xc] sm:$0xf]
  %v23 = vld [vmem:[%s1 + $0x10] sm:$0xf]
  %v24 = vld [vmem:[%s1 + $0x14] sm:$0xf]
  %v25 = vld [vmem:[%s1 + $0x18] sm:$0xf]
  %v26 = vld [vmem:[%s1 + $0x1c] sm:$0xf]
  %v27 = vld [vmem:[%s1 + $0x20] sm:$0xf]
  %v28 = vld [vmem:[%s1 + $0x24] sm:$0xf]
  %v29 = vld [vmem:[%s1 + $0x28] sm:$0xf]
  %v30 = vld [vmem:[%s1 + $0x2c] sm:$0xf]
  %v31 = vld [vmem:[%s1 + $0x30] sm:$0xf]
  %v32 = vld [vmem:[%s1 + $0x34] sm:$0xf]
  %v33 = vld [vmem:[%s1 + $0x38] sm:$0xf]
  %v34 = vld [vmem:[%s1 + $0x3c] sm:$0xf]
  %v35 = vld [vmem:[%s1 + $0x40] sm:$0xf]
  %v36 = vld [vmem:[%s1 + $0x44] sm:$0xf]
  %v37 = vld [vmem:[%s1 + $0x48] sm:$0xf]
  %v38 = vld [vmem:[%s1 + $0x4c] sm:$0xf]
  %v39 = vld [vmem:[%s1 + $0x50] sm:$0xf]
  %v40 = vld [vmem:[%s1 + $0x54] sm:$0xf]
  %v41 = vld [vmem:[%s1 + $0x58] sm:$0xf]
  %v42 = vld [vmem:[%s1 + $0x5c] sm:$0xf]
  %v43 = vld [vmem:[%s1 + $0x60] sm:$0xf]
  %v44 = vld [vmem:[%s1 + $0x64] sm:$0xf]
  %v45 = vld [vmem:[%s1 + $0x68] sm:$0xf]
  %v46 = vld [vmem:[%s1 + $0x6c] sm:$0xf]
  %v47 = vld [vmem:[%s1 + $0x70] sm:$0xf]
  %v48 = vld [vmem:[%s1 + $0x74] sm:$0xf]
  %v49 = vld [vmem:[%s1 + $0x78] sm:$0xf]
  %v50 = vld [vmem:[%s1 + $0x7c] sm:$0xf]
  %v51 = vld [vmem:[%s1 + $0x80] sm:$0xf]
  %v52 = vld [vmem:[%s1 + $0x84] sm:$0xf]
  %v53 = vld [vmem:[%s1 + $0x88] sm:$0xf]
  %v54 = vld [vmem:[%s1 + $0x8c] sm:$0xf]
  %v55 = vld [vmem:[%s1 + $0x90] sm:$0xf]
  %v56 = vld [vmem:[%s1 + $0x94] sm:$0xf]
  %v57 = vld [vmem:[%s1 + $0x98] sm:$0xf]
  %v58 = vld [vmem:[%s1 + $0x9c] sm:$0xf]
  %v59 = vld [vmem:[%s1 + $0xa0] sm:$0xf]
  %v60 = vld [vmem:[%s1 + $0xa4] sm:$0xf]
  %v61 = vld [vmem:[%s1 + $0xa8] sm:$0xf]
  %v62 = vld [vmem:[%s1 + $0xac] sm:$0xf]
  %v63 = vld [vmem:[%s1 + $0xb0] sm:$0xf]
  %v64 = vld [vmem:[%s1 + $0xb4] sm:$0xf]
  %v65 = vld [vmem:[%s1 + $0xb8] sm:$0xf]
  %v66 = vld [vmem:[%s1 + $0xbc] sm:$0xf]
  %v67 = vld [vmem:[%s2] sm:$0x1]
  %v69 = vlaneseq
  %v70 = vshrl.u32 %v69, 7
  %v71 = vsub.s32 0, %v70
  %v72 = vrot.slane %v67, %v71
  %v78 = vunpack.c.l.b16 %v15
  %v79 = vunpack.c.h.b16 %v15
  %v80 = vunpack.c.l.b16 %v16
  %v81 = vunpack.c.l.b16 %v17
  %v82 = vunpack.c.h.b16 %v17
  %v83 = vunpack.c.l.b16 %v18
  %v84 = vpack.c.b16 %v81, %v78
  %v85 = vpack.c.b16 %v82, %v79
  %v86 = vpack.c.b16 %v83, %v80
  %v138 = vunpack.c.l.b16 %v19
  %v139 = vunpack.c.l.b16 %v20
  %v140 = vunpack.c.l.b16 %v21
  %v141 = vunpack.c.l.b16 %v22
  %v142 = vunpack.c.l.b16 %v23
  %v143 = vunpack.c.l.b16 %v24
  %v144 = vunpack.c.l.b16 %v25
  %v145 = vunpack.c.l.b16 %v26
  %v146 = vunpack.c.l.b16 %v27
  %v147 = vunpack.c.l.b16 %v28
  %v148 = vunpack.c.l.b16 %v29
  %v149 = vunpack.c.l.b16 %v30
  %v150 = vunpack.c.l.b16 %v31
  %v151 = vunpack.c.l.b16 %v32
  %v152 = vunpack.c.l.b16 %v33
  %v153 = vunpack.c.l.b16 %v34
  %v154 = vunpack.c.l.b16 %v35
  %v155 = vunpack.c.l.b16 %v36
  %v156 = vunpack.c.l.b16 %v37
  %v157 = vunpack.c.l.b16 %v38
  %v158 = vunpack.c.l.b16 %v39
  %v159 = vunpack.c.l.b16 %v40
  %v160 = vunpack.c.l.b16 %v41
  %v161 = vunpack.c.l.b16 %v42
  %v162 = vunpack.c.l.b16 %v43
  %v163 = vunpack.c.l.b16 %v44
  %v164 = vunpack.c.l.b16 %v45
  %v165 = vunpack.c.l.b16 %v46
  %v166 = vunpack.c.l.b16 %v47
  %v167 = vunpack.c.l.b16 %v48
  %v168 = vunpack.c.l.b16 %v49
  %v169 = vunpack.c.l.b16 %v50
  %v170 = vunpack.c.l.b16 %v51
  %v171 = vunpack.c.l.b16 %v52
  %v172 = vunpack.c.l.b16 %v53
  %v173 = vunpack.c.l.b16 %v54
  %v174 = vunpack.c.l.b16 %v55
  %v175 = vunpack.c.l.b16 %v56
  %v176 = vunpack.c.l.b16 %v57
  %v177 = vunpack.c.l.b16 %v58
  %v178 = vunpack.c.l.b16 %v59
  %v179 = vunpack.c.l.b16 %v60
  %v180 = vunpack.c.l.b16 %v61
  %v181 = vunpack.c.l.b16 %v62
  %v182 = vunpack.c.l.b16 %v63
  %v183 = vunpack.c.l.b16 %v64
  %v184 = vunpack.c.l.b16 %v65
  %v185 = vunpack.c.l.b16 %v66
  %v186 = vpack.c.b16 %v139, %v138
  %v187 = vpack.c.b16 %v141, %v140
  %v188 = vpack.c.b16 %v143, %v142
  %v189 = vpack.c.b16 %v145, %v144
  %v190 = vpack.c.b16 %v147, %v146
  %v191 = vpack.c.b16 %v149, %v148
  %v192 = vpack.c.b16 %v151, %v150
  %v193 = vpack.c.b16 %v153, %v152
  %v194 = vpack.c.b16 %v155, %v154
  %v195 = vpack.c.b16 %v157, %v156
  %v196 = vpack.c.b16 %v159, %v158
  %v197 = vpack.c.b16 %v161, %v160
  %v198 = vpack.c.b16 %v163, %v162
  %v199 = vpack.c.b16 %v165, %v164
  %v200 = vpack.c.b16 %v167, %v166
  %v201 = vpack.c.b16 %v169, %v168
  %v202 = vpack.c.b16 %v171, %v170
  %v203 = vpack.c.b16 %v173, %v172
  %v204 = vpack.c.b16 %v175, %v174
  %v205 = vpack.c.b16 %v177, %v176
  %v206 = vpack.c.b16 %v179, %v178
  %v207 = vpack.c.b16 %v181, %v180
  %v208 = vpack.c.b16 %v183, %v182
  %v209 = vpack.c.b16 %v185, %v184
  %234 = vmatprep.subr.bf16.mxu0 0
  %235 = vmatpush1.bf16.msra.mxu0 %v186
  %236 = vmatprep.subr.bf16.mxu0 0
  %237 = vmatpush1.bf16.msra.mxu0 %v187
  %238 = vmatprep.subr.bf16.mxu0 0
  %239 = vmatpush1.bf16.msra.mxu0 %v188
  %240 = vmatprep.subr.bf16.mxu0 0
  %241 = vmatpush1.bf16.msra.mxu0 %v189
  %242 = vmatprep.subr.bf16.mxu0 0
  %243 = vmatpush1.bf16.msra.mxu0 %v190
  %244 = vmatprep.subr.bf16.mxu0 0
  %245 = vmatpush1.bf16.msra.mxu0 %v191
  %246 = vmatprep.subr.bf16.mxu0 0
  %247 = vmatpush1.bf16.msra.mxu0 %v192
  %248 = vmatprep.subr.bf16.mxu0 0
  %249 = vmatpush1.bf16.msra.mxu0 %v193
  %250 = vmatprep.subr.bf16.mxu0 0
  %251 = vmatpush1.bf16.msra.mxu0 %v194
  %252 = vmatprep.subr.bf16.mxu0 0
  %253 = vmatpush1.bf16.msra.mxu0 %v195
  %254 = vmatprep.subr.bf16.mxu0 0
  %255 = vmatpush1.bf16.msra.mxu0 %v196
  %256 = vmatprep.subr.bf16.mxu0 0
  %257 = vmatpush1.bf16.msra.mxu0 %v197
  %258 = vmatprep.subr.bf16.mxu0 0
  %259 = vmatpush1.bf16.msra.mxu0 %v198
  %260 = vmatprep.subr.bf16.mxu0 0
  %261 = vmatpush1.bf16.msra.mxu0 %v199
  %262 = vmatprep.subr.bf16.mxu0 0
  %263 = vmatpush1.bf16.msra.mxu0 %v200
  %264 = vmatprep.subr.bf16.mxu0 0
  %265 = vmatpush1.bf16.msra.mxu0 %v201
  %266 = vmatprep.mubr.bf16.mxu0 %v85
  %267 = vmatmul.mubr.bf16.gmra.mrb[0].mxu0 %v84
  %v268 = vpop.f32.mrb[0].mxu0
  %v269 = vadd.f32 %v72, %v268
  %v270 = vpop.f32.mrb[0].mxu0
  %v271 = vpop.f32.mrb[0].mxu0
  %v272 = vadd.f32 %v72, %v271
  %v273 = vpop.f32.mrb[0].mxu0
  %274 = vdwg.mxu0
  %275 = vmatprep.subr.bf16.mxu0 0
  %276 = vmatpush1.bf16.msra.mxu0 %v202
  %277 = vmatprep.subr.bf16.mxu0 0
  %278 = vmatpush1.bf16.msra.mxu0 %v203
  %279 = vmatprep.subr.bf16.mxu0 0
  %280 = vmatpush1.bf16.msra.mxu0 %v204
  %281 = vmatprep.subr.bf16.mxu0 0
  %282 = vmatpush1.bf16.msra.mxu0 %v205
  %283 = vmatprep.subr.bf16.mxu0 0
  %284 = vmatpush1.bf16.msra.mxu0 %v206
  %285 = vmatprep.subr.bf16.mxu0 0
  %286 = vmatpush1.bf16.msra.mxu0 %v207
  %287 = vmatprep.subr.bf16.mxu0 0
  %288 = vmatpush1.bf16.msra.mxu0 %v208
  %289 = vmatprep.subr.bf16.mxu0 0
  %290 = vmatpush1.bf16.msra.mxu0 %v209
  %291 = vmatprep.subr.bf16.mxu0 0
  %292 = vmatpush1.bf16.msra.mxu0 0
  %293 = vmatprep.subr.bf16.mxu0 0
  %294 = vmatpush1.bf16.msra.mxu0 0
  %295 = vmatprep.subr.bf16.mxu0 0
  %296 = vmatpush1.bf16.msra.mxu0 0
  %297 = vmatprep.subr.bf16.mxu0 0
  %298 = vmatpush1.bf16.msra.mxu0 0
  %299 = vmatprep.subr.bf16.mxu0 0
  %300 = vmatpush1.bf16.msra.mxu0 0
  %301 = vmatprep.subr.bf16.mxu0 0
  %302 = vmatpush1.bf16.msra.mxu0 0
  %303 = vmatprep.subr.bf16.mxu0 0
  %304 = vmatpush1.bf16.msra.mxu0 0
  %305 = vmatprep.subr.bf16.mxu0 0
  %306 = vmatpush1.bf16.msra.mxu0 0
  %307 = vmatprep.mubr.bf16.mxu0 0
  %308 = vmatmul.mubr.bf16.gmra.mrb[0].mxu0 %v86
  %v309 = vpop.f32.mrb[0].mxu0
  %v310 = vadd.f32 %v269, %v309
  %v311 = vpop.f32.mrb[0].mxu0
  %v312 = vpop.f32.mrb[0].mxu0
  %v313 = vadd.f32 %v272, %v312
  %v314 = vpop.f32.mrb[0].mxu0
  %315 = vdwg.mxu0
  %v316 = vmax.f32 %v310, 0.0
  %v317 = vmax.f32 %v313, 0.0
  %v318 = vpack.c.bf16 %v317, %v316
  %v320 = vunpack.c.l.b16 %v318
  %v321 = vunpack.c.h.b16 %v318
  %v322 = vpack.c.b16 %v320, %v320
  %v323 = vpack.c.b16 %v321, %v321
  %326 = vst [vmem:[%s3] sm:$0xf] %v322
  %327 = vst [vmem:[%s3 + $0x4] sm:$0xf] %v323
  // Predicated region
  $region14: #{_lambda_.85} parent=0 // pred_check
    _
  $region15: #{_lambda_.85} parent=0 // pred_check_branch
    %329 = sbr.rel (0) target = $region17
  $region16: #{_lambda_.85} parent=0 // pred_region
    _
  $region17: #{_lambda_.85} parent=0 // pred_fallthru
    _
  // Predicated region
  $region18: #{_lambda_.85} parent=0 // pred_check
    _
  $region19: #{_lambda_.85} parent=0 // pred_check_branch
    %331 = sbr.rel (0) target = $region21
  $region20: #{_lambda_.85} parent=0 // pred_region
    _
  $region21: #{_lambda_.85} parent=0 // pred_fallthru
    _

// kernel: _lambda_.86
$region0: #{_lambda_.86}
  #allocation0 [shape = 'u32[]', space=smem, size = 0x4, offset = 0x4, fixed_abs, tag = 'smem constant byte address 0x4 - core index']
  #allocation1 [shape = 'u32[144,128]{1,0:T(1,128)}', space=vmem, size = 0x12000, scoped, tag = 'internal scratch']
  %s0 = inlined_call_operand.vmem [shape: bf16[16,256], index: 0, kind: input, shape index: {}]
  %s1 = inlined_call_operand.vmem [shape: bf16[256,128], index: 1, kind: input, shape index: {}]
  %s2 = inlined_call_operand.vmem [shape: f32[1,128], index: 2, kind: input, shape index: {}]
  %s3 = inlined_call_operand.vmem [shape: bf16[16,128], index: 3, kind: input, shape index: {}]
  %s4 = inlined_call_operand.vmem [shape: bf16[16,128], index: 4, kind: output, shape index: {}]
  %s5 = sld [smem:[#allocation0]]
  $region26: #{_lambda_.86} parent=0
    _
  %s7 = ssub.s32 1, %s5
  %s8 = scalar_select 0, %s7, %s5
  // Predicated region
  $region2: #{_lambda_.86} parent=0 // pred_check
    _
  $region3: #{_lambda_.86} parent=0 // pred_check_branch
    %10 = sbr.rel (0) target = $region5
  $region4: #{_lambda_.86} parent=0 // pred_region
    _
  $region5: #{_lambda_.86} parent=0 // pred_fallthru
    _
  // Predicated region
  $region6: #{_lambda_.86} parent=0 // pred_check
    _
  $region7: #{_lambda_.86} parent=0 // pred_check_branch
    %12 = sbr.rel (0) target = $region9
  $region8: #{_lambda_.86} parent=0 // pred_region
    _
  $region9: #{_lambda_.86} parent=0 // pred_fallthru
    _
  // Predicated region
  $region10: #{_lambda_.86} parent=0 // pred_check
    _
  $region11: #{_lambda_.86} parent=0 // pred_check_branch
    %14 = sbr.rel (0) target = $region13
  $region12: #{_lambda_.86} parent=0 // pred_region
    _
  $region13: #{_lambda_.86} parent=0 // pred_fallthru
    _
  // Predicated region
  $region14: #{_lambda_.86} parent=0 // pred_check
    _
  $region15: #{_lambda_.86} parent=0 // pred_check_branch
    %16 = sbr.rel (0) target = $region17
  $region16: #{_lambda_.86} parent=0 // pred_region
    _
  $region17: #{_lambda_.86} parent=0 // pred_fallthru
    _
  %v18 = vld [vmem:[%s0] sm:$0xff]
  %v19 = vld [vmem:[%s0 + $0x8] sm:$0xff]
  %v20 = vld [vmem:[%s1] sm:$0xf]
  %v21 = vld [vmem:[%s1 + $0x4] sm:$0xf]
  %v22 = vld [vmem:[%s1 + $0x8] sm:$0xf]
  %v23 = vld [vmem:[%s1 + $0xc] sm:$0xf]
  %v24 = vld [vmem:[%s1 + $0x10] sm:$0xf]
  %v25 = vld [vmem:[%s1 + $0x14] sm:$0xf]
  %v26 = vld [vmem:[%s1 + $0x18] sm:$0xf]
  %v27 = vld [vmem:[%s1 + $0x1c] sm:$0xf]
  %v28 = vld [vmem:[%s1 + $0x20] sm:$0xf]
  %v29 = vld [vmem:[%s1 + $0x24] sm:$0xf]
  %v30 = vld [vmem:[%s1 + $0x28] sm:$0xf]
  %v31 = vld [vmem:[%s1 + $0x2c] sm:$0xf]
  %v32 = vld [vmem:[%s1 + $0x30] sm:$0xf]
  %v33 = vld [vmem:[%s1 + $0x34] sm:$0xf]
  %v34 = vld [vmem:[%s1 + $0x38] sm:$0xf]
  %v35 = vld [vmem:[%s1 + $0x3c] sm:$0xf]
  %v36 = vld [vmem:[%s1 + $0x40] sm:$0xf]
  %v37 = vld [vmem:[%s1 + $0x44] sm:$0xf]
  %v38 = vld [vmem:[%s1 + $0x48] sm:$0xf]
  %v39 = vld [vmem:[%s1 + $0x4c] sm:$0xf]
  %v40 = vld [vmem:[%s1 + $0x50] sm:$0xf]
  %v41 = vld [vmem:[%s1 + $0x54] sm:$0xf]
  %v42 = vld [vmem:[%s1 + $0x58] sm:$0xf]
  %v43 = vld [vmem:[%s1 + $0x5c] sm:$0xf]
  %v44 = vld [vmem:[%s1 + $0x60] sm:$0xf]
  %v45 = vld [vmem:[%s1 + $0x64] sm:$0xf]
  %v46 = vld [vmem:[%s1 + $0x68] sm:$0xf]
  %v47 = vld [vmem:[%s1 + $0x6c] sm:$0xf]
  %v48 = vld [vmem:[%s1 + $0x70] sm:$0xf]
  %v49 = vld [vmem:[%s1 + $0x74] sm:$0xf]
  %v50 = vld [vmem:[%s1 + $0x78] sm:$0xf]
  %v51 = vld [vmem:[%s1 + $0x7c] sm:$0xf]
  %v52 = vld [vmem:[%s2] sm:$0x1]
  %v54 = vlaneseq
  %v55 = vshrl.u32 %v54, 7
  %v56 = vsub.s32 0, %v55
  %v57 = vrot.slane %v52, %v56
  %v61 = vunpack.c.l.b16 %v18
  %v62 = vunpack.c.h.b16 %v18
  %v63 = vunpack.c.l.b16 %v19
  %v64 = vunpack.c.h.b16 %v19
  %v65 = vpack.c.b16 %v63, %v61
  %v66 = vpack.c.b16 %v64, %v62
  %v101 = vunpack.c.l.b16 %v20
  %v102 = vunpack.c.l.b16 %v21
  %v103 = vunpack.c.l.b16 %v22
  %v104 = vunpack.c.l.b16 %v23
  %v105 = vunpack.c.l.b16 %v24
  %v106 = vunpack.c.l.b16 %v25
  %v107 = vunpack.c.l.b16 %v26
  %v108 = vunpack.c.l.b16 %v27
  %v109 = vunpack.c.l.b16 %v28
  %v110 = vunpack.c.l.b16 %v29
  %v111 = vunpack.c.l.b16 %v30
  %v112 = vunpack.c.l.b16 %v31
  %v113 = vunpack.c.l.b16 %v32
  %v114 = vunpack.c.l.b16 %v33
  %v115 = vunpack.c.l.b16 %v34
  %v116 = vunpack.c.l.b16 %v35
  %v117 = vunpack.c.l.b16 %v36
  %v118 = vunpack.c.l.b16 %v37
  %v119 = vunpack.c.l.b16 %v38
  %v120 = vunpack.c.l.b16 %v39
  %v121 = vunpack.c.l.b16 %v40
  %v122 = vunpack.c.l.b16 %v41
  %v123 = vunpack.c.l.b16 %v42
  %v124 = vunpack.c.l.b16 %v43
  %v125 = vunpack.c.l.b16 %v44
  %v126 = vunpack.c.l.b16 %v45
  %v127 = vunpack.c.l.b16 %v46
  %v128 = vunpack.c.l.b16 %v47
  %v129 = vunpack.c.l.b16 %v48
  %v130 = vunpack.c.l.b16 %v49
  %v131 = vunpack.c.l.b16 %v50
  %v132 = vunpack.c.l.b16 %v51
  %v133 = vpack.c.b16 %v102, %v101
  %v134 = vpack.c.b16 %v104, %v103
  %v135 = vpack.c.b16 %v106, %v105
  %v136 = vpack.c.b16 %v108, %v107
  %v137 = vpack.c.b16 %v110, %v109
  %v138 = vpack.c.b16 %v112, %v111
  %v139 = vpack.c.b16 %v114, %v113
  %v140 = vpack.c.b16 %v116, %v115
  %v141 = vpack.c.b16 %v118, %v117
  %v142 = vpack.c.b16 %v120, %v119
  %v143 = vpack.c.b16 %v122, %v121
  %v144 = vpack.c.b16 %v124, %v123
  %v145 = vpack.c.b16 %v126, %v125
  %v146 = vpack.c.b16 %v128, %v127
  %v147 = vpack.c.b16 %v130, %v129
  %v148 = vpack.c.b16 %v132, %v131
  %165 = vmatprep.subr.bf16.mxu0 0
  %166 = vmatpush1.bf16.msra.mxu0 %v133
  %167 = vmatprep.subr.bf16.mxu0 0
  %168 = vmatpush1.bf16.msra.mxu0 %v134
  %169 = vmatprep.subr.bf16.mxu0 0
  %170 = vmatpush1.bf16.msra.mxu0 %v135
  %171 = vmatprep.subr.bf16.mxu0 0
  %172 = vmatpush1.bf16.msra.mxu0 %v136
  %173 = vmatprep.subr.bf16.mxu0 0
  %174 = vmatpush1.bf16.msra.mxu0 %v137
  %175 = vmatprep.subr.bf16.mxu0 0
  %176 = vmatpush1.bf16.msra.mxu0 %v138
  %177 = vmatprep.subr.bf16.mxu0 0
  %178 = vmatpush1.bf16.msra.mxu0 %v139
  %179 = vmatprep.subr.bf16.mxu0 0
  %180 = vmatpush1.bf16.msra.mxu0 %v140
  %181 = vmatprep.subr.bf16.mxu0 0
  %182 = vmatpush1.bf16.msra.mxu0 %v141
  %183 = vmatprep.subr.bf16.mxu0 0
  %184 = vmatpush1.bf16.msra.mxu0 %v142
  %185 = vmatprep.subr.bf16.mxu0 0
  %186 = vmatpush1.bf16.msra.mxu0 %v143
  %187 = vmatprep.subr.bf16.mxu0 0
  %188 = vmatpush1.bf16.msra.mxu0 %v144
  %189 = vmatprep.subr.bf16.mxu0 0
  %190 = vmatpush1.bf16.msra.mxu0 %v145
  %191 = vmatprep.subr.bf16.mxu0 0
  %192 = vmatpush1.bf16.msra.mxu0 %v146
  %193 = vmatprep.subr.bf16.mxu0 0
  %194 = vmatpush1.bf16.msra.mxu0 %v147
  %195 = vmatprep.subr.bf16.mxu0 0
  %196 = vmatpush1.bf16.msra.mxu0 %v148
  %197 = vmatprep.mubr.bf16.mxu0 %v66
  %198 = vmatmul.mubr.bf16.gmra.mrb[0].mxu0 %v65
  %v199 = vpop.f32.mrb[0].mxu0
  %v200 = vadd.f32 %v57, %v199
  %v201 = vpop.f32.mrb[0].mxu0
  %v202 = vpop.f32.mrb[0].mxu0
  %v203 = vadd.f32 %v57, %v202
  %v204 = vpop.f32.mrb[0].mxu0
  %205 = vdwg.mxu0
  %v206 = vld [vmem:[%s3] sm:$0xf]
  %v207 = vld [vmem:[%s3 + $0x4] sm:$0xf]
  %v208 = vunpack.c.l.bf16 %v206
  %v209 = vunpack.c.l.bf16 %v207
  %v210 = vadd.f32 %v200, %v208
  %v211 = vadd.f32 %v203, %v209
  %v212 = vmax.f32 %v210, 0.0
  %v213 = vmax.f32 %v211, 0.0
  %v214 = vpack.c.bf16 %v213, %v212
  %v216 = vunpack.c.l.b16 %v214
  %v217 = vunpack.c.h.b16 %v214
  %v218 = vpack.c.b16 %v216, %v216
  %v219 = vpack.c.b16 %v217, %v217
  %222 = vst [vmem:[%s4] sm:$0xf] %v218
  %223 = vst [vmem:[%s4 + $0x4] sm:$0xf] %v219
  // Predicated region
  $region18: #{_lambda_.86} parent=0 // pred_check
    _
  $region19: #{_lambda_.86} parent=0 // pred_check_branch
    %225 = sbr.rel (0) target = $region21
  $region20: #{_lambda_.86} parent=0 // pred_region
    _
  $region21: #{_lambda_.86} parent=0 // pred_fallthru
    _
  // Predicated region
  $region22: #{_lambda_.86} parent=0 // pred_check
    _
  $region23: #{_lambda_.86} parent=0 // pred_check_branch
    %227 = sbr.rel (0) target = $region25
  $region24: #{_lambda_.86} parent=0 // pred_region
    _
  $region25: #{_lambda_.86} parent=0 // pred_fallthru
    _

// kernel: _lambda_.83
$region0: #{_lambda_.83}
  #allocation0 [shape = 'u32[]', space=smem, size = 0x4, offset = 0x4, fixed_abs, tag = 'smem constant byte address 0x4 - core index']
  #allocation1 [shape = 'u32[144,128]{1,0:T(1,128)}', space=vmem, size = 0x12000, scoped, tag = 'internal scratch']
  %s0 = inlined_call_operand.vmem [shape: bf16[16,128], index: 0, kind: input, shape index: {}]
  %s1 = inlined_call_operand.vmem [shape: bf16[16,128], index: 1, kind: input, shape index: {}]
  %s2 = inlined_call_operand.vmem [shape: bf16[16,128], index: 2, kind: input, shape index: {}]
  %s3 = inlined_call_operand.vmem [shape: bf16[16,128], index: 3, kind: input, shape index: {}]
  %s4 = inlined_call_operand.vmem [shape: bf16[16,128], index: 4, kind: output, shape index: {}]
  %s5 = sld [smem:[#allocation0]]
  $region26: #{_lambda_.83} parent=0
    _
  %s7 = ssub.s32 1, %s5
  %s8 = scalar_select 0, %s7, %s5
  // Predicated region
  $region2: #{_lambda_.83} parent=0 // pred_check
    _
  $region3: #{_lambda_.83} parent=0 // pred_check_branch
    %10 = sbr.rel (0) target = $region5
  $region4: #{_lambda_.83} parent=0 // pred_region
    _
  $region5: #{_lambda_.83} parent=0 // pred_fallthru
    _
  // Predicated region
  $region6: #{_lambda_.83} parent=0 // pred_check
    _
  $region7: #{_lambda_.83} parent=0 // pred_check_branch
    %12 = sbr.rel (0) target = $region9
  $region8: #{_lambda_.83} parent=0 // pred_region
    _
  $region9: #{_lambda_.83} parent=0 // pred_fallthru
    _
  // Predicated region
  $region10: #{_lambda_.83} parent=0 // pred_check
    _
  $region11: #{_lambda_.83} parent=0 // pred_check_branch
    %14 = sbr.rel (0) target = $region13
  $region12: #{_lambda_.83} parent=0 // pred_region
    _
  $region13: #{_lambda_.83} parent=0 // pred_fallthru
    _
  // Predicated region
  $region14: #{_lambda_.83} parent=0 // pred_check
    _
  $region15: #{_lambda_.83} parent=0 // pred_check_branch
    %16 = sbr.rel (0) target = $region17
  $region16: #{_lambda_.83} parent=0 // pred_region
    _
  $region17: #{_lambda_.83} parent=0 // pred_fallthru
    _
  %v17 = vld [vmem:[%s0] sm:$0xf]
  %v18 = vld [vmem:[%s0 + $0x4] sm:$0xf]
  %v19 = vld [vmem:[%s1] sm:$0xf]
  %v20 = vld [vmem:[%s1 + $0x4] sm:$0xf]
  %v21 = vmax.bf16 %v17, %v19
  %v22 = vmax.bf16 %v18, %v20
  %v23 = vld [vmem:[%s2] sm:$0xf]
  %v24 = vld [vmem:[%s2 + $0x4] sm:$0xf]
  %v25 = vmax.bf16 %v21, %v23
  %v26 = vmax.bf16 %v22, %v24
  %v27 = vld [vmem:[%s3] sm:$0xf]
  %v28 = vld [vmem:[%s3 + $0x4] sm:$0xf]
  %v29 = vmax.bf16 %v25, %v27
  %v30 = vmax.bf16 %v26, %v28
  %31 = vst [vmem:[%s4] sm:$0xf] %v29
  %32 = vst [vmem:[%s4 + $0x4] sm:$0xf] %v30
  // Predicated region
  $region18: #{_lambda_.83} parent=0 // pred_check
    _
  $region19: #{_lambda_.83} parent=0 // pred_check_branch
    %34 = sbr.rel (0) target = $region21
  $region20: #{_lambda_.83} parent=0 // pred_region
    _
  $region21: #{_lambda_.83} parent=0 // pred_fallthru
    _
  // Predicated region
  $region22: #{_lambda_.83} parent=0 // pred_check
    _
  $region23: #{_lambda_.83} parent=0 // pred_check_branch
    %36 = sbr.rel (0) target = $region25
  $region24: #{_lambda_.83} parent=0 // pred_region
    _
  $region25: #{_lambda_.83} parent=0 // pred_fallthru
    _

// kernel: _lambda_.87
$region0: #{_lambda_.87}
  #allocation0 [shape = 'u32[]', space=smem, size = 0x4, offset = 0x4, fixed_abs, tag = 'smem constant byte address 0x4 - core index']
  #allocation1 [shape = 'u32[144,128]{1,0:T(1,128)}', space=vmem, size = 0x12000, scoped, tag = 'internal scratch']
  %s0 = inlined_call_operand.vmem [shape: bf16[16,128], index: 0, kind: input, shape index: {}]
  %s1 = inlined_call_operand.vmem [shape: bf16[128,128], index: 1, kind: input, shape index: {}]
  %s2 = inlined_call_operand.vmem [shape: f32[1,128], index: 2, kind: input, shape index: {}]
  %s3 = inlined_call_operand.vmem [shape: bf16[16,128], index: 3, kind: output, shape index: {}]
  %s4 = sld [smem:[#allocation0]]
  $region22: #{_lambda_.87} parent=0
    _
  %s6 = ssub.s32 1, %s4
  %s7 = scalar_select 0, %s6, %s4
  // Predicated region
  $region2: #{_lambda_.87} parent=0 // pred_check
    _
  $region3: #{_lambda_.87} parent=0 // pred_check_branch
    %9 = sbr.rel (0) target = $region5
  $region4: #{_lambda_.87} parent=0 // pred_region
    _
  $region5: #{_lambda_.87} parent=0 // pred_fallthru
    _
  // Predicated region
  $region6: #{_lambda_.87} parent=0 // pred_check
    _
  $region7: #{_lambda_.87} parent=0 // pred_check_branch
    %11 = sbr.rel (0) target = $region9
  $region8: #{_lambda_.87} parent=0 // pred_region
    _
  $region9: #{_lambda_.87} parent=0 // pred_fallthru
    _
  // Predicated region
  $region10: #{_lambda_.87} parent=0 // pred_check
    _
  $region11: #{_lambda_.87} parent=0 // pred_check_branch
    %13 = sbr.rel (0) target = $region13
  $region12: #{_lambda_.87} parent=0 // pred_region
    _
  $region13: #{_lambda_.87} parent=0 // pred_fallthru
    _
  %v15 = vld [vmem:[%s0] sm:$0xf]
  %v16 = vld [vmem:[%s0 + $0x4] sm:$0xf]
  %v17 = vld [vmem:[%s1] sm:$0xf]
  %v18 = vld [vmem:[%s1 + $0x4] sm:$0xf]
  %v19 = vld [vmem:[%s1 + $0x8] sm:$0xf]
  %v20 = vld [vmem:[%s1 + $0xc] sm:$0xf]
  %v21 = vld [vmem:[%s1 + $0x10] sm:$0xf]
  %v22 = vld [vmem:[%s1 + $0x14] sm:$0xf]
  %v23 = vld [vmem:[%s1 + $0x18] sm:$0xf]
  %v24 = vld [vmem:[%s1 + $0x1c] sm:$0xf]
  %v25 = vld [vmem:[%s1 + $0x20] sm:$0xf]
  %v26 = vld [vmem:[%s1 + $0x24] sm:$0xf]
  %v27 = vld [vmem:[%s1 + $0x28] sm:$0xf]
  %v28 = vld [vmem:[%s1 + $0x2c] sm:$0xf]
  %v29 = vld [vmem:[%s1 + $0x30] sm:$0xf]
  %v30 = vld [vmem:[%s1 + $0x34] sm:$0xf]
  %v31 = vld [vmem:[%s1 + $0x38] sm:$0xf]
  %v32 = vld [vmem:[%s1 + $0x3c] sm:$0xf]
  %v33 = vld [vmem:[%s2] sm:$0x1]
  %v35 = vlaneseq
  %v36 = vshrl.u32 %v35, 7
  %v37 = vsub.s32 0, %v36
  %v38 = vrot.slane %v33, %v37
  %v42 = vunpack.c.l.b16 %v15
  %v43 = vunpack.c.l.b16 %v16
  %v44 = vpack.c.b16 %v43, %v42
  %v62 = vunpack.c.l.b16 %v17
  %v63 = vunpack.c.l.b16 %v18
  %v64 = vunpack.c.l.b16 %v19
  %v65 = vunpack.c.l.b16 %v20
  %v66 = vunpack.c.l.b16 %v21
  %v67 = vunpack.c.l.b16 %v22
  %v68 = vunpack.c.l.b16 %v23
  %v69 = vunpack.c.l.b16 %v24
  %v70 = vunpack.c.l.b16 %v25
  %v71 = vunpack.c.l.b16 %v26
  %v72 = vunpack.c.l.b16 %v27
  %v73 = vunpack.c.l.b16 %v28
  %v74 = vunpack.c.l.b16 %v29
  %v75 = vunpack.c.l.b16 %v30
  %v76 = vunpack.c.l.b16 %v31
  %v77 = vunpack.c.l.b16 %v32
  %v78 = vpack.c.b16 %v63, %v62
  %v79 = vpack.c.b16 %v65, %v64
  %v80 = vpack.c.b16 %v67, %v66
  %v81 = vpack.c.b16 %v69, %v68
  %v82 = vpack.c.b16 %v71, %v70
  %v83 = vpack.c.b16 %v73, %v72
  %v84 = vpack.c.b16 %v75, %v74
  %v85 = vpack.c.b16 %v77, %v76
  %94 = vmatprep.subr.bf16.mxu0 0
  %95 = vmatpush1.bf16.msra.mxu0 %v78
  %96 = vmatprep.subr.bf16.mxu0 0
  %97 = vmatpush1.bf16.msra.mxu0 %v79
  %98 = vmatprep.subr.bf16.mxu0 0
  %99 = vmatpush1.bf16.msra.mxu0 %v80
  %100 = vmatprep.subr.bf16.mxu0 0
  %101 = vmatpush1.bf16.msra.mxu0 %v81
  %102 = vmatprep.subr.bf16.mxu0 0
  %103 = vmatpush1.bf16.msra.mxu0 %v82
  %104 = vmatprep.subr.bf16.mxu0 0
  %105 = vmatpush1.bf16.msra.mxu0 %v83
  %106 = vmatprep.subr.bf16.mxu0 0
  %107 = vmatpush1.bf16.msra.mxu0 %v84
  %108 = vmatprep.subr.bf16.mxu0 0
  %109 = vmatpush1.bf16.msra.mxu0 %v85
  %110 = vmatprep.subr.bf16.mxu0 0
  %111 = vmatpush1.bf16.msra.mxu0 0
  %112 = vmatprep.subr.bf16.mxu0 0
  %113 = vmatpush1.bf16.msra.mxu0 0
  %114 = vmatprep.subr.bf16.mxu0 0
  %115 = vmatpush1.bf16.msra.mxu0 0
  %116 = vmatprep.subr.bf16.mxu0 0
  %117 = vmatpush1.bf16.msra.mxu0 0
  %118 = vmatprep.subr.bf16.mxu0 0
  %119 = vmatpush1.bf16.msra.mxu0 0
  %120 = vmatprep.subr.bf16.mxu0 0
  %121 = vmatpush1.bf16.msra.mxu0 0
  %122 = vmatprep.subr.bf16.mxu0 0
  %123 = vmatpush1.bf16.msra.mxu0 0
  %124 = vmatprep.subr.bf16.mxu0 0
  %125 = vmatpush1.bf16.msra.mxu0 0
  %126 = vmatprep.mubr.bf16.mxu0 0
  %127 = vmatmul.mubr.bf16.gmra.mrb[0].mxu0 %v44
  %v128 = vpop.f32.mrb[0].mxu0
  %v129 = vadd.f32 %v38, %v128
  %v130 = vpop.f32.mrb[0].mxu0
  %v131 = vpop.f32.mrb[0].mxu0
  %v132 = vadd.f32 %v38, %v131
  %v133 = vpop.f32.mrb[0].mxu0
  %134 = vdwg.mxu0
  %v135 = vmax.f32 %v129, 0.0
  %v136 = vmax.f32 %v132, 0.0
  %v137 = vpack.c.bf16 %v136, %v135
  %v139 = vunpack.c.l.b16 %v137
  %v140 = vunpack.c.h.b16 %v137
  %v141 = vpack.c.b16 %v139, %v139
  %v142 = vpack.c.b16 %v140, %v140
  %145 = vst [vmem:[%s3] sm:$0xf] %v141
  %146 = vst [vmem:[%s3 + $0x4] sm:$0xf] %v142
  // Predicated region
  $region14: #{_lambda_.87} parent=0 // pred_check
    _
  $region15: #{_lambda_.87} parent=0 // pred_check_branch
    %148 = sbr.rel (0) target = $region17
  $region16: #{_lambda_.87} parent=0 // pred_region
    _
  $region17: #{_lambda_.87} parent=0 // pred_fallthru
    _
  // Predicated region
  $region18: #{_lambda_.87} parent=0 // pred_check
    _
  $region19: #{_lambda_.87} parent=0 // pred_check_branch
    %150 = sbr.rel (0) target = $region21
  $region20: #{_lambda_.87} parent=0 // pred_region
    _
  $region21: #{_lambda_.87} parent=0 // pred_fallthru
    _

// kernel: _lambda_.91
$region0: #{_lambda_.91}
  #allocation0 [shape = 'u32[]', space=smem, size = 0x4, offset = 0x4, fixed_abs, tag = 'smem constant byte address 0x4 - core index']
  #allocation1 [shape = 'u32[144,128]{1,0:T(1,128)}', space=vmem, size = 0x12000, scoped, tag = 'internal scratch']
  %s0 = inlined_call_operand.vmem [shape: bf16[16,128], index: 0, kind: input, shape index: {}]
  %s1 = inlined_call_operand.vmem [shape: bf16[128,128], index: 1, kind: input, shape index: {}]
  %s2 = inlined_call_operand.vmem [shape: f32[1,128], index: 2, kind: input, shape index: {}]
  %s3 = inlined_call_operand.vmem [shape: bf16[16,128], index: 3, kind: input, shape index: {}]
  %s4 = inlined_call_operand.vmem [shape: bf16[16,128], index: 4, kind: output, shape index: {}]
  %s5 = sld [smem:[#allocation0]]
  $region26: #{_lambda_.91} parent=0
    _
  %s7 = ssub.s32 1, %s5
  %s8 = scalar_select 0, %s7, %s5
  // Predicated region
  $region2: #{_lambda_.91} parent=0 // pred_check
    _
  $region3: #{_lambda_.91} parent=0 // pred_check_branch
    %10 = sbr.rel (0) target = $region5
  $region4: #{_lambda_.91} parent=0 // pred_region
    _
  $region5: #{_lambda_.91} parent=0 // pred_fallthru
    _
  // Predicated region
  $region6: #{_lambda_.91} parent=0 // pred_check
    _
  $region7: #{_lambda_.91} parent=0 // pred_check_branch
    %12 = sbr.rel (0) target = $region9
  $region8: #{_lambda_.91} parent=0 // pred_region
    _
  $region9: #{_lambda_.91} parent=0 // pred_fallthru
    _
  // Predicated region
  $region10: #{_lambda_.91} parent=0 // pred_check
    _
  $region11: #{_lambda_.91} parent=0 // pred_check_branch
    %14 = sbr.rel (0) target = $region13
  $region12: #{_lambda_.91} parent=0 // pred_region
    _
  $region13: #{_lambda_.91} parent=0 // pred_fallthru
    _
  // Predicated region
  $region14: #{_lambda_.91} parent=0 // pred_check
    _
  $region15: #{_lambda_.91} parent=0 // pred_check_branch
    %16 = sbr.rel (0) target = $region17
  $region16: #{_lambda_.91} parent=0 // pred_region
    _
  $region17: #{_lambda_.91} parent=0 // pred_fallthru
    _
  %v18 = vld [vmem:[%s0] sm:$0xf]
  %v19 = vld [vmem:[%s0 + $0x4] sm:$0xf]
  %v20 = vld [vmem:[%s1] sm:$0xf]
  %v21 = vld [vmem:[%s1 + $0x4] sm:$0xf]
  %v22 = vld [vmem:[%s1 + $0x8] sm:$0xf]
  %v23 = vld [vmem:[%s1 + $0xc] sm:$0xf]
  %v24 = vld [vmem:[%s1 + $0x10] sm:$0xf]
  %v25 = vld [vmem:[%s1 + $0x14] sm:$0xf]
  %v26 = vld [vmem:[%s1 + $0x18] sm:$0xf]
  %v27 = vld [vmem:[%s1 + $0x1c] sm:$0xf]
  %v28 = vld [vmem:[%s1 + $0x20] sm:$0xf]
  %v29 = vld [vmem:[%s1 + $0x24] sm:$0xf]
  %v30 = vld [vmem:[%s1 + $0x28] sm:$0xf]
  %v31 = vld [vmem:[%s1 + $0x2c] sm:$0xf]
  %v32 = vld [vmem:[%s1 + $0x30] sm:$0xf]
  %v33 = vld [vmem:[%s1 + $0x34] sm:$0xf]
  %v34 = vld [vmem:[%s1 + $0x38] sm:$0xf]
  %v35 = vld [vmem:[%s1 + $0x3c] sm:$0xf]
  %v36 = vld [vmem:[%s2] sm:$0x1]
  %v38 = vlaneseq
  %v39 = vshrl.u32 %v38, 7
  %v40 = vsub.s32 0, %v39
  %v41 = vrot.slane %v36, %v40
  %v45 = vunpack.c.l.b16 %v18
  %v46 = vunpack.c.l.b16 %v19
  %v47 = vpack.c.b16 %v46, %v45
  %v65 = vunpack.c.l.b16 %v20
  %v66 = vunpack.c.l.b16 %v21
  %v67 = vunpack.c.l.b16 %v22
  %v68 = vunpack.c.l.b16 %v23
  %v69 = vunpack.c.l.b16 %v24
  %v70 = vunpack.c.l.b16 %v25
  %v71 = vunpack.c.l.b16 %v26
  %v72 = vunpack.c.l.b16 %v27
  %v73 = vunpack.c.l.b16 %v28
  %v74 = vunpack.c.l.b16 %v29
  %v75 = vunpack.c.l.b16 %v30
  %v76 = vunpack.c.l.b16 %v31
  %v77 = vunpack.c.l.b16 %v32
  %v78 = vunpack.c.l.b16 %v33
  %v79 = vunpack.c.l.b16 %v34
  %v80 = vunpack.c.l.b16 %v35
  %v81 = vpack.c.b16 %v66, %v65
  %v82 = vpack.c.b16 %v68, %v67
  %v83 = vpack.c.b16 %v70, %v69
  %v84 = vpack.c.b16 %v72, %v71
  %v85 = vpack.c.b16 %v74, %v73
  %v86 = vpack.c.b16 %v76, %v75
  %v87 = vpack.c.b16 %v78, %v77
  %v88 = vpack.c.b16 %v80, %v79
  %97 = vmatprep.subr.bf16.mxu0 0
  %98 = vmatpush1.bf16.msra.mxu0 %v81
  %99 = vmatprep.subr.bf16.mxu0 0
  %100 = vmatpush1.bf16.msra.mxu0 %v82
  %101 = vmatprep.subr.bf16.mxu0 0
  %102 = vmatpush1.bf16.msra.mxu0 %v83
  %103 = vmatprep.subr.bf16.mxu0 0
  %104 = vmatpush1.bf16.msra.mxu0 %v84
  %105 = vmatprep.subr.bf16.mxu0 0
  %106 = vmatpush1.bf16.msra.mxu0 %v85
  %107 = vmatprep.subr.bf16.mxu0 0
  %108 = vmatpush1.bf16.msra.mxu0 %v86
  %109 = vmatprep.subr.bf16.mxu0 0
  %110 = vmatpush1.bf16.msra.mxu0 %v87
  %111 = vmatprep.subr.bf16.mxu0 0
  %112 = vmatpush1.bf16.msra.mxu0 %v88
  %113 = vmatprep.subr.bf16.mxu0 0
  %114 = vmatpush1.bf16.msra.mxu0 0
  %115 = vmatprep.subr.bf16.mxu0 0
  %116 = vmatpush1.bf16.msra.mxu0 0
  %117 = vmatprep.subr.bf16.mxu0 0
  %118 = vmatpush1.bf16.msra.mxu0 0
  %119 = vmatprep.subr.bf16.mxu0 0
  %120 = vmatpush1.bf16.msra.mxu0 0
  %121 = vmatprep.subr.bf16.mxu0 0
  %122 = vmatpush1.bf16.msra.mxu0 0
  %123 = vmatprep.subr.bf16.mxu0 0
  %124 = vmatpush1.bf16.msra.mxu0 0
  %125 = vmatprep.subr.bf16.mxu0 0
  %126 = vmatpush1.bf16.msra.mxu0 0
  %127 = vmatprep.subr.bf16.mxu0 0
  %128 = vmatpush1.bf16.msra.mxu0 0
  %129 = vmatprep.mubr.bf16.mxu0 0
  %130 = vmatmul.mubr.bf16.gmra.mrb[0].mxu0 %v47
  %v131 = vpop.f32.mrb[0].mxu0
  %v132 = vadd.f32 %v41, %v131
  %v133 = vpop.f32.mrb[0].mxu0
  %v134 = vpop.f32.mrb[0].mxu0
  %v135 = vadd.f32 %v41, %v134
  %v136 = vpop.f32.mrb[0].mxu0
  %137 = vdwg.mxu0
  %v138 = vld [vmem:[%s3] sm:$0xf]
  %v139 = vld [vmem:[%s3 + $0x4] sm:$0xf]
  %v140 = vunpack.c.l.bf16 %v138
  %v141 = vunpack.c.l.bf16 %v139
  %v142 = vadd.f32 %v132, %v140
  %v143 = vadd.f32 %v135, %v141
  %v144 = vmax.f32 %v142, 0.0
  %v145 = vmax.f32 %v143, 0.0
  %v146 = vpack.c.bf16 %v145, %v144
  %v148 = vunpack.c.l.b16 %v146
  %v149 = vunpack.c.h.b16 %v146
  %v150 = vpack.c.b16 %v148, %v148
  %v151 = vpack.c.b16 %v149, %v149
  %154 = vst [vmem:[%s4] sm:$0xf] %v150
  %155 = vst [vmem:[%s4 + $0x4] sm:$0xf] %v151
  // Predicated region
  $region18: #{_lambda_.91} parent=0 // pred_check
    _
  $region19: #{_lambda_.91} parent=0 // pred_check_branch
    %157 = sbr.rel (0) target = $region21
  $region20: #{_lambda_.91} parent=0 // pred_region
    _
  $region21: #{_lambda_.91} parent=0 // pred_fallthru
    _
  // Predicated region
  $region22: #{_lambda_.91} parent=0 // pred_check
    _
  $region23: #{_lambda_.91} parent=0 // pred_check_branch
    %159 = sbr.rel (0) target = $region25
  $region24: #{_lambda_.91} parent=0 // pred_region
    _
  $region25: #{_lambda_.91} parent=0 // pred_fallthru
    _

// kernel: _lambda_.92
$region0: #{_lambda_.92}
  #allocation0 [shape = 'u32[]', space=smem, size = 0x4, offset = 0x4, fixed_abs, tag = 'smem constant byte address 0x4 - core index']
  #allocation1 [shape = 'u32[144,128]{1,0:T(1,128)}', space=vmem, size = 0x12000, scoped, tag = 'internal scratch']
  %s0 = inlined_call_operand.vmem [shape: bf16[16,256], index: 0, kind: input, shape index: {}]
  %s1 = inlined_call_operand.vmem [shape: bf16[256,128], index: 1, kind: input, shape index: {}]
  %s2 = inlined_call_operand.vmem [shape: f32[1,128], index: 2, kind: input, shape index: {}]
  %s3 = inlined_call_operand.vmem [shape: bf16[16,128], index: 3, kind: output, shape index: {}]
  %s4 = sld [smem:[#allocation0]]
  $region22: #{_lambda_.92} parent=0
    _
  %s6 = ssub.s32 1, %s4
  %s7 = scalar_select 0, %s6, %s4
  // Predicated region
  $region2: #{_lambda_.92} parent=0 // pred_check
    _
  $region3: #{_lambda_.92} parent=0 // pred_check_branch
    %9 = sbr.rel (0) target = $region5
  $region4: #{_lambda_.92} parent=0 // pred_region
    _
  $region5: #{_lambda_.92} parent=0 // pred_fallthru
    _
  // Predicated region
  $region6: #{_lambda_.92} parent=0 // pred_check
    _
  $region7: #{_lambda_.92} parent=0 // pred_check_branch
    %11 = sbr.rel (0) target = $region9
  $region8: #{_lambda_.92} parent=0 // pred_region
    _
  $region9: #{_lambda_.92} parent=0 // pred_fallthru
    _
  // Predicated region
  $region10: #{_lambda_.92} parent=0 // pred_check
    _
  $region11: #{_lambda_.92} parent=0 // pred_check_branch
    %13 = sbr.rel (0) target = $region13
  $region12: #{_lambda_.92} parent=0 // pred_region
    _
  $region13: #{_lambda_.92} parent=0 // pred_fallthru
    _
  %v15 = vld [vmem:[%s0] sm:$0xff]
  %v16 = vld [vmem:[%s0 + $0x8] sm:$0xff]
  %v17 = vld [vmem:[%s1] sm:$0xf]
  %v18 = vld [vmem:[%s1 + $0x4] sm:$0xf]
  %v19 = vld [vmem:[%s1 + $0x8] sm:$0xf]
  %v20 = vld [vmem:[%s1 + $0xc] sm:$0xf]
  %v21 = vld [vmem:[%s1 + $0x10] sm:$0xf]
  %v22 = vld [vmem:[%s1 + $0x14] sm:$0xf]
  %v23 = vld [vmem:[%s1 + $0x18] sm:$0xf]
  %v24 = vld [vmem:[%s1 + $0x1c] sm:$0xf]
  %v25 = vld [vmem:[%s1 + $0x20] sm:$0xf]
  %v26 = vld [vmem:[%s1 + $0x24] sm:$0xf]
  %v27 = vld [vmem:[%s1 + $0x28] sm:$0xf]
  %v28 = vld [vmem:[%s1 + $0x2c] sm:$0xf]
  %v29 = vld [vmem:[%s1 + $0x30] sm:$0xf]
  %v30 = vld [vmem:[%s1 + $0x34] sm:$0xf]
  %v31 = vld [vmem:[%s1 + $0x38] sm:$0xf]
  %v32 = vld [vmem:[%s1 + $0x3c] sm:$0xf]
  %v33 = vld [vmem:[%s1 + $0x40] sm:$0xf]
  %v34 = vld [vmem:[%s1 + $0x44] sm:$0xf]
  %v35 = vld [vmem:[%s1 + $0x48] sm:$0xf]
  %v36 = vld [vmem:[%s1 + $0x4c] sm:$0xf]
  %v37 = vld [vmem:[%s1 + $0x50] sm:$0xf]
  %v38 = vld [vmem:[%s1 + $0x54] sm:$0xf]
  %v39 = vld [vmem:[%s1 + $0x58] sm:$0xf]
  %v40 = vld [vmem:[%s1 + $0x5c] sm:$0xf]
  %v41 = vld [vmem:[%s1 + $0x60] sm:$0xf]
  %v42 = vld [vmem:[%s1 + $0x64] sm:$0xf]
  %v43 = vld [vmem:[%s1 + $0x68] sm:$0xf]
  %v44 = vld [vmem:[%s1 + $0x6c] sm:$0xf]
  %v45 = vld [vmem:[%s1 + $0x70] sm:$0xf]
  %v46 = vld [vmem:[%s1 + $0x74] sm:$0xf]
  %v47 = vld [vmem:[%s1 + $0x78] sm:$0xf]
  %v48 = vld [vmem:[%s1 + $0x7c] sm:$0xf]
  %v49 = vld [vmem:[%s2] sm:$0x1]
  %v51 = vlaneseq
  %v52 = vshrl.u32 %v51, 7
  %v53 = vsub.s32 0, %v52
  %v54 = vrot.slane %v49, %v53
  %v58 = vunpack.c.l.b16 %v15
  %v59 = vunpack.c.h.b16 %v15
  %v60 = vunpack.c.l.b16 %v16
  %v61 = vunpack.c.h.b16 %v16
  %v62 = vpack.c.b16 %v60, %v58
  %v63 = vpack.c.b16 %v61, %v59
  %v98 = vunpack.c.l.b16 %v17
  %v99 = vunpack.c.l.b16 %v18
  %v100 = vunpack.c.l.b16 %v19
  %v101 = vunpack.c.l.b16 %v20
  %v102 = vunpack.c.l.b16 %v21
  %v103 = vunpack.c.l.b16 %v22
  %v104 = vunpack.c.l.b16 %v23
  %v105 = vunpack.c.l.b16 %v24
  %v106 = vunpack.c.l.b16 %v25
  %v107 = vunpack.c.l.b16 %v26
  %v108 = vunpack.c.l.b16 %v27
  %v109 = vunpack.c.l.b16 %v28
  %v110 = vunpack.c.l.b16 %v29
  %v111 = vunpack.c.l.b16 %v30
  %v112 = vunpack.c.l.b16 %v31
  %v113 = vunpack.c.l.b16 %v32
  %v114 = vunpack.c.l.b16 %v33
  %v115 = vunpack.c.l.b16 %v34
  %v116 = vunpack.c.l.b16 %v35
  %v117 = vunpack.c.l.b16 %v36
  %v118 = vunpack.c.l.b16 %v37
  %v119 = vunpack.c.l.b16 %v38
  %v120 = vunpack.c.l.b16 %v39
  %v121 = vunpack.c.l.b16 %v40
  %v122 = vunpack.c.l.b16 %v41
  %v123 = vunpack.c.l.b16 %v42
  %v124 = vunpack.c.l.b16 %v43
  %v125 = vunpack.c.l.b16 %v44
  %v126 = vunpack.c.l.b16 %v45
  %v127 = vunpack.c.l.b16 %v46
  %v128 = vunpack.c.l.b16 %v47
  %v129 = vunpack.c.l.b16 %v48
  %v130 = vpack.c.b16 %v99, %v98
  %v131 = vpack.c.b16 %v101, %v100
  %v132 = vpack.c.b16 %v103, %v102
  %v133 = vpack.c.b16 %v105, %v104
  %v134 = vpack.c.b16 %v107, %v106
  %v135 = vpack.c.b16 %v109, %v108
  %v136 = vpack.c.b16 %v111, %v110
  %v137 = vpack.c.b16 %v113, %v112
  %v138 = vpack.c.b16 %v115, %v114
  %v139 = vpack.c.b16 %v117, %v116
  %v140 = vpack.c.b16 %v119, %v118
  %v141 = vpack.c.b16 %v121, %v120
  %v142 = vpack.c.b16 %v123, %v122
  %v143 = vpack.c.b16 %v125, %v124
  %v144 = vpack.c.b16 %v127, %v126
  %v145 = vpack.c.b16 %v129, %v128
  %162 = vmatprep.subr.bf16.mxu0 0
  %163 = vmatpush1.bf16.msra.mxu0 %v130
  %164 = vmatprep.subr.bf16.mxu0 0
  %165 = vmatpush1.bf16.msra.mxu0 %v131
  %166 = vmatprep.subr.bf16.mxu0 0
  %167 = vmatpush1.bf16.msra.mxu0 %v132
  %168 = vmatprep.subr.bf16.mxu0 0
  %169 = vmatpush1.bf16.msra.mxu0 %v133
  %170 = vmatprep.subr.bf16.mxu0 0
  %171 = vmatpush1.bf16.msra.mxu0 %v134
  %172 = vmatprep.subr.bf16.mxu0 0
  %173 = vmatpush1.bf16.msra.mxu0 %v135
  %174 = vmatprep.subr.bf16.mxu0 0
  %175 = vmatpush1.bf16.msra.mxu0 %v136
  %176 = vmatprep.subr.bf16.mxu0 0
  %177 = vmatpush1.bf16.msra.mxu0 %v137
  %178 = vmatprep.subr.bf16.mxu0 0
  %179 = vmatpush1.bf16.msra.mxu0 %v138
  %180 = vmatprep.subr.bf16.mxu0 0
  %181 = vmatpush1.bf16.msra.mxu0 %v139
  %182 = vmatprep.subr.bf16.mxu0 0
  %183 = vmatpush1.bf16.msra.mxu0 %v140
  %184 = vmatprep.subr.bf16.mxu0 0
  %185 = vmatpush1.bf16.msra.mxu0 %v141
  %186 = vmatprep.subr.bf16.mxu0 0
  %187 = vmatpush1.bf16.msra.mxu0 %v142
  %188 = vmatprep.subr.bf16.mxu0 0
  %189 = vmatpush1.bf16.msra.mxu0 %v143
  %190 = vmatprep.subr.bf16.mxu0 0
  %191 = vmatpush1.bf16.msra.mxu0 %v144
  %192 = vmatprep.subr.bf16.mxu0 0
  %193 = vmatpush1.bf16.msra.mxu0 %v145
  %194 = vmatprep.mubr.bf16.mxu0 %v63
  %195 = vmatmul.mubr.bf16.gmra.mrb[0].mxu0 %v62
  %v196 = vpop.f32.mrb[0].mxu0
  %v197 = vadd.f32 %v54, %v196
  %v198 = vpop.f32.mrb[0].mxu0
  %v199 = vpop.f32.mrb[0].mxu0
  %v200 = vadd.f32 %v54, %v199
  %v201 = vpop.f32.mrb[0].mxu0
  %202 = vdwg.mxu0
  %v203 = vmax.f32 %v197, 0.0
  %v204 = vmax.f32 %v200, 0.0
  %v205 = vpack.c.bf16 %v204, %v203
  %v207 = vunpack.c.l.b16 %v205
  %v208 = vunpack.c.h.b16 %v205
  %v209 = vpack.c.b16 %v207, %v207
  %v210 = vpack.c.b16 %v208, %v208
  %213 = vst [vmem:[%s3] sm:$0xf] %v209
  %214 = vst [vmem:[%s3 + $0x4] sm:$0xf] %v210
  // Predicated region
  $region14: #{_lambda_.92} parent=0 // pred_check
    _
  $region15: #{_lambda_.92} parent=0 // pred_check_branch
    %216 = sbr.rel (0) target = $region17
  $region16: #{_lambda_.92} parent=0 // pred_region
    _
  $region17: #{_lambda_.92} parent=0 // pred_fallthru
    _
  // Predicated region
  $region18: #{_lambda_.92} parent=0 // pred_check
    _
  $region19: #{_lambda_.92} parent=0 // pred_check_branch
    %218 = sbr.rel (0) target = $region21
  $region20: #{_lambda_.92} parent=0 // pred_region
    _
  $region21: #{_lambda_.92} parent=0 // pred_fallthru
    _

// kernel: _lambda_.93
$region0: #{_lambda_.93}
  #allocation0 [shape = 'u32[]', space=smem, size = 0x4, offset = 0x4, fixed_abs, tag = 'smem constant byte address 0x4 - core index']
  #allocation1 [shape = 'u32[144,128]{1,0:T(1,128)}', space=vmem, size = 0x12000, scoped, tag = 'internal scratch']
  %s0 = inlined_call_operand.vmem [shape: bf16[16,256], index: 0, kind: input, shape index: {}]
  %s1 = inlined_call_operand.vmem [shape: bf16[256,128], index: 1, kind: input, shape index: {}]
  %s2 = inlined_call_operand.vmem [shape: f32[1,128], index: 2, kind: input, shape index: {}]
  %s3 = inlined_call_operand.vmem [shape: bf16[16,128], index: 3, kind: output, shape index: {}]
  %s4 = sld [smem:[#allocation0]]
  $region22: #{_lambda_.93} parent=0
    _
  %s6 = ssub.s32 1, %s4
  %s7 = scalar_select 0, %s6, %s4
  // Predicated region
  $region2: #{_lambda_.93} parent=0 // pred_check
    _
  $region3: #{_lambda_.93} parent=0 // pred_check_branch
    %9 = sbr.rel (0) target = $region5
  $region4: #{_lambda_.93} parent=0 // pred_region
    _
  $region5: #{_lambda_.93} parent=0 // pred_fallthru
    _
  // Predicated region
  $region6: #{_lambda_.93} parent=0 // pred_check
    _
  $region7: #{_lambda_.93} parent=0 // pred_check_branch
    %11 = sbr.rel (0) target = $region9
  $region8: #{_lambda_.93} parent=0 // pred_region
    _
  $region9: #{_lambda_.93} parent=0 // pred_fallthru
    _
  // Predicated region
  $region10: #{_lambda_.93} parent=0 // pred_check
    _
  $region11: #{_lambda_.93} parent=0 // pred_check_branch
    %13 = sbr.rel (0) target = $region13
  $region12: #{_lambda_.93} parent=0 // pred_region
    _
  $region13: #{_lambda_.93} parent=0 // pred_fallthru
    _
  %v15 = vld [vmem:[%s0] sm:$0xff]
  %v16 = vld [vmem:[%s0 + $0x8] sm:$0xff]
  %v17 = vld [vmem:[%s1] sm:$0xf]
  %v18 = vld [vmem:[%s1 + $0x4] sm:$0xf]
  %v19 = vld [vmem:[%s1 + $0x8] sm:$0xf]
  %v20 = vld [vmem:[%s1 + $0xc] sm:$0xf]
  %v21 = vld [vmem:[%s1 + $0x10] sm:$0xf]
  %v22 = vld [vmem:[%s1 + $0x14] sm:$0xf]
  %v23 = vld [vmem:[%s1 + $0x18] sm:$0xf]
  %v24 = vld [vmem:[%s1 + $0x1c] sm:$0xf]
  %v25 = vld [vmem:[%s1 + $0x20] sm:$0xf]
  %v26 = vld [vmem:[%s1 + $0x24] sm:$0xf]
  %v27 = vld [vmem:[%s1 + $0x28] sm:$0xf]
  %v28 = vld [vmem:[%s1 + $0x2c] sm:$0xf]
  %v29 = vld [vmem:[%s1 + $0x30] sm:$0xf]
  %v30 = vld [vmem:[%s1 + $0x34] sm:$0xf]
  %v31 = vld [vmem:[%s1 + $0x38] sm:$0xf]
  %v32 = vld [vmem:[%s1 + $0x3c] sm:$0xf]
  %v33 = vld [vmem:[%s1 + $0x40] sm:$0xf]
  %v34 = vld [vmem:[%s1 + $0x44] sm:$0xf]
  %v35 = vld [vmem:[%s1 + $0x48] sm:$0xf]
  %v36 = vld [vmem:[%s1 + $0x4c] sm:$0xf]
  %v37 = vld [vmem:[%s1 + $0x50] sm:$0xf]
  %v38 = vld [vmem:[%s1 + $0x54] sm:$0xf]
  %v39 = vld [vmem:[%s1 + $0x58] sm:$0xf]
  %v40 = vld [vmem:[%s1 + $0x5c] sm:$0xf]
  %v41 = vld [vmem:[%s1 + $0x60] sm:$0xf]
  %v42 = vld [vmem:[%s1 + $0x64] sm:$0xf]
  %v43 = vld [vmem:[%s1 + $0x68] sm:$0xf]
  %v44 = vld [vmem:[%s1 + $0x6c] sm:$0xf]
  %v45 = vld [vmem:[%s1 + $0x70] sm:$0xf]
  %v46 = vld [vmem:[%s1 + $0x74] sm:$0xf]
  %v47 = vld [vmem:[%s1 + $0x78] sm:$0xf]
  %v48 = vld [vmem:[%s1 + $0x7c] sm:$0xf]
  %v49 = vld [vmem:[%s2] sm:$0x1]
  %v51 = vlaneseq
  %v52 = vshrl.u32 %v51, 7
  %v53 = vsub.s32 0, %v52
  %v54 = vrot.slane %v49, %v53
  %v58 = vunpack.c.l.b16 %v15
  %v59 = vunpack.c.h.b16 %v15
  %v60 = vunpack.c.l.b16 %v16
  %v61 = vunpack.c.h.b16 %v16
  %v62 = vpack.c.b16 %v60, %v58
  %v63 = vpack.c.b16 %v61, %v59
  %v98 = vunpack.c.l.b16 %v17
  %v99 = vunpack.c.l.b16 %v18
  %v100 = vunpack.c.l.b16 %v19
  %v101 = vunpack.c.l.b16 %v20
  %v102 = vunpack.c.l.b16 %v21
  %v103 = vunpack.c.l.b16 %v22
  %v104 = vunpack.c.l.b16 %v23
  %v105 = vunpack.c.l.b16 %v24
  %v106 = vunpack.c.l.b16 %v25
  %v107 = vunpack.c.l.b16 %v26
  %v108 = vunpack.c.l.b16 %v27
  %v109 = vunpack.c.l.b16 %v28
  %v110 = vunpack.c.l.b16 %v29
  %v111 = vunpack.c.l.b16 %v30
  %v112 = vunpack.c.l.b16 %v31
  %v113 = vunpack.c.l.b16 %v32
  %v114 = vunpack.c.l.b16 %v33
  %v115 = vunpack.c.l.b16 %v34
  %v116 = vunpack.c.l.b16 %v35
  %v117 = vunpack.c.l.b16 %v36
  %v118 = vunpack.c.l.b16 %v37
  %v119 = vunpack.c.l.b16 %v38
  %v120 = vunpack.c.l.b16 %v39
  %v121 = vunpack.c.l.b16 %v40
  %v122 = vunpack.c.l.b16 %v41
  %v123 = vunpack.c.l.b16 %v42
  %v124 = vunpack.c.l.b16 %v43
  %v125 = vunpack.c.l.b16 %v44
  %v126 = vunpack.c.l.b16 %v45
  %v127 = vunpack.c.l.b16 %v46
  %v128 = vunpack.c.l.b16 %v47
  %v129 = vunpack.c.l.b16 %v48
  %v130 = vpack.c.b16 %v99, %v98
  %v131 = vpack.c.b16 %v101, %v100
  %v132 = vpack.c.b16 %v103, %v102
  %v133 = vpack.c.b16 %v105, %v104
  %v134 = vpack.c.b16 %v107, %v106
  %v135 = vpack.c.b16 %v109, %v108
  %v136 = vpack.c.b16 %v111, %v110
  %v137 = vpack.c.b16 %v113, %v112
  %v138 = vpack.c.b16 %v115, %v114
  %v139 = vpack.c.b16 %v117, %v116
  %v140 = vpack.c.b16 %v119, %v118
  %v141 = vpack.c.b16 %v121, %v120
  %v142 = vpack.c.b16 %v123, %v122
  %v143 = vpack.c.b16 %v125, %v124
  %v144 = vpack.c.b16 %v127, %v126
  %v145 = vpack.c.b16 %v129, %v128
  %162 = vmatprep.subr.bf16.mxu0 0
  %163 = vmatpush1.bf16.msra.mxu0 %v130
  %164 = vmatprep.subr.bf16.mxu0 0
  %165 = vmatpush1.bf16.msra.mxu0 %v131
  %166 = vmatprep.subr.bf16.mxu0 0
  %167 = vmatpush1.bf16.msra.mxu0 %v132
  %168 = vmatprep.subr.bf16.mxu0 0
  %169 = vmatpush1.bf16.msra.mxu0 %v133
  %170 = vmatprep.subr.bf16.mxu0 0
  %171 = vmatpush1.bf16.msra.mxu0 %v134
  %172 = vmatprep.subr.bf16.mxu0 0
  %173 = vmatpush1.bf16.msra.mxu0 %v135
  %174 = vmatprep.subr.bf16.mxu0 0
  %175 = vmatpush1.bf16.msra.mxu0 %v136
  %176 = vmatprep.subr.bf16.mxu0 0
  %177 = vmatpush1.bf16.msra.mxu0 %v137
  %178 = vmatprep.subr.bf16.mxu0 0
  %179 = vmatpush1.bf16.msra.mxu0 %v138
  %180 = vmatprep.subr.bf16.mxu0 0
  %181 = vmatpush1.bf16.msra.mxu0 %v139
  %182 = vmatprep.subr.bf16.mxu0 0
  %183 = vmatpush1.bf16.msra.mxu0 %v140
  %184 = vmatprep.subr.bf16.mxu0 0
  %185 = vmatpush1.bf16.msra.mxu0 %v141
  %186 = vmatprep.subr.bf16.mxu0 0
  %187 = vmatpush1.bf16.msra.mxu0 %v142
  %188 = vmatprep.subr.bf16.mxu0 0
  %189 = vmatpush1.bf16.msra.mxu0 %v143
  %190 = vmatprep.subr.bf16.mxu0 0
  %191 = vmatpush1.bf16.msra.mxu0 %v144
  %192 = vmatprep.subr.bf16.mxu0 0
  %193 = vmatpush1.bf16.msra.mxu0 %v145
  %194 = vmatprep.mubr.bf16.mxu0 %v63
  %195 = vmatmul.mubr.bf16.gmra.mrb[0].mxu0 %v62
  %v196 = vpop.f32.mrb[0].mxu0
  %v197 = vadd.f32 %v54, %v196
  %v198 = vpop.f32.mrb[0].mxu0
  %v199 = vpop.f32.mrb[0].mxu0
  %v200 = vadd.f32 %v54, %v199
  %v201 = vpop.f32.mrb[0].mxu0
  %202 = vdwg.mxu0
  %v203 = vpack.c.bf16 %v200, %v197
  %v205 = vunpack.c.l.b16 %v203
  %v206 = vunpack.c.h.b16 %v203
  %v207 = vpack.c.b16 %v205, %v205
  %v208 = vpack.c.b16 %v206, %v206
  %211 = vst [vmem:[%s3] sm:$0xf] %v207
  %212 = vst [vmem:[%s3 + $0x4] sm:$0xf] %v208
  // Predicated region
  $region14: #{_lambda_.93} parent=0 // pred_check
    _
  $region15: #{_lambda_.93} parent=0 // pred_check_branch
    %214 = sbr.rel (0) target = $region17
  $region16: #{_lambda_.93} parent=0 // pred_region
    _
  $region17: #{_lambda_.93} parent=0 // pred_fallthru
    _
  // Predicated region
  $region18: #{_lambda_.93} parent=0 // pred_check
    _
  $region19: #{_lambda_.93} parent=0 // pred_check_branch
    %216 = sbr.rel (0) target = $region21
  $region20: #{_lambda_.93} parent=0 // pred_region
    _
  $region21: #{_lambda_.93} parent=0 // pred_fallthru
    _

</llo_original>
